<compile_context>
chip_gen: v7x
topology: tpu7x:2x2x1
jax: 0.10.0
libtpu: 0.0.40
codegen_flags: <defaults>
</compile_context>

<pallas_src>
import functools
import math

import jax
import jax.numpy as jnp
from jax.experimental import pallas as pl
from jax.experimental.pallas import tpu as pltpu

EPS = 1e-5                      # torch BatchNorm2d default eps
MXU_DTYPE = jnp.bfloat16        # MXU operand dtype (f32 accumulate). Set to jnp.float32 for exact parity.


# --------------------------- in-kernel helpers -------------------------------

def _mxu_dot(a, w):
    """MXU matmul with bf16 operands and f32 accumulation."""
    return jnp.dot(a.astype(MXU_DTYPE), w.astype(MXU_DTYPE),
                   preferred_element_type=jnp.float32)


def _bn_train(x, g, b):
    """BatchNorm2d forward with batch statistics (training mode, biased var).

    x: (M, C) f32 where M = N*H*W; g, b: (1, C)."""
    mean = jnp.mean(x, axis=0, keepdims=True)
    var = jnp.mean(jnp.square(x - mean), axis=0, keepdims=True)
    return (x - mean) * jax.lax.rsqrt(var + EPS) * g + b


def _head(x2d, w1, g1, b1, w2_ref, hpad_ref, N, H, W):
    """conv1(1x1) + BN1 + ReLU + implicit-GEMM 3x3 conv (stride 1, pad 1).

    Returns the pre-BN2 conv2 output, shape (N*H*W, P), f32."""
    P = w1.shape[1]
    M = N * H * W
    # 1x1 conv == plain matmul on the (M, Cin) activation.
    h1 = _mxu_dot(x2d, w1)                                   # (M, P) f32
    h1 = jnp.maximum(_bn_train(h1, g1, b1), 0.0)
    # Implicit GEMM for the 3x3 conv: write h1 into a zero-padded VMEM scratch
    # once, then accumulate 9 shifted-view matmuls.  No im2col in HBM.
    hpad_ref[...] = jnp.zeros_like(hpad_ref)                 # (N, H+2, W+2, P)
    hpad_ref[:, 1:H + 1, 1:W + 1, :] = h1.reshape(N, H, W, P)
    acc = jnp.zeros((M, P), jnp.float32)
    for t in range(9):                                       # static unroll over taps
        ky, kx = divmod(t, 3)
        tap = hpad_ref[:, ky:ky + H, kx:kx + W, :].reshape(M, P)
        acc = acc + _mxu_dot(tap, w2_ref[t])                 # w2_ref[t]: (P, P)
    return acc


def _tail(h2_pre, resid, g2, b2, w3, g3, b3):
    """BN2 + ReLU + conv3(1x1) + BN3 + residual add + final ReLU."""
    h2 = jnp.maximum(_bn_train(h2_pre, g2, b2), 0.0)
    h3 = _bn_train(_mxu_dot(h2, w3), g3, b3)
    return jnp.maximum(h3 + resid, 0.0)


# --------------------------- Pallas kernels ----------------------------------

def _bottleneck_fused_kernel(N, H, W,
                             x_ref, w1_ref, g1_ref, b1_ref, w2_ref,
                             g2_ref, b2_ref, w3_ref, g3_ref, b3_ref,
                             o_ref, hpad_ref):
    """Whole Bottleneck (stride=1, identity residual) in a single launch."""
    x = x_ref[...]                                           # (M, Cin), Cin == 4*planes
    acc = _head(x, w1_ref[...], g1_ref[...], b1_ref[...], w2_ref, hpad_ref, N, H, W)
    o_ref[...] = _tail(acc, x, g2_ref[...], b2_ref[...],
                       w3_ref[...], g3_ref[...], b3_ref[...])


def _stage1_kernel(N, H, W, x_ref, w1_ref, g1_ref, b1_ref, w2_ref,
                   o_ref, hpad_ref):
    """conv1 + BN1 + ReLU + 3x3 conv computed at stride 1 over the full map.

    The stride-s output is obtained in glue by sampling every s-th pixel (exact,
    since the stride-s conv output equals the stride-1 output at positions s*y).
    This avoids strided in-kernel slicing; the extra MXU work is negligible here."""
    o_ref[...] = _head(x_ref[...], w1_ref[...], g1_ref[...], b1_ref[...],
                       w2_ref, hpad_ref, N, H, W)


def _stage2_downsample_kernel(h2_ref, xs_ref, g2_ref, b2_ref,
                              w3_ref, g3_ref, b3_ref,
                              wds_ref, gds_ref, bds_ref, o_ref):
    """BN2+ReLU+conv3+BN3, with the 1x1 shortcut conv + its BN fused in, then
    residual add + final ReLU.  All operands are (Ms, C) 2-D tiles."""
    resid = _bn_train(_mxu_dot(xs_ref[...], wds_ref[...]),
                      gds_ref[...], bds_ref[...])
    o_ref[...] = _tail(h2_ref[...], resid, g2_ref[...], b2_ref[...],
                       w3_ref[...], g3_ref[...], b3_ref[...])


# --------------------------- forward wrapper ---------------------------------

def bottleneck_forward(params, x_nchw):
    """Forward pass matching the PyTorch Bottleneck module (training-mode BN)."""
    stride = params["stride"]
    x = jnp.transpose(x_nchw, (0, 2, 3, 1)).astype(jnp.float32)   # NCHW -> NHWC
    N, H, W, Cin = x.shape
    w1, w2, w3 = params["w1"], params["w2"], params["w3"]
    P = w1.shape[1]
    C4 = w3.shape[1]
    x2d = x.reshape(N * H * W, Cin)
    mx = lambda w: w.astype(MXU_DTYPE)        # MXU-side weights as bf16 (halves weight DMA)

    if params["downsample"] is None:
        # Identity residual => whole block is ONE fused pallas_call.
        assert stride == 1 and Cin == C4, "identity residual requires stride=1 and inplanes == 4*planes"
        out2d = pl.pallas_call(
            functools.partial(_bottleneck_fused_kernel, N, H, W),
            out_shape=jax.ShapeDtypeStruct((N * H * W, C4), jnp.float32),
            scratch_shapes=[pltpu.VMEM((N, H + 2, W + 2, P), jnp.float32)],
        )(x2d, mx(w1), params["g1"], params["b1"], mx(w2),
          params["g2"], params["b2"], mx(w3), params["g3"], params["b3"])
        out = out2d.reshape(N, H, W, C4)
    else:
        # Downsampling block: 2 fused launches.
        h2_full = pl.pallas_call(
            functools.partial(_stage1_kernel, N, H, W),
            out_shape=jax.ShapeDtypeStruct((N * H * W, P), jnp.float32),
            scratch_shapes=[pltpu.VMEM((N, H + 2, W + 2, P), jnp.float32)],
        )(x2d, mx(w1), params["g1"], params["b1"], mx(w2))
        # stride-s 3x3 conv output == stride-1 output sampled every s pixels.
        h2s = h2_full.reshape(N, H, W, P)[:, ::stride, ::stride, :]
        xs = x[:, ::stride, ::stride, :]      # 1x1 stride-s shortcut conv == subsample + matmul
        Ns, Ho, Wo, _ = h2s.shape
        ds = params["downsample"]
        out2d = pl.pallas_call(
            _stage2_downsample_kernel,
            out_shape=jax.ShapeDtypeStruct((Ns * Ho * Wo, C4), jnp.float32),
        )(h2s.reshape(-1, P), xs.reshape(-1, Cin),
          params["g2"], params["b2"], mx(w3), params["g3"], params["b3"],
          mx(ds["w"]), ds["g"], ds["b"])
        out = out2d.reshape(Ns, Ho, Wo, C4)

    return jnp.transpose(out, (0, 3, 1, 2))   # NHWC -> NCHW


# --------------------------- parameter init ----------------------------------

def init_bottleneck_params(key, inplanes, planes, stride=1):
    expansion = 4
    C4 = planes * expansion
    keys = jax.random.split(key, 4)

    def conv_w(k, shape, fan_in):
        return math.sqrt(2.0 / fan_in) * jax.random.normal(k, shape, jnp.float32)

    params = {
        "stride": stride,
        # conv1: 1x1, (Cin, P)
        "w1": conv_w(keys[0], (inplanes, planes), inplanes),
        "g1": jnp.ones((1, planes), jnp.float32),
        "b1": jnp.zeros((1, planes), jnp.float32),
        # conv2: 3x3, taps-major (ky*3+kx, Cin, Cout)
        "w2": conv_w(keys[1], (9, planes, planes), 9 * planes),
        "g2": jnp.ones((1, planes), jnp.float32),
        "b2": jnp.zeros((1, planes), jnp.float32),
        # conv3: 1x1, (P, 4P)
        "w3": conv_w(keys[2], (planes, C4), planes),
        "g3": jnp.ones((1, C4), jnp.float32),
        "b3": jnp.zeros((1, C4), jnp.float32),
    }
    if stride != 1 or inplanes != C4:
        # Standard ResNet downsample: 1x1 conv (stride) + BatchNorm.
        params["downsample"] = {
            "w": conv_w(keys[3], (inplanes, C4), inplanes),
            "g": jnp.ones((1, C4), jnp.float32),
            "b": jnp.zeros((1, C4), jnp.float32),
        }
    else:
        params["downsample"] = None
    return params


# --------------------------- main --------------------------------------------

if __name__ == "__main__":
    key = jax.random.PRNGKey(0)
    k1, k2, kx1, kx2 = jax.random.split(key, 4)

    # Case 1 (module defaults): stride=1, downsample=None -> identity residual.
    # inplanes must equal planes*expansion.  Whole block = ONE fused pallas_call.
    planes = 16
    inplanes = planes * 4                      # 64
    p1 = init_bottleneck_params(k1, inplanes, planes, stride=1)
    x1 = jax.random.normal(kx1, (2, inplanes, 16, 16), jnp.float32)   # NCHW
    y1 = jax.block_until_ready(jax.jit(lambda inp: bottleneck_forward(p1, inp))(x1))
    assert y1.shape == (2, 64, 16, 16) and y1.dtype == jnp.float32

    # Case 2: channel change + stride=2 with a (1x1 conv + BN) downsample shortcut.
    p2 = init_bottleneck_params(k2, 32, planes, stride=2)
    x2 = jax.random.normal(kx2, (2, 32, 16, 16), jnp.float32)         # NCHW
    y2 = jax.block_until_ready(jax.jit(lambda inp: bottleneck_forward(p2, inp))(x2))
    assert y2.shape == (2, 64, 8, 8) and y2.dtype == jnp.float32

    print("KERNEL_OK")
</pallas_src>

<mosaic_0001>
module attributes {stable_mosaic.version = 11 : i64} {
  func.func @_bottleneck_fused_kernel(%arg0: memref<512x64xf32, #tpu.memory_space<vmem>>, %arg1: memref<64x16xbf16, #tpu.memory_space<vmem>>, %arg2: memref<1x16xf32, #tpu.memory_space<vmem>>, %arg3: memref<1x16xf32, #tpu.memory_space<vmem>>, %arg4: memref<9x16x16xbf16, #tpu.memory_space<vmem>>, %arg5: memref<1x16xf32, #tpu.memory_space<vmem>>, %arg6: memref<1x16xf32, #tpu.memory_space<vmem>>, %arg7: memref<16x64xbf16, #tpu.memory_space<vmem>>, %arg8: memref<1x64xf32, #tpu.memory_space<vmem>>, %arg9: memref<1x64xf32, #tpu.memory_space<vmem>>, %arg10: memref<512x64xf32, #tpu.memory_space<vmem>>, %arg11: memref<2x18x18x16xf32, #tpu.memory_space<vmem>>) attributes {dimension_semantics = [], scalar_prefetch = 0 : i64, scratch_operands = 1 : i64, tpu.core_type = #tpu.core_type<tc>} {
    %c0 = arith.constant 0 : index
    %c0_0 = arith.constant 0 : index
    %0 = vector.load %arg0[%c0, %c0_0] : memref<512x64xf32, #tpu.memory_space<vmem>>, vector<512x64xf32>
    %c0_1 = arith.constant 0 : index
    %c0_2 = arith.constant 0 : index
    %1 = vector.load %arg1[%c0_1, %c0_2] : memref<64x16xbf16, #tpu.memory_space<vmem>>, vector<64x16xbf16>
    %c0_3 = arith.constant 0 : index
    %c0_4 = arith.constant 0 : index
    %2 = vector.load %arg2[%c0_3, %c0_4] : memref<1x16xf32, #tpu.memory_space<vmem>>, vector<1x16xf32>
    %c0_5 = arith.constant 0 : index
    %c0_6 = arith.constant 0 : index
    %3 = vector.load %arg3[%c0_5, %c0_6] : memref<1x16xf32, #tpu.memory_space<vmem>>, vector<1x16xf32>
    %4 = arith.truncf %0 : vector<512x64xf32> to vector<512x64xbf16>
    %cst = arith.constant dense<0.000000e+00> : vector<512x16xf32>
    %5 = tpu.matmul %4, %1, %cst {dimension_numbers = #tpu.dot_dimension_numbers<[1], [0], [0], [1], [0, 0, 1, 1], [], []>} : vector<512x64xbf16>, vector<64x16xbf16>, vector<512x16xf32> -> vector<512x16xf32>
    %cst_7 = arith.constant dense<0.000000e+00> : vector<16xf32>
    %6 = vector.multi_reduction <add>, %5, %cst_7 [0] : vector<512x16xf32> to vector<16xf32>
    %7 = vector.shape_cast %6 : vector<16xf32> to vector<1x16xf32>
    %cst_8 = arith.constant 5.120000e+02 : f32
    %8 = vector.broadcast %cst_8 : f32 to vector<1x16xf32>
    %9 = arith.divf %7, %8 : vector<1x16xf32>
    %10 = vector.broadcast %9 : vector<1x16xf32> to vector<512x16xf32>
    %11 = arith.subf %5, %10 : vector<512x16xf32>
    %12 = arith.mulf %11, %11 : vector<512x16xf32>
    %cst_9 = arith.constant dense<0.000000e+00> : vector<16xf32>
    %13 = vector.multi_reduction <add>, %12, %cst_9 [0] : vector<512x16xf32> to vector<16xf32>
    %14 = vector.shape_cast %13 : vector<16xf32> to vector<1x16xf32>
    %cst_10 = arith.constant 5.120000e+02 : f32
    %15 = vector.broadcast %cst_10 : f32 to vector<1x16xf32>
    %16 = arith.divf %14, %15 : vector<1x16xf32>
    %17 = vector.broadcast %9 : vector<1x16xf32> to vector<512x16xf32>
    %18 = arith.subf %5, %17 : vector<512x16xf32>
    %cst_11 = arith.constant 9.99999974E-6 : f32
    %19 = vector.broadcast %cst_11 : f32 to vector<1x16xf32>
    %20 = arith.addf %16, %19 : vector<1x16xf32>
    %21 = math.rsqrt %20 : vector<1x16xf32>
    %22 = vector.broadcast %21 : vector<1x16xf32> to vector<512x16xf32>
    %23 = arith.mulf %18, %22 : vector<512x16xf32>
    %24 = vector.broadcast %2 : vector<1x16xf32> to vector<512x16xf32>
    %25 = arith.mulf %23, %24 : vector<512x16xf32>
    %26 = vector.broadcast %3 : vector<1x16xf32> to vector<512x16xf32>
    %27 = arith.addf %25, %26 : vector<512x16xf32>
    %cst_12 = arith.constant 0.000000e+00 : f32
    %28 = vector.broadcast %cst_12 : f32 to vector<512x16xf32>
    %29 = arith.maximumf %27, %28 : vector<512x16xf32>
    %cst_13 = arith.constant 0.000000e+00 : f32
    %30 = vector.broadcast %cst_13 : f32 to vector<2x18x18x16xf32>
    %c0_14 = arith.constant 0 : index
    %c0_15 = arith.constant 0 : index
    %c0_16 = arith.constant 0 : index
    %c0_17 = arith.constant 0 : index
    %31 = vector.load %arg11[%c0_14, %c0_15, %c0_16, %c0_17] : memref<2x18x18x16xf32, #tpu.memory_space<vmem>>, vector<2x18x18x16xf32>
    tpu.vector_store %arg11[%c0_14, %c0_15, %c0_16, %c0_17], %30 {strides = array<i32>} : memref<2x18x18x16xf32, #tpu.memory_space<vmem>>, vector<2x18x18x16xf32>,
    %32 = vector.shape_cast %29 : vector<512x16xf32> to vector<2x16x16x16xf32>
    %c0_18 = arith.constant 0 : index
    %c1 = arith.constant 1 : index
    %c1_19 = arith.constant 1 : index
    %c0_20 = arith.constant 0 : index
    %33 = vector.load %arg11[%c0_18, %c1, %c1_19, %c0_20] : memref<2x18x18x16xf32, #tpu.memory_space<vmem>>, vector<2x16x16x16xf32>
    tpu.vector_store %arg11[%c0_18, %c1, %c1_19, %c0_20], %32 {strides = array<i32>} : memref<2x18x18x16xf32, #tpu.memory_space<vmem>>, vector<2x16x16x16xf32>,
    %cst_21 = arith.constant 0.000000e+00 : f32
    %34 = vector.broadcast %cst_21 : f32 to vector<512x16xf32>
    %c0_22 = arith.constant 0 : index
    %c0_23 = arith.constant 0 : index
    %c0_24 = arith.constant 0 : index
    %c0_25 = arith.constant 0 : index
    %35 = vector.load %arg11[%c0_22, %c0_23, %c0_24, %c0_25] : memref<2x18x18x16xf32, #tpu.memory_space<vmem>>, vector<2x16x16x16xf32>
    %36 = vector.shape_cast %35 : vector<2x16x16x16xf32> to vector<512x16xf32>
    %c0_26 = arith.constant 0 : index
    %c0_27 = arith.constant 0 : index
    %c0_28 = arith.constant 0 : index
    %37 = vector.load %arg4[%c0_26, %c0_27, %c0_28] : memref<9x16x16xbf16, #tpu.memory_space<vmem>>, vector<1x16x16xbf16>
    %38 = vector.shape_cast %37 : vector<1x16x16xbf16> to vector<16x16xbf16>
    %39 = arith.truncf %36 : vector<512x16xf32> to vector<512x16xbf16>
    %cst_29 = arith.constant dense<0.000000e+00> : vector<512x16xf32>
    %40 = tpu.matmul %39, %38, %cst_29 {dimension_numbers = #tpu.dot_dimension_numbers<[1], [0], [0], [1], [0, 0, 1, 1], [], []>} : vector<512x16xbf16>, vector<16x16xbf16>, vector<512x16xf32> -> vector<512x16xf32>
    %41 = arith.addf %34, %40 : vector<512x16xf32>
    %c0_30 = arith.constant 0 : index
    %c0_31 = arith.constant 0 : index
    %c1_32 = arith.constant 1 : index
    %c0_33 = arith.constant 0 : index
    %42 = vector.load %arg11[%c0_30, %c0_31, %c1_32, %c0_33] : memref<2x18x18x16xf32, #tpu.memory_space<vmem>>, vector<2x16x16x16xf32>
    %43 = vector.shape_cast %42 : vector<2x16x16x16xf32> to vector<512x16xf32>
    %c1_34 = arith.constant 1 : index
    %c0_35 = arith.constant 0 : index
    %c0_36 = arith.constant 0 : index
    %44 = vector.load %arg4[%c1_34, %c0_35, %c0_36] : memref<9x16x16xbf16, #tpu.memory_space<vmem>>, vector<1x16x16xbf16>
    %45 = vector.shape_cast %44 : vector<1x16x16xbf16> to vector<16x16xbf16>
    %46 = arith.truncf %43 : vector<512x16xf32> to vector<512x16xbf16>
    %cst_37 = arith.constant dense<0.000000e+00> : vector<512x16xf32>
    %47 = tpu.matmul %46, %45, %cst_37 {dimension_numbers = #tpu.dot_dimension_numbers<[1], [0], [0], [1], [0, 0, 1, 1], [], []>} : vector<512x16xbf16>, vector<16x16xbf16>, vector<512x16xf32> -> vector<512x16xf32>
    %48 = arith.addf %41, %47 : vector<512x16xf32>
    %c0_38 = arith.constant 0 : index
    %c0_39 = arith.constant 0 : index
    %c2 = arith.constant 2 : index
    %c0_40 = arith.constant 0 : index
    %49 = vector.load %arg11[%c0_38, %c0_39, %c2, %c0_40] : memref<2x18x18x16xf32, #tpu.memory_space<vmem>>, vector<2x16x16x16xf32>
    %50 = vector.shape_cast %49 : vector<2x16x16x16xf32> to vector<512x16xf32>
    %c2_41 = arith.constant 2 : index
    %c0_42 = arith.constant 0 : index
    %c0_43 = arith.constant 0 : index
    %51 = vector.load %arg4[%c2_41, %c0_42, %c0_43] : memref<9x16x16xbf16, #tpu.memory_space<vmem>>, vector<1x16x16xbf16>
    %52 = vector.shape_cast %51 : vector<1x16x16xbf16> to vector<16x16xbf16>
    %53 = arith.truncf %50 : vector<512x16xf32> to vector<512x16xbf16>
    %cst_44 = arith.constant dense<0.000000e+00> : vector<512x16xf32>
    %54 = tpu.matmul %53, %52, %cst_44 {dimension_numbers = #tpu.dot_dimension_numbers<[1], [0], [0], [1], [0, 0, 1, 1], [], []>} : vector<512x16xbf16>, vector<16x16xbf16>, vector<512x16xf32> -> vector<512x16xf32>
    %55 = arith.addf %48, %54 : vector<512x16xf32>
    %c0_45 = arith.constant 0 : index
    %c1_46 = arith.constant 1 : index
    %c0_47 = arith.constant 0 : index
    %c0_48 = arith.constant 0 : index
    %56 = vector.load %arg11[%c0_45, %c1_46, %c0_47, %c0_48] : memref<2x18x18x16xf32, #tpu.memory_space<vmem>>, vector<2x16x16x16xf32>
    %57 = vector.shape_cast %56 : vector<2x16x16x16xf32> to vector<512x16xf32>
    %c3 = arith.constant 3 : index
    %c0_49 = arith.constant 0 : index
    %c0_50 = arith.constant 0 : index
    %58 = vector.load %arg4[%c3, %c0_49, %c0_50] : memref<9x16x16xbf16, #tpu.memory_space<vmem>>, vector<1x16x16xbf16>
    %59 = vector.shape_cast %58 : vector<1x16x16xbf16> to vector<16x16xbf16>
    %60 = arith.truncf %57 : vector<512x16xf32> to vector<512x16xbf16>
    %cst_51 = arith.constant dense<0.000000e+00> : vector<512x16xf32>
    %61 = tpu.matmul %60, %59, %cst_51 {dimension_numbers = #tpu.dot_dimension_numbers<[1], [0], [0], [1], [0, 0, 1, 1], [], []>} : vector<512x16xbf16>, vector<16x16xbf16>, vector<512x16xf32> -> vector<512x16xf32>
    %62 = arith.addf %55, %61 : vector<512x16xf32>
    %c0_52 = arith.constant 0 : index
    %c1_53 = arith.constant 1 : index
    %c1_54 = arith.constant 1 : index
    %c0_55 = arith.constant 0 : index
    %63 = vector.load %arg11[%c0_52, %c1_53, %c1_54, %c0_55] : memref<2x18x18x16xf32, #tpu.memory_space<vmem>>, vector<2x16x16x16xf32>
    %64 = vector.shape_cast %63 : vector<2x16x16x16xf32> to vector<512x16xf32>
    %c4 = arith.constant 4 : index
    %c0_56 = arith.constant 0 : index
    %c0_57 = arith.constant 0 : index
    %65 = vector.load %arg4[%c4, %c0_56, %c0_57] : memref<9x16x16xbf16, #tpu.memory_space<vmem>>, vector<1x16x16xbf16>
    %66 = vector.shape_cast %65 : vector<1x16x16xbf16> to vector<16x16xbf16>
    %67 = arith.truncf %64 : vector<512x16xf32> to vector<512x16xbf16>
    %cst_58 = arith.constant dense<0.000000e+00> : vector<512x16xf32>
    %68 = tpu.matmul %67, %66, %cst_58 {dimension_numbers = #tpu.dot_dimension_numbers<[1], [0], [0], [1], [0, 0, 1, 1], [], []>} : vector<512x16xbf16>, vector<16x16xbf16>, vector<512x16xf32> -> vector<512x16xf32>
    %69 = arith.addf %62, %68 : vector<512x16xf32>
    %c0_59 = arith.constant 0 : index
    %c1_60 = arith.constant 1 : index
    %c2_61 = arith.constant 2 : index
    %c0_62 = arith.constant 0 : index
    %70 = vector.load %arg11[%c0_59, %c1_60, %c2_61, %c0_62] : memref<2x18x18x16xf32, #tpu.memory_space<vmem>>, vector<2x16x16x16xf32>
    %71 = vector.shape_cast %70 : vector<2x16x16x16xf32> to vector<512x16xf32>
    %c5 = arith.constant 5 : index
    %c0_63 = arith.constant 0 : index
    %c0_64 = arith.constant 0 : index
    %72 = vector.load %arg4[%c5, %c0_63, %c0_64] : memref<9x16x16xbf16, #tpu.memory_space<vmem>>, vector<1x16x16xbf16>
    %73 = vector.shape_cast %72 : vector<1x16x16xbf16> to vector<16x16xbf16>
    %74 = arith.truncf %71 : vector<512x16xf32> to vector<512x16xbf16>
    %cst_65 = arith.constant dense<0.000000e+00> : vector<512x16xf32>
    %75 = tpu.matmul %74, %73, %cst_65 {dimension_numbers = #tpu.dot_dimension_numbers<[1], [0], [0], [1], [0, 0, 1, 1], [], []>} : vector<512x16xbf16>, vector<16x16xbf16>, vector<512x16xf32> -> vector<512x16xf32>
    %76 = arith.addf %69, %75 : vector<512x16xf32>
    %c0_66 = arith.constant 0 : index
    %c2_67 = arith.constant 2 : index
    %c0_68 = arith.constant 0 : index
    %c0_69 = arith.constant 0 : index
    %77 = vector.load %arg11[%c0_66, %c2_67, %c0_68, %c0_69] : memref<2x18x18x16xf32, #tpu.memory_space<vmem>>, vector<2x16x16x16xf32>
    %78 = vector.shape_cast %77 : vector<2x16x16x16xf32> to vector<512x16xf32>
    %c6 = arith.constant 6 : index
    %c0_70 = arith.constant 0 : index
    %c0_71 = arith.constant 0 : index
    %79 = vector.load %arg4[%c6, %c0_70, %c0_71] : memref<9x16x16xbf16, #tpu.memory_space<vmem>>, vector<1x16x16xbf16>
    %80 = vector.shape_cast %79 : vector<1x16x16xbf16> to vector<16x16xbf16>
    %81 = arith.truncf %78 : vector<512x16xf32> to vector<512x16xbf16>
    %cst_72 = arith.constant dense<0.000000e+00> : vector<512x16xf32>
    %82 = tpu.matmul %81, %80, %cst_72 {dimension_numbers = #tpu.dot_dimension_numbers<[1], [0], [0], [1], [0, 0, 1, 1], [], []>} : vector<512x16xbf16>, vector<16x16xbf16>, vector<512x16xf32> -> vector<512x16xf32>
    %83 = arith.addf %76, %82 : vector<512x16xf32>
    %c0_73 = arith.constant 0 : index
    %c2_74 = arith.constant 2 : index
    %c1_75 = arith.constant 1 : index
    %c0_76 = arith.constant 0 : index
    %84 = vector.load %arg11[%c0_73, %c2_74, %c1_75, %c0_76] : memref<2x18x18x16xf32, #tpu.memory_space<vmem>>, vector<2x16x16x16xf32>
    %85 = vector.shape_cast %84 : vector<2x16x16x16xf32> to vector<512x16xf32>
    %c7 = arith.constant 7 : index
    %c0_77 = arith.constant 0 : index
    %c0_78 = arith.constant 0 : index
    %86 = vector.load %arg4[%c7, %c0_77, %c0_78] : memref<9x16x16xbf16, #tpu.memory_space<vmem>>, vector<1x16x16xbf16>
    %87 = vector.shape_cast %86 : vector<1x16x16xbf16> to vector<16x16xbf16>
    %88 = arith.truncf %85 : vector<512x16xf32> to vector<512x16xbf16>
    %cst_79 = arith.constant dense<0.000000e+00> : vector<512x16xf32>
    %89 = tpu.matmul %88, %87, %cst_79 {dimension_numbers = #tpu.dot_dimension_numbers<[1], [0], [0], [1], [0, 0, 1, 1], [], []>} : vector<512x16xbf16>, vector<16x16xbf16>, vector<512x16xf32> -> vector<512x16xf32>
    %90 = arith.addf %83, %89 : vector<512x16xf32>
    %c0_80 = arith.constant 0 : index
    %c2_81 = arith.constant 2 : index
    %c2_82 = arith.constant 2 : index
    %c0_83 = arith.constant 0 : index
    %91 = vector.load %arg11[%c0_80, %c2_81, %c2_82, %c0_83] : memref<2x18x18x16xf32, #tpu.memory_space<vmem>>, vector<2x16x16x16xf32>
    %92 = vector.shape_cast %91 : vector<2x16x16x16xf32> to vector<512x16xf32>
    %c8 = arith.constant 8 : index
    %c0_84 = arith.constant 0 : index
    %c0_85 = arith.constant 0 : index
    %93 = vector.load %arg4[%c8, %c0_84, %c0_85] : memref<9x16x16xbf16, #tpu.memory_space<vmem>>, vector<1x16x16xbf16>
    %94 = vector.shape_cast %93 : vector<1x16x16xbf16> to vector<16x16xbf16>
    %95 = arith.truncf %92 : vector<512x16xf32> to vector<512x16xbf16>
    %cst_86 = arith.constant dense<0.000000e+00> : vector<512x16xf32>
    %96 = tpu.matmul %95, %94, %cst_86 {dimension_numbers = #tpu.dot_dimension_numbers<[1], [0], [0], [1], [0, 0, 1, 1], [], []>} : vector<512x16xbf16>, vector<16x16xbf16>, vector<512x16xf32> -> vector<512x16xf32>
    %97 = arith.addf %90, %96 : vector<512x16xf32>
    %c0_87 = arith.constant 0 : index
    %c0_88 = arith.constant 0 : index
    %98 = vector.load %arg5[%c0_87, %c0_88] : memref<1x16xf32, #tpu.memory_space<vmem>>, vector<1x16xf32>
    %c0_89 = arith.constant 0 : index
    %c0_90 = arith.constant 0 : index
    %99 = vector.load %arg6[%c0_89, %c0_90] : memref<1x16xf32, #tpu.memory_space<vmem>>, vector<1x16xf32>
    %c0_91 = arith.constant 0 : index
    %c0_92 = arith.constant 0 : index
    %100 = vector.load %arg7[%c0_91, %c0_92] : memref<16x64xbf16, #tpu.memory_space<vmem>>, vector<16x64xbf16>
    %c0_93 = arith.constant 0 : index
    %c0_94 = arith.constant 0 : index
    %101 = vector.load %arg8[%c0_93, %c0_94] : memref<1x64xf32, #tpu.memory_space<vmem>>, vector<1x64xf32>
    %c0_95 = arith.constant 0 : index
    %c0_96 = arith.constant 0 : index
    %102 = vector.load %arg9[%c0_95, %c0_96] : memref<1x64xf32, #tpu.memory_space<vmem>>, vector<1x64xf32>
    %cst_97 = arith.constant dense<0.000000e+00> : vector<16xf32>
    %103 = vector.multi_reduction <add>, %97, %cst_97 [0] : vector<512x16xf32> to vector<16xf32>
    %104 = vector.shape_cast %103 : vector<16xf32> to vector<1x16xf32>
    %cst_98 = arith.constant 5.120000e+02 : f32
    %105 = vector.broadcast %cst_98 : f32 to vector<1x16xf32>
    %106 = arith.divf %104, %105 : vector<1x16xf32>
    %107 = vector.broadcast %106 : vector<1x16xf32> to vector<512x16xf32>
    %108 = arith.subf %97, %107 : vector<512x16xf32>
    %109 = arith.mulf %108, %108 : vector<512x16xf32>
    %cst_99 = arith.constant dense<0.000000e+00> : vector<16xf32>
    %110 = vector.multi_reduction <add>, %109, %cst_99 [0] : vector<512x16xf32> to vector<16xf32>
    %111 = vector.shape_cast %110 : vector<16xf32> to vector<1x16xf32>
    %cst_100 = arith.constant 5.120000e+02 : f32
    %112 = vector.broadcast %cst_100 : f32 to vector<1x16xf32>
    %113 = arith.divf %111, %112 : vector<1x16xf32>
    %114 = vector.broadcast %106 : vector<1x16xf32> to vector<512x16xf32>
    %115 = arith.subf %97, %114 : vector<512x16xf32>
    %cst_101 = arith.constant 9.99999974E-6 : f32
    %116 = vector.broadcast %cst_101 : f32 to vector<1x16xf32>
    %117 = arith.addf %113, %116 : vector<1x16xf32>
    %118 = math.rsqrt %117 : vector<1x16xf32>
    %119 = vector.broadcast %118 : vector<1x16xf32> to vector<512x16xf32>
    %120 = arith.mulf %115, %119 : vector<512x16xf32>
    %121 = vector.broadcast %98 : vector<1x16xf32> to vector<512x16xf32>
    %122 = arith.mulf %120, %121 : vector<512x16xf32>
    %123 = vector.broadcast %99 : vector<1x16xf32> to vector<512x16xf32>
    %124 = arith.addf %122, %123 : vector<512x16xf32>
    %cst_102 = arith.constant 0.000000e+00 : f32
    %125 = vector.broadcast %cst_102 : f32 to vector<512x16xf32>
    %126 = arith.maximumf %124, %125 : vector<512x16xf32>
    %127 = arith.truncf %126 : vector<512x16xf32> to vector<512x16xbf16>
    %cst_103 = arith.constant dense<0.000000e+00> : vector<512x64xf32>
    %128 = tpu.matmul %127, %100, %cst_103 {dimension_numbers = #tpu.dot_dimension_numbers<[1], [0], [0], [1], [0, 0, 1, 1], [], []>} : vector<512x16xbf16>, vector<16x64xbf16>, vector<512x64xf32> -> vector<512x64xf32>
    %cst_104 = arith.constant dense<0.000000e+00> : vector<64xf32>
    %129 = vector.multi_reduction <add>, %128, %cst_104 [0] : vector<512x64xf32> to vector<64xf32>
    %130 = vector.shape_cast %129 : vector<64xf32> to vector<1x64xf32>
    %cst_105 = arith.constant 5.120000e+02 : f32
    %131 = vector.broadcast %cst_105 : f32 to vector<1x64xf32>
    %132 = arith.divf %130, %131 : vector<1x64xf32>
    %133 = vector.broadcast %132 : vector<1x64xf32> to vector<512x64xf32>
    %134 = arith.subf %128, %133 : vector<512x64xf32>
    %135 = arith.mulf %134, %134 : vector<512x64xf32>
    %cst_106 = arith.constant dense<0.000000e+00> : vector<64xf32>
    %136 = vector.multi_reduction <add>, %135, %cst_106 [0] : vector<512x64xf32> to vector<64xf32>
    %137 = vector.shape_cast %136 : vector<64xf32> to vector<1x64xf32>
    %cst_107 = arith.constant 5.120000e+02 : f32
    %138 = vector.broadcast %cst_107 : f32 to vector<1x64xf32>
    %139 = arith.divf %137, %138 : vector<1x64xf32>
    %140 = vector.broadcast %132 : vector<1x64xf32> to vector<512x64xf32>
    %141 = arith.subf %128, %140 : vector<512x64xf32>
    %cst_108 = arith.constant 9.99999974E-6 : f32
    %142 = vector.broadcast %cst_108 : f32 to vector<1x64xf32>
    %143 = arith.addf %139, %142 : vector<1x64xf32>
    %144 = math.rsqrt %143 : vector<1x64xf32>
    %145 = vector.broadcast %144 : vector<1x64xf32> to vector<512x64xf32>
    %146 = arith.mulf %141, %145 : vector<512x64xf32>
    %147 = vector.broadcast %101 : vector<1x64xf32> to vector<512x64xf32>
    %148 = arith.mulf %146, %147 : vector<512x64xf32>
    %149 = vector.broadcast %102 : vector<1x64xf32> to vector<512x64xf32>
    %150 = arith.addf %148, %149 : vector<512x64xf32>
    %151 = arith.addf %150, %0 : vector<512x64xf32>
    %cst_109 = arith.constant 0.000000e+00 : f32
    %152 = vector.broadcast %cst_109 : f32 to vector<512x64xf32>
    %153 = arith.maximumf %151, %152 : vector<512x64xf32>
    %c0_110 = arith.constant 0 : index
    %c0_111 = arith.constant 0 : index
    %154 = vector.load %arg10[%c0_110, %c0_111] : memref<512x64xf32, #tpu.memory_space<vmem>>, vector<512x64xf32>
    tpu.vector_store %arg10[%c0_110, %c0_111], %153 {strides = array<i32>} : memref<512x64xf32, #tpu.memory_space<vmem>>, vector<512x64xf32>,
    return
  }
}

</mosaic_0001>

<llo_original>
// kernel: _lambda_.1
$region0: #{_lambda_.1}
  #allocation0 [shape = 'u32[]', space=smem, size = 0x4, offset = 0x4, fixed_abs, tag = 'smem constant byte address 0x4 - core index']
  #allocation1 [shape = 'u32[144,128]{1,0:T(1,128)}', space=vmem, size = 0x12000, scoped, tag = 'internal scratch']
  #allocation2 [shape = 'f32[2,18,18,16]{3,2,1,0:T(8,128)}', space=vmem, size = 0x6c000, scoped, tag = 'scratch operand']
  %s0 = inlined_call_operand.hbm [shape: f32[512,64], index: 0, kind: input, shape index: {}]
  %s1 = inlined_call_operand.vmem [shape: bf16[64,16], index: 1, kind: input, shape index: {}]
  %s2 = inlined_call_operand.vmem [shape: f32[1,16], index: 2, kind: input, shape index: {}, may-alias: {2,5}]
  %s3 = inlined_call_operand.vmem [shape: f32[1,16], index: 3, kind: input, shape index: {}, may-alias: {3,6}]
  %s4 = inlined_call_operand.hbm [shape: bf16[9,16,16], index: 4, kind: input, shape index: {}]
  %s5 = inlined_call_operand.vmem [shape: f32[1,16], index: 5, kind: input, shape index: {}, may-alias: {2,5}]
  %s6 = inlined_call_operand.vmem [shape: f32[1,16], index: 6, kind: input, shape index: {}, may-alias: {3,6}]
  %s7 = inlined_call_operand.vmem [shape: bf16[16,64], index: 7, kind: input, shape index: {}]
  %s8 = inlined_call_operand.vmem [shape: f32[1,64], index: 8, kind: input, shape index: {}]
  %s9 = inlined_call_operand.vmem [shape: f32[1,64], index: 9, kind: input, shape index: {}]
  %s10 = inlined_call_operand.hbm [shape: f32[512,64], index: 10, kind: output, shape index: {}]
  %s11 = sld [smem:[#allocation0]]
  $region58: #{_lambda_.1} parent=0
    _
  %s13 = ssub.s32 1, %s11
  %s14 = scalar_select 0, %s13, %s11
  $region1: #{_lambda_.1} parent=0
    #allocation3 [shape = 'u8[262144]{0}', space=vmem, size = 0x40000, scoped, tag = 'input window, operand 0, single buffered']
    #allocation4 [shape = 's32[1]{0}', space=sflag, size = 0x4, scoped, tag = 'scoped memory for _lambda_.1']
    #allocation5 [shape = 's32[1]{0}', space=sflag, size = 0x4, scoped, tag = 'scoped memory for _lambda_.1']
    #allocation6 [shape = 'u8[36864]{0}', space=vmem, size = 0x9000, scoped, tag = 'input window, operand 4, single buffered']
    #allocation7 [shape = 's32[1]{0}', space=sflag, size = 0x4, scoped, tag = 'scoped memory for _lambda_.1']
    #allocation8 [shape = 'u8[262144]{0}', space=vmem, size = 0x40000, scoped, tag = 'output window, operand 0, single buffered']
    %15 = vsyncpa [#allocation4], 0
    %16 = vsyncpa [#allocation7], 0
    %17 = vsyncpa [#allocation5], 0
    // Predicated region
    $region2: #{_lambda_.1} parent=1 // pred_check
      _
    $region3: #{_lambda_.1} parent=1 // pred_check_branch
      %19 = sbr.rel (0) target = $region5
    $region4: #{_lambda_.1} parent=1 // pred_region
      %s21 = ssub.s32 8192, 8192
      %22 = vsyncadd [#allocation4], %s21
      %s23 = sshll.u32 [#allocation3], 4
      %s24 = int_to_ptr.vmem [resolvable:$true] %s23
      %29 = dma.hbm_to_vmem [thread:$0]  %s0, 8192, %s24, [#allocation4], 128, 128, 8
    $region5: #{_lambda_.1} parent=1 // pred_fallthru
      _
    // Predicated region
    $region6: #{_lambda_.1} parent=1 // pred_check
      _
    $region7: #{_lambda_.1} parent=1 // pred_check_branch
      %31 = sbr.rel (0) target = $region9
    $region8: #{_lambda_.1} parent=1 // pred_region
      _
    $region9: #{_lambda_.1} parent=1 // pred_fallthru
      _
    // Predicated region
    $region10: #{_lambda_.1} parent=1 // pred_check
      _
    $region11: #{_lambda_.1} parent=1 // pred_check_branch
      %33 = sbr.rel (0) target = $region13
    $region12: #{_lambda_.1} parent=1 // pred_region
      _
    $region13: #{_lambda_.1} parent=1 // pred_fallthru
      _
    // Predicated region
    $region14: #{_lambda_.1} parent=1 // pred_check
      _
    $region15: #{_lambda_.1} parent=1 // pred_check_branch
      %35 = sbr.rel (0) target = $region17
    $region16: #{_lambda_.1} parent=1 // pred_region
      _
    $region17: #{_lambda_.1} parent=1 // pred_fallthru
      _
    // Predicated region
    $region18: #{_lambda_.1} parent=1 // pred_check
      _
    $region19: #{_lambda_.1} parent=1 // pred_check_branch
      %37 = sbr.rel (0) target = $region21
    $region20: #{_lambda_.1} parent=1 // pred_region
      %s39 = ssub.s32 1152, 1152
      %40 = vsyncadd [#allocation7], %s39
      %s41 = sshll.u32 [#allocation6], 4
      %s42 = int_to_ptr.vmem [resolvable:$true] %s41
      %47 = dma.hbm_to_vmem [thread:$0]  %s4, 1152, %s42, [#allocation7], 64, 64, 4
    $region21: #{_lambda_.1} parent=1 // pred_fallthru
      _
    // Predicated region
    $region22: #{_lambda_.1} parent=1 // pred_check
      _
    $region23: #{_lambda_.1} parent=1 // pred_check_branch
      %49 = sbr.rel (0) target = $region25
    $region24: #{_lambda_.1} parent=1 // pred_region
      _
    $region25: #{_lambda_.1} parent=1 // pred_fallthru
      _
    // Predicated region
    $region26: #{_lambda_.1} parent=1 // pred_check
      _
    $region27: #{_lambda_.1} parent=1 // pred_check_branch
      %51 = sbr.rel (0) target = $region29
    $region28: #{_lambda_.1} parent=1 // pred_region
      _
    $region29: #{_lambda_.1} parent=1 // pred_fallthru
      _
    // Predicated region
    $region30: #{_lambda_.1} parent=1 // pred_check
      _
    $region31: #{_lambda_.1} parent=1 // pred_check_branch
      %53 = sbr.rel (0) target = $region33
    $region32: #{_lambda_.1} parent=1 // pred_region
      _
    $region33: #{_lambda_.1} parent=1 // pred_fallthru
      _
    // Predicated region
    $region34: #{_lambda_.1} parent=1 // pred_check
      _
    $region35: #{_lambda_.1} parent=1 // pred_check_branch
      %55 = sbr.rel (0) target = $region37
    $region36: #{_lambda_.1} parent=1 // pred_region
      _
    $region37: #{_lambda_.1} parent=1 // pred_fallthru
      _
    // Predicated region
    $region38: #{_lambda_.1} parent=1 // pred_check
      _
    $region39: #{_lambda_.1} parent=1 // pred_check_branch
      %57 = sbr.rel (0) target = $region41
    $region40: #{_lambda_.1} parent=1 // pred_region
      _
    $region41: #{_lambda_.1} parent=1 // pred_fallthru
      _
    // Predicated region
    $region42: #{_lambda_.1} parent=1 // pred_check
      _
    $region43: #{_lambda_.1} parent=1 // pred_check_branch
      %59 = sbr.rel (0) target = $region45
    $region44: #{_lambda_.1} parent=1 // pred_region
      %60 = dma.done [#allocation4], 8192
    $region45: #{_lambda_.1} parent=1 // pred_fallthru
      _
    // Predicated region
    $region46: #{_lambda_.1} parent=1 // pred_check
      _
    $region47: #{_lambda_.1} parent=1 // pred_check_branch
      %62 = sbr.rel (0) target = $region49
    $region48: #{_lambda_.1} parent=1 // pred_region
      %63 = dma.done [#allocation7], 1152
    $region49: #{_lambda_.1} parent=1 // pred_fallthru
      _
    %v65 = vld [vmem:[#allocation3] sm:$0xff]
    %v66 = vld [vmem:[#allocation3 + $0x8] sm:$0xff]
    %v67 = vld [vmem:[#allocation3 + $0x10] sm:$0xff]
    %v68 = vld [vmem:[#allocation3 + $0x18] sm:$0xff]
    %v69 = vld [vmem:[#allocation3 + $0x20] sm:$0xff]
    %v70 = vld [vmem:[#allocation3 + $0x28] sm:$0xff]
    %v71 = vld [vmem:[#allocation3 + $0x30] sm:$0xff]
    %v72 = vld [vmem:[#allocation3 + $0x38] sm:$0xff]
    %v73 = vld [vmem:[#allocation3 + $0x40] sm:$0xff]
    %v74 = vld [vmem:[#allocation3 + $0x48] sm:$0xff]
    %v75 = vld [vmem:[#allocation3 + $0x50] sm:$0xff]
    %v76 = vld [vmem:[#allocation3 + $0x58] sm:$0xff]
    %v77 = vld [vmem:[#allocation3 + $0x60] sm:$0xff]
    %v78 = vld [vmem:[#allocation3 + $0x68] sm:$0xff]
    %v79 = vld [vmem:[#allocation3 + $0x70] sm:$0xff]
    %v80 = vld [vmem:[#allocation3 + $0x78] sm:$0xff]
    %v81 = vld [vmem:[#allocation3 + $0x80] sm:$0xff]
    %v82 = vld [vmem:[#allocation3 + $0x88] sm:$0xff]
    %v83 = vld [vmem:[#allocation3 + $0x90] sm:$0xff]
    %v84 = vld [vmem:[#allocation3 + $0x98] sm:$0xff]
    %v85 = vld [vmem:[#allocation3 + $0xa0] sm:$0xff]
    %v86 = vld [vmem:[#allocation3 + $0xa8] sm:$0xff]
    %v87 = vld [vmem:[#allocation3 + $0xb0] sm:$0xff]
    %v88 = vld [vmem:[#allocation3 + $0xb8] sm:$0xff]
    %v89 = vld [vmem:[#allocation3 + $0xc0] sm:$0xff]
    %v90 = vld [vmem:[#allocation3 + $0xc8] sm:$0xff]
    %v91 = vld [vmem:[#allocation3 + $0xd0] sm:$0xff]
    %v92 = vld [vmem:[#allocation3 + $0xd8] sm:$0xff]
    %v93 = vld [vmem:[#allocation3 + $0xe0] sm:$0xff]
    %v94 = vld [vmem:[#allocation3 + $0xe8] sm:$0xff]
    %v95 = vld [vmem:[#allocation3 + $0xf0] sm:$0xff]
    %v96 = vld [vmem:[#allocation3 + $0xf8] sm:$0xff]
    %v97 = vld [vmem:[#allocation3 + $0x100] sm:$0xff]
    %v98 = vld [vmem:[#allocation3 + $0x108] sm:$0xff]
    %v99 = vld [vmem:[#allocation3 + $0x110] sm:$0xff]
    %v100 = vld [vmem:[#allocation3 + $0x118] sm:$0xff]
    %v101 = vld [vmem:[#allocation3 + $0x120] sm:$0xff]
    %v102 = vld [vmem:[#allocation3 + $0x128] sm:$0xff]
    %v103 = vld [vmem:[#allocation3 + $0x130] sm:$0xff]
    %v104 = vld [vmem:[#allocation3 + $0x138] sm:$0xff]
    %v105 = vld [vmem:[#allocation3 + $0x140] sm:$0xff]
    %v106 = vld [vmem:[#allocation3 + $0x148] sm:$0xff]
    %v107 = vld [vmem:[#allocation3 + $0x150] sm:$0xff]
    %v108 = vld [vmem:[#allocation3 + $0x158] sm:$0xff]
    %v109 = vld [vmem:[#allocation3 + $0x160] sm:$0xff]
    %v110 = vld [vmem:[#allocation3 + $0x168] sm:$0xff]
    %v111 = vld [vmem:[#allocation3 + $0x170] sm:$0xff]
    %v112 = vld [vmem:[#allocation3 + $0x178] sm:$0xff]
    %v113 = vld [vmem:[#allocation3 + $0x180] sm:$0xff]
    %v114 = vld [vmem:[#allocation3 + $0x188] sm:$0xff]
    %v115 = vld [vmem:[#allocation3 + $0x190] sm:$0xff]
    %v116 = vld [vmem:[#allocation3 + $0x198] sm:$0xff]
    %v117 = vld [vmem:[#allocation3 + $0x1a0] sm:$0xff]
    %v118 = vld [vmem:[#allocation3 + $0x1a8] sm:$0xff]
    %v119 = vld [vmem:[#allocation3 + $0x1b0] sm:$0xff]
    %v120 = vld [vmem:[#allocation3 + $0x1b8] sm:$0xff]
    %v121 = vld [vmem:[#allocation3 + $0x1c0] sm:$0xff]
    %v122 = vld [vmem:[#allocation3 + $0x1c8] sm:$0xff]
    %v123 = vld [vmem:[#allocation3 + $0x1d0] sm:$0xff]
    %v124 = vld [vmem:[#allocation3 + $0x1d8] sm:$0xff]
    %v125 = vld [vmem:[#allocation3 + $0x1e0] sm:$0xff]
    %v126 = vld [vmem:[#allocation3 + $0x1e8] sm:$0xff]
    %v127 = vld [vmem:[#allocation3 + $0x1f0] sm:$0xff]
    %v128 = vld [vmem:[#allocation3 + $0x1f8] sm:$0xff]
    %v129 = vld [vmem:[%s1] sm:$0xf]
    %v130 = vld [vmem:[%s1 + $0x4] sm:$0xf]
    %v131 = vld [vmem:[%s1 + $0x8] sm:$0xf]
    %v132 = vld [vmem:[%s1 + $0xc] sm:$0xf]
    %v133 = vld [vmem:[%s1 + $0x10] sm:$0xf]
    %v134 = vld [vmem:[%s1 + $0x14] sm:$0xf]
    %v135 = vld [vmem:[%s1 + $0x18] sm:$0xf]
    %v136 = vld [vmem:[%s1 + $0x1c] sm:$0xf]
    %v137 = vld [vmem:[%s2] sm:$0x1]
    %v138 = vld [vmem:[%s3] sm:$0x1]
    %v139 = vpack.c.bf16 %v66, %v65
    %v140 = vpack.c.bf16 %v68, %v67
    %v141 = vpack.c.bf16 %v70, %v69
    %v142 = vpack.c.bf16 %v72, %v71
    %v143 = vpack.c.bf16 %v74, %v73
    %v144 = vpack.c.bf16 %v76, %v75
    %v145 = vpack.c.bf16 %v78, %v77
    %v146 = vpack.c.bf16 %v80, %v79
    %v147 = vpack.c.bf16 %v82, %v81
    %v148 = vpack.c.bf16 %v84, %v83
    %v149 = vpack.c.bf16 %v86, %v85
    %v150 = vpack.c.bf16 %v88, %v87
    %v151 = vpack.c.bf16 %v90, %v89
    %v152 = vpack.c.bf16 %v92, %v91
    %v153 = vpack.c.bf16 %v94, %v93
    %v154 = vpack.c.bf16 %v96, %v95
    %v155 = vpack.c.bf16 %v98, %v97
    %v156 = vpack.c.bf16 %v100, %v99
    %v157 = vpack.c.bf16 %v102, %v101
    %v158 = vpack.c.bf16 %v104, %v103
    %v159 = vpack.c.bf16 %v106, %v105
    %v160 = vpack.c.bf16 %v108, %v107
    %v161 = vpack.c.bf16 %v110, %v109
    %v162 = vpack.c.bf16 %v112, %v111
    %v163 = vpack.c.bf16 %v114, %v113
    %v164 = vpack.c.bf16 %v116, %v115
    %v165 = vpack.c.bf16 %v118, %v117
    %v166 = vpack.c.bf16 %v120, %v119
    %v167 = vpack.c.bf16 %v122, %v121
    %v168 = vpack.c.bf16 %v124, %v123
    %v169 = vpack.c.bf16 %v126, %v125
    %v170 = vpack.c.bf16 %v128, %v127
    %v179 = vunpack.c.l.b16 %v129
    %v180 = vunpack.c.l.b16 %v130
    %v181 = vunpack.c.l.b16 %v131
    %v182 = vunpack.c.l.b16 %v132
    %v183 = vunpack.c.l.b16 %v133
    %v184 = vunpack.c.l.b16 %v134
    %v185 = vunpack.c.l.b16 %v135
    %v186 = vunpack.c.l.b16 %v136
    %v187 = vpack.c.b16 %v180, %v179
    %v188 = vpack.c.b16 %v182, %v181
    %v189 = vpack.c.b16 %v184, %v183
    %v190 = vpack.c.b16 %v186, %v185
    %vm195 = vcmask 523264
    %v197 = vsel %vm195, %v139, 0
    %v200 = vsel %vm195, %v140, 0
    %v203 = vsel %vm195, %v141, 0
    %v206 = vsel %vm195, %v142, 0
    %v209 = vsel %vm195, %v143, 0
    %v212 = vsel %vm195, %v144, 0
    %v215 = vsel %vm195, %v145, 0
    %v218 = vsel %vm195, %v146, 0
    %v221 = vsel %vm195, %v147, 0
    %v224 = vsel %vm195, %v148, 0
    %v227 = vsel %vm195, %v149, 0
    %v230 = vsel %vm195, %v150, 0
    %v233 = vsel %vm195, %v151, 0
    %v236 = vsel %vm195, %v152, 0
    %v239 = vsel %vm195, %v153, 0
    %v242 = vsel %vm195, %v154, 0
    %v245 = vsel %vm195, %v155, 0
    %v248 = vsel %vm195, %v156, 0
    %v251 = vsel %vm195, %v157, 0
    %v254 = vsel %vm195, %v158, 0
    %v257 = vsel %vm195, %v159, 0
    %v260 = vsel %vm195, %v160, 0
    %v263 = vsel %vm195, %v161, 0
    %v266 = vsel %vm195, %v162, 0
    %v269 = vsel %vm195, %v163, 0
    %v272 = vsel %vm195, %v164, 0
    %v275 = vsel %vm195, %v165, 0
    %v278 = vsel %vm195, %v166, 0
    %v281 = vsel %vm195, %v167, 0
    %v284 = vsel %vm195, %v168, 0
    %v287 = vsel %vm195, %v169, 0
    %v290 = vsel %vm195, %v170, 0
    %292 = vmatprep.subr.bf16.mxu0 0
    %293 = vmatpush1.bf16.msra.mxu0 %v187
    %294 = vmatprep.subr.bf16.mxu0 0
    %295 = vmatpush1.bf16.msra.mxu0 %v188
    %296 = vmatprep.subr.bf16.mxu0 0
    %297 = vmatpush1.bf16.msra.mxu0 %v189
    %298 = vmatprep.subr.bf16.mxu0 0
    %299 = vmatpush1.bf16.msra.mxu0 %v190
    %300 = vmatprep.subr.bf16.mxu0 0
    %301 = vmatpush1.bf16.msra.mxu0 0
    %302 = vmatprep.subr.bf16.mxu0 0
    %303 = vmatpush1.bf16.msra.mxu0 0
    %304 = vmatprep.subr.bf16.mxu0 0
    %305 = vmatpush1.bf16.msra.mxu0 0
    %306 = vmatprep.subr.bf16.mxu0 0
    %307 = vmatpush1.bf16.msra.mxu0 0
    %308 = vmatprep.subr.bf16.mxu0 0
    %309 = vmatpush1.bf16.msra.mxu0 0
    %310 = vmatprep.subr.bf16.mxu0 0
    %311 = vmatpush1.bf16.msra.mxu0 0
    %312 = vmatprep.subr.bf16.mxu0 0
    %313 = vmatpush1.bf16.msra.mxu0 0
    %314 = vmatprep.subr.bf16.mxu0 0
    %315 = vmatpush1.bf16.msra.mxu0 0
    %316 = vmatprep.subr.bf16.mxu0 0
    %317 = vmatpush1.bf16.msra.mxu0 0
    %318 = vmatprep.subr.bf16.mxu0 0
    %319 = vmatpush1.bf16.msra.mxu0 0
    %320 = vmatprep.subr.bf16.mxu0 0
    %321 = vmatpush1.bf16.msra.mxu0 0
    %322 = vmatprep.subr.bf16.mxu0 0
    %323 = vmatpush1.bf16.msra.mxu0 0
    %324 = vmatprep.mubr.bf16.mxu0 0
    %325 = vmatmul.mubr.bf16.gmra.mrb[0].mxu0 %v197
    %v326 = vpop.f32.mrb[0].mxu0
    %v327 = vadd.f32 0.0, %v326
    %v328 = vpop.f32.mrb[0].mxu0
    %v329 = vpop.f32.mrb[0].mxu0
    %v330 = vadd.f32 0.0, %v329
    %v331 = vpop.f32.mrb[0].mxu0
    %332 = vmatprep.mubr.bf16.mxu0 0
    %333 = vmatmul.mubr.bf16.gmra.mrb[0].mxu0 %v200
    %v334 = vpop.f32.mrb[0].mxu0
    %v335 = vadd.f32 0.0, %v334
    %v336 = vpop.f32.mrb[0].mxu0
    %v337 = vpop.f32.mrb[0].mxu0
    %v338 = vadd.f32 0.0, %v337
    %v339 = vpop.f32.mrb[0].mxu0
    %340 = vmatprep.mubr.bf16.mxu0 0
    %341 = vmatmul.mubr.bf16.gmra.mrb[0].mxu0 %v203
    %v342 = vpop.f32.mrb[0].mxu0
    %v343 = vadd.f32 0.0, %v342
    %v344 = vpop.f32.mrb[0].mxu0
    %v345 = vpop.f32.mrb[0].mxu0
    %v346 = vadd.f32 0.0, %v345
    %v347 = vpop.f32.mrb[0].mxu0
    %348 = vmatprep.mubr.bf16.mxu0 0
    %349 = vmatmul.mubr.bf16.gmra.mrb[0].mxu0 %v206
    %v350 = vpop.f32.mrb[0].mxu0
    %v351 = vadd.f32 0.0, %v350
    %v352 = vpop.f32.mrb[0].mxu0
    %v353 = vpop.f32.mrb[0].mxu0
    %v354 = vadd.f32 0.0, %v353
    %v355 = vpop.f32.mrb[0].mxu0
    %356 = vmatprep.mubr.bf16.mxu0 0
    %357 = vmatmul.mubr.bf16.gmra.mrb[0].mxu0 %v209
    %v358 = vpop.f32.mrb[0].mxu0
    %v359 = vadd.f32 0.0, %v358
    %v360 = vpop.f32.mrb[0].mxu0
    %v361 = vpop.f32.mrb[0].mxu0
    %v362 = vadd.f32 0.0, %v361
    %v363 = vpop.f32.mrb[0].mxu0
    %364 = vmatprep.mubr.bf16.mxu0 0
    %365 = vmatmul.mubr.bf16.gmra.mrb[0].mxu0 %v212
    %v366 = vpop.f32.mrb[0].mxu0
    %v367 = vadd.f32 0.0, %v366
    %v368 = vpop.f32.mrb[0].mxu0
    %v369 = vpop.f32.mrb[0].mxu0
    %v370 = vadd.f32 0.0, %v369
    %v371 = vpop.f32.mrb[0].mxu0
    %372 = vmatprep.mubr.bf16.mxu0 0
    %373 = vmatmul.mubr.bf16.gmra.mrb[0].mxu0 %v215
    %v374 = vpop.f32.mrb[0].mxu0
    %v375 = vadd.f32 0.0, %v374
    %v376 = vpop.f32.mrb[0].mxu0
    %v377 = vpop.f32.mrb[0].mxu0
    %v378 = vadd.f32 0.0, %v377
    %v379 = vpop.f32.mrb[0].mxu0
    %380 = vmatprep.mubr.bf16.mxu0 0
    %381 = vmatmul.mubr.bf16.gmra.mrb[0].mxu0 %v218
    %v382 = vpop.f32.mrb[0].mxu0
    %v383 = vadd.f32 0.0, %v382
    %v384 = vpop.f32.mrb[0].mxu0
    %v385 = vpop.f32.mrb[0].mxu0
    %v386 = vadd.f32 0.0, %v385
    %v387 = vpop.f32.mrb[0].mxu0
    %388 = vmatprep.mubr.bf16.mxu0 0
    %389 = vmatmul.mubr.bf16.gmra.mrb[0].mxu0 %v221
    %v390 = vpop.f32.mrb[0].mxu0
    %v391 = vadd.f32 0.0, %v390
    %v392 = vpop.f32.mrb[0].mxu0
    %v393 = vpop.f32.mrb[0].mxu0
    %v394 = vadd.f32 0.0, %v393
    %v395 = vpop.f32.mrb[0].mxu0
    %396 = vmatprep.mubr.bf16.mxu0 0
    %397 = vmatmul.mubr.bf16.gmra.mrb[0].mxu0 %v224
    %v398 = vpop.f32.mrb[0].mxu0
    %v399 = vadd.f32 0.0, %v398
    %v400 = vpop.f32.mrb[0].mxu0
    %v401 = vpop.f32.mrb[0].mxu0
    %v402 = vadd.f32 0.0, %v401
    %v403 = vpop.f32.mrb[0].mxu0
    %404 = vmatprep.mubr.bf16.mxu0 0
    %405 = vmatmul.mubr.bf16.gmra.mrb[0].mxu0 %v227
    %v406 = vpop.f32.mrb[0].mxu0
    %v407 = vadd.f32 0.0, %v406
    %v408 = vpop.f32.mrb[0].mxu0
    %v409 = vpop.f32.mrb[0].mxu0
    %v410 = vadd.f32 0.0, %v409
    %v411 = vpop.f32.mrb[0].mxu0
    %412 = vmatprep.mubr.bf16.mxu0 0
    %413 = vmatmul.mubr.bf16.gmra.mrb[0].mxu0 %v230
    %v414 = vpop.f32.mrb[0].mxu0
    %v415 = vadd.f32 0.0, %v414
    %v416 = vpop.f32.mrb[0].mxu0
    %v417 = vpop.f32.mrb[0].mxu0
    %v418 = vadd.f32 0.0, %v417
    %v419 = vpop.f32.mrb[0].mxu0
    %420 = vmatprep.mubr.bf16.mxu0 0
    %421 = vmatmul.mubr.bf16.gmra.mrb[0].mxu0 %v233
    %v422 = vpop.f32.mrb[0].mxu0
    %v423 = vadd.f32 0.0, %v422
    %v424 = vpop.f32.mrb[0].mxu0
    %v425 = vpop.f32.mrb[0].mxu0
    %v426 = vadd.f32 0.0, %v425
    %v427 = vpop.f32.mrb[0].mxu0
    %428 = vmatprep.mubr.bf16.mxu0 0
    %429 = vmatmul.mubr.bf16.gmra.mrb[0].mxu0 %v236
    %v430 = vpop.f32.mrb[0].mxu0
    %v431 = vadd.f32 0.0, %v430
    %v432 = vpop.f32.mrb[0].mxu0
    %v433 = vpop.f32.mrb[0].mxu0
    %v434 = vadd.f32 0.0, %v433
    %v435 = vpop.f32.mrb[0].mxu0
    %436 = vmatprep.mubr.bf16.mxu0 0
    %437 = vmatmul.mubr.bf16.gmra.mrb[0].mxu0 %v239
    %v438 = vpop.f32.mrb[0].mxu0
    %v439 = vadd.f32 0.0, %v438
    %v440 = vpop.f32.mrb[0].mxu0
    %v441 = vpop.f32.mrb[0].mxu0
    %v442 = vadd.f32 0.0, %v441
    %v443 = vpop.f32.mrb[0].mxu0
    %444 = vmatprep.mubr.bf16.mxu0 0
    %445 = vmatmul.mubr.bf16.gmra.mrb[0].mxu0 %v242
    %v446 = vpop.f32.mrb[0].mxu0
    %v447 = vadd.f32 0.0, %v446
    %v448 = vpop.f32.mrb[0].mxu0
    %v449 = vpop.f32.mrb[0].mxu0
    %v450 = vadd.f32 0.0, %v449
    %v451 = vpop.f32.mrb[0].mxu0
    %452 = vmatprep.mubr.bf16.mxu0 0
    %453 = vmatmul.mubr.bf16.gmra.mrb[0].mxu0 %v245
    %v454 = vpop.f32.mrb[0].mxu0
    %v455 = vadd.f32 0.0, %v454
    %v456 = vpop.f32.mrb[0].mxu0
    %v457 = vpop.f32.mrb[0].mxu0
    %v458 = vadd.f32 0.0, %v457
    %v459 = vpop.f32.mrb[0].mxu0
    %460 = vmatprep.mubr.bf16.mxu0 0
    %461 = vmatmul.mubr.bf16.gmra.mrb[0].mxu0 %v248
    %v462 = vpop.f32.mrb[0].mxu0
    %v463 = vadd.f32 0.0, %v462
    %v464 = vpop.f32.mrb[0].mxu0
    %v465 = vpop.f32.mrb[0].mxu0
    %v466 = vadd.f32 0.0, %v465
    %v467 = vpop.f32.mrb[0].mxu0
    %468 = vmatprep.mubr.bf16.mxu0 0
    %469 = vmatmul.mubr.bf16.gmra.mrb[0].mxu0 %v251
    %v470 = vpop.f32.mrb[0].mxu0
    %v471 = vadd.f32 0.0, %v470
    %v472 = vpop.f32.mrb[0].mxu0
    %v473 = vpop.f32.mrb[0].mxu0
    %v474 = vadd.f32 0.0, %v473
    %v475 = vpop.f32.mrb[0].mxu0
    %476 = vmatprep.mubr.bf16.mxu0 0
    %477 = vmatmul.mubr.bf16.gmra.mrb[0].mxu0 %v254
    %v478 = vpop.f32.mrb[0].mxu0
    %v479 = vadd.f32 0.0, %v478
    %v480 = vpop.f32.mrb[0].mxu0
    %v481 = vpop.f32.mrb[0].mxu0
    %v482 = vadd.f32 0.0, %v481
    %v483 = vpop.f32.mrb[0].mxu0
    %484 = vmatprep.mubr.bf16.mxu0 0
    %485 = vmatmul.mubr.bf16.gmra.mrb[0].mxu0 %v257
    %v486 = vpop.f32.mrb[0].mxu0
    %v487 = vadd.f32 0.0, %v486
    %v488 = vpop.f32.mrb[0].mxu0
    %v489 = vpop.f32.mrb[0].mxu0
    %v490 = vadd.f32 0.0, %v489
    %v491 = vpop.f32.mrb[0].mxu0
    %492 = vmatprep.mubr.bf16.mxu0 0
    %493 = vmatmul.mubr.bf16.gmra.mrb[0].mxu0 %v260
    %v494 = vpop.f32.mrb[0].mxu0
    %v495 = vadd.f32 0.0, %v494
    %v496 = vpop.f32.mrb[0].mxu0
    %v497 = vpop.f32.mrb[0].mxu0
    %v498 = vadd.f32 0.0, %v497
    %v499 = vpop.f32.mrb[0].mxu0
    %500 = vmatprep.mubr.bf16.mxu0 0
    %501 = vmatmul.mubr.bf16.gmra.mrb[0].mxu0 %v263
    %v502 = vpop.f32.mrb[0].mxu0
    %v503 = vadd.f32 0.0, %v502
    %v504 = vpop.f32.mrb[0].mxu0
    %v505 = vpop.f32.mrb[0].mxu0
    %v506 = vadd.f32 0.0, %v505
    %v507 = vpop.f32.mrb[0].mxu0
    %508 = vmatprep.mubr.bf16.mxu0 0
    %509 = vmatmul.mubr.bf16.gmra.mrb[0].mxu0 %v266
    %v510 = vpop.f32.mrb[0].mxu0
    %v511 = vadd.f32 0.0, %v510
    %v512 = vpop.f32.mrb[0].mxu0
    %v513 = vpop.f32.mrb[0].mxu0
    %v514 = vadd.f32 0.0, %v513
    %v515 = vpop.f32.mrb[0].mxu0
    %516 = vmatprep.mubr.bf16.mxu0 0
    %517 = vmatmul.mubr.bf16.gmra.mrb[0].mxu0 %v269
    %v518 = vpop.f32.mrb[0].mxu0
    %v519 = vadd.f32 0.0, %v518
    %v520 = vpop.f32.mrb[0].mxu0
    %v521 = vpop.f32.mrb[0].mxu0
    %v522 = vadd.f32 0.0, %v521
    %v523 = vpop.f32.mrb[0].mxu0
    %524 = vmatprep.mubr.bf16.mxu0 0
    %525 = vmatmul.mubr.bf16.gmra.mrb[0].mxu0 %v272
    %v526 = vpop.f32.mrb[0].mxu0
    %v527 = vadd.f32 0.0, %v526
    %v528 = vpop.f32.mrb[0].mxu0
    %v529 = vpop.f32.mrb[0].mxu0
    %v530 = vadd.f32 0.0, %v529
    %v531 = vpop.f32.mrb[0].mxu0
    %532 = vmatprep.mubr.bf16.mxu0 0
    %533 = vmatmul.mubr.bf16.gmra.mrb[0].mxu0 %v275
    %v534 = vpop.f32.mrb[0].mxu0
    %v535 = vadd.f32 0.0, %v534
    %v536 = vpop.f32.mrb[0].mxu0
    %v537 = vpop.f32.mrb[0].mxu0
    %v538 = vadd.f32 0.0, %v537
    %v539 = vpop.f32.mrb[0].mxu0
    %540 = vmatprep.mubr.bf16.mxu0 0
    %541 = vmatmul.mubr.bf16.gmra.mrb[0].mxu0 %v278
    %v542 = vpop.f32.mrb[0].mxu0
    %v543 = vadd.f32 0.0, %v542
    %v544 = vpop.f32.mrb[0].mxu0
    %v545 = vpop.f32.mrb[0].mxu0
    %v546 = vadd.f32 0.0, %v545
    %v547 = vpop.f32.mrb[0].mxu0
    %548 = vmatprep.mubr.bf16.mxu0 0
    %549 = vmatmul.mubr.bf16.gmra.mrb[0].mxu0 %v281
    %v550 = vpop.f32.mrb[0].mxu0
    %v551 = vadd.f32 0.0, %v550
    %v552 = vpop.f32.mrb[0].mxu0
    %v553 = vpop.f32.mrb[0].mxu0
    %v554 = vadd.f32 0.0, %v553
    %v555 = vpop.f32.mrb[0].mxu0
    %556 = vmatprep.mubr.bf16.mxu0 0
    %557 = vmatmul.mubr.bf16.gmra.mrb[0].mxu0 %v284
    %v558 = vpop.f32.mrb[0].mxu0
    %v559 = vadd.f32 0.0, %v558
    %v560 = vpop.f32.mrb[0].mxu0
    %v561 = vpop.f32.mrb[0].mxu0
    %v562 = vadd.f32 0.0, %v561
    %v563 = vpop.f32.mrb[0].mxu0
    %564 = vmatprep.mubr.bf16.mxu0 0
    %565 = vmatmul.mubr.bf16.gmra.mrb[0].mxu0 %v287
    %v566 = vpop.f32.mrb[0].mxu0
    %v567 = vadd.f32 0.0, %v566
    %v568 = vpop.f32.mrb[0].mxu0
    %v569 = vpop.f32.mrb[0].mxu0
    %v570 = vadd.f32 0.0, %v569
    %v571 = vpop.f32.mrb[0].mxu0
    %572 = vmatprep.mubr.bf16.mxu0 0
    %573 = vmatmul.mubr.bf16.gmra.mrb[0].mxu0 %v290
    %v574 = vpop.f32.mrb[0].mxu0
    %v575 = vadd.f32 0.0, %v574
    %v576 = vpop.f32.mrb[0].mxu0
    %v577 = vpop.f32.mrb[0].mxu0
    %v578 = vadd.f32 0.0, %v577
    %v579 = vpop.f32.mrb[0].mxu0
    %580 = vdwg.mxu0
    %vm581 = vcmask 130048
    %v582 = vsel %vm581, %v327, 0.0
    %v583 = vsel %vm581, %v330, 0.0
    %v584 = vadd.f32 %v582, %v583
    %v585 = vsel %vm581, %v335, 0.0
    %v586 = vadd.f32 %v584, %v585
    %v587 = vsel %vm581, %v338, 0.0
    %v588 = vadd.f32 %v586, %v587
    %v589 = vsel %vm581, %v343, 0.0
    %v590 = vadd.f32 %v588, %v589
    %v591 = vsel %vm581, %v346, 0.0
    %v592 = vadd.f32 %v590, %v591
    %v593 = vsel %vm581, %v351, 0.0
    %v594 = vadd.f32 %v592, %v593
    %v595 = vsel %vm581, %v354, 0.0
    %v596 = vadd.f32 %v594, %v595
    %v597 = vsel %vm581, %v359, 0.0
    %v598 = vadd.f32 %v596, %v597
    %v599 = vsel %vm581, %v362, 0.0
    %v600 = vadd.f32 %v598, %v599
    %v601 = vsel %vm581, %v367, 0.0
    %v602 = vadd.f32 %v600, %v601
    %v603 = vsel %vm581, %v370, 0.0
    %v604 = vadd.f32 %v602, %v603
    %v605 = vsel %vm581, %v375, 0.0
    %v606 = vadd.f32 %v604, %v605
    %v607 = vsel %vm581, %v378, 0.0
    %v608 = vadd.f32 %v606, %v607
    %v609 = vsel %vm581, %v383, 0.0
    %v610 = vadd.f32 %v608, %v609
    %v611 = vsel %vm581, %v386, 0.0
    %v612 = vadd.f32 %v610, %v611
    %v613 = vsel %vm581, %v391, 0.0
    %v614 = vadd.f32 %v612, %v613
    %v615 = vsel %vm581, %v394, 0.0
    %v616 = vadd.f32 %v614, %v615
    %v617 = vsel %vm581, %v399, 0.0
    %v618 = vadd.f32 %v616, %v617
    %v619 = vsel %vm581, %v402, 0.0
    %v620 = vadd.f32 %v618, %v619
    %v621 = vsel %vm581, %v407, 0.0
    %v622 = vadd.f32 %v620, %v621
    %v623 = vsel %vm581, %v410, 0.0
    %v624 = vadd.f32 %v622, %v623
    %v625 = vsel %vm581, %v415, 0.0
    %v626 = vadd.f32 %v624, %v625
    %v627 = vsel %vm581, %v418, 0.0
    %v628 = vadd.f32 %v626, %v627
    %v629 = vsel %vm581, %v423, 0.0
    %v630 = vadd.f32 %v628, %v629
    %v631 = vsel %vm581, %v426, 0.0
    %v632 = vadd.f32 %v630, %v631
    %v633 = vsel %vm581, %v431, 0.0
    %v634 = vadd.f32 %v632, %v633
    %v635 = vsel %vm581, %v434, 0.0
    %v636 = vadd.f32 %v634, %v635
    %v637 = vsel %vm581, %v439, 0.0
    %v638 = vadd.f32 %v636, %v637
    %v639 = vsel %vm581, %v442, 0.0
    %v640 = vadd.f32 %v638, %v639
    %v641 = vsel %vm581, %v447, 0.0
    %v642 = vadd.f32 %v640, %v641
    %v643 = vsel %vm581, %v450, 0.0
    %v644 = vadd.f32 %v642, %v643
    %v645 = vsel %vm581, %v455, 0.0
    %v646 = vadd.f32 %v644, %v645
    %v647 = vsel %vm581, %v458, 0.0
    %v648 = vadd.f32 %v646, %v647
    %v649 = vsel %vm581, %v463, 0.0
    %v650 = vadd.f32 %v648, %v649
    %v651 = vsel %vm581, %v466, 0.0
    %v652 = vadd.f32 %v650, %v651
    %v653 = vsel %vm581, %v471, 0.0
    %v654 = vadd.f32 %v652, %v653
    %v655 = vsel %vm581, %v474, 0.0
    %v656 = vadd.f32 %v654, %v655
    %v657 = vsel %vm581, %v479, 0.0
    %v658 = vadd.f32 %v656, %v657
    %v659 = vsel %vm581, %v482, 0.0
    %v660 = vadd.f32 %v658, %v659
    %v661 = vsel %vm581, %v487, 0.0
    %v662 = vadd.f32 %v660, %v661
    %v663 = vsel %vm581, %v490, 0.0
    %v664 = vadd.f32 %v662, %v663
    %v665 = vsel %vm581, %v495, 0.0
    %v666 = vadd.f32 %v664, %v665
    %v667 = vsel %vm581, %v498, 0.0
    %v668 = vadd.f32 %v666, %v667
    %v669 = vsel %vm581, %v503, 0.0
    %v670 = vadd.f32 %v668, %v669
    %v671 = vsel %vm581, %v506, 0.0
    %v672 = vadd.f32 %v670, %v671
    %v673 = vsel %vm581, %v511, 0.0
    %v674 = vadd.f32 %v672, %v673
    %v675 = vsel %vm581, %v514, 0.0
    %v676 = vadd.f32 %v674, %v675
    %v677 = vsel %vm581, %v519, 0.0
    %v678 = vadd.f32 %v676, %v677
    %v679 = vsel %vm581, %v522, 0.0
    %v680 = vadd.f32 %v678, %v679
    %v681 = vsel %vm581, %v527, 0.0
    %v682 = vadd.f32 %v680, %v681
    %v683 = vsel %vm581, %v530, 0.0
    %v684 = vadd.f32 %v682, %v683
    %v685 = vsel %vm581, %v535, 0.0
    %v686 = vadd.f32 %v684, %v685
    %v687 = vsel %vm581, %v538, 0.0
    %v688 = vadd.f32 %v686, %v687
    %v689 = vsel %vm581, %v543, 0.0
    %v690 = vadd.f32 %v688, %v689
    %v691 = vsel %vm581, %v546, 0.0
    %v692 = vadd.f32 %v690, %v691
    %v693 = vsel %vm581, %v551, 0.0
    %v694 = vadd.f32 %v692, %v693
    %v695 = vsel %vm581, %v554, 0.0
    %v696 = vadd.f32 %v694, %v695
    %v697 = vsel %vm581, %v559, 0.0
    %v698 = vadd.f32 %v696, %v697
    %v699 = vsel %vm581, %v562, 0.0
    %v700 = vadd.f32 %v698, %v699
    %v701 = vsel %vm581, %v567, 0.0
    %v702 = vadd.f32 %v700, %v701
    %v703 = vsel %vm581, %v570, 0.0
    %v704 = vadd.f32 %v702, %v703
    %v705 = vsel %vm581, %v575, 0.0
    %v706 = vadd.f32 %v704, %v705
    %v707 = vsel %vm581, %v578, 0.0
    %v708 = vadd.f32 %v706, %v707
    %v709 = vrot.slane %v708, 4
    %v710 = vadd.f32 %v708, %v709
    %v711 = vrot.slane %v710, 2
    %v712 = vadd.f32 %v710, %v711
    %v713 = vrot.slane %v712, 1
    %v714 = vadd.f32 %v712, %v713
    %v715 = vrcp.pop 512.0
    %v716 = vmul.f32 %v714, %v715
    %v717 = vsub.f32 %v327, %v716
    %v718 = vsub.f32 %v330, %v716
    %v719 = vsub.f32 %v335, %v716
    %v720 = vsub.f32 %v338, %v716
    %v721 = vsub.f32 %v343, %v716
    %v722 = vsub.f32 %v346, %v716
    %v723 = vsub.f32 %v351, %v716
    %v724 = vsub.f32 %v354, %v716
    %v725 = vsub.f32 %v359, %v716
    %v726 = vsub.f32 %v362, %v716
    %v727 = vsub.f32 %v367, %v716
    %v728 = vsub.f32 %v370, %v716
    %v729 = vsub.f32 %v375, %v716
    %v730 = vsub.f32 %v378, %v716
    %v731 = vsub.f32 %v383, %v716
    %v732 = vsub.f32 %v386, %v716
    %v733 = vsub.f32 %v391, %v716
    %v734 = vsub.f32 %v394, %v716
    %v735 = vsub.f32 %v399, %v716
    %v736 = vsub.f32 %v402, %v716
    %v737 = vsub.f32 %v407, %v716
    %v738 = vsub.f32 %v410, %v716
    %v739 = vsub.f32 %v415, %v716
    %v740 = vsub.f32 %v418, %v716
    %v741 = vsub.f32 %v423, %v716
    %v742 = vsub.f32 %v426, %v716
    %v743 = vsub.f32 %v431, %v716
    %v744 = vsub.f32 %v434, %v716
    %v745 = vsub.f32 %v439, %v716
    %v746 = vsub.f32 %v442, %v716
    %v747 = vsub.f32 %v447, %v716
    %v748 = vsub.f32 %v450, %v716
    %v749 = vsub.f32 %v455, %v716
    %v750 = vsub.f32 %v458, %v716
    %v751 = vsub.f32 %v463, %v716
    %v752 = vsub.f32 %v466, %v716
    %v753 = vsub.f32 %v471, %v716
    %v754 = vsub.f32 %v474, %v716
    %v755 = vsub.f32 %v479, %v716
    %v756 = vsub.f32 %v482, %v716
    %v757 = vsub.f32 %v487, %v716
    %v758 = vsub.f32 %v490, %v716
    %v759 = vsub.f32 %v495, %v716
    %v760 = vsub.f32 %v498, %v716
    %v761 = vsub.f32 %v503, %v716
    %v762 = vsub.f32 %v506, %v716
    %v763 = vsub.f32 %v511, %v716
    %v764 = vsub.f32 %v514, %v716
    %v765 = vsub.f32 %v519, %v716
    %v766 = vsub.f32 %v522, %v716
    %v767 = vsub.f32 %v527, %v716
    %v768 = vsub.f32 %v530, %v716
    %v769 = vsub.f32 %v535, %v716
    %v770 = vsub.f32 %v538, %v716
    %v771 = vsub.f32 %v543, %v716
    %v772 = vsub.f32 %v546, %v716
    %v773 = vsub.f32 %v551, %v716
    %v774 = vsub.f32 %v554, %v716
    %v775 = vsub.f32 %v559, %v716
    %v776 = vsub.f32 %v562, %v716
    %v777 = vsub.f32 %v567, %v716
    %v778 = vsub.f32 %v570, %v716
    %v779 = vsub.f32 %v575, %v716
    %v780 = vsub.f32 %v578, %v716
    %v781 = vmul.f32 %v717, %v717
    %v782 = vmul.f32 %v718, %v718
    %v783 = vmul.f32 %v719, %v719
    %v784 = vmul.f32 %v720, %v720
    %v785 = vmul.f32 %v721, %v721
    %v786 = vmul.f32 %v722, %v722
    %v787 = vmul.f32 %v723, %v723
    %v788 = vmul.f32 %v724, %v724
    %v789 = vmul.f32 %v725, %v725
    %v790 = vmul.f32 %v726, %v726
    %v791 = vmul.f32 %v727, %v727
    %v792 = vmul.f32 %v728, %v728
    %v793 = vmul.f32 %v729, %v729
    %v794 = vmul.f32 %v730, %v730
    %v795 = vmul.f32 %v731, %v731
    %v796 = vmul.f32 %v732, %v732
    %v797 = vmul.f32 %v733, %v733
    %v798 = vmul.f32 %v734, %v734
    %v799 = vmul.f32 %v735, %v735
    %v800 = vmul.f32 %v736, %v736
    %v801 = vmul.f32 %v737, %v737
    %v802 = vmul.f32 %v738, %v738
    %v803 = vmul.f32 %v739, %v739
    %v804 = vmul.f32 %v740, %v740
    %v805 = vmul.f32 %v741, %v741
    %v806 = vmul.f32 %v742, %v742
    %v807 = vmul.f32 %v743, %v743
    %v808 = vmul.f32 %v744, %v744
    %v809 = vmul.f32 %v745, %v745
    %v810 = vmul.f32 %v746, %v746
    %v811 = vmul.f32 %v747, %v747
    %v812 = vmul.f32 %v748, %v748
    %v813 = vmul.f32 %v749, %v749
    %v814 = vmul.f32 %v750, %v750
    %v815 = vmul.f32 %v751, %v751
    %v816 = vmul.f32 %v752, %v752
    %v817 = vmul.f32 %v753, %v753
    %v818 = vmul.f32 %v754, %v754
    %v819 = vmul.f32 %v755, %v755
    %v820 = vmul.f32 %v756, %v756
    %v821 = vmul.f32 %v757, %v757
    %v822 = vmul.f32 %v758, %v758
    %v823 = vmul.f32 %v759, %v759
    %v824 = vmul.f32 %v760, %v760
    %v825 = vmul.f32 %v761, %v761
    %v826 = vmul.f32 %v762, %v762
    %v827 = vmul.f32 %v763, %v763
    %v828 = vmul.f32 %v764, %v764
    %v829 = vmul.f32 %v765, %v765
    %v830 = vmul.f32 %v766, %v766
    %v831 = vmul.f32 %v767, %v767
    %v832 = vmul.f32 %v768, %v768
    %v833 = vmul.f32 %v769, %v769
    %v834 = vmul.f32 %v770, %v770
    %v835 = vmul.f32 %v771, %v771
    %v836 = vmul.f32 %v772, %v772
    %v837 = vmul.f32 %v773, %v773
    %v838 = vmul.f32 %v774, %v774
    %v839 = vmul.f32 %v775, %v775
    %v840 = vmul.f32 %v776, %v776
    %v841 = vmul.f32 %v777, %v777
    %v842 = vmul.f32 %v778, %v778
    %v843 = vmul.f32 %v779, %v779
    %v844 = vmul.f32 %v780, %v780
    %v845 = vsel %vm581, %v781, 0.0
    %v846 = vsel %vm581, %v782, 0.0
    %v847 = vadd.f32 %v845, %v846
    %v848 = vsel %vm581, %v783, 0.0
    %v849 = vadd.f32 %v847, %v848
    %v850 = vsel %vm581, %v784, 0.0
    %v851 = vadd.f32 %v849, %v850
    %v852 = vsel %vm581, %v785, 0.0
    %v853 = vadd.f32 %v851, %v852
    %v854 = vsel %vm581, %v786, 0.0
    %v855 = vadd.f32 %v853, %v854
    %v856 = vsel %vm581, %v787, 0.0
    %v857 = vadd.f32 %v855, %v856
    %v858 = vsel %vm581, %v788, 0.0
    %v859 = vadd.f32 %v857, %v858
    %v860 = vsel %vm581, %v789, 0.0
    %v861 = vadd.f32 %v859, %v860
    %v862 = vsel %vm581, %v790, 0.0
    %v863 = vadd.f32 %v861, %v862
    %v864 = vsel %vm581, %v791, 0.0
    %v865 = vadd.f32 %v863, %v864
    %v866 = vsel %vm581, %v792, 0.0
    %v867 = vadd.f32 %v865, %v866
    %v868 = vsel %vm581, %v793, 0.0
    %v869 = vadd.f32 %v867, %v868
    %v870 = vsel %vm581, %v794, 0.0
    %v871 = vadd.f32 %v869, %v870
    %v872 = vsel %vm581, %v795, 0.0
    %v873 = vadd.f32 %v871, %v872
    %v874 = vsel %vm581, %v796, 0.0
    %v875 = vadd.f32 %v873, %v874
    %v876 = vsel %vm581, %v797, 0.0
    %v877 = vadd.f32 %v875, %v876
    %v878 = vsel %vm581, %v798, 0.0
    %v879 = vadd.f32 %v877, %v878
    %v880 = vsel %vm581, %v799, 0.0
    %v881 = vadd.f32 %v879, %v880
    %v882 = vsel %vm581, %v800, 0.0
    %v883 = vadd.f32 %v881, %v882
    %v884 = vsel %vm581, %v801, 0.0
    %v885 = vadd.f32 %v883, %v884
    %v886 = vsel %vm581, %v802, 0.0
    %v887 = vadd.f32 %v885, %v886
    %v888 = vsel %vm581, %v803, 0.0
    %v889 = vadd.f32 %v887, %v888
    %v890 = vsel %vm581, %v804, 0.0
    %v891 = vadd.f32 %v889, %v890
    %v892 = vsel %vm581, %v805, 0.0
    %v893 = vadd.f32 %v891, %v892
    %v894 = vsel %vm581, %v806, 0.0
    %v895 = vadd.f32 %v893, %v894
    %v896 = vsel %vm581, %v807, 0.0
    %v897 = vadd.f32 %v895, %v896
    %v898 = vsel %vm581, %v808, 0.0
    %v899 = vadd.f32 %v897, %v898
    %v900 = vsel %vm581, %v809, 0.0
    %v901 = vadd.f32 %v899, %v900
    %v902 = vsel %vm581, %v810, 0.0
    %v903 = vadd.f32 %v901, %v902
    %v904 = vsel %vm581, %v811, 0.0
    %v905 = vadd.f32 %v903, %v904
    %v906 = vsel %vm581, %v812, 0.0
    %v907 = vadd.f32 %v905, %v906
    %v908 = vsel %vm581, %v813, 0.0
    %v909 = vadd.f32 %v907, %v908
    %v910 = vsel %vm581, %v814, 0.0
    %v911 = vadd.f32 %v909, %v910
    %v912 = vsel %vm581, %v815, 0.0
    %v913 = vadd.f32 %v911, %v912
    %v914 = vsel %vm581, %v816, 0.0
    %v915 = vadd.f32 %v913, %v914
    %v916 = vsel %vm581, %v817, 0.0
    %v917 = vadd.f32 %v915, %v916
    %v918 = vsel %vm581, %v818, 0.0
    %v919 = vadd.f32 %v917, %v918
    %v920 = vsel %vm581, %v819, 0.0
    %v921 = vadd.f32 %v919, %v920
    %v922 = vsel %vm581, %v820, 0.0
    %v923 = vadd.f32 %v921, %v922
    %v924 = vsel %vm581, %v821, 0.0
    %v925 = vadd.f32 %v923, %v924
    %v926 = vsel %vm581, %v822, 0.0
    %v927 = vadd.f32 %v925, %v926
    %v928 = vsel %vm581, %v823, 0.0
    %v929 = vadd.f32 %v927, %v928
    %v930 = vsel %vm581, %v824, 0.0
    %v931 = vadd.f32 %v929, %v930
    %v932 = vsel %vm581, %v825, 0.0
    %v933 = vadd.f32 %v931, %v932
    %v934 = vsel %vm581, %v826, 0.0
    %v935 = vadd.f32 %v933, %v934
    %v936 = vsel %vm581, %v827, 0.0
    %v937 = vadd.f32 %v935, %v936
    %v938 = vsel %vm581, %v828, 0.0
    %v939 = vadd.f32 %v937, %v938
    %v940 = vsel %vm581, %v829, 0.0
    %v941 = vadd.f32 %v939, %v940
    %v942 = vsel %vm581, %v830, 0.0
    %v943 = vadd.f32 %v941, %v942
    %v944 = vsel %vm581, %v831, 0.0
    %v945 = vadd.f32 %v943, %v944
    %v946 = vsel %vm581, %v832, 0.0
    %v947 = vadd.f32 %v945, %v946
    %v948 = vsel %vm581, %v833, 0.0
    %v949 = vadd.f32 %v947, %v948
    %v950 = vsel %vm581, %v834, 0.0
    %v951 = vadd.f32 %v949, %v950
    %v952 = vsel %vm581, %v835, 0.0
    %v953 = vadd.f32 %v951, %v952
    %v954 = vsel %vm581, %v836, 0.0
    %v955 = vadd.f32 %v953, %v954
    %v956 = vsel %vm581, %v837, 0.0
    %v957 = vadd.f32 %v955, %v956
    %v958 = vsel %vm581, %v838, 0.0
    %v959 = vadd.f32 %v957, %v958
    %v960 = vsel %vm581, %v839, 0.0
    %v961 = vadd.f32 %v959, %v960
    %v962 = vsel %vm581, %v840, 0.0
    %v963 = vadd.f32 %v961, %v962
    %v964 = vsel %vm581, %v841, 0.0
    %v965 = vadd.f32 %v963, %v964
    %v966 = vsel %vm581, %v842, 0.0
    %v967 = vadd.f32 %v965, %v966
    %v968 = vsel %vm581, %v843, 0.0
    %v969 = vadd.f32 %v967, %v968
    %v970 = vsel %vm581, %v844, 0.0
    %v971 = vadd.f32 %v969, %v970
    %v972 = vrot.slane %v971, 4
    %v973 = vadd.f32 %v971, %v972
    %v974 = vrot.slane %v973, 2
    %v975 = vadd.f32 %v973, %v974
    %v976 = vrot.slane %v975, 1
    %v977 = vadd.f32 %v975, %v976
    %v978 = vmul.f32 %v977, %v715
    %v979 = vadd.f32 %v978, 1e-05
    %v980 = vrsqrt.pop %v979
    %v981 = vmul.f32 %v717, %v980
    %v982 = vmul.f32 %v718, %v980
    %v983 = vmul.f32 %v719, %v980
    %v984 = vmul.f32 %v720, %v980
    %v985 = vmul.f32 %v721, %v980
    %v986 = vmul.f32 %v722, %v980
    %v987 = vmul.f32 %v723, %v980
    %v988 = vmul.f32 %v724, %v980
    %v989 = vmul.f32 %v725, %v980
    %v990 = vmul.f32 %v726, %v980
    %v991 = vmul.f32 %v727, %v980
    %v992 = vmul.f32 %v728, %v980
    %v993 = vmul.f32 %v729, %v980
    %v994 = vmul.f32 %v730, %v980
    %v995 = vmul.f32 %v731, %v980
    %v996 = vmul.f32 %v732, %v980
    %v997 = vmul.f32 %v733, %v980
    %v998 = vmul.f32 %v734, %v980
    %v999 = vmul.f32 %v735, %v980
    %v1000 = vmul.f32 %v736, %v980
    %v1001 = vmul.f32 %v737, %v980
    %v1002 = vmul.f32 %v738, %v980
    %v1003 = vmul.f32 %v739, %v980
    %v1004 = vmul.f32 %v740, %v980
    %v1005 = vmul.f32 %v741, %v980
    %v1006 = vmul.f32 %v742, %v980
    %v1007 = vmul.f32 %v743, %v980
    %v1008 = vmul.f32 %v744, %v980
    %v1009 = vmul.f32 %v745, %v980
    %v1010 = vmul.f32 %v746, %v980
    %v1011 = vmul.f32 %v747, %v980
    %v1012 = vmul.f32 %v748, %v980
    %v1013 = vmul.f32 %v749, %v980
    %v1014 = vmul.f32 %v750, %v980
    %v1015 = vmul.f32 %v751, %v980
    %v1016 = vmul.f32 %v752, %v980
    %v1017 = vmul.f32 %v753, %v980
    %v1018 = vmul.f32 %v754, %v980
    %v1019 = vmul.f32 %v755, %v980
    %v1020 = vmul.f32 %v756, %v980
    %v1021 = vmul.f32 %v757, %v980
    %v1022 = vmul.f32 %v758, %v980
    %v1023 = vmul.f32 %v759, %v980
    %v1024 = vmul.f32 %v760, %v980
    %v1025 = vmul.f32 %v761, %v980
    %v1026 = vmul.f32 %v762, %v980
    %v1027 = vmul.f32 %v763, %v980
    %v1028 = vmul.f32 %v764, %v980
    %v1029 = vmul.f32 %v765, %v980
    %v1030 = vmul.f32 %v766, %v980
    %v1031 = vmul.f32 %v767, %v980
    %v1032 = vmul.f32 %v768, %v980
    %v1033 = vmul.f32 %v769, %v980
    %v1034 = vmul.f32 %v770, %v980
    %v1035 = vmul.f32 %v771, %v980
    %v1036 = vmul.f32 %v772, %v980
    %v1037 = vmul.f32 %v773, %v980
    %v1038 = vmul.f32 %v774, %v980
    %v1039 = vmul.f32 %v775, %v980
    %v1040 = vmul.f32 %v776, %v980
    %v1041 = vmul.f32 %v777, %v980
    %v1042 = vmul.f32 %v778, %v980
    %v1043 = vmul.f32 %v779, %v980
    %v1044 = vmul.f32 %v780, %v980
    %v1046 = vlaneseq
    %v1047 = vshrl.u32 %v1046, 7
    %v1048 = vsub.s32 0, %v1047
    %v1049 = vrot.slane %v137, %v1048
    %v1051 = vmul.f32 %v981, %v1049
    %v1052 = vmul.f32 %v982, %v1049
    %v1053 = vmul.f32 %v983, %v1049
    %v1054 = vmul.f32 %v984, %v1049
    %v1055 = vmul.f32 %v985, %v1049
    %v1056 = vmul.f32 %v986, %v1049
    %v1057 = vmul.f32 %v987, %v1049
    %v1058 = vmul.f32 %v988, %v1049
    %v1059 = vmul.f32 %v989, %v1049
    %v1060 = vmul.f32 %v990, %v1049
    %v1061 = vmul.f32 %v991, %v1049
    %v1062 = vmul.f32 %v992, %v1049
    %v1063 = vmul.f32 %v993, %v1049
    %v1064 = vmul.f32 %v994, %v1049
    %v1065 = vmul.f32 %v995, %v1049
    %v1066 = vmul.f32 %v996, %v1049
    %v1067 = vmul.f32 %v997, %v1049
    %v1068 = vmul.f32 %v998, %v1049
    %v1069 = vmul.f32 %v999, %v1049
    %v1070 = vmul.f32 %v1000, %v1049
    %v1071 = vmul.f32 %v1001, %v1049
    %v1072 = vmul.f32 %v1002, %v1049
    %v1073 = vmul.f32 %v1003, %v1049
    %v1074 = vmul.f32 %v1004, %v1049
    %v1075 = vmul.f32 %v1005, %v1049
    %v1076 = vmul.f32 %v1006, %v1049
    %v1077 = vmul.f32 %v1007, %v1049
    %v1078 = vmul.f32 %v1008, %v1049
    %v1079 = vmul.f32 %v1009, %v1049
    %v1080 = vmul.f32 %v1010, %v1049
    %v1081 = vmul.f32 %v1011, %v1049
    %v1082 = vmul.f32 %v1012, %v1049
    %v1083 = vmul.f32 %v1013, %v1049
    %v1084 = vmul.f32 %v1014, %v1049
    %v1085 = vmul.f32 %v1015, %v1049
    %v1086 = vmul.f32 %v1016, %v1049
    %v1087 = vmul.f32 %v1017, %v1049
    %v1088 = vmul.f32 %v1018, %v1049
    %v1089 = vmul.f32 %v1019, %v1049
    %v1090 = vmul.f32 %v1020, %v1049
    %v1091 = vmul.f32 %v1021, %v1049
    %v1092 = vmul.f32 %v1022, %v1049
    %v1093 = vmul.f32 %v1023, %v1049
    %v1094 = vmul.f32 %v1024, %v1049
    %v1095 = vmul.f32 %v1025, %v1049
    %v1096 = vmul.f32 %v1026, %v1049
    %v1097 = vmul.f32 %v1027, %v1049
    %v1098 = vmul.f32 %v1028, %v1049
    %v1099 = vmul.f32 %v1029, %v1049
    %v1100 = vmul.f32 %v1030, %v1049
    %v1101 = vmul.f32 %v1031, %v1049
    %v1102 = vmul.f32 %v1032, %v1049
    %v1103 = vmul.f32 %v1033, %v1049
    %v1104 = vmul.f32 %v1034, %v1049
    %v1105 = vmul.f32 %v1035, %v1049
    %v1106 = vmul.f32 %v1036, %v1049
    %v1107 = vmul.f32 %v1037, %v1049
    %v1108 = vmul.f32 %v1038, %v1049
    %v1109 = vmul.f32 %v1039, %v1049
    %v1110 = vmul.f32 %v1040, %v1049
    %v1111 = vmul.f32 %v1041, %v1049
    %v1112 = vmul.f32 %v1042, %v1049
    %v1113 = vmul.f32 %v1043, %v1049
    %v1114 = vmul.f32 %v1044, %v1049
    %v1116 = vlaneseq
    %v1117 = vshrl.u32 %v1116, 7
    %v1118 = vsub.s32 0, %v1117
    %v1119 = vrot.slane %v138, %v1118
    %v1121 = vadd.f32 %v1051, %v1119
    %v1122 = vadd.f32 %v1052, %v1119
    %v1123 = vadd.f32 %v1053, %v1119
    %v1124 = vadd.f32 %v1054, %v1119
    %v1125 = vadd.f32 %v1055, %v1119
    %v1126 = vadd.f32 %v1056, %v1119
    %v1127 = vadd.f32 %v1057, %v1119
    %v1128 = vadd.f32 %v1058, %v1119
    %v1129 = vadd.f32 %v1059, %v1119
    %v1130 = vadd.f32 %v1060, %v1119
    %v1131 = vadd.f32 %v1061, %v1119
    %v1132 = vadd.f32 %v1062, %v1119
    %v1133 = vadd.f32 %v1063, %v1119
    %v1134 = vadd.f32 %v1064, %v1119
    %v1135 = vadd.f32 %v1065, %v1119
    %v1136 = vadd.f32 %v1066, %v1119
    %v1137 = vadd.f32 %v1067, %v1119
    %v1138 = vadd.f32 %v1068, %v1119
    %v1139 = vadd.f32 %v1069, %v1119
    %v1140 = vadd.f32 %v1070, %v1119
    %v1141 = vadd.f32 %v1071, %v1119
    %v1142 = vadd.f32 %v1072, %v1119
    %v1143 = vadd.f32 %v1073, %v1119
    %v1144 = vadd.f32 %v1074, %v1119
    %v1145 = vadd.f32 %v1075, %v1119
    %v1146 = vadd.f32 %v1076, %v1119
    %v1147 = vadd.f32 %v1077, %v1119
    %v1148 = vadd.f32 %v1078, %v1119
    %v1149 = vadd.f32 %v1079, %v1119
    %v1150 = vadd.f32 %v1080, %v1119
    %v1151 = vadd.f32 %v1081, %v1119
    %v1152 = vadd.f32 %v1082, %v1119
    %v1153 = vadd.f32 %v1083, %v1119
    %v1154 = vadd.f32 %v1084, %v1119
    %v1155 = vadd.f32 %v1085, %v1119
    %v1156 = vadd.f32 %v1086, %v1119
    %v1157 = vadd.f32 %v1087, %v1119
    %v1158 = vadd.f32 %v1088, %v1119
    %v1159 = vadd.f32 %v1089, %v1119
    %v1160 = vadd.f32 %v1090, %v1119
    %v1161 = vadd.f32 %v1091, %v1119
    %v1162 = vadd.f32 %v1092, %v1119
    %v1163 = vadd.f32 %v1093, %v1119
    %v1164 = vadd.f32 %v1094, %v1119
    %v1165 = vadd.f32 %v1095, %v1119
    %v1166 = vadd.f32 %v1096, %v1119
    %v1167 = vadd.f32 %v1097, %v1119
    %v1168 = vadd.f32 %v1098, %v1119
    %v1169 = vadd.f32 %v1099, %v1119
    %v1170 = vadd.f32 %v1100, %v1119
    %v1171 = vadd.f32 %v1101, %v1119
    %v1172 = vadd.f32 %v1102, %v1119
    %v1173 = vadd.f32 %v1103, %v1119
    %v1174 = vadd.f32 %v1104, %v1119
    %v1175 = vadd.f32 %v1105, %v1119
    %v1176 = vadd.f32 %v1106, %v1119
    %v1177 = vadd.f32 %v1107, %v1119
    %v1178 = vadd.f32 %v1108, %v1119
    %v1179 = vadd.f32 %v1109, %v1119
    %v1180 = vadd.f32 %v1110, %v1119
    %v1181 = vadd.f32 %v1111, %v1119
    %v1182 = vadd.f32 %v1112, %v1119
    %v1183 = vadd.f32 %v1113, %v1119
    %v1184 = vadd.f32 %v1114, %v1119
    %v1185 = vmax.f32 %v1121, 0.0
    %v1186 = vmax.f32 %v1122, 0.0
    %v1187 = vmax.f32 %v1123, 0.0
    %v1188 = vmax.f32 %v1124, 0.0
    %v1189 = vmax.f32 %v1125, 0.0
    %v1190 = vmax.f32 %v1126, 0.0
    %v1191 = vmax.f32 %v1127, 0.0
    %v1192 = vmax.f32 %v1128, 0.0
    %v1193 = vmax.f32 %v1129, 0.0
    %v1194 = vmax.f32 %v1130, 0.0
    %v1195 = vmax.f32 %v1131, 0.0
    %v1196 = vmax.f32 %v1132, 0.0
    %v1197 = vmax.f32 %v1133, 0.0
    %v1198 = vmax.f32 %v1134, 0.0
    %v1199 = vmax.f32 %v1135, 0.0
    %v1200 = vmax.f32 %v1136, 0.0
    %v1201 = vmax.f32 %v1137, 0.0
    %v1202 = vmax.f32 %v1138, 0.0
    %v1203 = vmax.f32 %v1139, 0.0
    %v1204 = vmax.f32 %v1140, 0.0
    %v1205 = vmax.f32 %v1141, 0.0
    %v1206 = vmax.f32 %v1142, 0.0
    %v1207 = vmax.f32 %v1143, 0.0
    %v1208 = vmax.f32 %v1144, 0.0
    %v1209 = vmax.f32 %v1145, 0.0
    %v1210 = vmax.f32 %v1146, 0.0
    %v1211 = vmax.f32 %v1147, 0.0
    %v1212 = vmax.f32 %v1148, 0.0
    %v1213 = vmax.f32 %v1149, 0.0
    %v1214 = vmax.f32 %v1150, 0.0
    %v1215 = vmax.f32 %v1151, 0.0
    %v1216 = vmax.f32 %v1152, 0.0
    %v1217 = vmax.f32 %v1153, 0.0
    %v1218 = vmax.f32 %v1154, 0.0
    %v1219 = vmax.f32 %v1155, 0.0
    %v1220 = vmax.f32 %v1156, 0.0
    %v1221 = vmax.f32 %v1157, 0.0
    %v1222 = vmax.f32 %v1158, 0.0
    %v1223 = vmax.f32 %v1159, 0.0
    %v1224 = vmax.f32 %v1160, 0.0
    %v1225 = vmax.f32 %v1161, 0.0
    %v1226 = vmax.f32 %v1162, 0.0
    %v1227 = vmax.f32 %v1163, 0.0
    %v1228 = vmax.f32 %v1164, 0.0
    %v1229 = vmax.f32 %v1165, 0.0
    %v1230 = vmax.f32 %v1166, 0.0
    %v1231 = vmax.f32 %v1167, 0.0
    %v1232 = vmax.f32 %v1168, 0.0
    %v1233 = vmax.f32 %v1169, 0.0
    %v1234 = vmax.f32 %v1170, 0.0
    %v1235 = vmax.f32 %v1171, 0.0
    %v1236 = vmax.f32 %v1172, 0.0
    %v1237 = vmax.f32 %v1173, 0.0
    %v1238 = vmax.f32 %v1174, 0.0
    %v1239 = vmax.f32 %v1175, 0.0
    %v1240 = vmax.f32 %v1176, 0.0
    %v1241 = vmax.f32 %v1177, 0.0
    %v1242 = vmax.f32 %v1178, 0.0
    %v1243 = vmax.f32 %v1179, 0.0
    %v1244 = vmax.f32 %v1180, 0.0
    %v1245 = vmax.f32 %v1181, 0.0
    %v1246 = vmax.f32 %v1182, 0.0
    %v1247 = vmax.f32 %v1183, 0.0
    %v1248 = vmax.f32 %v1184, 0.0
    %1249 = vst.msk [vmem:[#allocation2] sm:$0xff] %vm581, 0.0
    %1250 = vst.msk [vmem:[#allocation2 + $0x8] sm:$0xff] %vm581, 0.0
    %vm1251 = vcmask 123904
    %1252 = vst.msk [vmem:[#allocation2 + $0x10] sm:$0x3] %vm1251, 0.0
    %1253 = vst.msk [vmem:[#allocation2 + $0x18] sm:$0xff] %vm581, 0.0
    %1254 = vst.msk [vmem:[#allocation2 + $0x20] sm:$0xff] %vm581, 0.0
    %1255 = vst.msk [vmem:[#allocation2 + $0x28] sm:$0x3] %vm1251, 0.0
    %1256 = vst.msk [vmem:[#allocation2 + $0x30] sm:$0xff] %vm581, 0.0
    %1257 = vst.msk [vmem:[#allocation2 + $0x38] sm:$0xff] %vm581, 0.0
    %1258 = vst.msk [vmem:[#allocation2 + $0x40] sm:$0x3] %vm1251, 0.0
    %1259 = vst.msk [vmem:[#allocation2 + $0x48] sm:$0xff] %vm581, 0.0
    %1260 = vst.msk [vmem:[#allocation2 + $0x50] sm:$0xff] %vm581, 0.0
    %1261 = vst.msk [vmem:[#allocation2 + $0x58] sm:$0x3] %vm1251, 0.0
    %1262 = vst.msk [vmem:[#allocation2 + $0x60] sm:$0xff] %vm581, 0.0
    %1263 = vst.msk [vmem:[#allocation2 + $0x68] sm:$0xff] %vm581, 0.0
    %1264 = vst.msk [vmem:[#allocation2 + $0x70] sm:$0x3] %vm1251, 0.0
    %1265 = vst.msk [vmem:[#allocation2 + $0x78] sm:$0xff] %vm581, 0.0
    %1266 = vst.msk [vmem:[#allocation2 + $0x80] sm:$0xff] %vm581, 0.0
    %1267 = vst.msk [vmem:[#allocation2 + $0x88] sm:$0x3] %vm1251, 0.0
    %1268 = vst.msk [vmem:[#allocation2 + $0x90] sm:$0xff] %vm581, 0.0
    %1269 = vst.msk [vmem:[#allocation2 + $0x98] sm:$0xff] %vm581, 0.0
    %1270 = vst.msk [vmem:[#allocation2 + $0xa0] sm:$0x3] %vm1251, 0.0
    %1271 = vst.msk [vmem:[#allocation2 + $0xa8] sm:$0xff] %vm581, 0.0
    %1272 = vst.msk [vmem:[#allocation2 + $0xb0] sm:$0xff] %vm581, 0.0
    %1273 = vst.msk [vmem:[#allocation2 + $0xb8] sm:$0x3] %vm1251, 0.0
    %1274 = vst.msk [vmem:[#allocation2 + $0xc0] sm:$0xff] %vm581, 0.0
    %1275 = vst.msk [vmem:[#allocation2 + $0xc8] sm:$0xff] %vm581, 0.0
    %1276 = vst.msk [vmem:[#allocation2 + $0xd0] sm:$0x3] %vm1251, 0.0
    %1277 = vst.msk [vmem:[#allocation2 + $0xd8] sm:$0xff] %vm581, 0.0
    %1278 = vst.msk [vmem:[#allocation2 + $0xe0] sm:$0xff] %vm581, 0.0
    %1279 = vst.msk [vmem:[#allocation2 + $0xe8] sm:$0x3] %vm1251, 0.0
    %1280 = vst.msk [vmem:[#allocation2 + $0xf0] sm:$0xff] %vm581, 0.0
    %1281 = vst.msk [vmem:[#allocation2 + $0xf8] sm:$0xff] %vm581, 0.0
    %1282 = vst.msk [vmem:[#allocation2 + $0x100] sm:$0x3] %vm1251, 0.0
    %1283 = vst.msk [vmem:[#allocation2 + $0x108] sm:$0xff] %vm581, 0.0
    %1284 = vst.msk [vmem:[#allocation2 + $0x110] sm:$0xff] %vm581, 0.0
    %1285 = vst.msk [vmem:[#allocation2 + $0x118] sm:$0x3] %vm1251, 0.0
    %1286 = vst.msk [vmem:[#allocation2 + $0x120] sm:$0xff] %vm581, 0.0
    %1287 = vst.msk [vmem:[#allocation2 + $0x128] sm:$0xff] %vm581, 0.0
    %1288 = vst.msk [vmem:[#allocation2 + $0x130] sm:$0x3] %vm1251, 0.0
    %1289 = vst.msk [vmem:[#allocation2 + $0x138] sm:$0xff] %vm581, 0.0
    %1290 = vst.msk [vmem:[#allocation2 + $0x140] sm:$0xff] %vm581, 0.0
    %1291 = vst.msk [vmem:[#allocation2 + $0x148] sm:$0x3] %vm1251, 0.0
    %1292 = vst.msk [vmem:[#allocation2 + $0x150] sm:$0xff] %vm581, 0.0
    %1293 = vst.msk [vmem:[#allocation2 + $0x158] sm:$0xff] %vm581, 0.0
    %1294 = vst.msk [vmem:[#allocation2 + $0x160] sm:$0x3] %vm1251, 0.0
    %1295 = vst.msk [vmem:[#allocation2 + $0x168] sm:$0xff] %vm581, 0.0
    %1296 = vst.msk [vmem:[#allocation2 + $0x170] sm:$0xff] %vm581, 0.0
    %1297 = vst.msk [vmem:[#allocation2 + $0x178] sm:$0x3] %vm1251, 0.0
    %1298 = vst.msk [vmem:[#allocation2 + $0x180] sm:$0xff] %vm581, 0.0
    %1299 = vst.msk [vmem:[#allocation2 + $0x188] sm:$0xff] %vm581, 0.0
    %1300 = vst.msk [vmem:[#allocation2 + $0x190] sm:$0x3] %vm1251, 0.0
    %1301 = vst.msk [vmem:[#allocation2 + $0x198] sm:$0xff] %vm581, 0.0
    %1302 = vst.msk [vmem:[#allocation2 + $0x1a0] sm:$0xff] %vm581, 0.0
    %1303 = vst.msk [vmem:[#allocation2 + $0x1a8] sm:$0x3] %vm1251, 0.0
    %1304 = vst.msk [vmem:[#allocation2 + $0x1b0] sm:$0xff] %vm581, 0.0
    %1305 = vst.msk [vmem:[#allocation2 + $0x1b8] sm:$0xff] %vm581, 0.0
    %1306 = vst.msk [vmem:[#allocation2 + $0x1c0] sm:$0x3] %vm1251, 0.0
    %1307 = vst.msk [vmem:[#allocation2 + $0x1c8] sm:$0xff] %vm581, 0.0
    %1308 = vst.msk [vmem:[#allocation2 + $0x1d0] sm:$0xff] %vm581, 0.0
    %1309 = vst.msk [vmem:[#allocation2 + $0x1d8] sm:$0x3] %vm1251, 0.0
    %1310 = vst.msk [vmem:[#allocation2 + $0x1e0] sm:$0xff] %vm581, 0.0
    %1311 = vst.msk [vmem:[#allocation2 + $0x1e8] sm:$0xff] %vm581, 0.0
    %1312 = vst.msk [vmem:[#allocation2 + $0x1f0] sm:$0x3] %vm1251, 0.0
    %1313 = vst.msk [vmem:[#allocation2 + $0x1f8] sm:$0xff] %vm581, 0.0
    %1314 = vst.msk [vmem:[#allocation2 + $0x200] sm:$0xff] %vm581, 0.0
    %1315 = vst.msk [vmem:[#allocation2 + $0x208] sm:$0x3] %vm1251, 0.0
    %1316 = vst.msk [vmem:[#allocation2 + $0x210] sm:$0xff] %vm581, 0.0
    %1317 = vst.msk [vmem:[#allocation2 + $0x218] sm:$0xff] %vm581, 0.0
    %1318 = vst.msk [vmem:[#allocation2 + $0x220] sm:$0x3] %vm1251, 0.0
    %1319 = vst.msk [vmem:[#allocation2 + $0x228] sm:$0xff] %vm581, 0.0
    %1320 = vst.msk [vmem:[#allocation2 + $0x230] sm:$0xff] %vm581, 0.0
    %1321 = vst.msk [vmem:[#allocation2 + $0x238] sm:$0x3] %vm1251, 0.0
    %1322 = vst.msk [vmem:[#allocation2 + $0x240] sm:$0xff] %vm581, 0.0
    %1323 = vst.msk [vmem:[#allocation2 + $0x248] sm:$0xff] %vm581, 0.0
    %1324 = vst.msk [vmem:[#allocation2 + $0x250] sm:$0x3] %vm1251, 0.0
    %1325 = vst.msk [vmem:[#allocation2 + $0x258] sm:$0xff] %vm581, 0.0
    %1326 = vst.msk [vmem:[#allocation2 + $0x260] sm:$0xff] %vm581, 0.0
    %1327 = vst.msk [vmem:[#allocation2 + $0x268] sm:$0x3] %vm1251, 0.0
    %1328 = vst.msk [vmem:[#allocation2 + $0x270] sm:$0xff] %vm581, 0.0
    %1329 = vst.msk [vmem:[#allocation2 + $0x278] sm:$0xff] %vm581, 0.0
    %1330 = vst.msk [vmem:[#allocation2 + $0x280] sm:$0x3] %vm1251, 0.0
    %1331 = vst.msk [vmem:[#allocation2 + $0x288] sm:$0xff] %vm581, 0.0
    %1332 = vst.msk [vmem:[#allocation2 + $0x290] sm:$0xff] %vm581, 0.0
    %1333 = vst.msk [vmem:[#allocation2 + $0x298] sm:$0x3] %vm1251, 0.0
    %1334 = vst.msk [vmem:[#allocation2 + $0x2a0] sm:$0xff] %vm581, 0.0
    %1335 = vst.msk [vmem:[#allocation2 + $0x2a8] sm:$0xff] %vm581, 0.0
    %1336 = vst.msk [vmem:[#allocation2 + $0x2b0] sm:$0x3] %vm1251, 0.0
    %1337 = vst.msk [vmem:[#allocation2 + $0x2b8] sm:$0xff] %vm581, 0.0
    %1338 = vst.msk [vmem:[#allocation2 + $0x2c0] sm:$0xff] %vm581, 0.0
    %1339 = vst.msk [vmem:[#allocation2 + $0x2c8] sm:$0x3] %vm1251, 0.0
    %1340 = vst.msk [vmem:[#allocation2 + $0x2d0] sm:$0xff] %vm581, 0.0
    %1341 = vst.msk [vmem:[#allocation2 + $0x2d8] sm:$0xff] %vm581, 0.0
    %1342 = vst.msk [vmem:[#allocation2 + $0x2e0] sm:$0x3] %vm1251, 0.0
    %1343 = vst.msk [vmem:[#allocation2 + $0x2e8] sm:$0xff] %vm581, 0.0
    %1344 = vst.msk [vmem:[#allocation2 + $0x2f0] sm:$0xff] %vm581, 0.0
    %1345 = vst.msk [vmem:[#allocation2 + $0x2f8] sm:$0x3] %vm1251, 0.0
    %1346 = vst.msk [vmem:[#allocation2 + $0x300] sm:$0xff] %vm581, 0.0
    %1347 = vst.msk [vmem:[#allocation2 + $0x308] sm:$0xff] %vm581, 0.0
    %1348 = vst.msk [vmem:[#allocation2 + $0x310] sm:$0x3] %vm1251, 0.0
    %1349 = vst.msk [vmem:[#allocation2 + $0x318] sm:$0xff] %vm581, 0.0
    %1350 = vst.msk [vmem:[#allocation2 + $0x320] sm:$0xff] %vm581, 0.0
    %1351 = vst.msk [vmem:[#allocation2 + $0x328] sm:$0x3] %vm1251, 0.0
    %1352 = vst.msk [vmem:[#allocation2 + $0x330] sm:$0xff] %vm581, 0.0
    %1353 = vst.msk [vmem:[#allocation2 + $0x338] sm:$0xff] %vm581, 0.0
    %1354 = vst.msk [vmem:[#allocation2 + $0x340] sm:$0x3] %vm1251, 0.0
    %1355 = vst.msk [vmem:[#allocation2 + $0x348] sm:$0xff] %vm581, 0.0
    %1356 = vst.msk [vmem:[#allocation2 + $0x350] sm:$0xff] %vm581, 0.0
    %1357 = vst.msk [vmem:[#allocation2 + $0x358] sm:$0x3] %vm1251, 0.0
    %s1358 = scalar_lea.vmem [#allocation2], 24
    %1359 = vst.msk [vmem:[%s1358 + $0x1] sm:$0xff] %vm581, %v1185
    %1360 = vst.msk [vmem:[%s1358 + $0x9] sm:$0xff] %vm581, %v1186
    %1361 = vst.msk [vmem:[%s1358 + $0x19] sm:$0xff] %vm581, %v1187
    %1362 = vst.msk [vmem:[%s1358 + $0x21] sm:$0xff] %vm581, %v1188
    %1363 = vst.msk [vmem:[%s1358 + $0x31] sm:$0xff] %vm581, %v1189
    %1364 = vst.msk [vmem:[%s1358 + $0x39] sm:$0xff] %vm581, %v1190
    %1365 = vst.msk [vmem:[%s1358 + $0x49] sm:$0xff] %vm581, %v1191
    %1366 = vst.msk [vmem:[%s1358 + $0x51] sm:$0xff] %vm581, %v1192
    %1367 = vst.msk [vmem:[%s1358 + $0x61] sm:$0xff] %vm581, %v1193
    %1368 = vst.msk [vmem:[%s1358 + $0x69] sm:$0xff] %vm581, %v1194
    %1369 = vst.msk [vmem:[%s1358 + $0x79] sm:$0xff] %vm581, %v1195
    %1370 = vst.msk [vmem:[%s1358 + $0x81] sm:$0xff] %vm581, %v1196
    %1371 = vst.msk [vmem:[%s1358 + $0x91] sm:$0xff] %vm581, %v1197
    %1372 = vst.msk [vmem:[%s1358 + $0x99] sm:$0xff] %vm581, %v1198
    %1373 = vst.msk [vmem:[%s1358 + $0xa9] sm:$0xff] %vm581, %v1199
    %1374 = vst.msk [vmem:[%s1358 + $0xb1] sm:$0xff] %vm581, %v1200
    %1375 = vst.msk [vmem:[%s1358 + $0xc1] sm:$0xff] %vm581, %v1201
    %1376 = vst.msk [vmem:[%s1358 + $0xc9] sm:$0xff] %vm581, %v1202
    %1377 = vst.msk [vmem:[%s1358 + $0xd9] sm:$0xff] %vm581, %v1203
    %1378 = vst.msk [vmem:[%s1358 + $0xe1] sm:$0xff] %vm581, %v1204
    %1379 = vst.msk [vmem:[%s1358 + $0xf1] sm:$0xff] %vm581, %v1205
    %1380 = vst.msk [vmem:[%s1358 + $0xf9] sm:$0xff] %vm581, %v1206
    %1381 = vst.msk [vmem:[%s1358 + $0x109] sm:$0xff] %vm581, %v1207
    %1382 = vst.msk [vmem:[%s1358 + $0x111] sm:$0xff] %vm581, %v1208
    %1383 = vst.msk [vmem:[%s1358 + $0x121] sm:$0xff] %vm581, %v1209
    %1384 = vst.msk [vmem:[%s1358 + $0x129] sm:$0xff] %vm581, %v1210
    %1385 = vst.msk [vmem:[%s1358 + $0x139] sm:$0xff] %vm581, %v1211
    %1386 = vst.msk [vmem:[%s1358 + $0x141] sm:$0xff] %vm581, %v1212
    %1387 = vst.msk [vmem:[%s1358 + $0x151] sm:$0xff] %vm581, %v1213
    %1388 = vst.msk [vmem:[%s1358 + $0x159] sm:$0xff] %vm581, %v1214
    %1389 = vst.msk [vmem:[%s1358 + $0x169] sm:$0xff] %vm581, %v1215
    %1390 = vst.msk [vmem:[%s1358 + $0x171] sm:$0xff] %vm581, %v1216
    %1391 = vst.msk [vmem:[%s1358 + $0x1b1] sm:$0xff] %vm581, %v1217
    %1392 = vst.msk [vmem:[%s1358 + $0x1b9] sm:$0xff] %vm581, %v1218
    %1393 = vst.msk [vmem:[%s1358 + $0x1c9] sm:$0xff] %vm581, %v1219
    %1394 = vst.msk [vmem:[%s1358 + $0x1d1] sm:$0xff] %vm581, %v1220
    %1395 = vst.msk [vmem:[%s1358 + $0x1e1] sm:$0xff] %vm581, %v1221
    %1396 = vst.msk [vmem:[%s1358 + $0x1e9] sm:$0xff] %vm581, %v1222
    %1397 = vst.msk [vmem:[%s1358 + $0x1f9] sm:$0xff] %vm581, %v1223
    %1398 = vst.msk [vmem:[%s1358 + $0x201] sm:$0xff] %vm581, %v1224
    %1399 = vst.msk [vmem:[%s1358 + $0x211] sm:$0xff] %vm581, %v1225
    %1400 = vst.msk [vmem:[%s1358 + $0x219] sm:$0xff] %vm581, %v1226
    %1401 = vst.msk [vmem:[%s1358 + $0x229] sm:$0xff] %vm581, %v1227
    %1402 = vst.msk [vmem:[%s1358 + $0x231] sm:$0xff] %vm581, %v1228
    %1403 = vst.msk [vmem:[%s1358 + $0x241] sm:$0xff] %vm581, %v1229
    %1404 = vst.msk [vmem:[%s1358 + $0x249] sm:$0xff] %vm581, %v1230
    %1405 = vst.msk [vmem:[%s1358 + $0x259] sm:$0xff] %vm581, %v1231
    %1406 = vst.msk [vmem:[%s1358 + $0x261] sm:$0xff] %vm581, %v1232
    %1407 = vst.msk [vmem:[%s1358 + $0x271] sm:$0xff] %vm581, %v1233
    %1408 = vst.msk [vmem:[%s1358 + $0x279] sm:$0xff] %vm581, %v1234
    %1409 = vst.msk [vmem:[%s1358 + $0x289] sm:$0xff] %vm581, %v1235
    %1410 = vst.msk [vmem:[%s1358 + $0x291] sm:$0xff] %vm581, %v1236
    %1411 = vst.msk [vmem:[%s1358 + $0x2a1] sm:$0xff] %vm581, %v1237
    %1412 = vst.msk [vmem:[%s1358 + $0x2a9] sm:$0xff] %vm581, %v1238
    %1413 = vst.msk [vmem:[%s1358 + $0x2b9] sm:$0xff] %vm581, %v1239
    %1414 = vst.msk [vmem:[%s1358 + $0x2c1] sm:$0xff] %vm581, %v1240
    %1415 = vst.msk [vmem:[%s1358 + $0x2d1] sm:$0xff] %vm581, %v1241
    %1416 = vst.msk [vmem:[%s1358 + $0x2d9] sm:$0xff] %vm581, %v1242
    %1417 = vst.msk [vmem:[%s1358 + $0x2e9] sm:$0xff] %vm581, %v1243
    %1418 = vst.msk [vmem:[%s1358 + $0x2f1] sm:$0xff] %vm581, %v1244
    %1419 = vst.msk [vmem:[%s1358 + $0x301] sm:$0xff] %vm581, %v1245
    %1420 = vst.msk [vmem:[%s1358 + $0x309] sm:$0xff] %vm581, %v1246
    %1421 = vst.msk [vmem:[%s1358 + $0x319] sm:$0xff] %vm581, %v1247
    %1422 = vst.msk [vmem:[%s1358 + $0x321] sm:$0xff] %vm581, %v1248
    %v1423 = vld [vmem:[#allocation2] sm:$0xff]
    %v1424 = vld [vmem:[#allocation2 + $0x8] sm:$0xff]
    %v1425 = vld [vmem:[#allocation2 + $0x18] sm:$0xff]
    %v1426 = vld [vmem:[#allocation2 + $0x20] sm:$0xff]
    %v1427 = vld [vmem:[#allocation2 + $0x30] sm:$0xff]
    %v1428 = vld [vmem:[#allocation2 + $0x38] sm:$0xff]
    %v1429 = vld [vmem:[#allocation2 + $0x48] sm:$0xff]
    %v1430 = vld [vmem:[#allocation2 + $0x50] sm:$0xff]
    %v1431 = vld [vmem:[#allocation2 + $0x60] sm:$0xff]
    %v1432 = vld [vmem:[#allocation2 + $0x68] sm:$0xff]
    %v1433 = vld [vmem:[#allocation2 + $0x78] sm:$0xff]
    %v1434 = vld [vmem:[#allocation2 + $0x80] sm:$0xff]
    %v1435 = vld [vmem:[#allocation2 + $0x90] sm:$0xff]
    %v1436 = vld [vmem:[#allocation2 + $0x98] sm:$0xff]
    %v1437 = vld [vmem:[#allocation2 + $0xa8] sm:$0xff]
    %v1438 = vld [vmem:[#allocation2 + $0xb0] sm:$0xff]
    %v1439 = vld [vmem:[#allocation2 + $0xc0] sm:$0xff]
    %v1440 = vld [vmem:[#allocation2 + $0xc8] sm:$0xff]
    %v1441 = vld [vmem:[#allocation2 + $0xd8] sm:$0xff]
    %v1442 = vld [vmem:[#allocation2 + $0xe0] sm:$0xff]
    %v1443 = vld [vmem:[#allocation2 + $0xf0] sm:$0xff]
    %v1444 = vld [vmem:[#allocation2 + $0xf8] sm:$0xff]
    %v1445 = vld [vmem:[#allocation2 + $0x108] sm:$0xff]
    %v1446 = vld [vmem:[#allocation2 + $0x110] sm:$0xff]
    %v1447 = vld [vmem:[#allocation2 + $0x120] sm:$0xff]
    %v1448 = vld [vmem:[#allocation2 + $0x128] sm:$0xff]
    %v1449 = vld [vmem:[#allocation2 + $0x138] sm:$0xff]
    %v1450 = vld [vmem:[#allocation2 + $0x140] sm:$0xff]
    %v1451 = vld [vmem:[#allocation2 + $0x150] sm:$0xff]
    %v1452 = vld [vmem:[#allocation2 + $0x158] sm:$0xff]
    %v1453 = vld [vmem:[#allocation2 + $0x168] sm:$0xff]
    %v1454 = vld [vmem:[#allocation2 + $0x170] sm:$0xff]
    %v1455 = vld [vmem:[#allocation2 + $0x1b0] sm:$0xff]
    %v1456 = vld [vmem:[#allocation2 + $0x1b8] sm:$0xff]
    %v1457 = vld [vmem:[#allocation2 + $0x1c8] sm:$0xff]
    %v1458 = vld [vmem:[#allocation2 + $0x1d0] sm:$0xff]
    %v1459 = vld [vmem:[#allocation2 + $0x1e0] sm:$0xff]
    %v1460 = vld [vmem:[#allocation2 + $0x1e8] sm:$0xff]
    %v1461 = vld [vmem:[#allocation2 + $0x1f8] sm:$0xff]
    %v1462 = vld [vmem:[#allocation2 + $0x200] sm:$0xff]
    %v1463 = vld [vmem:[#allocation2 + $0x210] sm:$0xff]
    %v1464 = vld [vmem:[#allocation2 + $0x218] sm:$0xff]
    %v1465 = vld [vmem:[#allocation2 + $0x228] sm:$0xff]
    %v1466 = vld [vmem:[#allocation2 + $0x230] sm:$0xff]
    %v1467 = vld [vmem:[#allocation2 + $0x240] sm:$0xff]
    %v1468 = vld [vmem:[#allocation2 + $0x248] sm:$0xff]
    %v1469 = vld [vmem:[#allocation2 + $0x258] sm:$0xff]
    %v1470 = vld [vmem:[#allocation2 + $0x260] sm:$0xff]
    %v1471 = vld [vmem:[#allocation2 + $0x270] sm:$0xff]
    %v1472 = vld [vmem:[#allocation2 + $0x278] sm:$0xff]
    %v1473 = vld [vmem:[#allocation2 + $0x288] sm:$0xff]
    %v1474 = vld [vmem:[#allocation2 + $0x290] sm:$0xff]
    %v1475 = vld [vmem:[#allocation2 + $0x2a0] sm:$0xff]
    %v1476 = vld [vmem:[#allocation2 + $0x2a8] sm:$0xff]
    %v1477 = vld [vmem:[#allocation2 + $0x2b8] sm:$0xff]
    %v1478 = vld [vmem:[#allocation2 + $0x2c0] sm:$0xff]
    %v1479 = vld [vmem:[#allocation2 + $0x2d0] sm:$0xff]
    %v1480 = vld [vmem:[#allocation2 + $0x2d8] sm:$0xff]
    %v1481 = vld [vmem:[#allocation2 + $0x2e8] sm:$0xff]
    %v1482 = vld [vmem:[#allocation2 + $0x2f0] sm:$0xff]
    %v1483 = vld [vmem:[#allocation2 + $0x300] sm:$0xff]
    %v1484 = vld [vmem:[#allocation2 + $0x308] sm:$0xff]
    %v1485 = vld [vmem:[#allocation2 + $0x318] sm:$0xff]
    %v1486 = vld [vmem:[#allocation2 + $0x320] sm:$0xff]
    %v1487 = vld [vmem:[#allocation6] sm:$0xf]
    %v1488 = vld [vmem:[#allocation6 + $0x4] sm:$0xf]
    %v1489 = vpack.c.bf16 %v1424, %v1423
    %v1490 = vpack.c.bf16 %v1426, %v1425
    %v1491 = vpack.c.bf16 %v1428, %v1427
    %v1492 = vpack.c.bf16 %v1430, %v1429
    %v1493 = vpack.c.bf16 %v1432, %v1431
    %v1494 = vpack.c.bf16 %v1434, %v1433
    %v1495 = vpack.c.bf16 %v1436, %v1435
    %v1496 = vpack.c.bf16 %v1438, %v1437
    %v1497 = vpack.c.bf16 %v1440, %v1439
    %v1498 = vpack.c.bf16 %v1442, %v1441
    %v1499 = vpack.c.bf16 %v1444, %v1443
    %v1500 = vpack.c.bf16 %v1446, %v1445
    %v1501 = vpack.c.bf16 %v1448, %v1447
    %v1502 = vpack.c.bf16 %v1450, %v1449
    %v1503 = vpack.c.bf16 %v1452, %v1451
    %v1504 = vpack.c.bf16 %v1454, %v1453
    %v1505 = vpack.c.bf16 %v1456, %v1455
    %v1506 = vpack.c.bf16 %v1458, %v1457
    %v1507 = vpack.c.bf16 %v1460, %v1459
    %v1508 = vpack.c.bf16 %v1462, %v1461
    %v1509 = vpack.c.bf16 %v1464, %v1463
    %v1510 = vpack.c.bf16 %v1466, %v1465
    %v1511 = vpack.c.bf16 %v1468, %v1467
    %v1512 = vpack.c.bf16 %v1470, %v1469
    %v1513 = vpack.c.bf16 %v1472, %v1471
    %v1514 = vpack.c.bf16 %v1474, %v1473
    %v1515 = vpack.c.bf16 %v1476, %v1475
    %v1516 = vpack.c.bf16 %v1478, %v1477
    %v1517 = vpack.c.bf16 %v1480, %v1479
    %v1518 = vpack.c.bf16 %v1482, %v1481
    %v1519 = vpack.c.bf16 %v1484, %v1483
    %v1520 = vpack.c.bf16 %v1486, %v1485
    %v1521 = vld [vmem:[#allocation2 + $0x1] sm:$0xff]
    %v1522 = vld [vmem:[#allocation2 + $0x9] sm:$0xff]
    %v1523 = vld [vmem:[#allocation2 + $0x19] sm:$0xff]
    %v1524 = vld [vmem:[#allocation2 + $0x21] sm:$0xff]
    %v1525 = vld [vmem:[#allocation2 + $0x31] sm:$0xff]
    %v1526 = vld [vmem:[#allocation2 + $0x39] sm:$0xff]
    %v1527 = vld [vmem:[#allocation2 + $0x49] sm:$0xff]
    %v1528 = vld [vmem:[#allocation2 + $0x51] sm:$0xff]
    %v1529 = vld [vmem:[#allocation2 + $0x61] sm:$0xff]
    %v1530 = vld [vmem:[#allocation2 + $0x69] sm:$0xff]
    %v1531 = vld [vmem:[#allocation2 + $0x79] sm:$0xff]
    %v1532 = vld [vmem:[#allocation2 + $0x81] sm:$0xff]
    %v1533 = vld [vmem:[#allocation2 + $0x91] sm:$0xff]
    %v1534 = vld [vmem:[#allocation2 + $0x99] sm:$0xff]
    %v1535 = vld [vmem:[#allocation2 + $0xa9] sm:$0xff]
    %v1536 = vld [vmem:[#allocation2 + $0xb1] sm:$0xff]
    %v1537 = vld [vmem:[#allocation2 + $0xc1] sm:$0xff]
    %v1538 = vld [vmem:[#allocation2 + $0xc9] sm:$0xff]
    %v1539 = vld [vmem:[#allocation2 + $0xd9] sm:$0xff]
    %v1540 = vld [vmem:[#allocation2 + $0xe1] sm:$0xff]
    %v1541 = vld [vmem:[#allocation2 + $0xf1] sm:$0xff]
    %v1542 = vld [vmem:[#allocation2 + $0xf9] sm:$0xff]
    %v1543 = vld [vmem:[#allocation2 + $0x109] sm:$0xff]
    %v1544 = vld [vmem:[#allocation2 + $0x111] sm:$0xff]
    %v1545 = vld [vmem:[#allocation2 + $0x121] sm:$0xff]
    %v1546 = vld [vmem:[#allocation2 + $0x129] sm:$0xff]
    %v1547 = vld [vmem:[#allocation2 + $0x139] sm:$0xff]
    %v1548 = vld [vmem:[#allocation2 + $0x141] sm:$0xff]
    %v1549 = vld [vmem:[#allocation2 + $0x151] sm:$0xff]
    %v1550 = vld [vmem:[#allocation2 + $0x159] sm:$0xff]
    %v1551 = vld [vmem:[#allocation2 + $0x169] sm:$0xff]
    %v1552 = vld [vmem:[#allocation2 + $0x171] sm:$0xff]
    %v1553 = vld [vmem:[#allocation2 + $0x1b1] sm:$0xff]
    %v1554 = vld [vmem:[#allocation2 + $0x1b9] sm:$0xff]
    %v1555 = vld [vmem:[#allocation2 + $0x1c9] sm:$0xff]
    %v1556 = vld [vmem:[#allocation2 + $0x1d1] sm:$0xff]
    %v1557 = vld [vmem:[#allocation2 + $0x1e1] sm:$0xff]
    %v1558 = vld [vmem:[#allocation2 + $0x1e9] sm:$0xff]
    %v1559 = vld [vmem:[#allocation2 + $0x1f9] sm:$0xff]
    %v1560 = vld [vmem:[#allocation2 + $0x201] sm:$0xff]
    %v1561 = vld [vmem:[#allocation2 + $0x211] sm:$0xff]
    %v1562 = vld [vmem:[#allocation2 + $0x219] sm:$0xff]
    %v1563 = vld [vmem:[#allocation2 + $0x229] sm:$0xff]
    %v1564 = vld [vmem:[#allocation2 + $0x231] sm:$0xff]
    %v1565 = vld [vmem:[#allocation2 + $0x241] sm:$0xff]
    %v1566 = vld [vmem:[#allocation2 + $0x249] sm:$0xff]
    %v1567 = vld [vmem:[#allocation2 + $0x259] sm:$0xff]
    %v1568 = vld [vmem:[#allocation2 + $0x261] sm:$0xff]
    %v1569 = vld [vmem:[#allocation2 + $0x271] sm:$0xff]
    %v1570 = vld [vmem:[#allocation2 + $0x279] sm:$0xff]
    %v1571 = vld [vmem:[#allocation2 + $0x289] sm:$0xff]
    %v1572 = vld [vmem:[#allocation2 + $0x291] sm:$0xff]
    %v1573 = vld [vmem:[#allocation2 + $0x2a1] sm:$0xff]
    %v1574 = vld [vmem:[#allocation2 + $0x2a9] sm:$0xff]
    %v1575 = vld [vmem:[#allocation2 + $0x2b9] sm:$0xff]
    %v1576 = vld [vmem:[#allocation2 + $0x2c1] sm:$0xff]
    %v1577 = vld [vmem:[#allocation2 + $0x2d1] sm:$0xff]
    %v1578 = vld [vmem:[#allocation2 + $0x2d9] sm:$0xff]
    %v1579 = vld [vmem:[#allocation2 + $0x2e9] sm:$0xff]
    %v1580 = vld [vmem:[#allocation2 + $0x2f1] sm:$0xff]
    %v1581 = vld [vmem:[#allocation2 + $0x301] sm:$0xff]
    %v1582 = vld [vmem:[#allocation2 + $0x309] sm:$0xff]
    %v1583 = vld [vmem:[#allocation2 + $0x319] sm:$0xff]
    %v1584 = vld [vmem:[#allocation2 + $0x321] sm:$0xff]
    %s1585 = scalar_lea.vmem [#allocation6], 8
    %v1586 = vld [vmem:[%s1585] sm:$0xf]
    %v1587 = vld [vmem:[%s1585 + $0x4] sm:$0xf]
    %v1588 = vpack.c.bf16 %v1522, %v1521
    %v1589 = vpack.c.bf16 %v1524, %v1523
    %v1590 = vpack.c.bf16 %v1526, %v1525
    %v1591 = vpack.c.bf16 %v1528, %v1527
    %v1592 = vpack.c.bf16 %v1530, %v1529
    %v1593 = vpack.c.bf16 %v1532, %v1531
    %v1594 = vpack.c.bf16 %v1534, %v1533
    %v1595 = vpack.c.bf16 %v1536, %v1535
    %v1596 = vpack.c.bf16 %v1538, %v1537
    %v1597 = vpack.c.bf16 %v1540, %v1539
    %v1598 = vpack.c.bf16 %v1542, %v1541
    %v1599 = vpack.c.bf16 %v1544, %v1543
    %v1600 = vpack.c.bf16 %v1546, %v1545
    %v1601 = vpack.c.bf16 %v1548, %v1547
    %v1602 = vpack.c.bf16 %v1550, %v1549
    %v1603 = vpack.c.bf16 %v1552, %v1551
    %v1604 = vpack.c.bf16 %v1554, %v1553
    %v1605 = vpack.c.bf16 %v1556, %v1555
    %v1606 = vpack.c.bf16 %v1558, %v1557
    %v1607 = vpack.c.bf16 %v1560, %v1559
    %v1608 = vpack.c.bf16 %v1562, %v1561
    %v1609 = vpack.c.bf16 %v1564, %v1563
    %v1610 = vpack.c.bf16 %v1566, %v1565
    %v1611 = vpack.c.bf16 %v1568, %v1567
    %v1612 = vpack.c.bf16 %v1570, %v1569
    %v1613 = vpack.c.bf16 %v1572, %v1571
    %v1614 = vpack.c.bf16 %v1574, %v1573
    %v1615 = vpack.c.bf16 %v1576, %v1575
    %v1616 = vpack.c.bf16 %v1578, %v1577
    %v1617 = vpack.c.bf16 %v1580, %v1579
    %v1618 = vpack.c.bf16 %v1582, %v1581
    %v1619 = vpack.c.bf16 %v1584, %v1583
    %v1622 = vunpack.c.l.b16 %v1586
    %v1623 = vunpack.c.l.b16 %v1587
    %v1624 = vpack.c.b16 %v1623, %v1622
    %v1627 = vsel %vm581, %v1588, 0
    %v1630 = vsel %vm581, %v1589, 0
    %v1633 = vsel %vm581, %v1590, 0
    %v1636 = vsel %vm581, %v1591, 0
    %v1639 = vsel %vm581, %v1592, 0
    %v1642 = vsel %vm581, %v1593, 0
    %v1645 = vsel %vm581, %v1594, 0
    %v1648 = vsel %vm581, %v1595, 0
    %v1651 = vsel %vm581, %v1596, 0
    %v1654 = vsel %vm581, %v1597, 0
    %v1657 = vsel %vm581, %v1598, 0
    %v1660 = vsel %vm581, %v1599, 0
    %v1663 = vsel %vm581, %v1600, 0
    %v1666 = vsel %vm581, %v1601, 0
    %v1669 = vsel %vm581, %v1602, 0
    %v1672 = vsel %vm581, %v1603, 0
    %v1675 = vsel %vm581, %v1604, 0
    %v1678 = vsel %vm581, %v1605, 0
    %v1681 = vsel %vm581, %v1606, 0
    %v1684 = vsel %vm581, %v1607, 0
    %v1687 = vsel %vm581, %v1608, 0
    %v1690 = vsel %vm581, %v1609, 0
    %v1693 = vsel %vm581, %v1610, 0
    %v1696 = vsel %vm581, %v1611, 0
    %v1699 = vsel %vm581, %v1612, 0
    %v1702 = vsel %vm581, %v1613, 0
    %v1705 = vsel %vm581, %v1614, 0
    %v1708 = vsel %vm581, %v1615, 0
    %v1711 = vsel %vm581, %v1616, 0
    %v1714 = vsel %vm581, %v1617, 0
    %v1717 = vsel %vm581, %v1618, 0
    %v1720 = vsel %vm581, %v1619, 0
    %1722 = vmatprep.subr.bf16.mxu0 0
    %1723 = vmatpush1.bf16.msra.mxu0 %v1624
    %1724 = vmatprep.subr.bf16.mxu0 0
    %1725 = vmatpush1.bf16.msra.mxu0 0
    %1726 = vmatprep.subr.bf16.mxu0 0
    %1727 = vmatpush1.bf16.msra.mxu0 0
    %1728 = vmatprep.subr.bf16.mxu0 0
    %1729 = vmatpush1.bf16.msra.mxu0 0
    %1730 = vmatprep.subr.bf16.mxu0 0
    %1731 = vmatpush1.bf16.msra.mxu0 0
    %1732 = vmatprep.subr.bf16.mxu0 0
    %1733 = vmatpush1.bf16.msra.mxu0 0
    %1734 = vmatprep.subr.bf16.mxu0 0
    %1735 = vmatpush1.bf16.msra.mxu0 0
    %1736 = vmatprep.subr.bf16.mxu0 0
    %1737 = vmatpush1.bf16.msra.mxu0 0
    %1738 = vmatprep.subr.bf16.mxu0 0
    %1739 = vmatpush1.bf16.msra.mxu0 0
    %1740 = vmatprep.subr.bf16.mxu0 0
    %1741 = vmatpush1.bf16.msra.mxu0 0
    %1742 = vmatprep.subr.bf16.mxu0 0
    %1743 = vmatpush1.bf16.msra.mxu0 0
    %1744 = vmatprep.subr.bf16.mxu0 0
    %1745 = vmatpush1.bf16.msra.mxu0 0
    %1746 = vmatprep.subr.bf16.mxu0 0
    %1747 = vmatpush1.bf16.msra.mxu0 0
    %1748 = vmatprep.subr.bf16.mxu0 0
    %1749 = vmatpush1.bf16.msra.mxu0 0
    %1750 = vmatprep.subr.bf16.mxu0 0
    %1751 = vmatpush1.bf16.msra.mxu0 0
    %1752 = vmatprep.subr.bf16.mxu0 0
    %1753 = vmatpush1.bf16.msra.mxu0 0
    %1754 = vmatprep.mubr.bf16.mxu0 0
    %1755 = vmatmul.mubr.bf16.gmra.mrb[0].mxu0 %v1627
    %v1756 = vpop.f32.mrb[0].mxu0
    %v1757 = vadd.f32 0.0, %v1756
    %v1758 = vpop.f32.mrb[0].mxu0
    %v1759 = vpop.f32.mrb[0].mxu0
    %v1760 = vadd.f32 0.0, %v1759
    %v1761 = vpop.f32.mrb[0].mxu0
    %1762 = vmatprep.mubr.bf16.mxu0 0
    %1763 = vmatmul.mubr.bf16.gmra.mrb[0].mxu0 %v1630
    %v1764 = vpop.f32.mrb[0].mxu0
    %v1765 = vadd.f32 0.0, %v1764
    %v1766 = vpop.f32.mrb[0].mxu0
    %v1767 = vpop.f32.mrb[0].mxu0
    %v1768 = vadd.f32 0.0, %v1767
    %v1769 = vpop.f32.mrb[0].mxu0
    %1770 = vmatprep.mubr.bf16.mxu0 0
    %1771 = vmatmul.mubr.bf16.gmra.mrb[0].mxu0 %v1633
    %v1772 = vpop.f32.mrb[0].mxu0
    %v1773 = vadd.f32 0.0, %v1772
    %v1774 = vpop.f32.mrb[0].mxu0
    %v1775 = vpop.f32.mrb[0].mxu0
    %v1776 = vadd.f32 0.0, %v1775
    %v1777 = vpop.f32.mrb[0].mxu0
    %1778 = vmatprep.mubr.bf16.mxu0 0
    %1779 = vmatmul.mubr.bf16.gmra.mrb[0].mxu0 %v1636
    %v1780 = vpop.f32.mrb[0].mxu0
    %v1781 = vadd.f32 0.0, %v1780
    %v1782 = vpop.f32.mrb[0].mxu0
    %v1783 = vpop.f32.mrb[0].mxu0
    %v1784 = vadd.f32 0.0, %v1783
    %v1785 = vpop.f32.mrb[0].mxu0
    %1786 = vmatprep.mubr.bf16.mxu0 0
    %1787 = vmatmul.mubr.bf16.gmra.mrb[0].mxu0 %v1639
    %v1788 = vpop.f32.mrb[0].mxu0
    %v1789 = vadd.f32 0.0, %v1788
    %v1790 = vpop.f32.mrb[0].mxu0
    %v1791 = vpop.f32.mrb[0].mxu0
    %v1792 = vadd.f32 0.0, %v1791
    %v1793 = vpop.f32.mrb[0].mxu0
    %1794 = vmatprep.mubr.bf16.mxu0 0
    %1795 = vmatmul.mubr.bf16.gmra.mrb[0].mxu0 %v1642
    %v1796 = vpop.f32.mrb[0].mxu0
    %v1797 = vadd.f32 0.0, %v1796
    %v1798 = vpop.f32.mrb[0].mxu0
    %v1799 = vpop.f32.mrb[0].mxu0
    %v1800 = vadd.f32 0.0, %v1799
    %v1801 = vpop.f32.mrb[0].mxu0
    %1802 = vmatprep.mubr.bf16.mxu0 0
    %1803 = vmatmul.mubr.bf16.gmra.mrb[0].mxu0 %v1645
    %v1804 = vpop.f32.mrb[0].mxu0
    %v1805 = vadd.f32 0.0, %v1804
    %v1806 = vpop.f32.mrb[0].mxu0
    %v1807 = vpop.f32.mrb[0].mxu0
    %v1808 = vadd.f32 0.0, %v1807
    %v1809 = vpop.f32.mrb[0].mxu0
    %1810 = vmatprep.mubr.bf16.mxu0 0
    %1811 = vmatmul.mubr.bf16.gmra.mrb[0].mxu0 %v1648
    %v1812 = vpop.f32.mrb[0].mxu0
    %v1813 = vadd.f32 0.0, %v1812
    %v1814 = vpop.f32.mrb[0].mxu0
    %v1815 = vpop.f32.mrb[0].mxu0
    %v1816 = vadd.f32 0.0, %v1815
    %v1817 = vpop.f32.mrb[0].mxu0
    %1818 = vmatprep.mubr.bf16.mxu0 0
    %1819 = vmatmul.mubr.bf16.gmra.mrb[0].mxu0 %v1651
    %v1820 = vpop.f32.mrb[0].mxu0
    %v1821 = vadd.f32 0.0, %v1820
    %v1822 = vpop.f32.mrb[0].mxu0
    %v1823 = vpop.f32.mrb[0].mxu0
    %v1824 = vadd.f32 0.0, %v1823
    %v1825 = vpop.f32.mrb[0].mxu0
    %1826 = vmatprep.mubr.bf16.mxu0 0
    %1827 = vmatmul.mubr.bf16.gmra.mrb[0].mxu0 %v1654
    %v1828 = vpop.f32.mrb[0].mxu0
    %v1829 = vadd.f32 0.0, %v1828
    %v1830 = vpop.f32.mrb[0].mxu0
    %v1831 = vpop.f32.mrb[0].mxu0
    %v1832 = vadd.f32 0.0, %v1831
    %v1833 = vpop.f32.mrb[0].mxu0
    %1834 = vmatprep.mubr.bf16.mxu0 0
    %1835 = vmatmul.mubr.bf16.gmra.mrb[0].mxu0 %v1657
    %v1836 = vpop.f32.mrb[0].mxu0
    %v1837 = vadd.f32 0.0, %v1836
    %v1838 = vpop.f32.mrb[0].mxu0
    %v1839 = vpop.f32.mrb[0].mxu0
    %v1840 = vadd.f32 0.0, %v1839
    %v1841 = vpop.f32.mrb[0].mxu0
    %1842 = vmatprep.mubr.bf16.mxu0 0
    %1843 = vmatmul.mubr.bf16.gmra.mrb[0].mxu0 %v1660
    %v1844 = vpop.f32.mrb[0].mxu0
    %v1845 = vadd.f32 0.0, %v1844
    %v1846 = vpop.f32.mrb[0].mxu0
    %v1847 = vpop.f32.mrb[0].mxu0
    %v1848 = vadd.f32 0.0, %v1847
    %v1849 = vpop.f32.mrb[0].mxu0
    %1850 = vmatprep.mubr.bf16.mxu0 0
    %1851 = vmatmul.mubr.bf16.gmra.mrb[0].mxu0 %v1663
    %v1852 = vpop.f32.mrb[0].mxu0
    %v1853 = vadd.f32 0.0, %v1852
    %v1854 = vpop.f32.mrb[0].mxu0
    %v1855 = vpop.f32.mrb[0].mxu0
    %v1856 = vadd.f32 0.0, %v1855
    %v1857 = vpop.f32.mrb[0].mxu0
    %1858 = vmatprep.mubr.bf16.mxu0 0
    %1859 = vmatmul.mubr.bf16.gmra.mrb[0].mxu0 %v1666
    %v1860 = vpop.f32.mrb[0].mxu0
    %v1861 = vadd.f32 0.0, %v1860
    %v1862 = vpop.f32.mrb[0].mxu0
    %v1863 = vpop.f32.mrb[0].mxu0
    %v1864 = vadd.f32 0.0, %v1863
    %v1865 = vpop.f32.mrb[0].mxu0
    %1866 = vmatprep.mubr.bf16.mxu0 0
    %1867 = vmatmul.mubr.bf16.gmra.mrb[0].mxu0 %v1669
    %v1868 = vpop.f32.mrb[0].mxu0
    %v1869 = vadd.f32 0.0, %v1868
    %v1870 = vpop.f32.mrb[0].mxu0
    %v1871 = vpop.f32.mrb[0].mxu0
    %v1872 = vadd.f32 0.0, %v1871
    %v1873 = vpop.f32.mrb[0].mxu0
    %1874 = vmatprep.mubr.bf16.mxu0 0
    %1875 = vmatmul.mubr.bf16.gmra.mrb[0].mxu0 %v1672
    %v1876 = vpop.f32.mrb[0].mxu0
    %v1877 = vadd.f32 0.0, %v1876
    %v1878 = vpop.f32.mrb[0].mxu0
    %v1879 = vpop.f32.mrb[0].mxu0
    %v1880 = vadd.f32 0.0, %v1879
    %v1881 = vpop.f32.mrb[0].mxu0
    %1882 = vmatprep.mubr.bf16.mxu0 0
    %1883 = vmatmul.mubr.bf16.gmra.mrb[0].mxu0 %v1675
    %v1884 = vpop.f32.mrb[0].mxu0
    %v1885 = vadd.f32 0.0, %v1884
    %v1886 = vpop.f32.mrb[0].mxu0
    %v1887 = vpop.f32.mrb[0].mxu0
    %v1888 = vadd.f32 0.0, %v1887
    %v1889 = vpop.f32.mrb[0].mxu0
    %1890 = vmatprep.mubr.bf16.mxu0 0
    %1891 = vmatmul.mubr.bf16.gmra.mrb[0].mxu0 %v1678
    %v1892 = vpop.f32.mrb[0].mxu0
    %v1893 = vadd.f32 0.0, %v1892
    %v1894 = vpop.f32.mrb[0].mxu0
    %v1895 = vpop.f32.mrb[0].mxu0
    %v1896 = vadd.f32 0.0, %v1895
    %v1897 = vpop.f32.mrb[0].mxu0
    %1898 = vmatprep.mubr.bf16.mxu0 0
    %1899 = vmatmul.mubr.bf16.gmra.mrb[0].mxu0 %v1681
    %v1900 = vpop.f32.mrb[0].mxu0
    %v1901 = vadd.f32 0.0, %v1900
    %v1902 = vpop.f32.mrb[0].mxu0
    %v1903 = vpop.f32.mrb[0].mxu0
    %v1904 = vadd.f32 0.0, %v1903
    %v1905 = vpop.f32.mrb[0].mxu0
    %1906 = vmatprep.mubr.bf16.mxu0 0
    %1907 = vmatmul.mubr.bf16.gmra.mrb[0].mxu0 %v1684
    %v1908 = vpop.f32.mrb[0].mxu0
    %v1909 = vadd.f32 0.0, %v1908
    %v1910 = vpop.f32.mrb[0].mxu0
    %v1911 = vpop.f32.mrb[0].mxu0
    %v1912 = vadd.f32 0.0, %v1911
    %v1913 = vpop.f32.mrb[0].mxu0
    %1914 = vmatprep.mubr.bf16.mxu0 0
    %1915 = vmatmul.mubr.bf16.gmra.mrb[0].mxu0 %v1687
    %v1916 = vpop.f32.mrb[0].mxu0
    %v1917 = vadd.f32 0.0, %v1916
    %v1918 = vpop.f32.mrb[0].mxu0
    %v1919 = vpop.f32.mrb[0].mxu0
    %v1920 = vadd.f32 0.0, %v1919
    %v1921 = vpop.f32.mrb[0].mxu0
    %1922 = vmatprep.mubr.bf16.mxu0 0
    %1923 = vmatmul.mubr.bf16.gmra.mrb[0].mxu0 %v1690
    %v1924 = vpop.f32.mrb[0].mxu0
    %v1925 = vadd.f32 0.0, %v1924
    %v1926 = vpop.f32.mrb[0].mxu0
    %v1927 = vpop.f32.mrb[0].mxu0
    %v1928 = vadd.f32 0.0, %v1927
    %v1929 = vpop.f32.mrb[0].mxu0
    %1930 = vmatprep.mubr.bf16.mxu0 0
    %1931 = vmatmul.mubr.bf16.gmra.mrb[0].mxu0 %v1693
    %v1932 = vpop.f32.mrb[0].mxu0
    %v1933 = vadd.f32 0.0, %v1932
    %v1934 = vpop.f32.mrb[0].mxu0
    %v1935 = vpop.f32.mrb[0].mxu0
    %v1936 = vadd.f32 0.0, %v1935
    %v1937 = vpop.f32.mrb[0].mxu0
    %1938 = vmatprep.mubr.bf16.mxu0 0
    %1939 = vmatmul.mubr.bf16.gmra.mrb[0].mxu0 %v1696
    %v1940 = vpop.f32.mrb[0].mxu0
    %v1941 = vadd.f32 0.0, %v1940
    %v1942 = vpop.f32.mrb[0].mxu0
    %v1943 = vpop.f32.mrb[0].mxu0
    %v1944 = vadd.f32 0.0, %v1943
    %v1945 = vpop.f32.mrb[0].mxu0
    %1946 = vmatprep.mubr.bf16.mxu0 0
    %1947 = vmatmul.mubr.bf16.gmra.mrb[0].mxu0 %v1699
    %v1948 = vpop.f32.mrb[0].mxu0
    %v1949 = vadd.f32 0.0, %v1948
    %v1950 = vpop.f32.mrb[0].mxu0
    %v1951 = vpop.f32.mrb[0].mxu0
    %v1952 = vadd.f32 0.0, %v1951
    %v1953 = vpop.f32.mrb[0].mxu0
    %1954 = vmatprep.mubr.bf16.mxu0 0
    %1955 = vmatmul.mubr.bf16.gmra.mrb[0].mxu0 %v1702
    %v1956 = vpop.f32.mrb[0].mxu0
    %v1957 = vadd.f32 0.0, %v1956
    %v1958 = vpop.f32.mrb[0].mxu0
    %v1959 = vpop.f32.mrb[0].mxu0
    %v1960 = vadd.f32 0.0, %v1959
    %v1961 = vpop.f32.mrb[0].mxu0
    %1962 = vmatprep.mubr.bf16.mxu0 0
    %1963 = vmatmul.mubr.bf16.gmra.mrb[0].mxu0 %v1705
    %v1964 = vpop.f32.mrb[0].mxu0
    %v1965 = vadd.f32 0.0, %v1964
    %v1966 = vpop.f32.mrb[0].mxu0
    %v1967 = vpop.f32.mrb[0].mxu0
    %v1968 = vadd.f32 0.0, %v1967
    %v1969 = vpop.f32.mrb[0].mxu0
    %1970 = vmatprep.mubr.bf16.mxu0 0
    %1971 = vmatmul.mubr.bf16.gmra.mrb[0].mxu0 %v1708
    %v1972 = vpop.f32.mrb[0].mxu0
    %v1973 = vadd.f32 0.0, %v1972
    %v1974 = vpop.f32.mrb[0].mxu0
    %v1975 = vpop.f32.mrb[0].mxu0
    %v1976 = vadd.f32 0.0, %v1975
    %v1977 = vpop.f32.mrb[0].mxu0
    %1978 = vmatprep.mubr.bf16.mxu0 0
    %1979 = vmatmul.mubr.bf16.gmra.mrb[0].mxu0 %v1711
    %v1980 = vpop.f32.mrb[0].mxu0
    %v1981 = vadd.f32 0.0, %v1980
    %v1982 = vpop.f32.mrb[0].mxu0
    %v1983 = vpop.f32.mrb[0].mxu0
    %v1984 = vadd.f32 0.0, %v1983
    %v1985 = vpop.f32.mrb[0].mxu0
    %1986 = vmatprep.mubr.bf16.mxu0 0
    %1987 = vmatmul.mubr.bf16.gmra.mrb[0].mxu0 %v1714
    %v1988 = vpop.f32.mrb[0].mxu0
    %v1989 = vadd.f32 0.0, %v1988
    %v1990 = vpop.f32.mrb[0].mxu0
    %v1991 = vpop.f32.mrb[0].mxu0
    %v1992 = vadd.f32 0.0, %v1991
    %v1993 = vpop.f32.mrb[0].mxu0
    %1994 = vmatprep.mubr.bf16.mxu0 0
    %1995 = vmatmul.mubr.bf16.gmra.mrb[0].mxu0 %v1717
    %v1996 = vpop.f32.mrb[0].mxu0
    %v1997 = vadd.f32 0.0, %v1996
    %v1998 = vpop.f32.mrb[0].mxu0
    %v1999 = vpop.f32.mrb[0].mxu0
    %v2000 = vadd.f32 0.0, %v1999
    %v2001 = vpop.f32.mrb[0].mxu0
    %2002 = vmatprep.mubr.bf16.mxu0 0
    %2003 = vmatmul.mubr.bf16.gmra.mrb[0].mxu0 %v1720
    %v2004 = vpop.f32.mrb[0].mxu0
    %v2005 = vadd.f32 0.0, %v2004
    %v2006 = vpop.f32.mrb[0].mxu0
    %v2007 = vpop.f32.mrb[0].mxu0
    %v2008 = vadd.f32 0.0, %v2007
    %v2009 = vpop.f32.mrb[0].mxu0
    %2010 = vdwg.mxu0
    %v2013 = vunpack.c.l.b16 %v1487
    %v2014 = vunpack.c.l.b16 %v1488
    %v2015 = vpack.c.b16 %v2014, %v2013
    %v2018 = vsel %vm581, %v1489, 0
    %v2021 = vsel %vm581, %v1490, 0
    %v2024 = vsel %vm581, %v1491, 0
    %v2027 = vsel %vm581, %v1492, 0
    %v2030 = vsel %vm581, %v1493, 0
    %v2033 = vsel %vm581, %v1494, 0
    %v2036 = vsel %vm581, %v1495, 0
    %v2039 = vsel %vm581, %v1496, 0
    %v2042 = vsel %vm581, %v1497, 0
    %v2045 = vsel %vm581, %v1498, 0
    %v2048 = vsel %vm581, %v1499, 0
    %v2051 = vsel %vm581, %v1500, 0
    %v2054 = vsel %vm581, %v1501, 0
    %v2057 = vsel %vm581, %v1502, 0
    %v2060 = vsel %vm581, %v1503, 0
    %v2063 = vsel %vm581, %v1504, 0
    %v2066 = vsel %vm581, %v1505, 0
    %v2069 = vsel %vm581, %v1506, 0
    %v2072 = vsel %vm581, %v1507, 0
    %v2075 = vsel %vm581, %v1508, 0
    %v2078 = vsel %vm581, %v1509, 0
    %v2081 = vsel %vm581, %v1510, 0
    %v2084 = vsel %vm581, %v1511, 0
    %v2087 = vsel %vm581, %v1512, 0
    %v2090 = vsel %vm581, %v1513, 0
    %v2093 = vsel %vm581, %v1514, 0
    %v2096 = vsel %vm581, %v1515, 0
    %v2099 = vsel %vm581, %v1516, 0
    %v2102 = vsel %vm581, %v1517, 0
    %v2105 = vsel %vm581, %v1518, 0
    %v2108 = vsel %vm581, %v1519, 0
    %v2111 = vsel %vm581, %v1520, 0
    %2113 = vmatprep.subr.bf16.mxu0 0
    %2114 = vmatpush1.bf16.msra.mxu0 %v2015
    %2115 = vmatprep.subr.bf16.mxu0 0
    %2116 = vmatpush1.bf16.msra.mxu0 0
    %2117 = vmatprep.subr.bf16.mxu0 0
    %2118 = vmatpush1.bf16.msra.mxu0 0
    %2119 = vmatprep.subr.bf16.mxu0 0
    %2120 = vmatpush1.bf16.msra.mxu0 0
    %2121 = vmatprep.subr.bf16.mxu0 0
    %2122 = vmatpush1.bf16.msra.mxu0 0
    %2123 = vmatprep.subr.bf16.mxu0 0
    %2124 = vmatpush1.bf16.msra.mxu0 0
    %2125 = vmatprep.subr.bf16.mxu0 0
    %2126 = vmatpush1.bf16.msra.mxu0 0
    %2127 = vmatprep.subr.bf16.mxu0 0
    %2128 = vmatpush1.bf16.msra.mxu0 0
    %2129 = vmatprep.subr.bf16.mxu0 0
    %2130 = vmatpush1.bf16.msra.mxu0 0
    %2131 = vmatprep.subr.bf16.mxu0 0
    %2132 = vmatpush1.bf16.msra.mxu0 0
    %2133 = vmatprep.subr.bf16.mxu0 0
    %2134 = vmatpush1.bf16.msra.mxu0 0
    %2135 = vmatprep.subr.bf16.mxu0 0
    %2136 = vmatpush1.bf16.msra.mxu0 0
    %2137 = vmatprep.subr.bf16.mxu0 0
    %2138 = vmatpush1.bf16.msra.mxu0 0
    %2139 = vmatprep.subr.bf16.mxu0 0
    %2140 = vmatpush1.bf16.msra.mxu0 0
    %2141 = vmatprep.subr.bf16.mxu0 0
    %2142 = vmatpush1.bf16.msra.mxu0 0
    %2143 = vmatprep.subr.bf16.mxu0 0
    %2144 = vmatpush1.bf16.msra.mxu0 0
    %2145 = vmatprep.mubr.bf16.mxu0 0
    %2146 = vmatmul.mubr.bf16.gmra.mrb[0].mxu0 %v2018
    %v2147 = vpop.f32.mrb[0].mxu0
    %v2148 = vadd.f32 %v1757, %v2147
    %v2149 = vpop.f32.mrb[0].mxu0
    %v2150 = vpop.f32.mrb[0].mxu0
    %v2151 = vadd.f32 %v1760, %v2150
    %v2152 = vpop.f32.mrb[0].mxu0
    %2153 = vmatprep.mubr.bf16.mxu0 0
    %2154 = vmatmul.mubr.bf16.gmra.mrb[0].mxu0 %v2021
    %v2155 = vpop.f32.mrb[0].mxu0
    %v2156 = vadd.f32 %v1765, %v2155
    %v2157 = vpop.f32.mrb[0].mxu0
    %v2158 = vpop.f32.mrb[0].mxu0
    %v2159 = vadd.f32 %v1768, %v2158
    %v2160 = vpop.f32.mrb[0].mxu0
    %2161 = vmatprep.mubr.bf16.mxu0 0
    %2162 = vmatmul.mubr.bf16.gmra.mrb[0].mxu0 %v2024
    %v2163 = vpop.f32.mrb[0].mxu0
    %v2164 = vadd.f32 %v1773, %v2163
    %v2165 = vpop.f32.mrb[0].mxu0
    %v2166 = vpop.f32.mrb[0].mxu0
    %v2167 = vadd.f32 %v1776, %v2166
    %v2168 = vpop.f32.mrb[0].mxu0
    %2169 = vmatprep.mubr.bf16.mxu0 0
    %2170 = vmatmul.mubr.bf16.gmra.mrb[0].mxu0 %v2027
    %v2171 = vpop.f32.mrb[0].mxu0
    %v2172 = vadd.f32 %v1781, %v2171
    %v2173 = vpop.f32.mrb[0].mxu0
    %v2174 = vpop.f32.mrb[0].mxu0
    %v2175 = vadd.f32 %v1784, %v2174
    %v2176 = vpop.f32.mrb[0].mxu0
    %2177 = vmatprep.mubr.bf16.mxu0 0
    %2178 = vmatmul.mubr.bf16.gmra.mrb[0].mxu0 %v2030
    %v2179 = vpop.f32.mrb[0].mxu0
    %v2180 = vadd.f32 %v1789, %v2179
    %v2181 = vpop.f32.mrb[0].mxu0
    %v2182 = vpop.f32.mrb[0].mxu0
    %v2183 = vadd.f32 %v1792, %v2182
    %v2184 = vpop.f32.mrb[0].mxu0
    %2185 = vmatprep.mubr.bf16.mxu0 0
    %2186 = vmatmul.mubr.bf16.gmra.mrb[0].mxu0 %v2033
    %v2187 = vpop.f32.mrb[0].mxu0
    %v2188 = vadd.f32 %v1797, %v2187
    %v2189 = vpop.f32.mrb[0].mxu0
    %v2190 = vpop.f32.mrb[0].mxu0
    %v2191 = vadd.f32 %v1800, %v2190
    %v2192 = vpop.f32.mrb[0].mxu0
    %2193 = vmatprep.mubr.bf16.mxu0 0
    %2194 = vmatmul.mubr.bf16.gmra.mrb[0].mxu0 %v2036
    %v2195 = vpop.f32.mrb[0].mxu0
    %v2196 = vadd.f32 %v1805, %v2195
    %v2197 = vpop.f32.mrb[0].mxu0
    %v2198 = vpop.f32.mrb[0].mxu0
    %v2199 = vadd.f32 %v1808, %v2198
    %v2200 = vpop.f32.mrb[0].mxu0
    %2201 = vmatprep.mubr.bf16.mxu0 0
    %2202 = vmatmul.mubr.bf16.gmra.mrb[0].mxu0 %v2039
    %v2203 = vpop.f32.mrb[0].mxu0
    %v2204 = vadd.f32 %v1813, %v2203
    %v2205 = vpop.f32.mrb[0].mxu0
    %v2206 = vpop.f32.mrb[0].mxu0
    %v2207 = vadd.f32 %v1816, %v2206
    %v2208 = vpop.f32.mrb[0].mxu0
    %2209 = vmatprep.mubr.bf16.mxu0 0
    %2210 = vmatmul.mubr.bf16.gmra.mrb[0].mxu0 %v2042
    %v2211 = vpop.f32.mrb[0].mxu0
    %v2212 = vadd.f32 %v1821, %v2211
    %v2213 = vpop.f32.mrb[0].mxu0
    %v2214 = vpop.f32.mrb[0].mxu0
    %v2215 = vadd.f32 %v1824, %v2214
    %v2216 = vpop.f32.mrb[0].mxu0
    %2217 = vmatprep.mubr.bf16.mxu0 0
    %2218 = vmatmul.mubr.bf16.gmra.mrb[0].mxu0 %v2045
    %v2219 = vpop.f32.mrb[0].mxu0
    %v2220 = vadd.f32 %v1829, %v2219
    %v2221 = vpop.f32.mrb[0].mxu0
    %v2222 = vpop.f32.mrb[0].mxu0
    %v2223 = vadd.f32 %v1832, %v2222
    %v2224 = vpop.f32.mrb[0].mxu0
    %2225 = vmatprep.mubr.bf16.mxu0 0
    %2226 = vmatmul.mubr.bf16.gmra.mrb[0].mxu0 %v2048
    %v2227 = vpop.f32.mrb[0].mxu0
    %v2228 = vadd.f32 %v1837, %v2227
    %v2229 = vpop.f32.mrb[0].mxu0
    %v2230 = vpop.f32.mrb[0].mxu0
    %v2231 = vadd.f32 %v1840, %v2230
    %v2232 = vpop.f32.mrb[0].mxu0
    %2233 = vmatprep.mubr.bf16.mxu0 0
    %2234 = vmatmul.mubr.bf16.gmra.mrb[0].mxu0 %v2051
    %v2235 = vpop.f32.mrb[0].mxu0
    %v2236 = vadd.f32 %v1845, %v2235
    %v2237 = vpop.f32.mrb[0].mxu0
    %v2238 = vpop.f32.mrb[0].mxu0
    %v2239 = vadd.f32 %v1848, %v2238
    %v2240 = vpop.f32.mrb[0].mxu0
    %2241 = vmatprep.mubr.bf16.mxu0 0
    %2242 = vmatmul.mubr.bf16.gmra.mrb[0].mxu0 %v2054
    %v2243 = vpop.f32.mrb[0].mxu0
    %v2244 = vadd.f32 %v1853, %v2243
    %v2245 = vpop.f32.mrb[0].mxu0
    %v2246 = vpop.f32.mrb[0].mxu0
    %v2247 = vadd.f32 %v1856, %v2246
    %v2248 = vpop.f32.mrb[0].mxu0
    %2249 = vmatprep.mubr.bf16.mxu0 0
    %2250 = vmatmul.mubr.bf16.gmra.mrb[0].mxu0 %v2057
    %v2251 = vpop.f32.mrb[0].mxu0
    %v2252 = vadd.f32 %v1861, %v2251
    %v2253 = vpop.f32.mrb[0].mxu0
    %v2254 = vpop.f32.mrb[0].mxu0
    %v2255 = vadd.f32 %v1864, %v2254
    %v2256 = vpop.f32.mrb[0].mxu0
    %2257 = vmatprep.mubr.bf16.mxu0 0
    %2258 = vmatmul.mubr.bf16.gmra.mrb[0].mxu0 %v2060
    %v2259 = vpop.f32.mrb[0].mxu0
    %v2260 = vadd.f32 %v1869, %v2259
    %v2261 = vpop.f32.mrb[0].mxu0
    %v2262 = vpop.f32.mrb[0].mxu0
    %v2263 = vadd.f32 %v1872, %v2262
    %v2264 = vpop.f32.mrb[0].mxu0
    %2265 = vmatprep.mubr.bf16.mxu0 0
    %2266 = vmatmul.mubr.bf16.gmra.mrb[0].mxu0 %v2063
    %v2267 = vpop.f32.mrb[0].mxu0
    %v2268 = vadd.f32 %v1877, %v2267
    %v2269 = vpop.f32.mrb[0].mxu0
    %v2270 = vpop.f32.mrb[0].mxu0
    %v2271 = vadd.f32 %v1880, %v2270
    %v2272 = vpop.f32.mrb[0].mxu0
    %2273 = vmatprep.mubr.bf16.mxu0 0
    %2274 = vmatmul.mubr.bf16.gmra.mrb[0].mxu0 %v2066
    %v2275 = vpop.f32.mrb[0].mxu0
    %v2276 = vadd.f32 %v1885, %v2275
    %v2277 = vpop.f32.mrb[0].mxu0
    %v2278 = vpop.f32.mrb[0].mxu0
    %v2279 = vadd.f32 %v1888, %v2278
    %v2280 = vpop.f32.mrb[0].mxu0
    %2281 = vmatprep.mubr.bf16.mxu0 0
    %2282 = vmatmul.mubr.bf16.gmra.mrb[0].mxu0 %v2069
    %v2283 = vpop.f32.mrb[0].mxu0
    %v2284 = vadd.f32 %v1893, %v2283
    %v2285 = vpop.f32.mrb[0].mxu0
    %v2286 = vpop.f32.mrb[0].mxu0
    %v2287 = vadd.f32 %v1896, %v2286
    %v2288 = vpop.f32.mrb[0].mxu0
    %2289 = vmatprep.mubr.bf16.mxu0 0
    %2290 = vmatmul.mubr.bf16.gmra.mrb[0].mxu0 %v2072
    %v2291 = vpop.f32.mrb[0].mxu0
    %v2292 = vadd.f32 %v1901, %v2291
    %v2293 = vpop.f32.mrb[0].mxu0
    %v2294 = vpop.f32.mrb[0].mxu0
    %v2295 = vadd.f32 %v1904, %v2294
    %v2296 = vpop.f32.mrb[0].mxu0
    %2297 = vmatprep.mubr.bf16.mxu0 0
    %2298 = vmatmul.mubr.bf16.gmra.mrb[0].mxu0 %v2075
    %v2299 = vpop.f32.mrb[0].mxu0
    %v2300 = vadd.f32 %v1909, %v2299
    %v2301 = vpop.f32.mrb[0].mxu0
    %v2302 = vpop.f32.mrb[0].mxu0
    %v2303 = vadd.f32 %v1912, %v2302
    %v2304 = vpop.f32.mrb[0].mxu0
    %2305 = vmatprep.mubr.bf16.mxu0 0
    %2306 = vmatmul.mubr.bf16.gmra.mrb[0].mxu0 %v2078
    %v2307 = vpop.f32.mrb[0].mxu0
    %v2308 = vadd.f32 %v1917, %v2307
    %v2309 = vpop.f32.mrb[0].mxu0
    %v2310 = vpop.f32.mrb[0].mxu0
    %v2311 = vadd.f32 %v1920, %v2310
    %v2312 = vpop.f32.mrb[0].mxu0
    %2313 = vmatprep.mubr.bf16.mxu0 0
    %2314 = vmatmul.mubr.bf16.gmra.mrb[0].mxu0 %v2081
    %v2315 = vpop.f32.mrb[0].mxu0
    %v2316 = vadd.f32 %v1925, %v2315
    %v2317 = vpop.f32.mrb[0].mxu0
    %v2318 = vpop.f32.mrb[0].mxu0
    %v2319 = vadd.f32 %v1928, %v2318
    %v2320 = vpop.f32.mrb[0].mxu0
    %2321 = vmatprep.mubr.bf16.mxu0 0
    %2322 = vmatmul.mubr.bf16.gmra.mrb[0].mxu0 %v2084
    %v2323 = vpop.f32.mrb[0].mxu0
    %v2324 = vadd.f32 %v1933, %v2323
    %v2325 = vpop.f32.mrb[0].mxu0
    %v2326 = vpop.f32.mrb[0].mxu0
    %v2327 = vadd.f32 %v1936, %v2326
    %v2328 = vpop.f32.mrb[0].mxu0
    %2329 = vmatprep.mubr.bf16.mxu0 0
    %2330 = vmatmul.mubr.bf16.gmra.mrb[0].mxu0 %v2087
    %v2331 = vpop.f32.mrb[0].mxu0
    %v2332 = vadd.f32 %v1941, %v2331
    %v2333 = vpop.f32.mrb[0].mxu0
    %v2334 = vpop.f32.mrb[0].mxu0
    %v2335 = vadd.f32 %v1944, %v2334
    %v2336 = vpop.f32.mrb[0].mxu0
    %2337 = vmatprep.mubr.bf16.mxu0 0
    %2338 = vmatmul.mubr.bf16.gmra.mrb[0].mxu0 %v2090
    %v2339 = vpop.f32.mrb[0].mxu0
    %v2340 = vadd.f32 %v1949, %v2339
    %v2341 = vpop.f32.mrb[0].mxu0
    %v2342 = vpop.f32.mrb[0].mxu0
    %v2343 = vadd.f32 %v1952, %v2342
    %v2344 = vpop.f32.mrb[0].mxu0
    %2345 = vmatprep.mubr.bf16.mxu0 0
    %2346 = vmatmul.mubr.bf16.gmra.mrb[0].mxu0 %v2093
    %v2347 = vpop.f32.mrb[0].mxu0
    %v2348 = vadd.f32 %v1957, %v2347
    %v2349 = vpop.f32.mrb[0].mxu0
    %v2350 = vpop.f32.mrb[0].mxu0
    %v2351 = vadd.f32 %v1960, %v2350
    %v2352 = vpop.f32.mrb[0].mxu0
    %2353 = vmatprep.mubr.bf16.mxu0 0
    %2354 = vmatmul.mubr.bf16.gmra.mrb[0].mxu0 %v2096
    %v2355 = vpop.f32.mrb[0].mxu0
    %v2356 = vadd.f32 %v1965, %v2355
    %v2357 = vpop.f32.mrb[0].mxu0
    %v2358 = vpop.f32.mrb[0].mxu0
    %v2359 = vadd.f32 %v1968, %v2358
    %v2360 = vpop.f32.mrb[0].mxu0
    %2361 = vmatprep.mubr.bf16.mxu0 0
    %2362 = vmatmul.mubr.bf16.gmra.mrb[0].mxu0 %v2099
    %v2363 = vpop.f32.mrb[0].mxu0
    %v2364 = vadd.f32 %v1973, %v2363
    %v2365 = vpop.f32.mrb[0].mxu0
    %v2366 = vpop.f32.mrb[0].mxu0
    %v2367 = vadd.f32 %v1976, %v2366
    %v2368 = vpop.f32.mrb[0].mxu0
    %2369 = vmatprep.mubr.bf16.mxu0 0
    %2370 = vmatmul.mubr.bf16.gmra.mrb[0].mxu0 %v2102
    %v2371 = vpop.f32.mrb[0].mxu0
    %v2372 = vadd.f32 %v1981, %v2371
    %v2373 = vpop.f32.mrb[0].mxu0
    %v2374 = vpop.f32.mrb[0].mxu0
    %v2375 = vadd.f32 %v1984, %v2374
    %v2376 = vpop.f32.mrb[0].mxu0
    %2377 = vmatprep.mubr.bf16.mxu0 0
    %2378 = vmatmul.mubr.bf16.gmra.mrb[0].mxu0 %v2105
    %v2379 = vpop.f32.mrb[0].mxu0
    %v2380 = vadd.f32 %v1989, %v2379
    %v2381 = vpop.f32.mrb[0].mxu0
    %v2382 = vpop.f32.mrb[0].mxu0
    %v2383 = vadd.f32 %v1992, %v2382
    %v2384 = vpop.f32.mrb[0].mxu0
    %2385 = vmatprep.mubr.bf16.mxu0 0
    %2386 = vmatmul.mubr.bf16.gmra.mrb[0].mxu0 %v2108
    %v2387 = vpop.f32.mrb[0].mxu0
    %v2388 = vadd.f32 %v1997, %v2387
    %v2389 = vpop.f32.mrb[0].mxu0
    %v2390 = vpop.f32.mrb[0].mxu0
    %v2391 = vadd.f32 %v2000, %v2390
    %v2392 = vpop.f32.mrb[0].mxu0
    %2393 = vmatprep.mubr.bf16.mxu0 0
    %2394 = vmatmul.mubr.bf16.gmra.mrb[0].mxu0 %v2111
    %v2395 = vpop.f32.mrb[0].mxu0
    %v2396 = vadd.f32 %v2005, %v2395
    %v2397 = vpop.f32.mrb[0].mxu0
    %v2398 = vpop.f32.mrb[0].mxu0
    %v2399 = vadd.f32 %v2008, %v2398
    %v2400 = vpop.f32.mrb[0].mxu0
    %2401 = vdwg.mxu0
    %v2402 = vld [vmem:[#allocation2 + $0x2] sm:$0xff]
    %v2403 = vld [vmem:[#allocation2 + $0xa] sm:$0xff]
    %v2404 = vld [vmem:[#allocation2 + $0x1a] sm:$0xff]
    %v2405 = vld [vmem:[#allocation2 + $0x22] sm:$0xff]
    %v2406 = vld [vmem:[#allocation2 + $0x32] sm:$0xff]
    %v2407 = vld [vmem:[#allocation2 + $0x3a] sm:$0xff]
    %v2408 = vld [vmem:[#allocation2 + $0x4a] sm:$0xff]
    %v2409 = vld [vmem:[#allocation2 + $0x52] sm:$0xff]
    %v2410 = vld [vmem:[#allocation2 + $0x62] sm:$0xff]
    %v2411 = vld [vmem:[#allocation2 + $0x6a] sm:$0xff]
    %v2412 = vld [vmem:[#allocation2 + $0x7a] sm:$0xff]
    %v2413 = vld [vmem:[#allocation2 + $0x82] sm:$0xff]
    %v2414 = vld [vmem:[#allocation2 + $0x92] sm:$0xff]
    %v2415 = vld [vmem:[#allocation2 + $0x9a] sm:$0xff]
    %v2416 = vld [vmem:[#allocation2 + $0xaa] sm:$0xff]
    %v2417 = vld [vmem:[#allocation2 + $0xb2] sm:$0xff]
    %v2418 = vld [vmem:[#allocation2 + $0xc2] sm:$0xff]
    %v2419 = vld [vmem:[#allocation2 + $0xca] sm:$0xff]
    %v2420 = vld [vmem:[#allocation2 + $0xda] sm:$0xff]
    %v2421 = vld [vmem:[#allocation2 + $0xe2] sm:$0xff]
    %v2422 = vld [vmem:[#allocation2 + $0xf2] sm:$0xff]
    %v2423 = vld [vmem:[#allocation2 + $0xfa] sm:$0xff]
    %v2424 = vld [vmem:[#allocation2 + $0x10a] sm:$0xff]
    %v2425 = vld [vmem:[#allocation2 + $0x112] sm:$0xff]
    %v2426 = vld [vmem:[#allocation2 + $0x122] sm:$0xff]
    %v2427 = vld [vmem:[#allocation2 + $0x12a] sm:$0xff]
    %v2428 = vld [vmem:[#allocation2 + $0x13a] sm:$0xff]
    %v2429 = vld [vmem:[#allocation2 + $0x142] sm:$0xff]
    %v2430 = vld [vmem:[#allocation2 + $0x152] sm:$0xff]
    %v2431 = vld [vmem:[#allocation2 + $0x15a] sm:$0xff]
    %v2432 = vld [vmem:[#allocation2 + $0x16a] sm:$0xff]
    %v2433 = vld [vmem:[#allocation2 + $0x172] sm:$0xff]
    %v2434 = vld [vmem:[#allocation2 + $0x1b2] sm:$0xff]
    %v2435 = vld [vmem:[#allocation2 + $0x1ba] sm:$0xff]
    %v2436 = vld [vmem:[#allocation2 + $0x1ca] sm:$0xff]
    %v2437 = vld [vmem:[#allocation2 + $0x1d2] sm:$0xff]
    %v2438 = vld [vmem:[#allocation2 + $0x1e2] sm:$0xff]
    %v2439 = vld [vmem:[#allocation2 + $0x1ea] sm:$0xff]
    %v2440 = vld [vmem:[#allocation2 + $0x1fa] sm:$0xff]
    %v2441 = vld [vmem:[#allocation2 + $0x202] sm:$0xff]
    %v2442 = vld [vmem:[#allocation2 + $0x212] sm:$0xff]
    %v2443 = vld [vmem:[#allocation2 + $0x21a] sm:$0xff]
    %v2444 = vld [vmem:[#allocation2 + $0x22a] sm:$0xff]
    %v2445 = vld [vmem:[#allocation2 + $0x232] sm:$0xff]
    %v2446 = vld [vmem:[#allocation2 + $0x242] sm:$0xff]
    %v2447 = vld [vmem:[#allocation2 + $0x24a] sm:$0xff]
    %v2448 = vld [vmem:[#allocation2 + $0x25a] sm:$0xff]
    %v2449 = vld [vmem:[#allocation2 + $0x262] sm:$0xff]
    %v2450 = vld [vmem:[#allocation2 + $0x272] sm:$0xff]
    %v2451 = vld [vmem:[#allocation2 + $0x27a] sm:$0xff]
    %v2452 = vld [vmem:[#allocation2 + $0x28a] sm:$0xff]
    %v2453 = vld [vmem:[#allocation2 + $0x292] sm:$0xff]
    %v2454 = vld [vmem:[#allocation2 + $0x2a2] sm:$0xff]
    %v2455 = vld [vmem:[#allocation2 + $0x2aa] sm:$0xff]
    %v2456 = vld [vmem:[#allocation2 + $0x2ba] sm:$0xff]
    %v2457 = vld [vmem:[#allocation2 + $0x2c2] sm:$0xff]
    %v2458 = vld [vmem:[#allocation2 + $0x2d2] sm:$0xff]
    %v2459 = vld [vmem:[#allocation2 + $0x2da] sm:$0xff]
    %v2460 = vld [vmem:[#allocation2 + $0x2ea] sm:$0xff]
    %v2461 = vld [vmem:[#allocation2 + $0x2f2] sm:$0xff]
    %v2462 = vld [vmem:[#allocation2 + $0x302] sm:$0xff]
    %v2463 = vld [vmem:[#allocation2 + $0x30a] sm:$0xff]
    %v2464 = vld [vmem:[#allocation2 + $0x31a] sm:$0xff]
    %v2465 = vld [vmem:[#allocation2 + $0x322] sm:$0xff]
    %s2466 = scalar_lea.vmem [#allocation6], 16
    %v2467 = vld [vmem:[%s2466] sm:$0xf]
    %v2468 = vld [vmem:[%s2466 + $0x4] sm:$0xf]
    %v2469 = vpack.c.bf16 %v2403, %v2402
    %v2470 = vpack.c.bf16 %v2405, %v2404
    %v2471 = vpack.c.bf16 %v2407, %v2406
    %v2472 = vpack.c.bf16 %v2409, %v2408
    %v2473 = vpack.c.bf16 %v2411, %v2410
    %v2474 = vpack.c.bf16 %v2413, %v2412
    %v2475 = vpack.c.bf16 %v2415, %v2414
    %v2476 = vpack.c.bf16 %v2417, %v2416
    %v2477 = vpack.c.bf16 %v2419, %v2418
    %v2478 = vpack.c.bf16 %v2421, %v2420
    %v2479 = vpack.c.bf16 %v2423, %v2422
    %v2480 = vpack.c.bf16 %v2425, %v2424
    %v2481 = vpack.c.bf16 %v2427, %v2426
    %v2482 = vpack.c.bf16 %v2429, %v2428
    %v2483 = vpack.c.bf16 %v2431, %v2430
    %v2484 = vpack.c.bf16 %v2433, %v2432
    %v2485 = vpack.c.bf16 %v2435, %v2434
    %v2486 = vpack.c.bf16 %v2437, %v2436
    %v2487 = vpack.c.bf16 %v2439, %v2438
    %v2488 = vpack.c.bf16 %v2441, %v2440
    %v2489 = vpack.c.bf16 %v2443, %v2442
    %v2490 = vpack.c.bf16 %v2445, %v2444
    %v2491 = vpack.c.bf16 %v2447, %v2446
    %v2492 = vpack.c.bf16 %v2449, %v2448
    %v2493 = vpack.c.bf16 %v2451, %v2450
    %v2494 = vpack.c.bf16 %v2453, %v2452
    %v2495 = vpack.c.bf16 %v2455, %v2454
    %v2496 = vpack.c.bf16 %v2457, %v2456
    %v2497 = vpack.c.bf16 %v2459, %v2458
    %v2498 = vpack.c.bf16 %v2461, %v2460
    %v2499 = vpack.c.bf16 %v2463, %v2462
    %v2500 = vpack.c.bf16 %v2465, %v2464
    %v2503 = vunpack.c.l.b16 %v2467
    %v2504 = vunpack.c.l.b16 %v2468
    %v2505 = vpack.c.b16 %v2504, %v2503
    %v2508 = vsel %vm581, %v2469, 0
    %v2511 = vsel %vm581, %v2470, 0
    %v2514 = vsel %vm581, %v2471, 0
    %v2517 = vsel %vm581, %v2472, 0
    %v2520 = vsel %vm581, %v2473, 0
    %v2523 = vsel %vm581, %v2474, 0
    %v2526 = vsel %vm581, %v2475, 0
    %v2529 = vsel %vm581, %v2476, 0
    %v2532 = vsel %vm581, %v2477, 0
    %v2535 = vsel %vm581, %v2478, 0
    %v2538 = vsel %vm581, %v2479, 0
    %v2541 = vsel %vm581, %v2480, 0
    %v2544 = vsel %vm581, %v2481, 0
    %v2547 = vsel %vm581, %v2482, 0
    %v2550 = vsel %vm581, %v2483, 0
    %v2553 = vsel %vm581, %v2484, 0
    %v2556 = vsel %vm581, %v2485, 0
    %v2559 = vsel %vm581, %v2486, 0
    %v2562 = vsel %vm581, %v2487, 0
    %v2565 = vsel %vm581, %v2488, 0
    %v2568 = vsel %vm581, %v2489, 0
    %v2571 = vsel %vm581, %v2490, 0
    %v2574 = vsel %vm581, %v2491, 0
    %v2577 = vsel %vm581, %v2492, 0
    %v2580 = vsel %vm581, %v2493, 0
    %v2583 = vsel %vm581, %v2494, 0
    %v2586 = vsel %vm581, %v2495, 0
    %v2589 = vsel %vm581, %v2496, 0
    %v2592 = vsel %vm581, %v2497, 0
    %v2595 = vsel %vm581, %v2498, 0
    %v2598 = vsel %vm581, %v2499, 0
    %v2601 = vsel %vm581, %v2500, 0
    %2603 = vmatprep.subr.bf16.mxu0 0
    %2604 = vmatpush1.bf16.msra.mxu0 %v2505
    %2605 = vmatprep.subr.bf16.mxu0 0
    %2606 = vmatpush1.bf16.msra.mxu0 0
    %2607 = vmatprep.subr.bf16.mxu0 0
    %2608 = vmatpush1.bf16.msra.mxu0 0
    %2609 = vmatprep.subr.bf16.mxu0 0
    %2610 = vmatpush1.bf16.msra.mxu0 0
    %2611 = vmatprep.subr.bf16.mxu0 0
    %2612 = vmatpush1.bf16.msra.mxu0 0
    %2613 = vmatprep.subr.bf16.mxu0 0
    %2614 = vmatpush1.bf16.msra.mxu0 0
    %2615 = vmatprep.subr.bf16.mxu0 0
    %2616 = vmatpush1.bf16.msra.mxu0 0
    %2617 = vmatprep.subr.bf16.mxu0 0
    %2618 = vmatpush1.bf16.msra.mxu0 0
    %2619 = vmatprep.subr.bf16.mxu0 0
    %2620 = vmatpush1.bf16.msra.mxu0 0
    %2621 = vmatprep.subr.bf16.mxu0 0
    %2622 = vmatpush1.bf16.msra.mxu0 0
    %2623 = vmatprep.subr.bf16.mxu0 0
    %2624 = vmatpush1.bf16.msra.mxu0 0
    %2625 = vmatprep.subr.bf16.mxu0 0
    %2626 = vmatpush1.bf16.msra.mxu0 0
    %2627 = vmatprep.subr.bf16.mxu0 0
    %2628 = vmatpush1.bf16.msra.mxu0 0
    %2629 = vmatprep.subr.bf16.mxu0 0
    %2630 = vmatpush1.bf16.msra.mxu0 0
    %2631 = vmatprep.subr.bf16.mxu0 0
    %2632 = vmatpush1.bf16.msra.mxu0 0
    %2633 = vmatprep.subr.bf16.mxu0 0
    %2634 = vmatpush1.bf16.msra.mxu0 0
    %2635 = vmatprep.mubr.bf16.mxu0 0
    %2636 = vmatmul.mubr.bf16.gmra.mrb[0].mxu0 %v2508
    %v2637 = vpop.f32.mrb[0].mxu0
    %v2638 = vadd.f32 0.0, %v2637
    %v2639 = vpop.f32.mrb[0].mxu0
    %v2640 = vpop.f32.mrb[0].mxu0
    %v2641 = vadd.f32 0.0, %v2640
    %v2642 = vpop.f32.mrb[0].mxu0
    %2643 = vmatprep.mubr.bf16.mxu0 0
    %2644 = vmatmul.mubr.bf16.gmra.mrb[0].mxu0 %v2511
    %v2645 = vpop.f32.mrb[0].mxu0
    %v2646 = vadd.f32 0.0, %v2645
    %v2647 = vpop.f32.mrb[0].mxu0
    %v2648 = vpop.f32.mrb[0].mxu0
    %v2649 = vadd.f32 0.0, %v2648
    %v2650 = vpop.f32.mrb[0].mxu0
    %2651 = vmatprep.mubr.bf16.mxu0 0
    %2652 = vmatmul.mubr.bf16.gmra.mrb[0].mxu0 %v2514
    %v2653 = vpop.f32.mrb[0].mxu0
    %v2654 = vadd.f32 0.0, %v2653
    %v2655 = vpop.f32.mrb[0].mxu0
    %v2656 = vpop.f32.mrb[0].mxu0
    %v2657 = vadd.f32 0.0, %v2656
    %v2658 = vpop.f32.mrb[0].mxu0
    %2659 = vmatprep.mubr.bf16.mxu0 0
    %2660 = vmatmul.mubr.bf16.gmra.mrb[0].mxu0 %v2517
    %v2661 = vpop.f32.mrb[0].mxu0
    %v2662 = vadd.f32 0.0, %v2661
    %v2663 = vpop.f32.mrb[0].mxu0
    %v2664 = vpop.f32.mrb[0].mxu0
    %v2665 = vadd.f32 0.0, %v2664
    %v2666 = vpop.f32.mrb[0].mxu0
    %2667 = vmatprep.mubr.bf16.mxu0 0
    %2668 = vmatmul.mubr.bf16.gmra.mrb[0].mxu0 %v2520
    %v2669 = vpop.f32.mrb[0].mxu0
    %v2670 = vadd.f32 0.0, %v2669
    %v2671 = vpop.f32.mrb[0].mxu0
    %v2672 = vpop.f32.mrb[0].mxu0
    %v2673 = vadd.f32 0.0, %v2672
    %v2674 = vpop.f32.mrb[0].mxu0
    %2675 = vmatprep.mubr.bf16.mxu0 0
    %2676 = vmatmul.mubr.bf16.gmra.mrb[0].mxu0 %v2523
    %v2677 = vpop.f32.mrb[0].mxu0
    %v2678 = vadd.f32 0.0, %v2677
    %v2679 = vpop.f32.mrb[0].mxu0
    %v2680 = vpop.f32.mrb[0].mxu0
    %v2681 = vadd.f32 0.0, %v2680
    %v2682 = vpop.f32.mrb[0].mxu0
    %2683 = vmatprep.mubr.bf16.mxu0 0
    %2684 = vmatmul.mubr.bf16.gmra.mrb[0].mxu0 %v2526
    %v2685 = vpop.f32.mrb[0].mxu0
    %v2686 = vadd.f32 0.0, %v2685
    %v2687 = vpop.f32.mrb[0].mxu0
    %v2688 = vpop.f32.mrb[0].mxu0
    %v2689 = vadd.f32 0.0, %v2688
    %v2690 = vpop.f32.mrb[0].mxu0
    %2691 = vmatprep.mubr.bf16.mxu0 0
    %2692 = vmatmul.mubr.bf16.gmra.mrb[0].mxu0 %v2529
    %v2693 = vpop.f32.mrb[0].mxu0
    %v2694 = vadd.f32 0.0, %v2693
    %v2695 = vpop.f32.mrb[0].mxu0
    %v2696 = vpop.f32.mrb[0].mxu0
    %v2697 = vadd.f32 0.0, %v2696
    %v2698 = vpop.f32.mrb[0].mxu0
    %2699 = vmatprep.mubr.bf16.mxu0 0
    %2700 = vmatmul.mubr.bf16.gmra.mrb[0].mxu0 %v2532
    %v2701 = vpop.f32.mrb[0].mxu0
    %v2702 = vadd.f32 0.0, %v2701
    %v2703 = vpop.f32.mrb[0].mxu0
    %v2704 = vpop.f32.mrb[0].mxu0
    %v2705 = vadd.f32 0.0, %v2704
    %v2706 = vpop.f32.mrb[0].mxu0
    %2707 = vmatprep.mubr.bf16.mxu0 0
    %2708 = vmatmul.mubr.bf16.gmra.mrb[0].mxu0 %v2535
    %v2709 = vpop.f32.mrb[0].mxu0
    %v2710 = vadd.f32 0.0, %v2709
    %v2711 = vpop.f32.mrb[0].mxu0
    %v2712 = vpop.f32.mrb[0].mxu0
    %v2713 = vadd.f32 0.0, %v2712
    %v2714 = vpop.f32.mrb[0].mxu0
    %2715 = vmatprep.mubr.bf16.mxu0 0
    %2716 = vmatmul.mubr.bf16.gmra.mrb[0].mxu0 %v2538
    %v2717 = vpop.f32.mrb[0].mxu0
    %v2718 = vadd.f32 0.0, %v2717
    %v2719 = vpop.f32.mrb[0].mxu0
    %v2720 = vpop.f32.mrb[0].mxu0
    %v2721 = vadd.f32 0.0, %v2720
    %v2722 = vpop.f32.mrb[0].mxu0
    %2723 = vmatprep.mubr.bf16.mxu0 0
    %2724 = vmatmul.mubr.bf16.gmra.mrb[0].mxu0 %v2541
    %v2725 = vpop.f32.mrb[0].mxu0
    %v2726 = vadd.f32 0.0, %v2725
    %v2727 = vpop.f32.mrb[0].mxu0
    %v2728 = vpop.f32.mrb[0].mxu0
    %v2729 = vadd.f32 0.0, %v2728
    %v2730 = vpop.f32.mrb[0].mxu0
    %2731 = vmatprep.mubr.bf16.mxu0 0
    %2732 = vmatmul.mubr.bf16.gmra.mrb[0].mxu0 %v2544
    %v2733 = vpop.f32.mrb[0].mxu0
    %v2734 = vadd.f32 0.0, %v2733
    %v2735 = vpop.f32.mrb[0].mxu0
    %v2736 = vpop.f32.mrb[0].mxu0
    %v2737 = vadd.f32 0.0, %v2736
    %v2738 = vpop.f32.mrb[0].mxu0
    %2739 = vmatprep.mubr.bf16.mxu0 0
    %2740 = vmatmul.mubr.bf16.gmra.mrb[0].mxu0 %v2547
    %v2741 = vpop.f32.mrb[0].mxu0
    %v2742 = vadd.f32 0.0, %v2741
    %v2743 = vpop.f32.mrb[0].mxu0
    %v2744 = vpop.f32.mrb[0].mxu0
    %v2745 = vadd.f32 0.0, %v2744
    %v2746 = vpop.f32.mrb[0].mxu0
    %2747 = vmatprep.mubr.bf16.mxu0 0
    %2748 = vmatmul.mubr.bf16.gmra.mrb[0].mxu0 %v2550
    %v2749 = vpop.f32.mrb[0].mxu0
    %v2750 = vadd.f32 0.0, %v2749
    %v2751 = vpop.f32.mrb[0].mxu0
    %v2752 = vpop.f32.mrb[0].mxu0
    %v2753 = vadd.f32 0.0, %v2752
    %v2754 = vpop.f32.mrb[0].mxu0
    %2755 = vmatprep.mubr.bf16.mxu0 0
    %2756 = vmatmul.mubr.bf16.gmra.mrb[0].mxu0 %v2553
    %v2757 = vpop.f32.mrb[0].mxu0
    %v2758 = vadd.f32 0.0, %v2757
    %v2759 = vpop.f32.mrb[0].mxu0
    %v2760 = vpop.f32.mrb[0].mxu0
    %v2761 = vadd.f32 0.0, %v2760
    %v2762 = vpop.f32.mrb[0].mxu0
    %2763 = vmatprep.mubr.bf16.mxu0 0
    %2764 = vmatmul.mubr.bf16.gmra.mrb[0].mxu0 %v2556
    %v2765 = vpop.f32.mrb[0].mxu0
    %v2766 = vadd.f32 0.0, %v2765
    %v2767 = vpop.f32.mrb[0].mxu0
    %v2768 = vpop.f32.mrb[0].mxu0
    %v2769 = vadd.f32 0.0, %v2768
    %v2770 = vpop.f32.mrb[0].mxu0
    %2771 = vmatprep.mubr.bf16.mxu0 0
    %2772 = vmatmul.mubr.bf16.gmra.mrb[0].mxu0 %v2559
    %v2773 = vpop.f32.mrb[0].mxu0
    %v2774 = vadd.f32 0.0, %v2773
    %v2775 = vpop.f32.mrb[0].mxu0
    %v2776 = vpop.f32.mrb[0].mxu0
    %v2777 = vadd.f32 0.0, %v2776
    %v2778 = vpop.f32.mrb[0].mxu0
    %2779 = vmatprep.mubr.bf16.mxu0 0
    %2780 = vmatmul.mubr.bf16.gmra.mrb[0].mxu0 %v2562
    %v2781 = vpop.f32.mrb[0].mxu0
    %v2782 = vadd.f32 0.0, %v2781
    %v2783 = vpop.f32.mrb[0].mxu0
    %v2784 = vpop.f32.mrb[0].mxu0
    %v2785 = vadd.f32 0.0, %v2784
    %v2786 = vpop.f32.mrb[0].mxu0
    %2787 = vmatprep.mubr.bf16.mxu0 0
    %2788 = vmatmul.mubr.bf16.gmra.mrb[0].mxu0 %v2565
    %v2789 = vpop.f32.mrb[0].mxu0
    %v2790 = vadd.f32 0.0, %v2789
    %v2791 = vpop.f32.mrb[0].mxu0
    %v2792 = vpop.f32.mrb[0].mxu0
    %v2793 = vadd.f32 0.0, %v2792
    %v2794 = vpop.f32.mrb[0].mxu0
    %2795 = vmatprep.mubr.bf16.mxu0 0
    %2796 = vmatmul.mubr.bf16.gmra.mrb[0].mxu0 %v2568
    %v2797 = vpop.f32.mrb[0].mxu0
    %v2798 = vadd.f32 0.0, %v2797
    %v2799 = vpop.f32.mrb[0].mxu0
    %v2800 = vpop.f32.mrb[0].mxu0
    %v2801 = vadd.f32 0.0, %v2800
    %v2802 = vpop.f32.mrb[0].mxu0
    %2803 = vmatprep.mubr.bf16.mxu0 0
    %2804 = vmatmul.mubr.bf16.gmra.mrb[0].mxu0 %v2571
    %v2805 = vpop.f32.mrb[0].mxu0
    %v2806 = vadd.f32 0.0, %v2805
    %v2807 = vpop.f32.mrb[0].mxu0
    %v2808 = vpop.f32.mrb[0].mxu0
    %v2809 = vadd.f32 0.0, %v2808
    %v2810 = vpop.f32.mrb[0].mxu0
    %2811 = vmatprep.mubr.bf16.mxu0 0
    %2812 = vmatmul.mubr.bf16.gmra.mrb[0].mxu0 %v2574
    %v2813 = vpop.f32.mrb[0].mxu0
    %v2814 = vadd.f32 0.0, %v2813
    %v2815 = vpop.f32.mrb[0].mxu0
    %v2816 = vpop.f32.mrb[0].mxu0
    %v2817 = vadd.f32 0.0, %v2816
    %v2818 = vpop.f32.mrb[0].mxu0
    %2819 = vmatprep.mubr.bf16.mxu0 0
    %2820 = vmatmul.mubr.bf16.gmra.mrb[0].mxu0 %v2577
    %v2821 = vpop.f32.mrb[0].mxu0
    %v2822 = vadd.f32 0.0, %v2821
    %v2823 = vpop.f32.mrb[0].mxu0
    %v2824 = vpop.f32.mrb[0].mxu0
    %v2825 = vadd.f32 0.0, %v2824
    %v2826 = vpop.f32.mrb[0].mxu0
    %2827 = vmatprep.mubr.bf16.mxu0 0
    %2828 = vmatmul.mubr.bf16.gmra.mrb[0].mxu0 %v2580
    %v2829 = vpop.f32.mrb[0].mxu0
    %v2830 = vadd.f32 0.0, %v2829
    %v2831 = vpop.f32.mrb[0].mxu0
    %v2832 = vpop.f32.mrb[0].mxu0
    %v2833 = vadd.f32 0.0, %v2832
    %v2834 = vpop.f32.mrb[0].mxu0
    %2835 = vmatprep.mubr.bf16.mxu0 0
    %2836 = vmatmul.mubr.bf16.gmra.mrb[0].mxu0 %v2583
    %v2837 = vpop.f32.mrb[0].mxu0
    %v2838 = vadd.f32 0.0, %v2837
    %v2839 = vpop.f32.mrb[0].mxu0
    %v2840 = vpop.f32.mrb[0].mxu0
    %v2841 = vadd.f32 0.0, %v2840
    %v2842 = vpop.f32.mrb[0].mxu0
    %2843 = vmatprep.mubr.bf16.mxu0 0
    %2844 = vmatmul.mubr.bf16.gmra.mrb[0].mxu0 %v2586
    %v2845 = vpop.f32.mrb[0].mxu0
    %v2846 = vadd.f32 0.0, %v2845
    %v2847 = vpop.f32.mrb[0].mxu0
    %v2848 = vpop.f32.mrb[0].mxu0
    %v2849 = vadd.f32 0.0, %v2848
    %v2850 = vpop.f32.mrb[0].mxu0
    %2851 = vmatprep.mubr.bf16.mxu0 0
    %2852 = vmatmul.mubr.bf16.gmra.mrb[0].mxu0 %v2589
    %v2853 = vpop.f32.mrb[0].mxu0
    %v2854 = vadd.f32 0.0, %v2853
    %v2855 = vpop.f32.mrb[0].mxu0
    %v2856 = vpop.f32.mrb[0].mxu0
    %v2857 = vadd.f32 0.0, %v2856
    %v2858 = vpop.f32.mrb[0].mxu0
    %2859 = vmatprep.mubr.bf16.mxu0 0
    %2860 = vmatmul.mubr.bf16.gmra.mrb[0].mxu0 %v2592
    %v2861 = vpop.f32.mrb[0].mxu0
    %v2862 = vadd.f32 0.0, %v2861
    %v2863 = vpop.f32.mrb[0].mxu0
    %v2864 = vpop.f32.mrb[0].mxu0
    %v2865 = vadd.f32 0.0, %v2864
    %v2866 = vpop.f32.mrb[0].mxu0
    %2867 = vmatprep.mubr.bf16.mxu0 0
    %2868 = vmatmul.mubr.bf16.gmra.mrb[0].mxu0 %v2595
    %v2869 = vpop.f32.mrb[0].mxu0
    %v2870 = vadd.f32 0.0, %v2869
    %v2871 = vpop.f32.mrb[0].mxu0
    %v2872 = vpop.f32.mrb[0].mxu0
    %v2873 = vadd.f32 0.0, %v2872
    %v2874 = vpop.f32.mrb[0].mxu0
    %2875 = vmatprep.mubr.bf16.mxu0 0
    %2876 = vmatmul.mubr.bf16.gmra.mrb[0].mxu0 %v2598
    %v2877 = vpop.f32.mrb[0].mxu0
    %v2878 = vadd.f32 0.0, %v2877
    %v2879 = vpop.f32.mrb[0].mxu0
    %v2880 = vpop.f32.mrb[0].mxu0
    %v2881 = vadd.f32 0.0, %v2880
    %v2882 = vpop.f32.mrb[0].mxu0
    %2883 = vmatprep.mubr.bf16.mxu0 0
    %2884 = vmatmul.mubr.bf16.gmra.mrb[0].mxu0 %v2601
    %v2885 = vpop.f32.mrb[0].mxu0
    %v2886 = vadd.f32 0.0, %v2885
    %v2887 = vpop.f32.mrb[0].mxu0
    %v2888 = vpop.f32.mrb[0].mxu0
    %v2889 = vadd.f32 0.0, %v2888
    %v2890 = vpop.f32.mrb[0].mxu0
    %2891 = vdwg.mxu0
    %v2892 = vadd.f32 %v2148, %v2638
    %v2893 = vadd.f32 %v2151, %v2641
    %v2894 = vadd.f32 %v2156, %v2646
    %v2895 = vadd.f32 %v2159, %v2649
    %v2896 = vadd.f32 %v2164, %v2654
    %v2897 = vadd.f32 %v2167, %v2657
    %v2898 = vadd.f32 %v2172, %v2662
    %v2899 = vadd.f32 %v2175, %v2665
    %v2900 = vadd.f32 %v2180, %v2670
    %v2901 = vadd.f32 %v2183, %v2673
    %v2902 = vadd.f32 %v2188, %v2678
    %v2903 = vadd.f32 %v2191, %v2681
    %v2904 = vadd.f32 %v2196, %v2686
    %v2905 = vadd.f32 %v2199, %v2689
    %v2906 = vadd.f32 %v2204, %v2694
    %v2907 = vadd.f32 %v2207, %v2697
    %v2908 = vadd.f32 %v2212, %v2702
    %v2909 = vadd.f32 %v2215, %v2705
    %v2910 = vadd.f32 %v2220, %v2710
    %v2911 = vadd.f32 %v2223, %v2713
    %v2912 = vadd.f32 %v2228, %v2718
    %v2913 = vadd.f32 %v2231, %v2721
    %v2914 = vadd.f32 %v2236, %v2726
    %v2915 = vadd.f32 %v2239, %v2729
    %v2916 = vadd.f32 %v2244, %v2734
    %v2917 = vadd.f32 %v2247, %v2737
    %v2918 = vadd.f32 %v2252, %v2742
    %v2919 = vadd.f32 %v2255, %v2745
    %v2920 = vadd.f32 %v2260, %v2750
    %v2921 = vadd.f32 %v2263, %v2753
    %v2922 = vadd.f32 %v2268, %v2758
    %v2923 = vadd.f32 %v2271, %v2761
    %v2924 = vadd.f32 %v2276, %v2766
    %v2925 = vadd.f32 %v2279, %v2769
    %v2926 = vadd.f32 %v2284, %v2774
    %v2927 = vadd.f32 %v2287, %v2777
    %v2928 = vadd.f32 %v2292, %v2782
    %v2929 = vadd.f32 %v2295, %v2785
    %v2930 = vadd.f32 %v2300, %v2790
    %v2931 = vadd.f32 %v2303, %v2793
    %v2932 = vadd.f32 %v2308, %v2798
    %v2933 = vadd.f32 %v2311, %v2801
    %v2934 = vadd.f32 %v2316, %v2806
    %v2935 = vadd.f32 %v2319, %v2809
    %v2936 = vadd.f32 %v2324, %v2814
    %v2937 = vadd.f32 %v2327, %v2817
    %v2938 = vadd.f32 %v2332, %v2822
    %v2939 = vadd.f32 %v2335, %v2825
    %v2940 = vadd.f32 %v2340, %v2830
    %v2941 = vadd.f32 %v2343, %v2833
    %v2942 = vadd.f32 %v2348, %v2838
    %v2943 = vadd.f32 %v2351, %v2841
    %v2944 = vadd.f32 %v2356, %v2846
    %v2945 = vadd.f32 %v2359, %v2849
    %v2946 = vadd.f32 %v2364, %v2854
    %v2947 = vadd.f32 %v2367, %v2857
    %v2948 = vadd.f32 %v2372, %v2862
    %v2949 = vadd.f32 %v2375, %v2865
    %v2950 = vadd.f32 %v2380, %v2870
    %v2951 = vadd.f32 %v2383, %v2873
    %v2952 = vadd.f32 %v2388, %v2878
    %v2953 = vadd.f32 %v2391, %v2881
    %v2954 = vadd.f32 %v2396, %v2886
    %v2955 = vadd.f32 %v2399, %v2889
    %v2956 = vld [vmem:[%s1358] sm:$0xff]
    %v2957 = vld [vmem:[%s1358 + $0x8] sm:$0xff]
    %v2958 = vld [vmem:[%s1358 + $0x18] sm:$0xff]
    %v2959 = vld [vmem:[%s1358 + $0x20] sm:$0xff]
    %v2960 = vld [vmem:[%s1358 + $0x30] sm:$0xff]
    %v2961 = vld [vmem:[%s1358 + $0x38] sm:$0xff]
    %v2962 = vld [vmem:[%s1358 + $0x48] sm:$0xff]
    %v2963 = vld [vmem:[%s1358 + $0x50] sm:$0xff]
    %v2964 = vld [vmem:[%s1358 + $0x60] sm:$0xff]
    %v2965 = vld [vmem:[%s1358 + $0x68] sm:$0xff]
    %v2966 = vld [vmem:[%s1358 + $0x78] sm:$0xff]
    %v2967 = vld [vmem:[%s1358 + $0x80] sm:$0xff]
    %v2968 = vld [vmem:[%s1358 + $0x90] sm:$0xff]
    %v2969 = vld [vmem:[%s1358 + $0x98] sm:$0xff]
    %v2970 = vld [vmem:[%s1358 + $0xa8] sm:$0xff]
    %v2971 = vld [vmem:[%s1358 + $0xb0] sm:$0xff]
    %v2972 = vld [vmem:[%s1358 + $0xc0] sm:$0xff]
    %v2973 = vld [vmem:[%s1358 + $0xc8] sm:$0xff]
    %v2974 = vld [vmem:[%s1358 + $0xd8] sm:$0xff]
    %v2975 = vld [vmem:[%s1358 + $0xe0] sm:$0xff]
    %v2976 = vld [vmem:[%s1358 + $0xf0] sm:$0xff]
    %v2977 = vld [vmem:[%s1358 + $0xf8] sm:$0xff]
    %v2978 = vld [vmem:[%s1358 + $0x108] sm:$0xff]
    %v2979 = vld [vmem:[%s1358 + $0x110] sm:$0xff]
    %v2980 = vld [vmem:[%s1358 + $0x120] sm:$0xff]
    %v2981 = vld [vmem:[%s1358 + $0x128] sm:$0xff]
    %v2982 = vld [vmem:[%s1358 + $0x138] sm:$0xff]
    %v2983 = vld [vmem:[%s1358 + $0x140] sm:$0xff]
    %v2984 = vld [vmem:[%s1358 + $0x150] sm:$0xff]
    %v2985 = vld [vmem:[%s1358 + $0x158] sm:$0xff]
    %v2986 = vld [vmem:[%s1358 + $0x168] sm:$0xff]
    %v2987 = vld [vmem:[%s1358 + $0x170] sm:$0xff]
    %v2988 = vld [vmem:[%s1358 + $0x1b0] sm:$0xff]
    %v2989 = vld [vmem:[%s1358 + $0x1b8] sm:$0xff]
    %v2990 = vld [vmem:[%s1358 + $0x1c8] sm:$0xff]
    %v2991 = vld [vmem:[%s1358 + $0x1d0] sm:$0xff]
    %v2992 = vld [vmem:[%s1358 + $0x1e0] sm:$0xff]
    %v2993 = vld [vmem:[%s1358 + $0x1e8] sm:$0xff]
    %v2994 = vld [vmem:[%s1358 + $0x1f8] sm:$0xff]
    %v2995 = vld [vmem:[%s1358 + $0x200] sm:$0xff]
    %v2996 = vld [vmem:[%s1358 + $0x210] sm:$0xff]
    %v2997 = vld [vmem:[%s1358 + $0x218] sm:$0xff]
    %v2998 = vld [vmem:[%s1358 + $0x228] sm:$0xff]
    %v2999 = vld [vmem:[%s1358 + $0x230] sm:$0xff]
    %v3000 = vld [vmem:[%s1358 + $0x240] sm:$0xff]
    %v3001 = vld [vmem:[%s1358 + $0x248] sm:$0xff]
    %v3002 = vld [vmem:[%s1358 + $0x258] sm:$0xff]
    %v3003 = vld [vmem:[%s1358 + $0x260] sm:$0xff]
    %v3004 = vld [vmem:[%s1358 + $0x270] sm:$0xff]
    %v3005 = vld [vmem:[%s1358 + $0x278] sm:$0xff]
    %v3006 = vld [vmem:[%s1358 + $0x288] sm:$0xff]
    %v3007 = vld [vmem:[%s1358 + $0x290] sm:$0xff]
    %v3008 = vld [vmem:[%s1358 + $0x2a0] sm:$0xff]
    %v3009 = vld [vmem:[%s1358 + $0x2a8] sm:$0xff]
    %v3010 = vld [vmem:[%s1358 + $0x2b8] sm:$0xff]
    %v3011 = vld [vmem:[%s1358 + $0x2c0] sm:$0xff]
    %v3012 = vld [vmem:[%s1358 + $0x2d0] sm:$0xff]
    %v3013 = vld [vmem:[%s1358 + $0x2d8] sm:$0xff]
    %v3014 = vld [vmem:[%s1358 + $0x2e8] sm:$0xff]
    %v3015 = vld [vmem:[%s1358 + $0x2f0] sm:$0xff]
    %v3016 = vld [vmem:[%s1358 + $0x300] sm:$0xff]
    %v3017 = vld [vmem:[%s1358 + $0x308] sm:$0xff]
    %v3018 = vld [vmem:[%s1358 + $0x318] sm:$0xff]
    %v3019 = vld [vmem:[%s1358 + $0x320] sm:$0xff]
    %s3020 = scalar_lea.vmem [#allocation6], 24
    %v3021 = vld [vmem:[%s3020] sm:$0xf]
    %v3022 = vld [vmem:[%s3020 + $0x4] sm:$0xf]
    %v3023 = vpack.c.bf16 %v2957, %v2956
    %v3024 = vpack.c.bf16 %v2959, %v2958
    %v3025 = vpack.c.bf16 %v2961, %v2960
    %v3026 = vpack.c.bf16 %v2963, %v2962
    %v3027 = vpack.c.bf16 %v2965, %v2964
    %v3028 = vpack.c.bf16 %v2967, %v2966
    %v3029 = vpack.c.bf16 %v2969, %v2968
    %v3030 = vpack.c.bf16 %v2971, %v2970
    %v3031 = vpack.c.bf16 %v2973, %v2972
    %v3032 = vpack.c.bf16 %v2975, %v2974
    %v3033 = vpack.c.bf16 %v2977, %v2976
    %v3034 = vpack.c.bf16 %v2979, %v2978
    %v3035 = vpack.c.bf16 %v2981, %v2980
    %v3036 = vpack.c.bf16 %v2983, %v2982
    %v3037 = vpack.c.bf16 %v2985, %v2984
    %v3038 = vpack.c.bf16 %v2987, %v2986
    %v3039 = vpack.c.bf16 %v2989, %v2988
    %v3040 = vpack.c.bf16 %v2991, %v2990
    %v3041 = vpack.c.bf16 %v2993, %v2992
    %v3042 = vpack.c.bf16 %v2995, %v2994
    %v3043 = vpack.c.bf16 %v2997, %v2996
    %v3044 = vpack.c.bf16 %v2999, %v2998
    %v3045 = vpack.c.bf16 %v3001, %v3000
    %v3046 = vpack.c.bf16 %v3003, %v3002
    %v3047 = vpack.c.bf16 %v3005, %v3004
    %v3048 = vpack.c.bf16 %v3007, %v3006
    %v3049 = vpack.c.bf16 %v3009, %v3008
    %v3050 = vpack.c.bf16 %v3011, %v3010
    %v3051 = vpack.c.bf16 %v3013, %v3012
    %v3052 = vpack.c.bf16 %v3015, %v3014
    %v3053 = vpack.c.bf16 %v3017, %v3016
    %v3054 = vpack.c.bf16 %v3019, %v3018
    %v3057 = vunpack.c.l.b16 %v3021
    %v3058 = vunpack.c.l.b16 %v3022
    %v3059 = vpack.c.b16 %v3058, %v3057
    %v3062 = vsel %vm581, %v3023, 0
    %v3065 = vsel %vm581, %v3024, 0
    %v3068 = vsel %vm581, %v3025, 0
    %v3071 = vsel %vm581, %v3026, 0
    %v3074 = vsel %vm581, %v3027, 0
    %v3077 = vsel %vm581, %v3028, 0
    %v3080 = vsel %vm581, %v3029, 0
    %v3083 = vsel %vm581, %v3030, 0
    %v3086 = vsel %vm581, %v3031, 0
    %v3089 = vsel %vm581, %v3032, 0
    %v3092 = vsel %vm581, %v3033, 0
    %v3095 = vsel %vm581, %v3034, 0
    %v3098 = vsel %vm581, %v3035, 0
    %v3101 = vsel %vm581, %v3036, 0
    %v3104 = vsel %vm581, %v3037, 0
    %v3107 = vsel %vm581, %v3038, 0
    %v3110 = vsel %vm581, %v3039, 0
    %v3113 = vsel %vm581, %v3040, 0
    %v3116 = vsel %vm581, %v3041, 0
    %v3119 = vsel %vm581, %v3042, 0
    %v3122 = vsel %vm581, %v3043, 0
    %v3125 = vsel %vm581, %v3044, 0
    %v3128 = vsel %vm581, %v3045, 0
    %v3131 = vsel %vm581, %v3046, 0
    %v3134 = vsel %vm581, %v3047, 0
    %v3137 = vsel %vm581, %v3048, 0
    %v3140 = vsel %vm581, %v3049, 0
    %v3143 = vsel %vm581, %v3050, 0
    %v3146 = vsel %vm581, %v3051, 0
    %v3149 = vsel %vm581, %v3052, 0
    %v3152 = vsel %vm581, %v3053, 0
    %v3155 = vsel %vm581, %v3054, 0
    %3157 = vmatprep.subr.bf16.mxu0 0
    %3158 = vmatpush1.bf16.msra.mxu0 %v3059
    %3159 = vmatprep.subr.bf16.mxu0 0
    %3160 = vmatpush1.bf16.msra.mxu0 0
    %3161 = vmatprep.subr.bf16.mxu0 0
    %3162 = vmatpush1.bf16.msra.mxu0 0
    %3163 = vmatprep.subr.bf16.mxu0 0
    %3164 = vmatpush1.bf16.msra.mxu0 0
    %3165 = vmatprep.subr.bf16.mxu0 0
    %3166 = vmatpush1.bf16.msra.mxu0 0
    %3167 = vmatprep.subr.bf16.mxu0 0
    %3168 = vmatpush1.bf16.msra.mxu0 0
    %3169 = vmatprep.subr.bf16.mxu0 0
    %3170 = vmatpush1.bf16.msra.mxu0 0
    %3171 = vmatprep.subr.bf16.mxu0 0
    %3172 = vmatpush1.bf16.msra.mxu0 0
    %3173 = vmatprep.subr.bf16.mxu0 0
    %3174 = vmatpush1.bf16.msra.mxu0 0
    %3175 = vmatprep.subr.bf16.mxu0 0
    %3176 = vmatpush1.bf16.msra.mxu0 0
    %3177 = vmatprep.subr.bf16.mxu0 0
    %3178 = vmatpush1.bf16.msra.mxu0 0
    %3179 = vmatprep.subr.bf16.mxu0 0
    %3180 = vmatpush1.bf16.msra.mxu0 0
    %3181 = vmatprep.subr.bf16.mxu0 0
    %3182 = vmatpush1.bf16.msra.mxu0 0
    %3183 = vmatprep.subr.bf16.mxu0 0
    %3184 = vmatpush1.bf16.msra.mxu0 0
    %3185 = vmatprep.subr.bf16.mxu0 0
    %3186 = vmatpush1.bf16.msra.mxu0 0
    %3187 = vmatprep.subr.bf16.mxu0 0
    %3188 = vmatpush1.bf16.msra.mxu0 0
    %3189 = vmatprep.mubr.bf16.mxu0 0
    %3190 = vmatmul.mubr.bf16.gmra.mrb[0].mxu0 %v3062
    %v3191 = vpop.f32.mrb[0].mxu0
    %v3192 = vadd.f32 0.0, %v3191
    %v3193 = vpop.f32.mrb[0].mxu0
    %v3194 = vpop.f32.mrb[0].mxu0
    %v3195 = vadd.f32 0.0, %v3194
    %v3196 = vpop.f32.mrb[0].mxu0
    %3197 = vmatprep.mubr.bf16.mxu0 0
    %3198 = vmatmul.mubr.bf16.gmra.mrb[0].mxu0 %v3065
    %v3199 = vpop.f32.mrb[0].mxu0
    %v3200 = vadd.f32 0.0, %v3199
    %v3201 = vpop.f32.mrb[0].mxu0
    %v3202 = vpop.f32.mrb[0].mxu0
    %v3203 = vadd.f32 0.0, %v3202
    %v3204 = vpop.f32.mrb[0].mxu0
    %3205 = vmatprep.mubr.bf16.mxu0 0
    %3206 = vmatmul.mubr.bf16.gmra.mrb[0].mxu0 %v3068
    %v3207 = vpop.f32.mrb[0].mxu0
    %v3208 = vadd.f32 0.0, %v3207
    %v3209 = vpop.f32.mrb[0].mxu0
    %v3210 = vpop.f32.mrb[0].mxu0
    %v3211 = vadd.f32 0.0, %v3210
    %v3212 = vpop.f32.mrb[0].mxu0
    %3213 = vmatprep.mubr.bf16.mxu0 0
    %3214 = vmatmul.mubr.bf16.gmra.mrb[0].mxu0 %v3071
    %v3215 = vpop.f32.mrb[0].mxu0
    %v3216 = vadd.f32 0.0, %v3215
    %v3217 = vpop.f32.mrb[0].mxu0
    %v3218 = vpop.f32.mrb[0].mxu0
    %v3219 = vadd.f32 0.0, %v3218
    %v3220 = vpop.f32.mrb[0].mxu0
    %3221 = vmatprep.mubr.bf16.mxu0 0
    %3222 = vmatmul.mubr.bf16.gmra.mrb[0].mxu0 %v3074
    %v3223 = vpop.f32.mrb[0].mxu0
    %v3224 = vadd.f32 0.0, %v3223
    %v3225 = vpop.f32.mrb[0].mxu0
    %v3226 = vpop.f32.mrb[0].mxu0
    %v3227 = vadd.f32 0.0, %v3226
    %v3228 = vpop.f32.mrb[0].mxu0
    %3229 = vmatprep.mubr.bf16.mxu0 0
    %3230 = vmatmul.mubr.bf16.gmra.mrb[0].mxu0 %v3077
    %v3231 = vpop.f32.mrb[0].mxu0
    %v3232 = vadd.f32 0.0, %v3231
    %v3233 = vpop.f32.mrb[0].mxu0
    %v3234 = vpop.f32.mrb[0].mxu0
    %v3235 = vadd.f32 0.0, %v3234
    %v3236 = vpop.f32.mrb[0].mxu0
    %3237 = vmatprep.mubr.bf16.mxu0 0
    %3238 = vmatmul.mubr.bf16.gmra.mrb[0].mxu0 %v3080
    %v3239 = vpop.f32.mrb[0].mxu0
    %v3240 = vadd.f32 0.0, %v3239
    %v3241 = vpop.f32.mrb[0].mxu0
    %v3242 = vpop.f32.mrb[0].mxu0
    %v3243 = vadd.f32 0.0, %v3242
    %v3244 = vpop.f32.mrb[0].mxu0
    %3245 = vmatprep.mubr.bf16.mxu0 0
    %3246 = vmatmul.mubr.bf16.gmra.mrb[0].mxu0 %v3083
    %v3247 = vpop.f32.mrb[0].mxu0
    %v3248 = vadd.f32 0.0, %v3247
    %v3249 = vpop.f32.mrb[0].mxu0
    %v3250 = vpop.f32.mrb[0].mxu0
    %v3251 = vadd.f32 0.0, %v3250
    %v3252 = vpop.f32.mrb[0].mxu0
    %3253 = vmatprep.mubr.bf16.mxu0 0
    %3254 = vmatmul.mubr.bf16.gmra.mrb[0].mxu0 %v3086
    %v3255 = vpop.f32.mrb[0].mxu0
    %v3256 = vadd.f32 0.0, %v3255
    %v3257 = vpop.f32.mrb[0].mxu0
    %v3258 = vpop.f32.mrb[0].mxu0
    %v3259 = vadd.f32 0.0, %v3258
    %v3260 = vpop.f32.mrb[0].mxu0
    %3261 = vmatprep.mubr.bf16.mxu0 0
    %3262 = vmatmul.mubr.bf16.gmra.mrb[0].mxu0 %v3089
    %v3263 = vpop.f32.mrb[0].mxu0
    %v3264 = vadd.f32 0.0, %v3263
    %v3265 = vpop.f32.mrb[0].mxu0
    %v3266 = vpop.f32.mrb[0].mxu0
    %v3267 = vadd.f32 0.0, %v3266
    %v3268 = vpop.f32.mrb[0].mxu0
    %3269 = vmatprep.mubr.bf16.mxu0 0
    %3270 = vmatmul.mubr.bf16.gmra.mrb[0].mxu0 %v3092
    %v3271 = vpop.f32.mrb[0].mxu0
    %v3272 = vadd.f32 0.0, %v3271
    %v3273 = vpop.f32.mrb[0].mxu0
    %v3274 = vpop.f32.mrb[0].mxu0
    %v3275 = vadd.f32 0.0, %v3274
    %v3276 = vpop.f32.mrb[0].mxu0
    %3277 = vmatprep.mubr.bf16.mxu0 0
    %3278 = vmatmul.mubr.bf16.gmra.mrb[0].mxu0 %v3095
    %v3279 = vpop.f32.mrb[0].mxu0
    %v3280 = vadd.f32 0.0, %v3279
    %v3281 = vpop.f32.mrb[0].mxu0
    %v3282 = vpop.f32.mrb[0].mxu0
    %v3283 = vadd.f32 0.0, %v3282
    %v3284 = vpop.f32.mrb[0].mxu0
    %3285 = vmatprep.mubr.bf16.mxu0 0
    %3286 = vmatmul.mubr.bf16.gmra.mrb[0].mxu0 %v3098
    %v3287 = vpop.f32.mrb[0].mxu0
    %v3288 = vadd.f32 0.0, %v3287
    %v3289 = vpop.f32.mrb[0].mxu0
    %v3290 = vpop.f32.mrb[0].mxu0
    %v3291 = vadd.f32 0.0, %v3290
    %v3292 = vpop.f32.mrb[0].mxu0
    %3293 = vmatprep.mubr.bf16.mxu0 0
    %3294 = vmatmul.mubr.bf16.gmra.mrb[0].mxu0 %v3101
    %v3295 = vpop.f32.mrb[0].mxu0
    %v3296 = vadd.f32 0.0, %v3295
    %v3297 = vpop.f32.mrb[0].mxu0
    %v3298 = vpop.f32.mrb[0].mxu0
    %v3299 = vadd.f32 0.0, %v3298
    %v3300 = vpop.f32.mrb[0].mxu0
    %3301 = vmatprep.mubr.bf16.mxu0 0
    %3302 = vmatmul.mubr.bf16.gmra.mrb[0].mxu0 %v3104
    %v3303 = vpop.f32.mrb[0].mxu0
    %v3304 = vadd.f32 0.0, %v3303
    %v3305 = vpop.f32.mrb[0].mxu0
    %v3306 = vpop.f32.mrb[0].mxu0
    %v3307 = vadd.f32 0.0, %v3306
    %v3308 = vpop.f32.mrb[0].mxu0
    %3309 = vmatprep.mubr.bf16.mxu0 0
    %3310 = vmatmul.mubr.bf16.gmra.mrb[0].mxu0 %v3107
    %v3311 = vpop.f32.mrb[0].mxu0
    %v3312 = vadd.f32 0.0, %v3311
    %v3313 = vpop.f32.mrb[0].mxu0
    %v3314 = vpop.f32.mrb[0].mxu0
    %v3315 = vadd.f32 0.0, %v3314
    %v3316 = vpop.f32.mrb[0].mxu0
    %3317 = vmatprep.mubr.bf16.mxu0 0
    %3318 = vmatmul.mubr.bf16.gmra.mrb[0].mxu0 %v3110
    %v3319 = vpop.f32.mrb[0].mxu0
    %v3320 = vadd.f32 0.0, %v3319
    %v3321 = vpop.f32.mrb[0].mxu0
    %v3322 = vpop.f32.mrb[0].mxu0
    %v3323 = vadd.f32 0.0, %v3322
    %v3324 = vpop.f32.mrb[0].mxu0
    %3325 = vmatprep.mubr.bf16.mxu0 0
    %3326 = vmatmul.mubr.bf16.gmra.mrb[0].mxu0 %v3113
    %v3327 = vpop.f32.mrb[0].mxu0
    %v3328 = vadd.f32 0.0, %v3327
    %v3329 = vpop.f32.mrb[0].mxu0
    %v3330 = vpop.f32.mrb[0].mxu0
    %v3331 = vadd.f32 0.0, %v3330
    %v3332 = vpop.f32.mrb[0].mxu0
    %3333 = vmatprep.mubr.bf16.mxu0 0
    %3334 = vmatmul.mubr.bf16.gmra.mrb[0].mxu0 %v3116
    %v3335 = vpop.f32.mrb[0].mxu0
    %v3336 = vadd.f32 0.0, %v3335
    %v3337 = vpop.f32.mrb[0].mxu0
    %v3338 = vpop.f32.mrb[0].mxu0
    %v3339 = vadd.f32 0.0, %v3338
    %v3340 = vpop.f32.mrb[0].mxu0
    %3341 = vmatprep.mubr.bf16.mxu0 0
    %3342 = vmatmul.mubr.bf16.gmra.mrb[0].mxu0 %v3119
    %v3343 = vpop.f32.mrb[0].mxu0
    %v3344 = vadd.f32 0.0, %v3343
    %v3345 = vpop.f32.mrb[0].mxu0
    %v3346 = vpop.f32.mrb[0].mxu0
    %v3347 = vadd.f32 0.0, %v3346
    %v3348 = vpop.f32.mrb[0].mxu0
    %3349 = vmatprep.mubr.bf16.mxu0 0
    %3350 = vmatmul.mubr.bf16.gmra.mrb[0].mxu0 %v3122
    %v3351 = vpop.f32.mrb[0].mxu0
    %v3352 = vadd.f32 0.0, %v3351
    %v3353 = vpop.f32.mrb[0].mxu0
    %v3354 = vpop.f32.mrb[0].mxu0
    %v3355 = vadd.f32 0.0, %v3354
    %v3356 = vpop.f32.mrb[0].mxu0
    %3357 = vmatprep.mubr.bf16.mxu0 0
    %3358 = vmatmul.mubr.bf16.gmra.mrb[0].mxu0 %v3125
    %v3359 = vpop.f32.mrb[0].mxu0
    %v3360 = vadd.f32 0.0, %v3359
    %v3361 = vpop.f32.mrb[0].mxu0
    %v3362 = vpop.f32.mrb[0].mxu0
    %v3363 = vadd.f32 0.0, %v3362
    %v3364 = vpop.f32.mrb[0].mxu0
    %3365 = vmatprep.mubr.bf16.mxu0 0
    %3366 = vmatmul.mubr.bf16.gmra.mrb[0].mxu0 %v3128
    %v3367 = vpop.f32.mrb[0].mxu0
    %v3368 = vadd.f32 0.0, %v3367
    %v3369 = vpop.f32.mrb[0].mxu0
    %v3370 = vpop.f32.mrb[0].mxu0
    %v3371 = vadd.f32 0.0, %v3370
    %v3372 = vpop.f32.mrb[0].mxu0
    %3373 = vmatprep.mubr.bf16.mxu0 0
    %3374 = vmatmul.mubr.bf16.gmra.mrb[0].mxu0 %v3131
    %v3375 = vpop.f32.mrb[0].mxu0
    %v3376 = vadd.f32 0.0, %v3375
    %v3377 = vpop.f32.mrb[0].mxu0
    %v3378 = vpop.f32.mrb[0].mxu0
    %v3379 = vadd.f32 0.0, %v3378
    %v3380 = vpop.f32.mrb[0].mxu0
    %3381 = vmatprep.mubr.bf16.mxu0 0
    %3382 = vmatmul.mubr.bf16.gmra.mrb[0].mxu0 %v3134
    %v3383 = vpop.f32.mrb[0].mxu0
    %v3384 = vadd.f32 0.0, %v3383
    %v3385 = vpop.f32.mrb[0].mxu0
    %v3386 = vpop.f32.mrb[0].mxu0
    %v3387 = vadd.f32 0.0, %v3386
    %v3388 = vpop.f32.mrb[0].mxu0
    %3389 = vmatprep.mubr.bf16.mxu0 0
    %3390 = vmatmul.mubr.bf16.gmra.mrb[0].mxu0 %v3137
    %v3391 = vpop.f32.mrb[0].mxu0
    %v3392 = vadd.f32 0.0, %v3391
    %v3393 = vpop.f32.mrb[0].mxu0
    %v3394 = vpop.f32.mrb[0].mxu0
    %v3395 = vadd.f32 0.0, %v3394
    %v3396 = vpop.f32.mrb[0].mxu0
    %3397 = vmatprep.mubr.bf16.mxu0 0
    %3398 = vmatmul.mubr.bf16.gmra.mrb[0].mxu0 %v3140
    %v3399 = vpop.f32.mrb[0].mxu0
    %v3400 = vadd.f32 0.0, %v3399
    %v3401 = vpop.f32.mrb[0].mxu0
    %v3402 = vpop.f32.mrb[0].mxu0
    %v3403 = vadd.f32 0.0, %v3402
    %v3404 = vpop.f32.mrb[0].mxu0
    %3405 = vmatprep.mubr.bf16.mxu0 0
    %3406 = vmatmul.mubr.bf16.gmra.mrb[0].mxu0 %v3143
    %v3407 = vpop.f32.mrb[0].mxu0
    %v3408 = vadd.f32 0.0, %v3407
    %v3409 = vpop.f32.mrb[0].mxu0
    %v3410 = vpop.f32.mrb[0].mxu0
    %v3411 = vadd.f32 0.0, %v3410
    %v3412 = vpop.f32.mrb[0].mxu0
    %3413 = vmatprep.mubr.bf16.mxu0 0
    %3414 = vmatmul.mubr.bf16.gmra.mrb[0].mxu0 %v3146
    %v3415 = vpop.f32.mrb[0].mxu0
    %v3416 = vadd.f32 0.0, %v3415
    %v3417 = vpop.f32.mrb[0].mxu0
    %v3418 = vpop.f32.mrb[0].mxu0
    %v3419 = vadd.f32 0.0, %v3418
    %v3420 = vpop.f32.mrb[0].mxu0
    %3421 = vmatprep.mubr.bf16.mxu0 0
    %3422 = vmatmul.mubr.bf16.gmra.mrb[0].mxu0 %v3149
    %v3423 = vpop.f32.mrb[0].mxu0
    %v3424 = vadd.f32 0.0, %v3423
    %v3425 = vpop.f32.mrb[0].mxu0
    %v3426 = vpop.f32.mrb[0].mxu0
    %v3427 = vadd.f32 0.0, %v3426
    %v3428 = vpop.f32.mrb[0].mxu0
    %3429 = vmatprep.mubr.bf16.mxu0 0
    %3430 = vmatmul.mubr.bf16.gmra.mrb[0].mxu0 %v3152
    %v3431 = vpop.f32.mrb[0].mxu0
    %v3432 = vadd.f32 0.0, %v3431
    %v3433 = vpop.f32.mrb[0].mxu0
    %v3434 = vpop.f32.mrb[0].mxu0
    %v3435 = vadd.f32 0.0, %v3434
    %v3436 = vpop.f32.mrb[0].mxu0
    %3437 = vmatprep.mubr.bf16.mxu0 0
    %3438 = vmatmul.mubr.bf16.gmra.mrb[0].mxu0 %v3155
    %v3439 = vpop.f32.mrb[0].mxu0
    %v3440 = vadd.f32 0.0, %v3439
    %v3441 = vpop.f32.mrb[0].mxu0
    %v3442 = vpop.f32.mrb[0].mxu0
    %v3443 = vadd.f32 0.0, %v3442
    %v3444 = vpop.f32.mrb[0].mxu0
    %3445 = vdwg.mxu0
    %v3446 = vadd.f32 %v2892, %v3192
    %v3447 = vadd.f32 %v2893, %v3195
    %v3448 = vadd.f32 %v2894, %v3200
    %v3449 = vadd.f32 %v2895, %v3203
    %v3450 = vadd.f32 %v2896, %v3208
    %v3451 = vadd.f32 %v2897, %v3211
    %v3452 = vadd.f32 %v2898, %v3216
    %v3453 = vadd.f32 %v2899, %v3219
    %v3454 = vadd.f32 %v2900, %v3224
    %v3455 = vadd.f32 %v2901, %v3227
    %v3456 = vadd.f32 %v2902, %v3232
    %v3457 = vadd.f32 %v2903, %v3235
    %v3458 = vadd.f32 %v2904, %v3240
    %v3459 = vadd.f32 %v2905, %v3243
    %v3460 = vadd.f32 %v2906, %v3248
    %v3461 = vadd.f32 %v2907, %v3251
    %v3462 = vadd.f32 %v2908, %v3256
    %v3463 = vadd.f32 %v2909, %v3259
    %v3464 = vadd.f32 %v2910, %v3264
    %v3465 = vadd.f32 %v2911, %v3267
    %v3466 = vadd.f32 %v2912, %v3272
    %v3467 = vadd.f32 %v2913, %v3275
    %v3468 = vadd.f32 %v2914, %v3280
    %v3469 = vadd.f32 %v2915, %v3283
    %v3470 = vadd.f32 %v2916, %v3288
    %v3471 = vadd.f32 %v2917, %v3291
    %v3472 = vadd.f32 %v2918, %v3296
    %v3473 = vadd.f32 %v2919, %v3299
    %v3474 = vadd.f32 %v2920, %v3304
    %v3475 = vadd.f32 %v2921, %v3307
    %v3476 = vadd.f32 %v2922, %v3312
    %v3477 = vadd.f32 %v2923, %v3315
    %v3478 = vadd.f32 %v2924, %v3320
    %v3479 = vadd.f32 %v2925, %v3323
    %v3480 = vadd.f32 %v2926, %v3328
    %v3481 = vadd.f32 %v2927, %v3331
    %v3482 = vadd.f32 %v2928, %v3336
    %v3483 = vadd.f32 %v2929, %v3339
    %v3484 = vadd.f32 %v2930, %v3344
    %v3485 = vadd.f32 %v2931, %v3347
    %v3486 = vadd.f32 %v2932, %v3352
    %v3487 = vadd.f32 %v2933, %v3355
    %v3488 = vadd.f32 %v2934, %v3360
    %v3489 = vadd.f32 %v2935, %v3363
    %v3490 = vadd.f32 %v2936, %v3368
    %v3491 = vadd.f32 %v2937, %v3371
    %v3492 = vadd.f32 %v2938, %v3376
    %v3493 = vadd.f32 %v2939, %v3379
    %v3494 = vadd.f32 %v2940, %v3384
    %v3495 = vadd.f32 %v2941, %v3387
    %v3496 = vadd.f32 %v2942, %v3392
    %v3497 = vadd.f32 %v2943, %v3395
    %v3498 = vadd.f32 %v2944, %v3400
    %v3499 = vadd.f32 %v2945, %v3403
    %v3500 = vadd.f32 %v2946, %v3408
    %v3501 = vadd.f32 %v2947, %v3411
    %v3502 = vadd.f32 %v2948, %v3416
    %v3503 = vadd.f32 %v2949, %v3419
    %v3504 = vadd.f32 %v2950, %v3424
    %v3505 = vadd.f32 %v2951, %v3427
    %v3506 = vadd.f32 %v2952, %v3432
    %v3507 = vadd.f32 %v2953, %v3435
    %v3508 = vadd.f32 %v2954, %v3440
    %v3509 = vadd.f32 %v2955, %v3443
    %v3510 = vld [vmem:[%s1358 + $0x1] sm:$0xff]
    %v3511 = vld [vmem:[%s1358 + $0x9] sm:$0xff]
    %v3512 = vld [vmem:[%s1358 + $0x19] sm:$0xff]
    %v3513 = vld [vmem:[%s1358 + $0x21] sm:$0xff]
    %v3514 = vld [vmem:[%s1358 + $0x31] sm:$0xff]
    %v3515 = vld [vmem:[%s1358 + $0x39] sm:$0xff]
    %v3516 = vld [vmem:[%s1358 + $0x49] sm:$0xff]
    %v3517 = vld [vmem:[%s1358 + $0x51] sm:$0xff]
    %v3518 = vld [vmem:[%s1358 + $0x61] sm:$0xff]
    %v3519 = vld [vmem:[%s1358 + $0x69] sm:$0xff]
    %v3520 = vld [vmem:[%s1358 + $0x79] sm:$0xff]
    %v3521 = vld [vmem:[%s1358 + $0x81] sm:$0xff]
    %v3522 = vld [vmem:[%s1358 + $0x91] sm:$0xff]
    %v3523 = vld [vmem:[%s1358 + $0x99] sm:$0xff]
    %v3524 = vld [vmem:[%s1358 + $0xa9] sm:$0xff]
    %v3525 = vld [vmem:[%s1358 + $0xb1] sm:$0xff]
    %v3526 = vld [vmem:[%s1358 + $0xc1] sm:$0xff]
    %v3527 = vld [vmem:[%s1358 + $0xc9] sm:$0xff]
    %v3528 = vld [vmem:[%s1358 + $0xd9] sm:$0xff]
    %v3529 = vld [vmem:[%s1358 + $0xe1] sm:$0xff]
    %v3530 = vld [vmem:[%s1358 + $0xf1] sm:$0xff]
    %v3531 = vld [vmem:[%s1358 + $0xf9] sm:$0xff]
    %v3532 = vld [vmem:[%s1358 + $0x109] sm:$0xff]
    %v3533 = vld [vmem:[%s1358 + $0x111] sm:$0xff]
    %v3534 = vld [vmem:[%s1358 + $0x121] sm:$0xff]
    %v3535 = vld [vmem:[%s1358 + $0x129] sm:$0xff]
    %v3536 = vld [vmem:[%s1358 + $0x139] sm:$0xff]
    %v3537 = vld [vmem:[%s1358 + $0x141] sm:$0xff]
    %v3538 = vld [vmem:[%s1358 + $0x151] sm:$0xff]
    %v3539 = vld [vmem:[%s1358 + $0x159] sm:$0xff]
    %v3540 = vld [vmem:[%s1358 + $0x169] sm:$0xff]
    %v3541 = vld [vmem:[%s1358 + $0x171] sm:$0xff]
    %v3542 = vld [vmem:[%s1358 + $0x1b1] sm:$0xff]
    %v3543 = vld [vmem:[%s1358 + $0x1b9] sm:$0xff]
    %v3544 = vld [vmem:[%s1358 + $0x1c9] sm:$0xff]
    %v3545 = vld [vmem:[%s1358 + $0x1d1] sm:$0xff]
    %v3546 = vld [vmem:[%s1358 + $0x1e1] sm:$0xff]
    %v3547 = vld [vmem:[%s1358 + $0x1e9] sm:$0xff]
    %v3548 = vld [vmem:[%s1358 + $0x1f9] sm:$0xff]
    %v3549 = vld [vmem:[%s1358 + $0x201] sm:$0xff]
    %v3550 = vld [vmem:[%s1358 + $0x211] sm:$0xff]
    %v3551 = vld [vmem:[%s1358 + $0x219] sm:$0xff]
    %v3552 = vld [vmem:[%s1358 + $0x229] sm:$0xff]
    %v3553 = vld [vmem:[%s1358 + $0x231] sm:$0xff]
    %v3554 = vld [vmem:[%s1358 + $0x241] sm:$0xff]
    %v3555 = vld [vmem:[%s1358 + $0x249] sm:$0xff]
    %v3556 = vld [vmem:[%s1358 + $0x259] sm:$0xff]
    %v3557 = vld [vmem:[%s1358 + $0x261] sm:$0xff]
    %v3558 = vld [vmem:[%s1358 + $0x271] sm:$0xff]
    %v3559 = vld [vmem:[%s1358 + $0x279] sm:$0xff]
    %v3560 = vld [vmem:[%s1358 + $0x289] sm:$0xff]
    %v3561 = vld [vmem:[%s1358 + $0x291] sm:$0xff]
    %v3562 = vld [vmem:[%s1358 + $0x2a1] sm:$0xff]
    %v3563 = vld [vmem:[%s1358 + $0x2a9] sm:$0xff]
    %v3564 = vld [vmem:[%s1358 + $0x2b9] sm:$0xff]
    %v3565 = vld [vmem:[%s1358 + $0x2c1] sm:$0xff]
    %v3566 = vld [vmem:[%s1358 + $0x2d1] sm:$0xff]
    %v3567 = vld [vmem:[%s1358 + $0x2d9] sm:$0xff]
    %v3568 = vld [vmem:[%s1358 + $0x2e9] sm:$0xff]
    %v3569 = vld [vmem:[%s1358 + $0x2f1] sm:$0xff]
    %v3570 = vld [vmem:[%s1358 + $0x301] sm:$0xff]
    %v3571 = vld [vmem:[%s1358 + $0x309] sm:$0xff]
    %v3572 = vld [vmem:[%s1358 + $0x319] sm:$0xff]
    %v3573 = vld [vmem:[%s1358 + $0x321] sm:$0xff]
    %s3574 = scalar_lea.vmem [#allocation6], 32
    %v3575 = vld [vmem:[%s3574] sm:$0xf]
    %v3576 = vld [vmem:[%s3574 + $0x4] sm:$0xf]
    %v3577 = vpack.c.bf16 %v3511, %v3510
    %v3578 = vpack.c.bf16 %v3513, %v3512
    %v3579 = vpack.c.bf16 %v3515, %v3514
    %v3580 = vpack.c.bf16 %v3517, %v3516
    %v3581 = vpack.c.bf16 %v3519, %v3518
    %v3582 = vpack.c.bf16 %v3521, %v3520
    %v3583 = vpack.c.bf16 %v3523, %v3522
    %v3584 = vpack.c.bf16 %v3525, %v3524
    %v3585 = vpack.c.bf16 %v3527, %v3526
    %v3586 = vpack.c.bf16 %v3529, %v3528
    %v3587 = vpack.c.bf16 %v3531, %v3530
    %v3588 = vpack.c.bf16 %v3533, %v3532
    %v3589 = vpack.c.bf16 %v3535, %v3534
    %v3590 = vpack.c.bf16 %v3537, %v3536
    %v3591 = vpack.c.bf16 %v3539, %v3538
    %v3592 = vpack.c.bf16 %v3541, %v3540
    %v3593 = vpack.c.bf16 %v3543, %v3542
    %v3594 = vpack.c.bf16 %v3545, %v3544
    %v3595 = vpack.c.bf16 %v3547, %v3546
    %v3596 = vpack.c.bf16 %v3549, %v3548
    %v3597 = vpack.c.bf16 %v3551, %v3550
    %v3598 = vpack.c.bf16 %v3553, %v3552
    %v3599 = vpack.c.bf16 %v3555, %v3554
    %v3600 = vpack.c.bf16 %v3557, %v3556
    %v3601 = vpack.c.bf16 %v3559, %v3558
    %v3602 = vpack.c.bf16 %v3561, %v3560
    %v3603 = vpack.c.bf16 %v3563, %v3562
    %v3604 = vpack.c.bf16 %v3565, %v3564
    %v3605 = vpack.c.bf16 %v3567, %v3566
    %v3606 = vpack.c.bf16 %v3569, %v3568
    %v3607 = vpack.c.bf16 %v3571, %v3570
    %v3608 = vpack.c.bf16 %v3573, %v3572
    %v3611 = vunpack.c.l.b16 %v3575
    %v3612 = vunpack.c.l.b16 %v3576
    %v3613 = vpack.c.b16 %v3612, %v3611
    %v3616 = vsel %vm581, %v3577, 0
    %v3619 = vsel %vm581, %v3578, 0
    %v3622 = vsel %vm581, %v3579, 0
    %v3625 = vsel %vm581, %v3580, 0
    %v3628 = vsel %vm581, %v3581, 0
    %v3631 = vsel %vm581, %v3582, 0
    %v3634 = vsel %vm581, %v3583, 0
    %v3637 = vsel %vm581, %v3584, 0
    %v3640 = vsel %vm581, %v3585, 0
    %v3643 = vsel %vm581, %v3586, 0
    %v3646 = vsel %vm581, %v3587, 0
    %v3649 = vsel %vm581, %v3588, 0
    %v3652 = vsel %vm581, %v3589, 0
    %v3655 = vsel %vm581, %v3590, 0
    %v3658 = vsel %vm581, %v3591, 0
    %v3661 = vsel %vm581, %v3592, 0
    %v3664 = vsel %vm581, %v3593, 0
    %v3667 = vsel %vm581, %v3594, 0
    %v3670 = vsel %vm581, %v3595, 0
    %v3673 = vsel %vm581, %v3596, 0
    %v3676 = vsel %vm581, %v3597, 0
    %v3679 = vsel %vm581, %v3598, 0
    %v3682 = vsel %vm581, %v3599, 0
    %v3685 = vsel %vm581, %v3600, 0
    %v3688 = vsel %vm581, %v3601, 0
    %v3691 = vsel %vm581, %v3602, 0
    %v3694 = vsel %vm581, %v3603, 0
    %v3697 = vsel %vm581, %v3604, 0
    %v3700 = vsel %vm581, %v3605, 0
    %v3703 = vsel %vm581, %v3606, 0
    %v3706 = vsel %vm581, %v3607, 0
    %v3709 = vsel %vm581, %v3608, 0
    %3711 = vmatprep.subr.bf16.mxu0 0
    %3712 = vmatpush1.bf16.msra.mxu0 %v3613
    %3713 = vmatprep.subr.bf16.mxu0 0
    %3714 = vmatpush1.bf16.msra.mxu0 0
    %3715 = vmatprep.subr.bf16.mxu0 0
    %3716 = vmatpush1.bf16.msra.mxu0 0
    %3717 = vmatprep.subr.bf16.mxu0 0
    %3718 = vmatpush1.bf16.msra.mxu0 0
    %3719 = vmatprep.subr.bf16.mxu0 0
    %3720 = vmatpush1.bf16.msra.mxu0 0
    %3721 = vmatprep.subr.bf16.mxu0 0
    %3722 = vmatpush1.bf16.msra.mxu0 0
    %3723 = vmatprep.subr.bf16.mxu0 0
    %3724 = vmatpush1.bf16.msra.mxu0 0
    %3725 = vmatprep.subr.bf16.mxu0 0
    %3726 = vmatpush1.bf16.msra.mxu0 0
    %3727 = vmatprep.subr.bf16.mxu0 0
    %3728 = vmatpush1.bf16.msra.mxu0 0
    %3729 = vmatprep.subr.bf16.mxu0 0
    %3730 = vmatpush1.bf16.msra.mxu0 0
    %3731 = vmatprep.subr.bf16.mxu0 0
    %3732 = vmatpush1.bf16.msra.mxu0 0
    %3733 = vmatprep.subr.bf16.mxu0 0
    %3734 = vmatpush1.bf16.msra.mxu0 0
    %3735 = vmatprep.subr.bf16.mxu0 0
    %3736 = vmatpush1.bf16.msra.mxu0 0
    %3737 = vmatprep.subr.bf16.mxu0 0
    %3738 = vmatpush1.bf16.msra.mxu0 0
    %3739 = vmatprep.subr.bf16.mxu0 0
    %3740 = vmatpush1.bf16.msra.mxu0 0
    %3741 = vmatprep.subr.bf16.mxu0 0
    %3742 = vmatpush1.bf16.msra.mxu0 0
    %3743 = vmatprep.mubr.bf16.mxu0 0
    %3744 = vmatmul.mubr.bf16.gmra.mrb[0].mxu0 %v3616
    %v3745 = vpop.f32.mrb[0].mxu0
    %v3746 = vadd.f32 0.0, %v3745
    %v3747 = vpop.f32.mrb[0].mxu0
    %v3748 = vpop.f32.mrb[0].mxu0
    %v3749 = vadd.f32 0.0, %v3748
    %v3750 = vpop.f32.mrb[0].mxu0
    %3751 = vmatprep.mubr.bf16.mxu0 0
    %3752 = vmatmul.mubr.bf16.gmra.mrb[0].mxu0 %v3619
    %v3753 = vpop.f32.mrb[0].mxu0
    %v3754 = vadd.f32 0.0, %v3753
    %v3755 = vpop.f32.mrb[0].mxu0
    %v3756 = vpop.f32.mrb[0].mxu0
    %v3757 = vadd.f32 0.0, %v3756
    %v3758 = vpop.f32.mrb[0].mxu0
    %3759 = vmatprep.mubr.bf16.mxu0 0
    %3760 = vmatmul.mubr.bf16.gmra.mrb[0].mxu0 %v3622
    %v3761 = vpop.f32.mrb[0].mxu0
    %v3762 = vadd.f32 0.0, %v3761
    %v3763 = vpop.f32.mrb[0].mxu0
    %v3764 = vpop.f32.mrb[0].mxu0
    %v3765 = vadd.f32 0.0, %v3764
    %v3766 = vpop.f32.mrb[0].mxu0
    %3767 = vmatprep.mubr.bf16.mxu0 0
    %3768 = vmatmul.mubr.bf16.gmra.mrb[0].mxu0 %v3625
    %v3769 = vpop.f32.mrb[0].mxu0
    %v3770 = vadd.f32 0.0, %v3769
    %v3771 = vpop.f32.mrb[0].mxu0
    %v3772 = vpop.f32.mrb[0].mxu0
    %v3773 = vadd.f32 0.0, %v3772
    %v3774 = vpop.f32.mrb[0].mxu0
    %3775 = vmatprep.mubr.bf16.mxu0 0
    %3776 = vmatmul.mubr.bf16.gmra.mrb[0].mxu0 %v3628
    %v3777 = vpop.f32.mrb[0].mxu0
    %v3778 = vadd.f32 0.0, %v3777
    %v3779 = vpop.f32.mrb[0].mxu0
    %v3780 = vpop.f32.mrb[0].mxu0
    %v3781 = vadd.f32 0.0, %v3780
    %v3782 = vpop.f32.mrb[0].mxu0
    %3783 = vmatprep.mubr.bf16.mxu0 0
    %3784 = vmatmul.mubr.bf16.gmra.mrb[0].mxu0 %v3631
    %v3785 = vpop.f32.mrb[0].mxu0
    %v3786 = vadd.f32 0.0, %v3785
    %v3787 = vpop.f32.mrb[0].mxu0
    %v3788 = vpop.f32.mrb[0].mxu0
    %v3789 = vadd.f32 0.0, %v3788
    %v3790 = vpop.f32.mrb[0].mxu0
    %3791 = vmatprep.mubr.bf16.mxu0 0
    %3792 = vmatmul.mubr.bf16.gmra.mrb[0].mxu0 %v3634
    %v3793 = vpop.f32.mrb[0].mxu0
    %v3794 = vadd.f32 0.0, %v3793
    %v3795 = vpop.f32.mrb[0].mxu0
    %v3796 = vpop.f32.mrb[0].mxu0
    %v3797 = vadd.f32 0.0, %v3796
    %v3798 = vpop.f32.mrb[0].mxu0
    %3799 = vmatprep.mubr.bf16.mxu0 0
    %3800 = vmatmul.mubr.bf16.gmra.mrb[0].mxu0 %v3637
    %v3801 = vpop.f32.mrb[0].mxu0
    %v3802 = vadd.f32 0.0, %v3801
    %v3803 = vpop.f32.mrb[0].mxu0
    %v3804 = vpop.f32.mrb[0].mxu0
    %v3805 = vadd.f32 0.0, %v3804
    %v3806 = vpop.f32.mrb[0].mxu0
    %3807 = vmatprep.mubr.bf16.mxu0 0
    %3808 = vmatmul.mubr.bf16.gmra.mrb[0].mxu0 %v3640
    %v3809 = vpop.f32.mrb[0].mxu0
    %v3810 = vadd.f32 0.0, %v3809
    %v3811 = vpop.f32.mrb[0].mxu0
    %v3812 = vpop.f32.mrb[0].mxu0
    %v3813 = vadd.f32 0.0, %v3812
    %v3814 = vpop.f32.mrb[0].mxu0
    %3815 = vmatprep.mubr.bf16.mxu0 0
    %3816 = vmatmul.mubr.bf16.gmra.mrb[0].mxu0 %v3643
    %v3817 = vpop.f32.mrb[0].mxu0
    %v3818 = vadd.f32 0.0, %v3817
    %v3819 = vpop.f32.mrb[0].mxu0
    %v3820 = vpop.f32.mrb[0].mxu0
    %v3821 = vadd.f32 0.0, %v3820
    %v3822 = vpop.f32.mrb[0].mxu0
    %3823 = vmatprep.mubr.bf16.mxu0 0
    %3824 = vmatmul.mubr.bf16.gmra.mrb[0].mxu0 %v3646
    %v3825 = vpop.f32.mrb[0].mxu0
    %v3826 = vadd.f32 0.0, %v3825
    %v3827 = vpop.f32.mrb[0].mxu0
    %v3828 = vpop.f32.mrb[0].mxu0
    %v3829 = vadd.f32 0.0, %v3828
    %v3830 = vpop.f32.mrb[0].mxu0
    %3831 = vmatprep.mubr.bf16.mxu0 0
    %3832 = vmatmul.mubr.bf16.gmra.mrb[0].mxu0 %v3649
    %v3833 = vpop.f32.mrb[0].mxu0
    %v3834 = vadd.f32 0.0, %v3833
    %v3835 = vpop.f32.mrb[0].mxu0
    %v3836 = vpop.f32.mrb[0].mxu0
    %v3837 = vadd.f32 0.0, %v3836
    %v3838 = vpop.f32.mrb[0].mxu0
    %3839 = vmatprep.mubr.bf16.mxu0 0
    %3840 = vmatmul.mubr.bf16.gmra.mrb[0].mxu0 %v3652
    %v3841 = vpop.f32.mrb[0].mxu0
    %v3842 = vadd.f32 0.0, %v3841
    %v3843 = vpop.f32.mrb[0].mxu0
    %v3844 = vpop.f32.mrb[0].mxu0
    %v3845 = vadd.f32 0.0, %v3844
    %v3846 = vpop.f32.mrb[0].mxu0
    %3847 = vmatprep.mubr.bf16.mxu0 0
    %3848 = vmatmul.mubr.bf16.gmra.mrb[0].mxu0 %v3655
    %v3849 = vpop.f32.mrb[0].mxu0
    %v3850 = vadd.f32 0.0, %v3849
    %v3851 = vpop.f32.mrb[0].mxu0
    %v3852 = vpop.f32.mrb[0].mxu0
    %v3853 = vadd.f32 0.0, %v3852
    %v3854 = vpop.f32.mrb[0].mxu0
    %3855 = vmatprep.mubr.bf16.mxu0 0
    %3856 = vmatmul.mubr.bf16.gmra.mrb[0].mxu0 %v3658
    %v3857 = vpop.f32.mrb[0].mxu0
    %v3858 = vadd.f32 0.0, %v3857
    %v3859 = vpop.f32.mrb[0].mxu0
    %v3860 = vpop.f32.mrb[0].mxu0
    %v3861 = vadd.f32 0.0, %v3860
    %v3862 = vpop.f32.mrb[0].mxu0
    %3863 = vmatprep.mubr.bf16.mxu0 0
    %3864 = vmatmul.mubr.bf16.gmra.mrb[0].mxu0 %v3661
    %v3865 = vpop.f32.mrb[0].mxu0
    %v3866 = vadd.f32 0.0, %v3865
    %v3867 = vpop.f32.mrb[0].mxu0
    %v3868 = vpop.f32.mrb[0].mxu0
    %v3869 = vadd.f32 0.0, %v3868
    %v3870 = vpop.f32.mrb[0].mxu0
    %3871 = vmatprep.mubr.bf16.mxu0 0
    %3872 = vmatmul.mubr.bf16.gmra.mrb[0].mxu0 %v3664
    %v3873 = vpop.f32.mrb[0].mxu0
    %v3874 = vadd.f32 0.0, %v3873
    %v3875 = vpop.f32.mrb[0].mxu0
    %v3876 = vpop.f32.mrb[0].mxu0
    %v3877 = vadd.f32 0.0, %v3876
    %v3878 = vpop.f32.mrb[0].mxu0
    %3879 = vmatprep.mubr.bf16.mxu0 0
    %3880 = vmatmul.mubr.bf16.gmra.mrb[0].mxu0 %v3667
    %v3881 = vpop.f32.mrb[0].mxu0
    %v3882 = vadd.f32 0.0, %v3881
    %v3883 = vpop.f32.mrb[0].mxu0
    %v3884 = vpop.f32.mrb[0].mxu0
    %v3885 = vadd.f32 0.0, %v3884
    %v3886 = vpop.f32.mrb[0].mxu0
    %3887 = vmatprep.mubr.bf16.mxu0 0
    %3888 = vmatmul.mubr.bf16.gmra.mrb[0].mxu0 %v3670
    %v3889 = vpop.f32.mrb[0].mxu0
    %v3890 = vadd.f32 0.0, %v3889
    %v3891 = vpop.f32.mrb[0].mxu0
    %v3892 = vpop.f32.mrb[0].mxu0
    %v3893 = vadd.f32 0.0, %v3892
    %v3894 = vpop.f32.mrb[0].mxu0
    %3895 = vmatprep.mubr.bf16.mxu0 0
    %3896 = vmatmul.mubr.bf16.gmra.mrb[0].mxu0 %v3673
    %v3897 = vpop.f32.mrb[0].mxu0
    %v3898 = vadd.f32 0.0, %v3897
    %v3899 = vpop.f32.mrb[0].mxu0
    %v3900 = vpop.f32.mrb[0].mxu0
    %v3901 = vadd.f32 0.0, %v3900
    %v3902 = vpop.f32.mrb[0].mxu0
    %3903 = vmatprep.mubr.bf16.mxu0 0
    %3904 = vmatmul.mubr.bf16.gmra.mrb[0].mxu0 %v3676
    %v3905 = vpop.f32.mrb[0].mxu0
    %v3906 = vadd.f32 0.0, %v3905
    %v3907 = vpop.f32.mrb[0].mxu0
    %v3908 = vpop.f32.mrb[0].mxu0
    %v3909 = vadd.f32 0.0, %v3908
    %v3910 = vpop.f32.mrb[0].mxu0
    %3911 = vmatprep.mubr.bf16.mxu0 0
    %3912 = vmatmul.mubr.bf16.gmra.mrb[0].mxu0 %v3679
    %v3913 = vpop.f32.mrb[0].mxu0
    %v3914 = vadd.f32 0.0, %v3913
    %v3915 = vpop.f32.mrb[0].mxu0
    %v3916 = vpop.f32.mrb[0].mxu0
    %v3917 = vadd.f32 0.0, %v3916
    %v3918 = vpop.f32.mrb[0].mxu0
    %3919 = vmatprep.mubr.bf16.mxu0 0
    %3920 = vmatmul.mubr.bf16.gmra.mrb[0].mxu0 %v3682
    %v3921 = vpop.f32.mrb[0].mxu0
    %v3922 = vadd.f32 0.0, %v3921
    %v3923 = vpop.f32.mrb[0].mxu0
    %v3924 = vpop.f32.mrb[0].mxu0
    %v3925 = vadd.f32 0.0, %v3924
    %v3926 = vpop.f32.mrb[0].mxu0
    %3927 = vmatprep.mubr.bf16.mxu0 0
    %3928 = vmatmul.mubr.bf16.gmra.mrb[0].mxu0 %v3685
    %v3929 = vpop.f32.mrb[0].mxu0
    %v3930 = vadd.f32 0.0, %v3929
    %v3931 = vpop.f32.mrb[0].mxu0
    %v3932 = vpop.f32.mrb[0].mxu0
    %v3933 = vadd.f32 0.0, %v3932
    %v3934 = vpop.f32.mrb[0].mxu0
    %3935 = vmatprep.mubr.bf16.mxu0 0
    %3936 = vmatmul.mubr.bf16.gmra.mrb[0].mxu0 %v3688
    %v3937 = vpop.f32.mrb[0].mxu0
    %v3938 = vadd.f32 0.0, %v3937
    %v3939 = vpop.f32.mrb[0].mxu0
    %v3940 = vpop.f32.mrb[0].mxu0
    %v3941 = vadd.f32 0.0, %v3940
    %v3942 = vpop.f32.mrb[0].mxu0
    %3943 = vmatprep.mubr.bf16.mxu0 0
    %3944 = vmatmul.mubr.bf16.gmra.mrb[0].mxu0 %v3691
    %v3945 = vpop.f32.mrb[0].mxu0
    %v3946 = vadd.f32 0.0, %v3945
    %v3947 = vpop.f32.mrb[0].mxu0
    %v3948 = vpop.f32.mrb[0].mxu0
    %v3949 = vadd.f32 0.0, %v3948
    %v3950 = vpop.f32.mrb[0].mxu0
    %3951 = vmatprep.mubr.bf16.mxu0 0
    %3952 = vmatmul.mubr.bf16.gmra.mrb[0].mxu0 %v3694
    %v3953 = vpop.f32.mrb[0].mxu0
    %v3954 = vadd.f32 0.0, %v3953
    %v3955 = vpop.f32.mrb[0].mxu0
    %v3956 = vpop.f32.mrb[0].mxu0
    %v3957 = vadd.f32 0.0, %v3956
    %v3958 = vpop.f32.mrb[0].mxu0
    %3959 = vmatprep.mubr.bf16.mxu0 0
    %3960 = vmatmul.mubr.bf16.gmra.mrb[0].mxu0 %v3697
    %v3961 = vpop.f32.mrb[0].mxu0
    %v3962 = vadd.f32 0.0, %v3961
    %v3963 = vpop.f32.mrb[0].mxu0
    %v3964 = vpop.f32.mrb[0].mxu0
    %v3965 = vadd.f32 0.0, %v3964
    %v3966 = vpop.f32.mrb[0].mxu0
    %3967 = vmatprep.mubr.bf16.mxu0 0
    %3968 = vmatmul.mubr.bf16.gmra.mrb[0].mxu0 %v3700
    %v3969 = vpop.f32.mrb[0].mxu0
    %v3970 = vadd.f32 0.0, %v3969
    %v3971 = vpop.f32.mrb[0].mxu0
    %v3972 = vpop.f32.mrb[0].mxu0
    %v3973 = vadd.f32 0.0, %v3972
    %v3974 = vpop.f32.mrb[0].mxu0
    %3975 = vmatprep.mubr.bf16.mxu0 0
    %3976 = vmatmul.mubr.bf16.gmra.mrb[0].mxu0 %v3703
    %v3977 = vpop.f32.mrb[0].mxu0
    %v3978 = vadd.f32 0.0, %v3977
    %v3979 = vpop.f32.mrb[0].mxu0
    %v3980 = vpop.f32.mrb[0].mxu0
    %v3981 = vadd.f32 0.0, %v3980
    %v3982 = vpop.f32.mrb[0].mxu0
    %3983 = vmatprep.mubr.bf16.mxu0 0
    %3984 = vmatmul.mubr.bf16.gmra.mrb[0].mxu0 %v3706
    %v3985 = vpop.f32.mrb[0].mxu0
    %v3986 = vadd.f32 0.0, %v3985
    %v3987 = vpop.f32.mrb[0].mxu0
    %v3988 = vpop.f32.mrb[0].mxu0
    %v3989 = vadd.f32 0.0, %v3988
    %v3990 = vpop.f32.mrb[0].mxu0
    %3991 = vmatprep.mubr.bf16.mxu0 0
    %3992 = vmatmul.mubr.bf16.gmra.mrb[0].mxu0 %v3709
    %v3993 = vpop.f32.mrb[0].mxu0
    %v3994 = vadd.f32 0.0, %v3993
    %v3995 = vpop.f32.mrb[0].mxu0
    %v3996 = vpop.f32.mrb[0].mxu0
    %v3997 = vadd.f32 0.0, %v3996
    %v3998 = vpop.f32.mrb[0].mxu0
    %3999 = vdwg.mxu0
    %v4000 = vadd.f32 %v3446, %v3746
    %v4001 = vadd.f32 %v3447, %v3749
    %v4002 = vadd.f32 %v3448, %v3754
    %v4003 = vadd.f32 %v3449, %v3757
    %v4004 = vadd.f32 %v3450, %v3762
    %v4005 = vadd.f32 %v3451, %v3765
    %v4006 = vadd.f32 %v3452, %v3770
    %v4007 = vadd.f32 %v3453, %v3773
    %v4008 = vadd.f32 %v3454, %v3778
    %v4009 = vadd.f32 %v3455, %v3781
    %v4010 = vadd.f32 %v3456, %v3786
    %v4011 = vadd.f32 %v3457, %v3789
    %v4012 = vadd.f32 %v3458, %v3794
    %v4013 = vadd.f32 %v3459, %v3797
    %v4014 = vadd.f32 %v3460, %v3802
    %v4015 = vadd.f32 %v3461, %v3805
    %v4016 = vadd.f32 %v3462, %v3810
    %v4017 = vadd.f32 %v3463, %v3813
    %v4018 = vadd.f32 %v3464, %v3818
    %v4019 = vadd.f32 %v3465, %v3821
    %v4020 = vadd.f32 %v3466, %v3826
    %v4021 = vadd.f32 %v3467, %v3829
    %v4022 = vadd.f32 %v3468, %v3834
    %v4023 = vadd.f32 %v3469, %v3837
    %v4024 = vadd.f32 %v3470, %v3842
    %v4025 = vadd.f32 %v3471, %v3845
    %v4026 = vadd.f32 %v3472, %v3850
    %v4027 = vadd.f32 %v3473, %v3853
    %v4028 = vadd.f32 %v3474, %v3858
    %v4029 = vadd.f32 %v3475, %v3861
    %v4030 = vadd.f32 %v3476, %v3866
    %v4031 = vadd.f32 %v3477, %v3869
    %v4032 = vadd.f32 %v3478, %v3874
    %v4033 = vadd.f32 %v3479, %v3877
    %v4034 = vadd.f32 %v3480, %v3882
    %v4035 = vadd.f32 %v3481, %v3885
    %v4036 = vadd.f32 %v3482, %v3890
    %v4037 = vadd.f32 %v3483, %v3893
    %v4038 = vadd.f32 %v3484, %v3898
    %v4039 = vadd.f32 %v3485, %v3901
    %v4040 = vadd.f32 %v3486, %v3906
    %v4041 = vadd.f32 %v3487, %v3909
    %v4042 = vadd.f32 %v3488, %v3914
    %v4043 = vadd.f32 %v3489, %v3917
    %v4044 = vadd.f32 %v3490, %v3922
    %v4045 = vadd.f32 %v3491, %v3925
    %v4046 = vadd.f32 %v3492, %v3930
    %v4047 = vadd.f32 %v3493, %v3933
    %v4048 = vadd.f32 %v3494, %v3938
    %v4049 = vadd.f32 %v3495, %v3941
    %v4050 = vadd.f32 %v3496, %v3946
    %v4051 = vadd.f32 %v3497, %v3949
    %v4052 = vadd.f32 %v3498, %v3954
    %v4053 = vadd.f32 %v3499, %v3957
    %v4054 = vadd.f32 %v3500, %v3962
    %v4055 = vadd.f32 %v3501, %v3965
    %v4056 = vadd.f32 %v3502, %v3970
    %v4057 = vadd.f32 %v3503, %v3973
    %v4058 = vadd.f32 %v3504, %v3978
    %v4059 = vadd.f32 %v3505, %v3981
    %v4060 = vadd.f32 %v3506, %v3986
    %v4061 = vadd.f32 %v3507, %v3989
    %v4062 = vadd.f32 %v3508, %v3994
    %v4063 = vadd.f32 %v3509, %v3997
    %v4064 = vld [vmem:[%s1358 + $0x2] sm:$0xff]
    %v4065 = vld [vmem:[%s1358 + $0xa] sm:$0xff]
    %v4066 = vld [vmem:[%s1358 + $0x1a] sm:$0xff]
    %v4067 = vld [vmem:[%s1358 + $0x22] sm:$0xff]
    %v4068 = vld [vmem:[%s1358 + $0x32] sm:$0xff]
    %v4069 = vld [vmem:[%s1358 + $0x3a] sm:$0xff]
    %v4070 = vld [vmem:[%s1358 + $0x4a] sm:$0xff]
    %v4071 = vld [vmem:[%s1358 + $0x52] sm:$0xff]
    %v4072 = vld [vmem:[%s1358 + $0x62] sm:$0xff]
    %v4073 = vld [vmem:[%s1358 + $0x6a] sm:$0xff]
    %v4074 = vld [vmem:[%s1358 + $0x7a] sm:$0xff]
    %v4075 = vld [vmem:[%s1358 + $0x82] sm:$0xff]
    %v4076 = vld [vmem:[%s1358 + $0x92] sm:$0xff]
    %v4077 = vld [vmem:[%s1358 + $0x9a] sm:$0xff]
    %v4078 = vld [vmem:[%s1358 + $0xaa] sm:$0xff]
    %v4079 = vld [vmem:[%s1358 + $0xb2] sm:$0xff]
    %v4080 = vld [vmem:[%s1358 + $0xc2] sm:$0xff]
    %v4081 = vld [vmem:[%s1358 + $0xca] sm:$0xff]
    %v4082 = vld [vmem:[%s1358 + $0xda] sm:$0xff]
    %v4083 = vld [vmem:[%s1358 + $0xe2] sm:$0xff]
    %v4084 = vld [vmem:[%s1358 + $0xf2] sm:$0xff]
    %v4085 = vld [vmem:[%s1358 + $0xfa] sm:$0xff]
    %v4086 = vld [vmem:[%s1358 + $0x10a] sm:$0xff]
    %v4087 = vld [vmem:[%s1358 + $0x112] sm:$0xff]
    %v4088 = vld [vmem:[%s1358 + $0x122] sm:$0xff]
    %v4089 = vld [vmem:[%s1358 + $0x12a] sm:$0xff]
    %v4090 = vld [vmem:[%s1358 + $0x13a] sm:$0xff]
    %v4091 = vld [vmem:[%s1358 + $0x142] sm:$0xff]
    %v4092 = vld [vmem:[%s1358 + $0x152] sm:$0xff]
    %v4093 = vld [vmem:[%s1358 + $0x15a] sm:$0xff]
    %v4094 = vld [vmem:[%s1358 + $0x16a] sm:$0xff]
    %v4095 = vld [vmem:[%s1358 + $0x172] sm:$0xff]
    %v4096 = vld [vmem:[%s1358 + $0x1b2] sm:$0xff]
    %v4097 = vld [vmem:[%s1358 + $0x1ba] sm:$0xff]
    %v4098 = vld [vmem:[%s1358 + $0x1ca] sm:$0xff]
    %v4099 = vld [vmem:[%s1358 + $0x1d2] sm:$0xff]
    %v4100 = vld [vmem:[%s1358 + $0x1e2] sm:$0xff]
    %v4101 = vld [vmem:[%s1358 + $0x1ea] sm:$0xff]
    %v4102 = vld [vmem:[%s1358 + $0x1fa] sm:$0xff]
    %v4103 = vld [vmem:[%s1358 + $0x202] sm:$0xff]
    %v4104 = vld [vmem:[%s1358 + $0x212] sm:$0xff]
    %v4105 = vld [vmem:[%s1358 + $0x21a] sm:$0xff]
    %v4106 = vld [vmem:[%s1358 + $0x22a] sm:$0xff]
    %v4107 = vld [vmem:[%s1358 + $0x232] sm:$0xff]
    %v4108 = vld [vmem:[%s1358 + $0x242] sm:$0xff]
    %v4109 = vld [vmem:[%s1358 + $0x24a] sm:$0xff]
    %v4110 = vld [vmem:[%s1358 + $0x25a] sm:$0xff]
    %v4111 = vld [vmem:[%s1358 + $0x262] sm:$0xff]
    %v4112 = vld [vmem:[%s1358 + $0x272] sm:$0xff]
    %v4113 = vld [vmem:[%s1358 + $0x27a] sm:$0xff]
    %v4114 = vld [vmem:[%s1358 + $0x28a] sm:$0xff]
    %v4115 = vld [vmem:[%s1358 + $0x292] sm:$0xff]
    %v4116 = vld [vmem:[%s1358 + $0x2a2] sm:$0xff]
    %v4117 = vld [vmem:[%s1358 + $0x2aa] sm:$0xff]
    %v4118 = vld [vmem:[%s1358 + $0x2ba] sm:$0xff]
    %v4119 = vld [vmem:[%s1358 + $0x2c2] sm:$0xff]
    %v4120 = vld [vmem:[%s1358 + $0x2d2] sm:$0xff]
    %v4121 = vld [vmem:[%s1358 + $0x2da] sm:$0xff]
    %v4122 = vld [vmem:[%s1358 + $0x2ea] sm:$0xff]
    %v4123 = vld [vmem:[%s1358 + $0x2f2] sm:$0xff]
    %v4124 = vld [vmem:[%s1358 + $0x302] sm:$0xff]
    %v4125 = vld [vmem:[%s1358 + $0x30a] sm:$0xff]
    %v4126 = vld [vmem:[%s1358 + $0x31a] sm:$0xff]
    %v4127 = vld [vmem:[%s1358 + $0x322] sm:$0xff]
    %s4128 = scalar_lea.vmem [#allocation6], 40
    %v4129 = vld [vmem:[%s4128] sm:$0xf]
    %v4130 = vld [vmem:[%s4128 + $0x4] sm:$0xf]
    %v4131 = vpack.c.bf16 %v4065, %v4064
    %v4132 = vpack.c.bf16 %v4067, %v4066
    %v4133 = vpack.c.bf16 %v4069, %v4068
    %v4134 = vpack.c.bf16 %v4071, %v4070
    %v4135 = vpack.c.bf16 %v4073, %v4072
    %v4136 = vpack.c.bf16 %v4075, %v4074
    %v4137 = vpack.c.bf16 %v4077, %v4076
    %v4138 = vpack.c.bf16 %v4079, %v4078
    %v4139 = vpack.c.bf16 %v4081, %v4080
    %v4140 = vpack.c.bf16 %v4083, %v4082
    %v4141 = vpack.c.bf16 %v4085, %v4084
    %v4142 = vpack.c.bf16 %v4087, %v4086
    %v4143 = vpack.c.bf16 %v4089, %v4088
    %v4144 = vpack.c.bf16 %v4091, %v4090
    %v4145 = vpack.c.bf16 %v4093, %v4092
    %v4146 = vpack.c.bf16 %v4095, %v4094
    %v4147 = vpack.c.bf16 %v4097, %v4096
    %v4148 = vpack.c.bf16 %v4099, %v4098
    %v4149 = vpack.c.bf16 %v4101, %v4100
    %v4150 = vpack.c.bf16 %v4103, %v4102
    %v4151 = vpack.c.bf16 %v4105, %v4104
    %v4152 = vpack.c.bf16 %v4107, %v4106
    %v4153 = vpack.c.bf16 %v4109, %v4108
    %v4154 = vpack.c.bf16 %v4111, %v4110
    %v4155 = vpack.c.bf16 %v4113, %v4112
    %v4156 = vpack.c.bf16 %v4115, %v4114
    %v4157 = vpack.c.bf16 %v4117, %v4116
    %v4158 = vpack.c.bf16 %v4119, %v4118
    %v4159 = vpack.c.bf16 %v4121, %v4120
    %v4160 = vpack.c.bf16 %v4123, %v4122
    %v4161 = vpack.c.bf16 %v4125, %v4124
    %v4162 = vpack.c.bf16 %v4127, %v4126
    %v4165 = vunpack.c.l.b16 %v4129
    %v4166 = vunpack.c.l.b16 %v4130
    %v4167 = vpack.c.b16 %v4166, %v4165
    %v4170 = vsel %vm581, %v4131, 0
    %v4173 = vsel %vm581, %v4132, 0
    %v4176 = vsel %vm581, %v4133, 0
    %v4179 = vsel %vm581, %v4134, 0
    %v4182 = vsel %vm581, %v4135, 0
    %v4185 = vsel %vm581, %v4136, 0
    %v4188 = vsel %vm581, %v4137, 0
    %v4191 = vsel %vm581, %v4138, 0
    %v4194 = vsel %vm581, %v4139, 0
    %v4197 = vsel %vm581, %v4140, 0
    %v4200 = vsel %vm581, %v4141, 0
    %v4203 = vsel %vm581, %v4142, 0
    %v4206 = vsel %vm581, %v4143, 0
    %v4209 = vsel %vm581, %v4144, 0
    %v4212 = vsel %vm581, %v4145, 0
    %v4215 = vsel %vm581, %v4146, 0
    %v4218 = vsel %vm581, %v4147, 0
    %v4221 = vsel %vm581, %v4148, 0
    %v4224 = vsel %vm581, %v4149, 0
    %v4227 = vsel %vm581, %v4150, 0
    %v4230 = vsel %vm581, %v4151, 0
    %v4233 = vsel %vm581, %v4152, 0
    %v4236 = vsel %vm581, %v4153, 0
    %v4239 = vsel %vm581, %v4154, 0
    %v4242 = vsel %vm581, %v4155, 0
    %v4245 = vsel %vm581, %v4156, 0
    %v4248 = vsel %vm581, %v4157, 0
    %v4251 = vsel %vm581, %v4158, 0
    %v4254 = vsel %vm581, %v4159, 0
    %v4257 = vsel %vm581, %v4160, 0
    %v4260 = vsel %vm581, %v4161, 0
    %v4263 = vsel %vm581, %v4162, 0
    %4265 = vmatprep.subr.bf16.mxu0 0
    %4266 = vmatpush1.bf16.msra.mxu0 %v4167
    %4267 = vmatprep.subr.bf16.mxu0 0
    %4268 = vmatpush1.bf16.msra.mxu0 0
    %4269 = vmatprep.subr.bf16.mxu0 0
    %4270 = vmatpush1.bf16.msra.mxu0 0
    %4271 = vmatprep.subr.bf16.mxu0 0
    %4272 = vmatpush1.bf16.msra.mxu0 0
    %4273 = vmatprep.subr.bf16.mxu0 0
    %4274 = vmatpush1.bf16.msra.mxu0 0
    %4275 = vmatprep.subr.bf16.mxu0 0
    %4276 = vmatpush1.bf16.msra.mxu0 0
    %4277 = vmatprep.subr.bf16.mxu0 0
    %4278 = vmatpush1.bf16.msra.mxu0 0
    %4279 = vmatprep.subr.bf16.mxu0 0
    %4280 = vmatpush1.bf16.msra.mxu0 0
    %4281 = vmatprep.subr.bf16.mxu0 0
    %4282 = vmatpush1.bf16.msra.mxu0 0
    %4283 = vmatprep.subr.bf16.mxu0 0
    %4284 = vmatpush1.bf16.msra.mxu0 0
    %4285 = vmatprep.subr.bf16.mxu0 0
    %4286 = vmatpush1.bf16.msra.mxu0 0
    %4287 = vmatprep.subr.bf16.mxu0 0
    %4288 = vmatpush1.bf16.msra.mxu0 0
    %4289 = vmatprep.subr.bf16.mxu0 0
    %4290 = vmatpush1.bf16.msra.mxu0 0
    %4291 = vmatprep.subr.bf16.mxu0 0
    %4292 = vmatpush1.bf16.msra.mxu0 0
    %4293 = vmatprep.subr.bf16.mxu0 0
    %4294 = vmatpush1.bf16.msra.mxu0 0
    %4295 = vmatprep.subr.bf16.mxu0 0
    %4296 = vmatpush1.bf16.msra.mxu0 0
    %4297 = vmatprep.mubr.bf16.mxu0 0
    %4298 = vmatmul.mubr.bf16.gmra.mrb[0].mxu0 %v4170
    %v4299 = vpop.f32.mrb[0].mxu0
    %v4300 = vadd.f32 0.0, %v4299
    %v4301 = vpop.f32.mrb[0].mxu0
    %v4302 = vpop.f32.mrb[0].mxu0
    %v4303 = vadd.f32 0.0, %v4302
    %v4304 = vpop.f32.mrb[0].mxu0
    %4305 = vmatprep.mubr.bf16.mxu0 0
    %4306 = vmatmul.mubr.bf16.gmra.mrb[0].mxu0 %v4173
    %v4307 = vpop.f32.mrb[0].mxu0
    %v4308 = vadd.f32 0.0, %v4307
    %v4309 = vpop.f32.mrb[0].mxu0
    %v4310 = vpop.f32.mrb[0].mxu0
    %v4311 = vadd.f32 0.0, %v4310
    %v4312 = vpop.f32.mrb[0].mxu0
    %4313 = vmatprep.mubr.bf16.mxu0 0
    %4314 = vmatmul.mubr.bf16.gmra.mrb[0].mxu0 %v4176
    %v4315 = vpop.f32.mrb[0].mxu0
    %v4316 = vadd.f32 0.0, %v4315
    %v4317 = vpop.f32.mrb[0].mxu0
    %v4318 = vpop.f32.mrb[0].mxu0
    %v4319 = vadd.f32 0.0, %v4318
    %v4320 = vpop.f32.mrb[0].mxu0
    %4321 = vmatprep.mubr.bf16.mxu0 0
    %4322 = vmatmul.mubr.bf16.gmra.mrb[0].mxu0 %v4179
    %v4323 = vpop.f32.mrb[0].mxu0
    %v4324 = vadd.f32 0.0, %v4323
    %v4325 = vpop.f32.mrb[0].mxu0
    %v4326 = vpop.f32.mrb[0].mxu0
    %v4327 = vadd.f32 0.0, %v4326
    %v4328 = vpop.f32.mrb[0].mxu0
    %4329 = vmatprep.mubr.bf16.mxu0 0
    %4330 = vmatmul.mubr.bf16.gmra.mrb[0].mxu0 %v4182
    %v4331 = vpop.f32.mrb[0].mxu0
    %v4332 = vadd.f32 0.0, %v4331
    %v4333 = vpop.f32.mrb[0].mxu0
    %v4334 = vpop.f32.mrb[0].mxu0
    %v4335 = vadd.f32 0.0, %v4334
    %v4336 = vpop.f32.mrb[0].mxu0
    %4337 = vmatprep.mubr.bf16.mxu0 0
    %4338 = vmatmul.mubr.bf16.gmra.mrb[0].mxu0 %v4185
    %v4339 = vpop.f32.mrb[0].mxu0
    %v4340 = vadd.f32 0.0, %v4339
    %v4341 = vpop.f32.mrb[0].mxu0
    %v4342 = vpop.f32.mrb[0].mxu0
    %v4343 = vadd.f32 0.0, %v4342
    %v4344 = vpop.f32.mrb[0].mxu0
    %4345 = vmatprep.mubr.bf16.mxu0 0
    %4346 = vmatmul.mubr.bf16.gmra.mrb[0].mxu0 %v4188
    %v4347 = vpop.f32.mrb[0].mxu0
    %v4348 = vadd.f32 0.0, %v4347
    %v4349 = vpop.f32.mrb[0].mxu0
    %v4350 = vpop.f32.mrb[0].mxu0
    %v4351 = vadd.f32 0.0, %v4350
    %v4352 = vpop.f32.mrb[0].mxu0
    %4353 = vmatprep.mubr.bf16.mxu0 0
    %4354 = vmatmul.mubr.bf16.gmra.mrb[0].mxu0 %v4191
    %v4355 = vpop.f32.mrb[0].mxu0
    %v4356 = vadd.f32 0.0, %v4355
    %v4357 = vpop.f32.mrb[0].mxu0
    %v4358 = vpop.f32.mrb[0].mxu0
    %v4359 = vadd.f32 0.0, %v4358
    %v4360 = vpop.f32.mrb[0].mxu0
    %4361 = vmatprep.mubr.bf16.mxu0 0
    %4362 = vmatmul.mubr.bf16.gmra.mrb[0].mxu0 %v4194
    %v4363 = vpop.f32.mrb[0].mxu0
    %v4364 = vadd.f32 0.0, %v4363
    %v4365 = vpop.f32.mrb[0].mxu0
    %v4366 = vpop.f32.mrb[0].mxu0
    %v4367 = vadd.f32 0.0, %v4366
    %v4368 = vpop.f32.mrb[0].mxu0
    %4369 = vmatprep.mubr.bf16.mxu0 0
    %4370 = vmatmul.mubr.bf16.gmra.mrb[0].mxu0 %v4197
    %v4371 = vpop.f32.mrb[0].mxu0
    %v4372 = vadd.f32 0.0, %v4371
    %v4373 = vpop.f32.mrb[0].mxu0
    %v4374 = vpop.f32.mrb[0].mxu0
    %v4375 = vadd.f32 0.0, %v4374
    %v4376 = vpop.f32.mrb[0].mxu0
    %4377 = vmatprep.mubr.bf16.mxu0 0
    %4378 = vmatmul.mubr.bf16.gmra.mrb[0].mxu0 %v4200
    %v4379 = vpop.f32.mrb[0].mxu0
    %v4380 = vadd.f32 0.0, %v4379
    %v4381 = vpop.f32.mrb[0].mxu0
    %v4382 = vpop.f32.mrb[0].mxu0
    %v4383 = vadd.f32 0.0, %v4382
    %v4384 = vpop.f32.mrb[0].mxu0
    %4385 = vmatprep.mubr.bf16.mxu0 0
    %4386 = vmatmul.mubr.bf16.gmra.mrb[0].mxu0 %v4203
    %v4387 = vpop.f32.mrb[0].mxu0
    %v4388 = vadd.f32 0.0, %v4387
    %v4389 = vpop.f32.mrb[0].mxu0
    %v4390 = vpop.f32.mrb[0].mxu0
    %v4391 = vadd.f32 0.0, %v4390
    %v4392 = vpop.f32.mrb[0].mxu0
    %4393 = vmatprep.mubr.bf16.mxu0 0
    %4394 = vmatmul.mubr.bf16.gmra.mrb[0].mxu0 %v4206
    %v4395 = vpop.f32.mrb[0].mxu0
    %v4396 = vadd.f32 0.0, %v4395
    %v4397 = vpop.f32.mrb[0].mxu0
    %v4398 = vpop.f32.mrb[0].mxu0
    %v4399 = vadd.f32 0.0, %v4398
    %v4400 = vpop.f32.mrb[0].mxu0
    %4401 = vmatprep.mubr.bf16.mxu0 0
    %4402 = vmatmul.mubr.bf16.gmra.mrb[0].mxu0 %v4209
    %v4403 = vpop.f32.mrb[0].mxu0
    %v4404 = vadd.f32 0.0, %v4403
    %v4405 = vpop.f32.mrb[0].mxu0
    %v4406 = vpop.f32.mrb[0].mxu0
    %v4407 = vadd.f32 0.0, %v4406
    %v4408 = vpop.f32.mrb[0].mxu0
    %4409 = vmatprep.mubr.bf16.mxu0 0
    %4410 = vmatmul.mubr.bf16.gmra.mrb[0].mxu0 %v4212
    %v4411 = vpop.f32.mrb[0].mxu0
    %v4412 = vadd.f32 0.0, %v4411
    %v4413 = vpop.f32.mrb[0].mxu0
    %v4414 = vpop.f32.mrb[0].mxu0
    %v4415 = vadd.f32 0.0, %v4414
    %v4416 = vpop.f32.mrb[0].mxu0
    %4417 = vmatprep.mubr.bf16.mxu0 0
    %4418 = vmatmul.mubr.bf16.gmra.mrb[0].mxu0 %v4215
    %v4419 = vpop.f32.mrb[0].mxu0
    %v4420 = vadd.f32 0.0, %v4419
    %v4421 = vpop.f32.mrb[0].mxu0
    %v4422 = vpop.f32.mrb[0].mxu0
    %v4423 = vadd.f32 0.0, %v4422
    %v4424 = vpop.f32.mrb[0].mxu0
    %4425 = vmatprep.mubr.bf16.mxu0 0
    %4426 = vmatmul.mubr.bf16.gmra.mrb[0].mxu0 %v4218
    %v4427 = vpop.f32.mrb[0].mxu0
    %v4428 = vadd.f32 0.0, %v4427
    %v4429 = vpop.f32.mrb[0].mxu0
    %v4430 = vpop.f32.mrb[0].mxu0
    %v4431 = vadd.f32 0.0, %v4430
    %v4432 = vpop.f32.mrb[0].mxu0
    %4433 = vmatprep.mubr.bf16.mxu0 0
    %4434 = vmatmul.mubr.bf16.gmra.mrb[0].mxu0 %v4221
    %v4435 = vpop.f32.mrb[0].mxu0
    %v4436 = vadd.f32 0.0, %v4435
    %v4437 = vpop.f32.mrb[0].mxu0
    %v4438 = vpop.f32.mrb[0].mxu0
    %v4439 = vadd.f32 0.0, %v4438
    %v4440 = vpop.f32.mrb[0].mxu0
    %4441 = vmatprep.mubr.bf16.mxu0 0
    %4442 = vmatmul.mubr.bf16.gmra.mrb[0].mxu0 %v4224
    %v4443 = vpop.f32.mrb[0].mxu0
    %v4444 = vadd.f32 0.0, %v4443
    %v4445 = vpop.f32.mrb[0].mxu0
    %v4446 = vpop.f32.mrb[0].mxu0
    %v4447 = vadd.f32 0.0, %v4446
    %v4448 = vpop.f32.mrb[0].mxu0
    %4449 = vmatprep.mubr.bf16.mxu0 0
    %4450 = vmatmul.mubr.bf16.gmra.mrb[0].mxu0 %v4227
    %v4451 = vpop.f32.mrb[0].mxu0
    %v4452 = vadd.f32 0.0, %v4451
    %v4453 = vpop.f32.mrb[0].mxu0
    %v4454 = vpop.f32.mrb[0].mxu0
    %v4455 = vadd.f32 0.0, %v4454
    %v4456 = vpop.f32.mrb[0].mxu0
    %4457 = vmatprep.mubr.bf16.mxu0 0
    %4458 = vmatmul.mubr.bf16.gmra.mrb[0].mxu0 %v4230
    %v4459 = vpop.f32.mrb[0].mxu0
    %v4460 = vadd.f32 0.0, %v4459
    %v4461 = vpop.f32.mrb[0].mxu0
    %v4462 = vpop.f32.mrb[0].mxu0
    %v4463 = vadd.f32 0.0, %v4462
    %v4464 = vpop.f32.mrb[0].mxu0
    %4465 = vmatprep.mubr.bf16.mxu0 0
    %4466 = vmatmul.mubr.bf16.gmra.mrb[0].mxu0 %v4233
    %v4467 = vpop.f32.mrb[0].mxu0
    %v4468 = vadd.f32 0.0, %v4467
    %v4469 = vpop.f32.mrb[0].mxu0
    %v4470 = vpop.f32.mrb[0].mxu0
    %v4471 = vadd.f32 0.0, %v4470
    %v4472 = vpop.f32.mrb[0].mxu0
    %4473 = vmatprep.mubr.bf16.mxu0 0
    %4474 = vmatmul.mubr.bf16.gmra.mrb[0].mxu0 %v4236
    %v4475 = vpop.f32.mrb[0].mxu0
    %v4476 = vadd.f32 0.0, %v4475
    %v4477 = vpop.f32.mrb[0].mxu0
    %v4478 = vpop.f32.mrb[0].mxu0
    %v4479 = vadd.f32 0.0, %v4478
    %v4480 = vpop.f32.mrb[0].mxu0
    %4481 = vmatprep.mubr.bf16.mxu0 0
    %4482 = vmatmul.mubr.bf16.gmra.mrb[0].mxu0 %v4239
    %v4483 = vpop.f32.mrb[0].mxu0
    %v4484 = vadd.f32 0.0, %v4483
    %v4485 = vpop.f32.mrb[0].mxu0
    %v4486 = vpop.f32.mrb[0].mxu0
    %v4487 = vadd.f32 0.0, %v4486
    %v4488 = vpop.f32.mrb[0].mxu0
    %4489 = vmatprep.mubr.bf16.mxu0 0
    %4490 = vmatmul.mubr.bf16.gmra.mrb[0].mxu0 %v4242
    %v4491 = vpop.f32.mrb[0].mxu0
    %v4492 = vadd.f32 0.0, %v4491
    %v4493 = vpop.f32.mrb[0].mxu0
    %v4494 = vpop.f32.mrb[0].mxu0
    %v4495 = vadd.f32 0.0, %v4494
    %v4496 = vpop.f32.mrb[0].mxu0
    %4497 = vmatprep.mubr.bf16.mxu0 0
    %4498 = vmatmul.mubr.bf16.gmra.mrb[0].mxu0 %v4245
    %v4499 = vpop.f32.mrb[0].mxu0
    %v4500 = vadd.f32 0.0, %v4499
    %v4501 = vpop.f32.mrb[0].mxu0
    %v4502 = vpop.f32.mrb[0].mxu0
    %v4503 = vadd.f32 0.0, %v4502
    %v4504 = vpop.f32.mrb[0].mxu0
    %4505 = vmatprep.mubr.bf16.mxu0 0
    %4506 = vmatmul.mubr.bf16.gmra.mrb[0].mxu0 %v4248
    %v4507 = vpop.f32.mrb[0].mxu0
    %v4508 = vadd.f32 0.0, %v4507
    %v4509 = vpop.f32.mrb[0].mxu0
    %v4510 = vpop.f32.mrb[0].mxu0
    %v4511 = vadd.f32 0.0, %v4510
    %v4512 = vpop.f32.mrb[0].mxu0
    %4513 = vmatprep.mubr.bf16.mxu0 0
    %4514 = vmatmul.mubr.bf16.gmra.mrb[0].mxu0 %v4251
    %v4515 = vpop.f32.mrb[0].mxu0
    %v4516 = vadd.f32 0.0, %v4515
    %v4517 = vpop.f32.mrb[0].mxu0
    %v4518 = vpop.f32.mrb[0].mxu0
    %v4519 = vadd.f32 0.0, %v4518
    %v4520 = vpop.f32.mrb[0].mxu0
    %4521 = vmatprep.mubr.bf16.mxu0 0
    %4522 = vmatmul.mubr.bf16.gmra.mrb[0].mxu0 %v4254
    %v4523 = vpop.f32.mrb[0].mxu0
    %v4524 = vadd.f32 0.0, %v4523
    %v4525 = vpop.f32.mrb[0].mxu0
    %v4526 = vpop.f32.mrb[0].mxu0
    %v4527 = vadd.f32 0.0, %v4526
    %v4528 = vpop.f32.mrb[0].mxu0
    %4529 = vmatprep.mubr.bf16.mxu0 0
    %4530 = vmatmul.mubr.bf16.gmra.mrb[0].mxu0 %v4257
    %v4531 = vpop.f32.mrb[0].mxu0
    %v4532 = vadd.f32 0.0, %v4531
    %v4533 = vpop.f32.mrb[0].mxu0
    %v4534 = vpop.f32.mrb[0].mxu0
    %v4535 = vadd.f32 0.0, %v4534
    %v4536 = vpop.f32.mrb[0].mxu0
    %4537 = vmatprep.mubr.bf16.mxu0 0
    %4538 = vmatmul.mubr.bf16.gmra.mrb[0].mxu0 %v4260
    %v4539 = vpop.f32.mrb[0].mxu0
    %v4540 = vadd.f32 0.0, %v4539
    %v4541 = vpop.f32.mrb[0].mxu0
    %v4542 = vpop.f32.mrb[0].mxu0
    %v4543 = vadd.f32 0.0, %v4542
    %v4544 = vpop.f32.mrb[0].mxu0
    %4545 = vmatprep.mubr.bf16.mxu0 0
    %4546 = vmatmul.mubr.bf16.gmra.mrb[0].mxu0 %v4263
    %v4547 = vpop.f32.mrb[0].mxu0
    %v4548 = vadd.f32 0.0, %v4547
    %v4549 = vpop.f32.mrb[0].mxu0
    %v4550 = vpop.f32.mrb[0].mxu0
    %v4551 = vadd.f32 0.0, %v4550
    %v4552 = vpop.f32.mrb[0].mxu0
    %4553 = vdwg.mxu0
    %v4554 = vadd.f32 %v4000, %v4300
    %v4555 = vadd.f32 %v4001, %v4303
    %v4556 = vadd.f32 %v4002, %v4308
    %v4557 = vadd.f32 %v4003, %v4311
    %v4558 = vadd.f32 %v4004, %v4316
    %v4559 = vadd.f32 %v4005, %v4319
    %v4560 = vadd.f32 %v4006, %v4324
    %v4561 = vadd.f32 %v4007, %v4327
    %v4562 = vadd.f32 %v4008, %v4332
    %v4563 = vadd.f32 %v4009, %v4335
    %v4564 = vadd.f32 %v4010, %v4340
    %v4565 = vadd.f32 %v4011, %v4343
    %v4566 = vadd.f32 %v4012, %v4348
    %v4567 = vadd.f32 %v4013, %v4351
    %v4568 = vadd.f32 %v4014, %v4356
    %v4569 = vadd.f32 %v4015, %v4359
    %v4570 = vadd.f32 %v4016, %v4364
    %v4571 = vadd.f32 %v4017, %v4367
    %v4572 = vadd.f32 %v4018, %v4372
    %v4573 = vadd.f32 %v4019, %v4375
    %v4574 = vadd.f32 %v4020, %v4380
    %v4575 = vadd.f32 %v4021, %v4383
    %v4576 = vadd.f32 %v4022, %v4388
    %v4577 = vadd.f32 %v4023, %v4391
    %v4578 = vadd.f32 %v4024, %v4396
    %v4579 = vadd.f32 %v4025, %v4399
    %v4580 = vadd.f32 %v4026, %v4404
    %v4581 = vadd.f32 %v4027, %v4407
    %v4582 = vadd.f32 %v4028, %v4412
    %v4583 = vadd.f32 %v4029, %v4415
    %v4584 = vadd.f32 %v4030, %v4420
    %v4585 = vadd.f32 %v4031, %v4423
    %v4586 = vadd.f32 %v4032, %v4428
    %v4587 = vadd.f32 %v4033, %v4431
    %v4588 = vadd.f32 %v4034, %v4436
    %v4589 = vadd.f32 %v4035, %v4439
    %v4590 = vadd.f32 %v4036, %v4444
    %v4591 = vadd.f32 %v4037, %v4447
    %v4592 = vadd.f32 %v4038, %v4452
    %v4593 = vadd.f32 %v4039, %v4455
    %v4594 = vadd.f32 %v4040, %v4460
    %v4595 = vadd.f32 %v4041, %v4463
    %v4596 = vadd.f32 %v4042, %v4468
    %v4597 = vadd.f32 %v4043, %v4471
    %v4598 = vadd.f32 %v4044, %v4476
    %v4599 = vadd.f32 %v4045, %v4479
    %v4600 = vadd.f32 %v4046, %v4484
    %v4601 = vadd.f32 %v4047, %v4487
    %v4602 = vadd.f32 %v4048, %v4492
    %v4603 = vadd.f32 %v4049, %v4495
    %v4604 = vadd.f32 %v4050, %v4500
    %v4605 = vadd.f32 %v4051, %v4503
    %v4606 = vadd.f32 %v4052, %v4508
    %v4607 = vadd.f32 %v4053, %v4511
    %v4608 = vadd.f32 %v4054, %v4516
    %v4609 = vadd.f32 %v4055, %v4519
    %v4610 = vadd.f32 %v4056, %v4524
    %v4611 = vadd.f32 %v4057, %v4527
    %v4612 = vadd.f32 %v4058, %v4532
    %v4613 = vadd.f32 %v4059, %v4535
    %v4614 = vadd.f32 %v4060, %v4540
    %v4615 = vadd.f32 %v4061, %v4543
    %v4616 = vadd.f32 %v4062, %v4548
    %v4617 = vadd.f32 %v4063, %v4551
    %s4618 = scalar_lea.vmem [#allocation2], 48
    %v4619 = vld [vmem:[%s4618] sm:$0xff]
    %v4620 = vld [vmem:[%s4618 + $0x8] sm:$0xff]
    %v4621 = vld [vmem:[%s4618 + $0x18] sm:$0xff]
    %v4622 = vld [vmem:[%s4618 + $0x20] sm:$0xff]
    %v4623 = vld [vmem:[%s4618 + $0x30] sm:$0xff]
    %v4624 = vld [vmem:[%s4618 + $0x38] sm:$0xff]
    %v4625 = vld [vmem:[%s4618 + $0x48] sm:$0xff]
    %v4626 = vld [vmem:[%s4618 + $0x50] sm:$0xff]
    %v4627 = vld [vmem:[%s4618 + $0x60] sm:$0xff]
    %v4628 = vld [vmem:[%s4618 + $0x68] sm:$0xff]
    %v4629 = vld [vmem:[%s4618 + $0x78] sm:$0xff]
    %v4630 = vld [vmem:[%s4618 + $0x80] sm:$0xff]
    %v4631 = vld [vmem:[%s4618 + $0x90] sm:$0xff]
    %v4632 = vld [vmem:[%s4618 + $0x98] sm:$0xff]
    %v4633 = vld [vmem:[%s4618 + $0xa8] sm:$0xff]
    %v4634 = vld [vmem:[%s4618 + $0xb0] sm:$0xff]
    %v4635 = vld [vmem:[%s4618 + $0xc0] sm:$0xff]
    %v4636 = vld [vmem:[%s4618 + $0xc8] sm:$0xff]
    %v4637 = vld [vmem:[%s4618 + $0xd8] sm:$0xff]
    %v4638 = vld [vmem:[%s4618 + $0xe0] sm:$0xff]
    %v4639 = vld [vmem:[%s4618 + $0xf0] sm:$0xff]
    %v4640 = vld [vmem:[%s4618 + $0xf8] sm:$0xff]
    %v4641 = vld [vmem:[%s4618 + $0x108] sm:$0xff]
    %v4642 = vld [vmem:[%s4618 + $0x110] sm:$0xff]
    %v4643 = vld [vmem:[%s4618 + $0x120] sm:$0xff]
    %v4644 = vld [vmem:[%s4618 + $0x128] sm:$0xff]
    %v4645 = vld [vmem:[%s4618 + $0x138] sm:$0xff]
    %v4646 = vld [vmem:[%s4618 + $0x140] sm:$0xff]
    %v4647 = vld [vmem:[%s4618 + $0x150] sm:$0xff]
    %v4648 = vld [vmem:[%s4618 + $0x158] sm:$0xff]
    %v4649 = vld [vmem:[%s4618 + $0x168] sm:$0xff]
    %v4650 = vld [vmem:[%s4618 + $0x170] sm:$0xff]
    %v4651 = vld [vmem:[%s4618 + $0x1b0] sm:$0xff]
    %v4652 = vld [vmem:[%s4618 + $0x1b8] sm:$0xff]
    %v4653 = vld [vmem:[%s4618 + $0x1c8] sm:$0xff]
    %v4654 = vld [vmem:[%s4618 + $0x1d0] sm:$0xff]
    %v4655 = vld [vmem:[%s4618 + $0x1e0] sm:$0xff]
    %v4656 = vld [vmem:[%s4618 + $0x1e8] sm:$0xff]
    %v4657 = vld [vmem:[%s4618 + $0x1f8] sm:$0xff]
    %v4658 = vld [vmem:[%s4618 + $0x200] sm:$0xff]
    %v4659 = vld [vmem:[%s4618 + $0x210] sm:$0xff]
    %v4660 = vld [vmem:[%s4618 + $0x218] sm:$0xff]
    %v4661 = vld [vmem:[%s4618 + $0x228] sm:$0xff]
    %v4662 = vld [vmem:[%s4618 + $0x230] sm:$0xff]
    %v4663 = vld [vmem:[%s4618 + $0x240] sm:$0xff]
    %v4664 = vld [vmem:[%s4618 + $0x248] sm:$0xff]
    %v4665 = vld [vmem:[%s4618 + $0x258] sm:$0xff]
    %v4666 = vld [vmem:[%s4618 + $0x260] sm:$0xff]
    %v4667 = vld [vmem:[%s4618 + $0x270] sm:$0xff]
    %v4668 = vld [vmem:[%s4618 + $0x278] sm:$0xff]
    %v4669 = vld [vmem:[%s4618 + $0x288] sm:$0xff]
    %v4670 = vld [vmem:[%s4618 + $0x290] sm:$0xff]
    %v4671 = vld [vmem:[%s4618 + $0x2a0] sm:$0xff]
    %v4672 = vld [vmem:[%s4618 + $0x2a8] sm:$0xff]
    %v4673 = vld [vmem:[%s4618 + $0x2b8] sm:$0xff]
    %v4674 = vld [vmem:[%s4618 + $0x2c0] sm:$0xff]
    %v4675 = vld [vmem:[%s4618 + $0x2d0] sm:$0xff]
    %v4676 = vld [vmem:[%s4618 + $0x2d8] sm:$0xff]
    %v4677 = vld [vmem:[%s4618 + $0x2e8] sm:$0xff]
    %v4678 = vld [vmem:[%s4618 + $0x2f0] sm:$0xff]
    %v4679 = vld [vmem:[%s4618 + $0x300] sm:$0xff]
    %v4680 = vld [vmem:[%s4618 + $0x308] sm:$0xff]
    %v4681 = vld [vmem:[%s4618 + $0x318] sm:$0xff]
    %v4682 = vld [vmem:[%s4618 + $0x320] sm:$0xff]
    %s4683 = scalar_lea.vmem [#allocation6], 48
    %v4684 = vld [vmem:[%s4683] sm:$0xf]
    %v4685 = vld [vmem:[%s4683 + $0x4] sm:$0xf]
    %v4686 = vpack.c.bf16 %v4620, %v4619
    %v4687 = vpack.c.bf16 %v4622, %v4621
    %v4688 = vpack.c.bf16 %v4624, %v4623
    %v4689 = vpack.c.bf16 %v4626, %v4625
    %v4690 = vpack.c.bf16 %v4628, %v4627
    %v4691 = vpack.c.bf16 %v4630, %v4629
    %v4692 = vpack.c.bf16 %v4632, %v4631
    %v4693 = vpack.c.bf16 %v4634, %v4633
    %v4694 = vpack.c.bf16 %v4636, %v4635
    %v4695 = vpack.c.bf16 %v4638, %v4637
    %v4696 = vpack.c.bf16 %v4640, %v4639
    %v4697 = vpack.c.bf16 %v4642, %v4641
    %v4698 = vpack.c.bf16 %v4644, %v4643
    %v4699 = vpack.c.bf16 %v4646, %v4645
    %v4700 = vpack.c.bf16 %v4648, %v4647
    %v4701 = vpack.c.bf16 %v4650, %v4649
    %v4702 = vpack.c.bf16 %v4652, %v4651
    %v4703 = vpack.c.bf16 %v4654, %v4653
    %v4704 = vpack.c.bf16 %v4656, %v4655
    %v4705 = vpack.c.bf16 %v4658, %v4657
    %v4706 = vpack.c.bf16 %v4660, %v4659
    %v4707 = vpack.c.bf16 %v4662, %v4661
    %v4708 = vpack.c.bf16 %v4664, %v4663
    %v4709 = vpack.c.bf16 %v4666, %v4665
    %v4710 = vpack.c.bf16 %v4668, %v4667
    %v4711 = vpack.c.bf16 %v4670, %v4669
    %v4712 = vpack.c.bf16 %v4672, %v4671
    %v4713 = vpack.c.bf16 %v4674, %v4673
    %v4714 = vpack.c.bf16 %v4676, %v4675
    %v4715 = vpack.c.bf16 %v4678, %v4677
    %v4716 = vpack.c.bf16 %v4680, %v4679
    %v4717 = vpack.c.bf16 %v4682, %v4681
    %v4720 = vunpack.c.l.b16 %v4684
    %v4721 = vunpack.c.l.b16 %v4685
    %v4722 = vpack.c.b16 %v4721, %v4720
    %v4725 = vsel %vm581, %v4686, 0
    %v4728 = vsel %vm581, %v4687, 0
    %v4731 = vsel %vm581, %v4688, 0
    %v4734 = vsel %vm581, %v4689, 0
    %v4737 = vsel %vm581, %v4690, 0
    %v4740 = vsel %vm581, %v4691, 0
    %v4743 = vsel %vm581, %v4692, 0
    %v4746 = vsel %vm581, %v4693, 0
    %v4749 = vsel %vm581, %v4694, 0
    %v4752 = vsel %vm581, %v4695, 0
    %v4755 = vsel %vm581, %v4696, 0
    %v4758 = vsel %vm581, %v4697, 0
    %v4761 = vsel %vm581, %v4698, 0
    %v4764 = vsel %vm581, %v4699, 0
    %v4767 = vsel %vm581, %v4700, 0
    %v4770 = vsel %vm581, %v4701, 0
    %v4773 = vsel %vm581, %v4702, 0
    %v4776 = vsel %vm581, %v4703, 0
    %v4779 = vsel %vm581, %v4704, 0
    %v4782 = vsel %vm581, %v4705, 0
    %v4785 = vsel %vm581, %v4706, 0
    %v4788 = vsel %vm581, %v4707, 0
    %v4791 = vsel %vm581, %v4708, 0
    %v4794 = vsel %vm581, %v4709, 0
    %v4797 = vsel %vm581, %v4710, 0
    %v4800 = vsel %vm581, %v4711, 0
    %v4803 = vsel %vm581, %v4712, 0
    %v4806 = vsel %vm581, %v4713, 0
    %v4809 = vsel %vm581, %v4714, 0
    %v4812 = vsel %vm581, %v4715, 0
    %v4815 = vsel %vm581, %v4716, 0
    %v4818 = vsel %vm581, %v4717, 0
    %4820 = vmatprep.subr.bf16.mxu0 0
    %4821 = vmatpush1.bf16.msra.mxu0 %v4722
    %4822 = vmatprep.subr.bf16.mxu0 0
    %4823 = vmatpush1.bf16.msra.mxu0 0
    %4824 = vmatprep.subr.bf16.mxu0 0
    %4825 = vmatpush1.bf16.msra.mxu0 0
    %4826 = vmatprep.subr.bf16.mxu0 0
    %4827 = vmatpush1.bf16.msra.mxu0 0
    %4828 = vmatprep.subr.bf16.mxu0 0
    %4829 = vmatpush1.bf16.msra.mxu0 0
    %4830 = vmatprep.subr.bf16.mxu0 0
    %4831 = vmatpush1.bf16.msra.mxu0 0
    %4832 = vmatprep.subr.bf16.mxu0 0
    %4833 = vmatpush1.bf16.msra.mxu0 0
    %4834 = vmatprep.subr.bf16.mxu0 0
    %4835 = vmatpush1.bf16.msra.mxu0 0
    %4836 = vmatprep.subr.bf16.mxu0 0
    %4837 = vmatpush1.bf16.msra.mxu0 0
    %4838 = vmatprep.subr.bf16.mxu0 0
    %4839 = vmatpush1.bf16.msra.mxu0 0
    %4840 = vmatprep.subr.bf16.mxu0 0
    %4841 = vmatpush1.bf16.msra.mxu0 0
    %4842 = vmatprep.subr.bf16.mxu0 0
    %4843 = vmatpush1.bf16.msra.mxu0 0
    %4844 = vmatprep.subr.bf16.mxu0 0
    %4845 = vmatpush1.bf16.msra.mxu0 0
    %4846 = vmatprep.subr.bf16.mxu0 0
    %4847 = vmatpush1.bf16.msra.mxu0 0
    %4848 = vmatprep.subr.bf16.mxu0 0
    %4849 = vmatpush1.bf16.msra.mxu0 0
    %4850 = vmatprep.subr.bf16.mxu0 0
    %4851 = vmatpush1.bf16.msra.mxu0 0
    %4852 = vmatprep.mubr.bf16.mxu0 0
    %4853 = vmatmul.mubr.bf16.gmra.mrb[0].mxu0 %v4725
    %v4854 = vpop.f32.mrb[0].mxu0
    %v4855 = vadd.f32 0.0, %v4854
    %v4856 = vpop.f32.mrb[0].mxu0
    %v4857 = vpop.f32.mrb[0].mxu0
    %v4858 = vadd.f32 0.0, %v4857
    %v4859 = vpop.f32.mrb[0].mxu0
    %4860 = vmatprep.mubr.bf16.mxu0 0
    %4861 = vmatmul.mubr.bf16.gmra.mrb[0].mxu0 %v4728
    %v4862 = vpop.f32.mrb[0].mxu0
    %v4863 = vadd.f32 0.0, %v4862
    %v4864 = vpop.f32.mrb[0].mxu0
    %v4865 = vpop.f32.mrb[0].mxu0
    %v4866 = vadd.f32 0.0, %v4865
    %v4867 = vpop.f32.mrb[0].mxu0
    %4868 = vmatprep.mubr.bf16.mxu0 0
    %4869 = vmatmul.mubr.bf16.gmra.mrb[0].mxu0 %v4731
    %v4870 = vpop.f32.mrb[0].mxu0
    %v4871 = vadd.f32 0.0, %v4870
    %v4872 = vpop.f32.mrb[0].mxu0
    %v4873 = vpop.f32.mrb[0].mxu0
    %v4874 = vadd.f32 0.0, %v4873
    %v4875 = vpop.f32.mrb[0].mxu0
    %4876 = vmatprep.mubr.bf16.mxu0 0
    %4877 = vmatmul.mubr.bf16.gmra.mrb[0].mxu0 %v4734
    %v4878 = vpop.f32.mrb[0].mxu0
    %v4879 = vadd.f32 0.0, %v4878
    %v4880 = vpop.f32.mrb[0].mxu0
    %v4881 = vpop.f32.mrb[0].mxu0
    %v4882 = vadd.f32 0.0, %v4881
    %v4883 = vpop.f32.mrb[0].mxu0
    %4884 = vmatprep.mubr.bf16.mxu0 0
    %4885 = vmatmul.mubr.bf16.gmra.mrb[0].mxu0 %v4737
    %v4886 = vpop.f32.mrb[0].mxu0
    %v4887 = vadd.f32 0.0, %v4886
    %v4888 = vpop.f32.mrb[0].mxu0
    %v4889 = vpop.f32.mrb[0].mxu0
    %v4890 = vadd.f32 0.0, %v4889
    %v4891 = vpop.f32.mrb[0].mxu0
    %4892 = vmatprep.mubr.bf16.mxu0 0
    %4893 = vmatmul.mubr.bf16.gmra.mrb[0].mxu0 %v4740
    %v4894 = vpop.f32.mrb[0].mxu0
    %v4895 = vadd.f32 0.0, %v4894
    %v4896 = vpop.f32.mrb[0].mxu0
    %v4897 = vpop.f32.mrb[0].mxu0
    %v4898 = vadd.f32 0.0, %v4897
    %v4899 = vpop.f32.mrb[0].mxu0
    %4900 = vmatprep.mubr.bf16.mxu0 0
    %4901 = vmatmul.mubr.bf16.gmra.mrb[0].mxu0 %v4743
    %v4902 = vpop.f32.mrb[0].mxu0
    %v4903 = vadd.f32 0.0, %v4902
    %v4904 = vpop.f32.mrb[0].mxu0
    %v4905 = vpop.f32.mrb[0].mxu0
    %v4906 = vadd.f32 0.0, %v4905
    %v4907 = vpop.f32.mrb[0].mxu0
    %4908 = vmatprep.mubr.bf16.mxu0 0
    %4909 = vmatmul.mubr.bf16.gmra.mrb[0].mxu0 %v4746
    %v4910 = vpop.f32.mrb[0].mxu0
    %v4911 = vadd.f32 0.0, %v4910
    %v4912 = vpop.f32.mrb[0].mxu0
    %v4913 = vpop.f32.mrb[0].mxu0
    %v4914 = vadd.f32 0.0, %v4913
    %v4915 = vpop.f32.mrb[0].mxu0
    %4916 = vmatprep.mubr.bf16.mxu0 0
    %4917 = vmatmul.mubr.bf16.gmra.mrb[0].mxu0 %v4749
    %v4918 = vpop.f32.mrb[0].mxu0
    %v4919 = vadd.f32 0.0, %v4918
    %v4920 = vpop.f32.mrb[0].mxu0
    %v4921 = vpop.f32.mrb[0].mxu0
    %v4922 = vadd.f32 0.0, %v4921
    %v4923 = vpop.f32.mrb[0].mxu0
    %4924 = vmatprep.mubr.bf16.mxu0 0
    %4925 = vmatmul.mubr.bf16.gmra.mrb[0].mxu0 %v4752
    %v4926 = vpop.f32.mrb[0].mxu0
    %v4927 = vadd.f32 0.0, %v4926
    %v4928 = vpop.f32.mrb[0].mxu0
    %v4929 = vpop.f32.mrb[0].mxu0
    %v4930 = vadd.f32 0.0, %v4929
    %v4931 = vpop.f32.mrb[0].mxu0
    %4932 = vmatprep.mubr.bf16.mxu0 0
    %4933 = vmatmul.mubr.bf16.gmra.mrb[0].mxu0 %v4755
    %v4934 = vpop.f32.mrb[0].mxu0
    %v4935 = vadd.f32 0.0, %v4934
    %v4936 = vpop.f32.mrb[0].mxu0
    %v4937 = vpop.f32.mrb[0].mxu0
    %v4938 = vadd.f32 0.0, %v4937
    %v4939 = vpop.f32.mrb[0].mxu0
    %4940 = vmatprep.mubr.bf16.mxu0 0
    %4941 = vmatmul.mubr.bf16.gmra.mrb[0].mxu0 %v4758
    %v4942 = vpop.f32.mrb[0].mxu0
    %v4943 = vadd.f32 0.0, %v4942
    %v4944 = vpop.f32.mrb[0].mxu0
    %v4945 = vpop.f32.mrb[0].mxu0
    %v4946 = vadd.f32 0.0, %v4945
    %v4947 = vpop.f32.mrb[0].mxu0
    %4948 = vmatprep.mubr.bf16.mxu0 0
    %4949 = vmatmul.mubr.bf16.gmra.mrb[0].mxu0 %v4761
    %v4950 = vpop.f32.mrb[0].mxu0
    %v4951 = vadd.f32 0.0, %v4950
    %v4952 = vpop.f32.mrb[0].mxu0
    %v4953 = vpop.f32.mrb[0].mxu0
    %v4954 = vadd.f32 0.0, %v4953
    %v4955 = vpop.f32.mrb[0].mxu0
    %4956 = vmatprep.mubr.bf16.mxu0 0
    %4957 = vmatmul.mubr.bf16.gmra.mrb[0].mxu0 %v4764
    %v4958 = vpop.f32.mrb[0].mxu0
    %v4959 = vadd.f32 0.0, %v4958
    %v4960 = vpop.f32.mrb[0].mxu0
    %v4961 = vpop.f32.mrb[0].mxu0
    %v4962 = vadd.f32 0.0, %v4961
    %v4963 = vpop.f32.mrb[0].mxu0
    %4964 = vmatprep.mubr.bf16.mxu0 0
    %4965 = vmatmul.mubr.bf16.gmra.mrb[0].mxu0 %v4767
    %v4966 = vpop.f32.mrb[0].mxu0
    %v4967 = vadd.f32 0.0, %v4966
    %v4968 = vpop.f32.mrb[0].mxu0
    %v4969 = vpop.f32.mrb[0].mxu0
    %v4970 = vadd.f32 0.0, %v4969
    %v4971 = vpop.f32.mrb[0].mxu0
    %4972 = vmatprep.mubr.bf16.mxu0 0
    %4973 = vmatmul.mubr.bf16.gmra.mrb[0].mxu0 %v4770
    %v4974 = vpop.f32.mrb[0].mxu0
    %v4975 = vadd.f32 0.0, %v4974
    %v4976 = vpop.f32.mrb[0].mxu0
    %v4977 = vpop.f32.mrb[0].mxu0
    %v4978 = vadd.f32 0.0, %v4977
    %v4979 = vpop.f32.mrb[0].mxu0
    %4980 = vmatprep.mubr.bf16.mxu0 0
    %4981 = vmatmul.mubr.bf16.gmra.mrb[0].mxu0 %v4773
    %v4982 = vpop.f32.mrb[0].mxu0
    %v4983 = vadd.f32 0.0, %v4982
    %v4984 = vpop.f32.mrb[0].mxu0
    %v4985 = vpop.f32.mrb[0].mxu0
    %v4986 = vadd.f32 0.0, %v4985
    %v4987 = vpop.f32.mrb[0].mxu0
    %4988 = vmatprep.mubr.bf16.mxu0 0
    %4989 = vmatmul.mubr.bf16.gmra.mrb[0].mxu0 %v4776
    %v4990 = vpop.f32.mrb[0].mxu0
    %v4991 = vadd.f32 0.0, %v4990
    %v4992 = vpop.f32.mrb[0].mxu0
    %v4993 = vpop.f32.mrb[0].mxu0
    %v4994 = vadd.f32 0.0, %v4993
    %v4995 = vpop.f32.mrb[0].mxu0
    %4996 = vmatprep.mubr.bf16.mxu0 0
    %4997 = vmatmul.mubr.bf16.gmra.mrb[0].mxu0 %v4779
    %v4998 = vpop.f32.mrb[0].mxu0
    %v4999 = vadd.f32 0.0, %v4998
    %v5000 = vpop.f32.mrb[0].mxu0
    %v5001 = vpop.f32.mrb[0].mxu0
    %v5002 = vadd.f32 0.0, %v5001
    %v5003 = vpop.f32.mrb[0].mxu0
    %5004 = vmatprep.mubr.bf16.mxu0 0
    %5005 = vmatmul.mubr.bf16.gmra.mrb[0].mxu0 %v4782
    %v5006 = vpop.f32.mrb[0].mxu0
    %v5007 = vadd.f32 0.0, %v5006
    %v5008 = vpop.f32.mrb[0].mxu0
    %v5009 = vpop.f32.mrb[0].mxu0
    %v5010 = vadd.f32 0.0, %v5009
    %v5011 = vpop.f32.mrb[0].mxu0
    %5012 = vmatprep.mubr.bf16.mxu0 0
    %5013 = vmatmul.mubr.bf16.gmra.mrb[0].mxu0 %v4785
    %v5014 = vpop.f32.mrb[0].mxu0
    %v5015 = vadd.f32 0.0, %v5014
    %v5016 = vpop.f32.mrb[0].mxu0
    %v5017 = vpop.f32.mrb[0].mxu0
    %v5018 = vadd.f32 0.0, %v5017
    %v5019 = vpop.f32.mrb[0].mxu0
    %5020 = vmatprep.mubr.bf16.mxu0 0
    %5021 = vmatmul.mubr.bf16.gmra.mrb[0].mxu0 %v4788
    %v5022 = vpop.f32.mrb[0].mxu0
    %v5023 = vadd.f32 0.0, %v5022
    %v5024 = vpop.f32.mrb[0].mxu0
    %v5025 = vpop.f32.mrb[0].mxu0
    %v5026 = vadd.f32 0.0, %v5025
    %v5027 = vpop.f32.mrb[0].mxu0
    %5028 = vmatprep.mubr.bf16.mxu0 0
    %5029 = vmatmul.mubr.bf16.gmra.mrb[0].mxu0 %v4791
    %v5030 = vpop.f32.mrb[0].mxu0
    %v5031 = vadd.f32 0.0, %v5030
    %v5032 = vpop.f32.mrb[0].mxu0
    %v5033 = vpop.f32.mrb[0].mxu0
    %v5034 = vadd.f32 0.0, %v5033
    %v5035 = vpop.f32.mrb[0].mxu0
    %5036 = vmatprep.mubr.bf16.mxu0 0
    %5037 = vmatmul.mubr.bf16.gmra.mrb[0].mxu0 %v4794
    %v5038 = vpop.f32.mrb[0].mxu0
    %v5039 = vadd.f32 0.0, %v5038
    %v5040 = vpop.f32.mrb[0].mxu0
    %v5041 = vpop.f32.mrb[0].mxu0
    %v5042 = vadd.f32 0.0, %v5041
    %v5043 = vpop.f32.mrb[0].mxu0
    %5044 = vmatprep.mubr.bf16.mxu0 0
    %5045 = vmatmul.mubr.bf16.gmra.mrb[0].mxu0 %v4797
    %v5046 = vpop.f32.mrb[0].mxu0
    %v5047 = vadd.f32 0.0, %v5046
    %v5048 = vpop.f32.mrb[0].mxu0
    %v5049 = vpop.f32.mrb[0].mxu0
    %v5050 = vadd.f32 0.0, %v5049
    %v5051 = vpop.f32.mrb[0].mxu0
    %5052 = vmatprep.mubr.bf16.mxu0 0
    %5053 = vmatmul.mubr.bf16.gmra.mrb[0].mxu0 %v4800
    %v5054 = vpop.f32.mrb[0].mxu0
    %v5055 = vadd.f32 0.0, %v5054
    %v5056 = vpop.f32.mrb[0].mxu0
    %v5057 = vpop.f32.mrb[0].mxu0
    %v5058 = vadd.f32 0.0, %v5057
    %v5059 = vpop.f32.mrb[0].mxu0
    %5060 = vmatprep.mubr.bf16.mxu0 0
    %5061 = vmatmul.mubr.bf16.gmra.mrb[0].mxu0 %v4803
    %v5062 = vpop.f32.mrb[0].mxu0
    %v5063 = vadd.f32 0.0, %v5062
    %v5064 = vpop.f32.mrb[0].mxu0
    %v5065 = vpop.f32.mrb[0].mxu0
    %v5066 = vadd.f32 0.0, %v5065
    %v5067 = vpop.f32.mrb[0].mxu0
    %5068 = vmatprep.mubr.bf16.mxu0 0
    %5069 = vmatmul.mubr.bf16.gmra.mrb[0].mxu0 %v4806
    %v5070 = vpop.f32.mrb[0].mxu0
    %v5071 = vadd.f32 0.0, %v5070
    %v5072 = vpop.f32.mrb[0].mxu0
    %v5073 = vpop.f32.mrb[0].mxu0
    %v5074 = vadd.f32 0.0, %v5073
    %v5075 = vpop.f32.mrb[0].mxu0
    %5076 = vmatprep.mubr.bf16.mxu0 0
    %5077 = vmatmul.mubr.bf16.gmra.mrb[0].mxu0 %v4809
    %v5078 = vpop.f32.mrb[0].mxu0
    %v5079 = vadd.f32 0.0, %v5078
    %v5080 = vpop.f32.mrb[0].mxu0
    %v5081 = vpop.f32.mrb[0].mxu0
    %v5082 = vadd.f32 0.0, %v5081
    %v5083 = vpop.f32.mrb[0].mxu0
    %5084 = vmatprep.mubr.bf16.mxu0 0
    %5085 = vmatmul.mubr.bf16.gmra.mrb[0].mxu0 %v4812
    %v5086 = vpop.f32.mrb[0].mxu0
    %v5087 = vadd.f32 0.0, %v5086
    %v5088 = vpop.f32.mrb[0].mxu0
    %v5089 = vpop.f32.mrb[0].mxu0
    %v5090 = vadd.f32 0.0, %v5089
    %v5091 = vpop.f32.mrb[0].mxu0
    %5092 = vmatprep.mubr.bf16.mxu0 0
    %5093 = vmatmul.mubr.bf16.gmra.mrb[0].mxu0 %v4815
    %v5094 = vpop.f32.mrb[0].mxu0
    %v5095 = vadd.f32 0.0, %v5094
    %v5096 = vpop.f32.mrb[0].mxu0
    %v5097 = vpop.f32.mrb[0].mxu0
    %v5098 = vadd.f32 0.0, %v5097
    %v5099 = vpop.f32.mrb[0].mxu0
    %5100 = vmatprep.mubr.bf16.mxu0 0
    %5101 = vmatmul.mubr.bf16.gmra.mrb[0].mxu0 %v4818
    %v5102 = vpop.f32.mrb[0].mxu0
    %v5103 = vadd.f32 0.0, %v5102
    %v5104 = vpop.f32.mrb[0].mxu0
    %v5105 = vpop.f32.mrb[0].mxu0
    %v5106 = vadd.f32 0.0, %v5105
    %v5107 = vpop.f32.mrb[0].mxu0
    %5108 = vdwg.mxu0
    %v5109 = vadd.f32 %v4554, %v4855
    %v5110 = vadd.f32 %v4555, %v4858
    %v5111 = vadd.f32 %v4556, %v4863
    %v5112 = vadd.f32 %v4557, %v4866
    %v5113 = vadd.f32 %v4558, %v4871
    %v5114 = vadd.f32 %v4559, %v4874
    %v5115 = vadd.f32 %v4560, %v4879
    %v5116 = vadd.f32 %v4561, %v4882
    %v5117 = vadd.f32 %v4562, %v4887
    %v5118 = vadd.f32 %v4563, %v4890
    %v5119 = vadd.f32 %v4564, %v4895
    %v5120 = vadd.f32 %v4565, %v4898
    %v5121 = vadd.f32 %v4566, %v4903
    %v5122 = vadd.f32 %v4567, %v4906
    %v5123 = vadd.f32 %v4568, %v4911
    %v5124 = vadd.f32 %v4569, %v4914
    %v5125 = vadd.f32 %v4570, %v4919
    %v5126 = vadd.f32 %v4571, %v4922
    %v5127 = vadd.f32 %v4572, %v4927
    %v5128 = vadd.f32 %v4573, %v4930
    %v5129 = vadd.f32 %v4574, %v4935
    %v5130 = vadd.f32 %v4575, %v4938
    %v5131 = vadd.f32 %v4576, %v4943
    %v5132 = vadd.f32 %v4577, %v4946
    %v5133 = vadd.f32 %v4578, %v4951
    %v5134 = vadd.f32 %v4579, %v4954
    %v5135 = vadd.f32 %v4580, %v4959
    %v5136 = vadd.f32 %v4581, %v4962
    %v5137 = vadd.f32 %v4582, %v4967
    %v5138 = vadd.f32 %v4583, %v4970
    %v5139 = vadd.f32 %v4584, %v4975
    %v5140 = vadd.f32 %v4585, %v4978
    %v5141 = vadd.f32 %v4586, %v4983
    %v5142 = vadd.f32 %v4587, %v4986
    %v5143 = vadd.f32 %v4588, %v4991
    %v5144 = vadd.f32 %v4589, %v4994
    %v5145 = vadd.f32 %v4590, %v4999
    %v5146 = vadd.f32 %v4591, %v5002
    %v5147 = vadd.f32 %v4592, %v5007
    %v5148 = vadd.f32 %v4593, %v5010
    %v5149 = vadd.f32 %v4594, %v5015
    %v5150 = vadd.f32 %v4595, %v5018
    %v5151 = vadd.f32 %v4596, %v5023
    %v5152 = vadd.f32 %v4597, %v5026
    %v5153 = vadd.f32 %v4598, %v5031
    %v5154 = vadd.f32 %v4599, %v5034
    %v5155 = vadd.f32 %v4600, %v5039
    %v5156 = vadd.f32 %v4601, %v5042
    %v5157 = vadd.f32 %v4602, %v5047
    %v5158 = vadd.f32 %v4603, %v5050
    %v5159 = vadd.f32 %v4604, %v5055
    %v5160 = vadd.f32 %v4605, %v5058
    %v5161 = vadd.f32 %v4606, %v5063
    %v5162 = vadd.f32 %v4607, %v5066
    %v5163 = vadd.f32 %v4608, %v5071
    %v5164 = vadd.f32 %v4609, %v5074
    %v5165 = vadd.f32 %v4610, %v5079
    %v5166 = vadd.f32 %v4611, %v5082
    %v5167 = vadd.f32 %v4612, %v5087
    %v5168 = vadd.f32 %v4613, %v5090
    %v5169 = vadd.f32 %v4614, %v5095
    %v5170 = vadd.f32 %v4615, %v5098
    %v5171 = vadd.f32 %v4616, %v5103
    %v5172 = vadd.f32 %v4617, %v5106
    %v5173 = vld [vmem:[%s4618 + $0x1] sm:$0xff]
    %v5174 = vld [vmem:[%s4618 + $0x9] sm:$0xff]
    %v5175 = vld [vmem:[%s4618 + $0x19] sm:$0xff]
    %v5176 = vld [vmem:[%s4618 + $0x21] sm:$0xff]
    %v5177 = vld [vmem:[%s4618 + $0x31] sm:$0xff]
    %v5178 = vld [vmem:[%s4618 + $0x39] sm:$0xff]
    %v5179 = vld [vmem:[%s4618 + $0x49] sm:$0xff]
    %v5180 = vld [vmem:[%s4618 + $0x51] sm:$0xff]
    %v5181 = vld [vmem:[%s4618 + $0x61] sm:$0xff]
    %v5182 = vld [vmem:[%s4618 + $0x69] sm:$0xff]
    %v5183 = vld [vmem:[%s4618 + $0x79] sm:$0xff]
    %v5184 = vld [vmem:[%s4618 + $0x81] sm:$0xff]
    %v5185 = vld [vmem:[%s4618 + $0x91] sm:$0xff]
    %v5186 = vld [vmem:[%s4618 + $0x99] sm:$0xff]
    %v5187 = vld [vmem:[%s4618 + $0xa9] sm:$0xff]
    %v5188 = vld [vmem:[%s4618 + $0xb1] sm:$0xff]
    %v5189 = vld [vmem:[%s4618 + $0xc1] sm:$0xff]
    %v5190 = vld [vmem:[%s4618 + $0xc9] sm:$0xff]
    %v5191 = vld [vmem:[%s4618 + $0xd9] sm:$0xff]
    %v5192 = vld [vmem:[%s4618 + $0xe1] sm:$0xff]
    %v5193 = vld [vmem:[%s4618 + $0xf1] sm:$0xff]
    %v5194 = vld [vmem:[%s4618 + $0xf9] sm:$0xff]
    %v5195 = vld [vmem:[%s4618 + $0x109] sm:$0xff]
    %v5196 = vld [vmem:[%s4618 + $0x111] sm:$0xff]
    %v5197 = vld [vmem:[%s4618 + $0x121] sm:$0xff]
    %v5198 = vld [vmem:[%s4618 + $0x129] sm:$0xff]
    %v5199 = vld [vmem:[%s4618 + $0x139] sm:$0xff]
    %v5200 = vld [vmem:[%s4618 + $0x141] sm:$0xff]
    %v5201 = vld [vmem:[%s4618 + $0x151] sm:$0xff]
    %v5202 = vld [vmem:[%s4618 + $0x159] sm:$0xff]
    %v5203 = vld [vmem:[%s4618 + $0x169] sm:$0xff]
    %v5204 = vld [vmem:[%s4618 + $0x171] sm:$0xff]
    %v5205 = vld [vmem:[%s4618 + $0x1b1] sm:$0xff]
    %v5206 = vld [vmem:[%s4618 + $0x1b9] sm:$0xff]
    %v5207 = vld [vmem:[%s4618 + $0x1c9] sm:$0xff]
    %v5208 = vld [vmem:[%s4618 + $0x1d1] sm:$0xff]
    %v5209 = vld [vmem:[%s4618 + $0x1e1] sm:$0xff]
    %v5210 = vld [vmem:[%s4618 + $0x1e9] sm:$0xff]
    %v5211 = vld [vmem:[%s4618 + $0x1f9] sm:$0xff]
    %v5212 = vld [vmem:[%s4618 + $0x201] sm:$0xff]
    %v5213 = vld [vmem:[%s4618 + $0x211] sm:$0xff]
    %v5214 = vld [vmem:[%s4618 + $0x219] sm:$0xff]
    %v5215 = vld [vmem:[%s4618 + $0x229] sm:$0xff]
    %v5216 = vld [vmem:[%s4618 + $0x231] sm:$0xff]
    %v5217 = vld [vmem:[%s4618 + $0x241] sm:$0xff]
    %v5218 = vld [vmem:[%s4618 + $0x249] sm:$0xff]
    %v5219 = vld [vmem:[%s4618 + $0x259] sm:$0xff]
    %v5220 = vld [vmem:[%s4618 + $0x261] sm:$0xff]
    %v5221 = vld [vmem:[%s4618 + $0x271] sm:$0xff]
    %v5222 = vld [vmem:[%s4618 + $0x279] sm:$0xff]
    %v5223 = vld [vmem:[%s4618 + $0x289] sm:$0xff]
    %v5224 = vld [vmem:[%s4618 + $0x291] sm:$0xff]
    %v5225 = vld [vmem:[%s4618 + $0x2a1] sm:$0xff]
    %v5226 = vld [vmem:[%s4618 + $0x2a9] sm:$0xff]
    %v5227 = vld [vmem:[%s4618 + $0x2b9] sm:$0xff]
    %v5228 = vld [vmem:[%s4618 + $0x2c1] sm:$0xff]
    %v5229 = vld [vmem:[%s4618 + $0x2d1] sm:$0xff]
    %v5230 = vld [vmem:[%s4618 + $0x2d9] sm:$0xff]
    %v5231 = vld [vmem:[%s4618 + $0x2e9] sm:$0xff]
    %v5232 = vld [vmem:[%s4618 + $0x2f1] sm:$0xff]
    %v5233 = vld [vmem:[%s4618 + $0x301] sm:$0xff]
    %v5234 = vld [vmem:[%s4618 + $0x309] sm:$0xff]
    %v5235 = vld [vmem:[%s4618 + $0x319] sm:$0xff]
    %v5236 = vld [vmem:[%s4618 + $0x321] sm:$0xff]
    %s5237 = scalar_lea.vmem [#allocation6], 56
    %v5238 = vld [vmem:[%s5237] sm:$0xf]
    %v5239 = vld [vmem:[%s5237 + $0x4] sm:$0xf]
    %v5240 = vpack.c.bf16 %v5174, %v5173
    %v5241 = vpack.c.bf16 %v5176, %v5175
    %v5242 = vpack.c.bf16 %v5178, %v5177
    %v5243 = vpack.c.bf16 %v5180, %v5179
    %v5244 = vpack.c.bf16 %v5182, %v5181
    %v5245 = vpack.c.bf16 %v5184, %v5183
    %v5246 = vpack.c.bf16 %v5186, %v5185
    %v5247 = vpack.c.bf16 %v5188, %v5187
    %v5248 = vpack.c.bf16 %v5190, %v5189
    %v5249 = vpack.c.bf16 %v5192, %v5191
    %v5250 = vpack.c.bf16 %v5194, %v5193
    %v5251 = vpack.c.bf16 %v5196, %v5195
    %v5252 = vpack.c.bf16 %v5198, %v5197
    %v5253 = vpack.c.bf16 %v5200, %v5199
    %v5254 = vpack.c.bf16 %v5202, %v5201
    %v5255 = vpack.c.bf16 %v5204, %v5203
    %v5256 = vpack.c.bf16 %v5206, %v5205
    %v5257 = vpack.c.bf16 %v5208, %v5207
    %v5258 = vpack.c.bf16 %v5210, %v5209
    %v5259 = vpack.c.bf16 %v5212, %v5211
    %v5260 = vpack.c.bf16 %v5214, %v5213
    %v5261 = vpack.c.bf16 %v5216, %v5215
    %v5262 = vpack.c.bf16 %v5218, %v5217
    %v5263 = vpack.c.bf16 %v5220, %v5219
    %v5264 = vpack.c.bf16 %v5222, %v5221
    %v5265 = vpack.c.bf16 %v5224, %v5223
    %v5266 = vpack.c.bf16 %v5226, %v5225
    %v5267 = vpack.c.bf16 %v5228, %v5227
    %v5268 = vpack.c.bf16 %v5230, %v5229
    %v5269 = vpack.c.bf16 %v5232, %v5231
    %v5270 = vpack.c.bf16 %v5234, %v5233
    %v5271 = vpack.c.bf16 %v5236, %v5235
    %v5274 = vunpack.c.l.b16 %v5238
    %v5275 = vunpack.c.l.b16 %v5239
    %v5276 = vpack.c.b16 %v5275, %v5274
    %v5279 = vsel %vm581, %v5240, 0
    %v5282 = vsel %vm581, %v5241, 0
    %v5285 = vsel %vm581, %v5242, 0
    %v5288 = vsel %vm581, %v5243, 0
    %v5291 = vsel %vm581, %v5244, 0
    %v5294 = vsel %vm581, %v5245, 0
    %v5297 = vsel %vm581, %v5246, 0
    %v5300 = vsel %vm581, %v5247, 0
    %v5303 = vsel %vm581, %v5248, 0
    %v5306 = vsel %vm581, %v5249, 0
    %v5309 = vsel %vm581, %v5250, 0
    %v5312 = vsel %vm581, %v5251, 0
    %v5315 = vsel %vm581, %v5252, 0
    %v5318 = vsel %vm581, %v5253, 0
    %v5321 = vsel %vm581, %v5254, 0
    %v5324 = vsel %vm581, %v5255, 0
    %v5327 = vsel %vm581, %v5256, 0
    %v5330 = vsel %vm581, %v5257, 0
    %v5333 = vsel %vm581, %v5258, 0
    %v5336 = vsel %vm581, %v5259, 0
    %v5339 = vsel %vm581, %v5260, 0
    %v5342 = vsel %vm581, %v5261, 0
    %v5345 = vsel %vm581, %v5262, 0
    %v5348 = vsel %vm581, %v5263, 0
    %v5351 = vsel %vm581, %v5264, 0
    %v5354 = vsel %vm581, %v5265, 0
    %v5357 = vsel %vm581, %v5266, 0
    %v5360 = vsel %vm581, %v5267, 0
    %v5363 = vsel %vm581, %v5268, 0
    %v5366 = vsel %vm581, %v5269, 0
    %v5369 = vsel %vm581, %v5270, 0
    %v5372 = vsel %vm581, %v5271, 0
    %5374 = vmatprep.subr.bf16.mxu0 0
    %5375 = vmatpush1.bf16.msra.mxu0 %v5276
    %5376 = vmatprep.subr.bf16.mxu0 0
    %5377 = vmatpush1.bf16.msra.mxu0 0
    %5378 = vmatprep.subr.bf16.mxu0 0
    %5379 = vmatpush1.bf16.msra.mxu0 0
    %5380 = vmatprep.subr.bf16.mxu0 0
    %5381 = vmatpush1.bf16.msra.mxu0 0
    %5382 = vmatprep.subr.bf16.mxu0 0
    %5383 = vmatpush1.bf16.msra.mxu0 0
    %5384 = vmatprep.subr.bf16.mxu0 0
    %5385 = vmatpush1.bf16.msra.mxu0 0
    %5386 = vmatprep.subr.bf16.mxu0 0
    %5387 = vmatpush1.bf16.msra.mxu0 0
    %5388 = vmatprep.subr.bf16.mxu0 0
    %5389 = vmatpush1.bf16.msra.mxu0 0
    %5390 = vmatprep.subr.bf16.mxu0 0
    %5391 = vmatpush1.bf16.msra.mxu0 0
    %5392 = vmatprep.subr.bf16.mxu0 0
    %5393 = vmatpush1.bf16.msra.mxu0 0
    %5394 = vmatprep.subr.bf16.mxu0 0
    %5395 = vmatpush1.bf16.msra.mxu0 0
    %5396 = vmatprep.subr.bf16.mxu0 0
    %5397 = vmatpush1.bf16.msra.mxu0 0
    %5398 = vmatprep.subr.bf16.mxu0 0
    %5399 = vmatpush1.bf16.msra.mxu0 0
    %5400 = vmatprep.subr.bf16.mxu0 0
    %5401 = vmatpush1.bf16.msra.mxu0 0
    %5402 = vmatprep.subr.bf16.mxu0 0
    %5403 = vmatpush1.bf16.msra.mxu0 0
    %5404 = vmatprep.subr.bf16.mxu0 0
    %5405 = vmatpush1.bf16.msra.mxu0 0
    %5406 = vmatprep.mubr.bf16.mxu0 0
    %5407 = vmatmul.mubr.bf16.gmra.mrb[0].mxu0 %v5279
    %v5408 = vpop.f32.mrb[0].mxu0
    %v5409 = vadd.f32 0.0, %v5408
    %v5410 = vpop.f32.mrb[0].mxu0
    %v5411 = vpop.f32.mrb[0].mxu0
    %v5412 = vadd.f32 0.0, %v5411
    %v5413 = vpop.f32.mrb[0].mxu0
    %5414 = vmatprep.mubr.bf16.mxu0 0
    %5415 = vmatmul.mubr.bf16.gmra.mrb[0].mxu0 %v5282
    %v5416 = vpop.f32.mrb[0].mxu0
    %v5417 = vadd.f32 0.0, %v5416
    %v5418 = vpop.f32.mrb[0].mxu0
    %v5419 = vpop.f32.mrb[0].mxu0
    %v5420 = vadd.f32 0.0, %v5419
    %v5421 = vpop.f32.mrb[0].mxu0
    %5422 = vmatprep.mubr.bf16.mxu0 0
    %5423 = vmatmul.mubr.bf16.gmra.mrb[0].mxu0 %v5285
    %v5424 = vpop.f32.mrb[0].mxu0
    %v5425 = vadd.f32 0.0, %v5424
    %v5426 = vpop.f32.mrb[0].mxu0
    %v5427 = vpop.f32.mrb[0].mxu0
    %v5428 = vadd.f32 0.0, %v5427
    %v5429 = vpop.f32.mrb[0].mxu0
    %5430 = vmatprep.mubr.bf16.mxu0 0
    %5431 = vmatmul.mubr.bf16.gmra.mrb[0].mxu0 %v5288
    %v5432 = vpop.f32.mrb[0].mxu0
    %v5433 = vadd.f32 0.0, %v5432
    %v5434 = vpop.f32.mrb[0].mxu0
    %v5435 = vpop.f32.mrb[0].mxu0
    %v5436 = vadd.f32 0.0, %v5435
    %v5437 = vpop.f32.mrb[0].mxu0
    %5438 = vmatprep.mubr.bf16.mxu0 0
    %5439 = vmatmul.mubr.bf16.gmra.mrb[0].mxu0 %v5291
    %v5440 = vpop.f32.mrb[0].mxu0
    %v5441 = vadd.f32 0.0, %v5440
    %v5442 = vpop.f32.mrb[0].mxu0
    %v5443 = vpop.f32.mrb[0].mxu0
    %v5444 = vadd.f32 0.0, %v5443
    %v5445 = vpop.f32.mrb[0].mxu0
    %5446 = vmatprep.mubr.bf16.mxu0 0
    %5447 = vmatmul.mubr.bf16.gmra.mrb[0].mxu0 %v5294
    %v5448 = vpop.f32.mrb[0].mxu0
    %v5449 = vadd.f32 0.0, %v5448
    %v5450 = vpop.f32.mrb[0].mxu0
    %v5451 = vpop.f32.mrb[0].mxu0
    %v5452 = vadd.f32 0.0, %v5451
    %v5453 = vpop.f32.mrb[0].mxu0
    %5454 = vmatprep.mubr.bf16.mxu0 0
    %5455 = vmatmul.mubr.bf16.gmra.mrb[0].mxu0 %v5297
    %v5456 = vpop.f32.mrb[0].mxu0
    %v5457 = vadd.f32 0.0, %v5456
    %v5458 = vpop.f32.mrb[0].mxu0
    %v5459 = vpop.f32.mrb[0].mxu0
    %v5460 = vadd.f32 0.0, %v5459
    %v5461 = vpop.f32.mrb[0].mxu0
    %5462 = vmatprep.mubr.bf16.mxu0 0
    %5463 = vmatmul.mubr.bf16.gmra.mrb[0].mxu0 %v5300
    %v5464 = vpop.f32.mrb[0].mxu0
    %v5465 = vadd.f32 0.0, %v5464
    %v5466 = vpop.f32.mrb[0].mxu0
    %v5467 = vpop.f32.mrb[0].mxu0
    %v5468 = vadd.f32 0.0, %v5467
    %v5469 = vpop.f32.mrb[0].mxu0
    %5470 = vmatprep.mubr.bf16.mxu0 0
    %5471 = vmatmul.mubr.bf16.gmra.mrb[0].mxu0 %v5303
    %v5472 = vpop.f32.mrb[0].mxu0
    %v5473 = vadd.f32 0.0, %v5472
    %v5474 = vpop.f32.mrb[0].mxu0
    %v5475 = vpop.f32.mrb[0].mxu0
    %v5476 = vadd.f32 0.0, %v5475
    %v5477 = vpop.f32.mrb[0].mxu0
    %5478 = vmatprep.mubr.bf16.mxu0 0
    %5479 = vmatmul.mubr.bf16.gmra.mrb[0].mxu0 %v5306
    %v5480 = vpop.f32.mrb[0].mxu0
    %v5481 = vadd.f32 0.0, %v5480
    %v5482 = vpop.f32.mrb[0].mxu0
    %v5483 = vpop.f32.mrb[0].mxu0
    %v5484 = vadd.f32 0.0, %v5483
    %v5485 = vpop.f32.mrb[0].mxu0
    %5486 = vmatprep.mubr.bf16.mxu0 0
    %5487 = vmatmul.mubr.bf16.gmra.mrb[0].mxu0 %v5309
    %v5488 = vpop.f32.mrb[0].mxu0
    %v5489 = vadd.f32 0.0, %v5488
    %v5490 = vpop.f32.mrb[0].mxu0
    %v5491 = vpop.f32.mrb[0].mxu0
    %v5492 = vadd.f32 0.0, %v5491
    %v5493 = vpop.f32.mrb[0].mxu0
    %5494 = vmatprep.mubr.bf16.mxu0 0
    %5495 = vmatmul.mubr.bf16.gmra.mrb[0].mxu0 %v5312
    %v5496 = vpop.f32.mrb[0].mxu0
    %v5497 = vadd.f32 0.0, %v5496
    %v5498 = vpop.f32.mrb[0].mxu0
    %v5499 = vpop.f32.mrb[0].mxu0
    %v5500 = vadd.f32 0.0, %v5499
    %v5501 = vpop.f32.mrb[0].mxu0
    %5502 = vmatprep.mubr.bf16.mxu0 0
    %5503 = vmatmul.mubr.bf16.gmra.mrb[0].mxu0 %v5315
    %v5504 = vpop.f32.mrb[0].mxu0
    %v5505 = vadd.f32 0.0, %v5504
    %v5506 = vpop.f32.mrb[0].mxu0
    %v5507 = vpop.f32.mrb[0].mxu0
    %v5508 = vadd.f32 0.0, %v5507
    %v5509 = vpop.f32.mrb[0].mxu0
    %5510 = vmatprep.mubr.bf16.mxu0 0
    %5511 = vmatmul.mubr.bf16.gmra.mrb[0].mxu0 %v5318
    %v5512 = vpop.f32.mrb[0].mxu0
    %v5513 = vadd.f32 0.0, %v5512
    %v5514 = vpop.f32.mrb[0].mxu0
    %v5515 = vpop.f32.mrb[0].mxu0
    %v5516 = vadd.f32 0.0, %v5515
    %v5517 = vpop.f32.mrb[0].mxu0
    %5518 = vmatprep.mubr.bf16.mxu0 0
    %5519 = vmatmul.mubr.bf16.gmra.mrb[0].mxu0 %v5321
    %v5520 = vpop.f32.mrb[0].mxu0
    %v5521 = vadd.f32 0.0, %v5520
    %v5522 = vpop.f32.mrb[0].mxu0
    %v5523 = vpop.f32.mrb[0].mxu0
    %v5524 = vadd.f32 0.0, %v5523
    %v5525 = vpop.f32.mrb[0].mxu0
    %5526 = vmatprep.mubr.bf16.mxu0 0
    %5527 = vmatmul.mubr.bf16.gmra.mrb[0].mxu0 %v5324
    %v5528 = vpop.f32.mrb[0].mxu0
    %v5529 = vadd.f32 0.0, %v5528
    %v5530 = vpop.f32.mrb[0].mxu0
    %v5531 = vpop.f32.mrb[0].mxu0
    %v5532 = vadd.f32 0.0, %v5531
    %v5533 = vpop.f32.mrb[0].mxu0
    %5534 = vmatprep.mubr.bf16.mxu0 0
    %5535 = vmatmul.mubr.bf16.gmra.mrb[0].mxu0 %v5327
    %v5536 = vpop.f32.mrb[0].mxu0
    %v5537 = vadd.f32 0.0, %v5536
    %v5538 = vpop.f32.mrb[0].mxu0
    %v5539 = vpop.f32.mrb[0].mxu0
    %v5540 = vadd.f32 0.0, %v5539
    %v5541 = vpop.f32.mrb[0].mxu0
    %5542 = vmatprep.mubr.bf16.mxu0 0
    %5543 = vmatmul.mubr.bf16.gmra.mrb[0].mxu0 %v5330
    %v5544 = vpop.f32.mrb[0].mxu0
    %v5545 = vadd.f32 0.0, %v5544
    %v5546 = vpop.f32.mrb[0].mxu0
    %v5547 = vpop.f32.mrb[0].mxu0
    %v5548 = vadd.f32 0.0, %v5547
    %v5549 = vpop.f32.mrb[0].mxu0
    %5550 = vmatprep.mubr.bf16.mxu0 0
    %5551 = vmatmul.mubr.bf16.gmra.mrb[0].mxu0 %v5333
    %v5552 = vpop.f32.mrb[0].mxu0
    %v5553 = vadd.f32 0.0, %v5552
    %v5554 = vpop.f32.mrb[0].mxu0
    %v5555 = vpop.f32.mrb[0].mxu0
    %v5556 = vadd.f32 0.0, %v5555
    %v5557 = vpop.f32.mrb[0].mxu0
    %5558 = vmatprep.mubr.bf16.mxu0 0
    %5559 = vmatmul.mubr.bf16.gmra.mrb[0].mxu0 %v5336
    %v5560 = vpop.f32.mrb[0].mxu0
    %v5561 = vadd.f32 0.0, %v5560
    %v5562 = vpop.f32.mrb[0].mxu0
    %v5563 = vpop.f32.mrb[0].mxu0
    %v5564 = vadd.f32 0.0, %v5563
    %v5565 = vpop.f32.mrb[0].mxu0
    %5566 = vmatprep.mubr.bf16.mxu0 0
    %5567 = vmatmul.mubr.bf16.gmra.mrb[0].mxu0 %v5339
    %v5568 = vpop.f32.mrb[0].mxu0
    %v5569 = vadd.f32 0.0, %v5568
    %v5570 = vpop.f32.mrb[0].mxu0
    %v5571 = vpop.f32.mrb[0].mxu0
    %v5572 = vadd.f32 0.0, %v5571
    %v5573 = vpop.f32.mrb[0].mxu0
    %5574 = vmatprep.mubr.bf16.mxu0 0
    %5575 = vmatmul.mubr.bf16.gmra.mrb[0].mxu0 %v5342
    %v5576 = vpop.f32.mrb[0].mxu0
    %v5577 = vadd.f32 0.0, %v5576
    %v5578 = vpop.f32.mrb[0].mxu0
    %v5579 = vpop.f32.mrb[0].mxu0
    %v5580 = vadd.f32 0.0, %v5579
    %v5581 = vpop.f32.mrb[0].mxu0
    %5582 = vmatprep.mubr.bf16.mxu0 0
    %5583 = vmatmul.mubr.bf16.gmra.mrb[0].mxu0 %v5345
    %v5584 = vpop.f32.mrb[0].mxu0
    %v5585 = vadd.f32 0.0, %v5584
    %v5586 = vpop.f32.mrb[0].mxu0
    %v5587 = vpop.f32.mrb[0].mxu0
    %v5588 = vadd.f32 0.0, %v5587
    %v5589 = vpop.f32.mrb[0].mxu0
    %5590 = vmatprep.mubr.bf16.mxu0 0
    %5591 = vmatmul.mubr.bf16.gmra.mrb[0].mxu0 %v5348
    %v5592 = vpop.f32.mrb[0].mxu0
    %v5593 = vadd.f32 0.0, %v5592
    %v5594 = vpop.f32.mrb[0].mxu0
    %v5595 = vpop.f32.mrb[0].mxu0
    %v5596 = vadd.f32 0.0, %v5595
    %v5597 = vpop.f32.mrb[0].mxu0
    %5598 = vmatprep.mubr.bf16.mxu0 0
    %5599 = vmatmul.mubr.bf16.gmra.mrb[0].mxu0 %v5351
    %v5600 = vpop.f32.mrb[0].mxu0
    %v5601 = vadd.f32 0.0, %v5600
    %v5602 = vpop.f32.mrb[0].mxu0
    %v5603 = vpop.f32.mrb[0].mxu0
    %v5604 = vadd.f32 0.0, %v5603
    %v5605 = vpop.f32.mrb[0].mxu0
    %5606 = vmatprep.mubr.bf16.mxu0 0
    %5607 = vmatmul.mubr.bf16.gmra.mrb[0].mxu0 %v5354
    %v5608 = vpop.f32.mrb[0].mxu0
    %v5609 = vadd.f32 0.0, %v5608
    %v5610 = vpop.f32.mrb[0].mxu0
    %v5611 = vpop.f32.mrb[0].mxu0
    %v5612 = vadd.f32 0.0, %v5611
    %v5613 = vpop.f32.mrb[0].mxu0
    %5614 = vmatprep.mubr.bf16.mxu0 0
    %5615 = vmatmul.mubr.bf16.gmra.mrb[0].mxu0 %v5357
    %v5616 = vpop.f32.mrb[0].mxu0
    %v5617 = vadd.f32 0.0, %v5616
    %v5618 = vpop.f32.mrb[0].mxu0
    %v5619 = vpop.f32.mrb[0].mxu0
    %v5620 = vadd.f32 0.0, %v5619
    %v5621 = vpop.f32.mrb[0].mxu0
    %5622 = vmatprep.mubr.bf16.mxu0 0
    %5623 = vmatmul.mubr.bf16.gmra.mrb[0].mxu0 %v5360
    %v5624 = vpop.f32.mrb[0].mxu0
    %v5625 = vadd.f32 0.0, %v5624
    %v5626 = vpop.f32.mrb[0].mxu0
    %v5627 = vpop.f32.mrb[0].mxu0
    %v5628 = vadd.f32 0.0, %v5627
    %v5629 = vpop.f32.mrb[0].mxu0
    %5630 = vmatprep.mubr.bf16.mxu0 0
    %5631 = vmatmul.mubr.bf16.gmra.mrb[0].mxu0 %v5363
    %v5632 = vpop.f32.mrb[0].mxu0
    %v5633 = vadd.f32 0.0, %v5632
    %v5634 = vpop.f32.mrb[0].mxu0
    %v5635 = vpop.f32.mrb[0].mxu0
    %v5636 = vadd.f32 0.0, %v5635
    %v5637 = vpop.f32.mrb[0].mxu0
    %5638 = vmatprep.mubr.bf16.mxu0 0
    %5639 = vmatmul.mubr.bf16.gmra.mrb[0].mxu0 %v5366
    %v5640 = vpop.f32.mrb[0].mxu0
    %v5641 = vadd.f32 0.0, %v5640
    %v5642 = vpop.f32.mrb[0].mxu0
    %v5643 = vpop.f32.mrb[0].mxu0
    %v5644 = vadd.f32 0.0, %v5643
    %v5645 = vpop.f32.mrb[0].mxu0
    %5646 = vmatprep.mubr.bf16.mxu0 0
    %5647 = vmatmul.mubr.bf16.gmra.mrb[0].mxu0 %v5369
    %v5648 = vpop.f32.mrb[0].mxu0
    %v5649 = vadd.f32 0.0, %v5648
    %v5650 = vpop.f32.mrb[0].mxu0
    %v5651 = vpop.f32.mrb[0].mxu0
    %v5652 = vadd.f32 0.0, %v5651
    %v5653 = vpop.f32.mrb[0].mxu0
    %5654 = vmatprep.mubr.bf16.mxu0 0
    %5655 = vmatmul.mubr.bf16.gmra.mrb[0].mxu0 %v5372
    %v5656 = vpop.f32.mrb[0].mxu0
    %v5657 = vadd.f32 0.0, %v5656
    %v5658 = vpop.f32.mrb[0].mxu0
    %v5659 = vpop.f32.mrb[0].mxu0
    %v5660 = vadd.f32 0.0, %v5659
    %v5661 = vpop.f32.mrb[0].mxu0
    %5662 = vdwg.mxu0
    %v5663 = vadd.f32 %v5109, %v5409
    %v5664 = vadd.f32 %v5110, %v5412
    %v5665 = vadd.f32 %v5111, %v5417
    %v5666 = vadd.f32 %v5112, %v5420
    %v5667 = vadd.f32 %v5113, %v5425
    %v5668 = vadd.f32 %v5114, %v5428
    %v5669 = vadd.f32 %v5115, %v5433
    %v5670 = vadd.f32 %v5116, %v5436
    %v5671 = vadd.f32 %v5117, %v5441
    %v5672 = vadd.f32 %v5118, %v5444
    %v5673 = vadd.f32 %v5119, %v5449
    %v5674 = vadd.f32 %v5120, %v5452
    %v5675 = vadd.f32 %v5121, %v5457
    %v5676 = vadd.f32 %v5122, %v5460
    %v5677 = vadd.f32 %v5123, %v5465
    %v5678 = vadd.f32 %v5124, %v5468
    %v5679 = vadd.f32 %v5125, %v5473
    %v5680 = vadd.f32 %v5126, %v5476
    %v5681 = vadd.f32 %v5127, %v5481
    %v5682 = vadd.f32 %v5128, %v5484
    %v5683 = vadd.f32 %v5129, %v5489
    %v5684 = vadd.f32 %v5130, %v5492
    %v5685 = vadd.f32 %v5131, %v5497
    %v5686 = vadd.f32 %v5132, %v5500
    %v5687 = vadd.f32 %v5133, %v5505
    %v5688 = vadd.f32 %v5134, %v5508
    %v5689 = vadd.f32 %v5135, %v5513
    %v5690 = vadd.f32 %v5136, %v5516
    %v5691 = vadd.f32 %v5137, %v5521
    %v5692 = vadd.f32 %v5138, %v5524
    %v5693 = vadd.f32 %v5139, %v5529
    %v5694 = vadd.f32 %v5140, %v5532
    %v5695 = vadd.f32 %v5141, %v5537
    %v5696 = vadd.f32 %v5142, %v5540
    %v5697 = vadd.f32 %v5143, %v5545
    %v5698 = vadd.f32 %v5144, %v5548
    %v5699 = vadd.f32 %v5145, %v5553
    %v5700 = vadd.f32 %v5146, %v5556
    %v5701 = vadd.f32 %v5147, %v5561
    %v5702 = vadd.f32 %v5148, %v5564
    %v5703 = vadd.f32 %v5149, %v5569
    %v5704 = vadd.f32 %v5150, %v5572
    %v5705 = vadd.f32 %v5151, %v5577
    %v5706 = vadd.f32 %v5152, %v5580
    %v5707 = vadd.f32 %v5153, %v5585
    %v5708 = vadd.f32 %v5154, %v5588
    %v5709 = vadd.f32 %v5155, %v5593
    %v5710 = vadd.f32 %v5156, %v5596
    %v5711 = vadd.f32 %v5157, %v5601
    %v5712 = vadd.f32 %v5158, %v5604
    %v5713 = vadd.f32 %v5159, %v5609
    %v5714 = vadd.f32 %v5160, %v5612
    %v5715 = vadd.f32 %v5161, %v5617
    %v5716 = vadd.f32 %v5162, %v5620
    %v5717 = vadd.f32 %v5163, %v5625
    %v5718 = vadd.f32 %v5164, %v5628
    %v5719 = vadd.f32 %v5165, %v5633
    %v5720 = vadd.f32 %v5166, %v5636
    %v5721 = vadd.f32 %v5167, %v5641
    %v5722 = vadd.f32 %v5168, %v5644
    %v5723 = vadd.f32 %v5169, %v5649
    %v5724 = vadd.f32 %v5170, %v5652
    %v5725 = vadd.f32 %v5171, %v5657
    %v5726 = vadd.f32 %v5172, %v5660
    %v5727 = vld [vmem:[%s4618 + $0x2] sm:$0xff]
    %v5728 = vld [vmem:[%s4618 + $0xa] sm:$0xff]
    %v5729 = vld [vmem:[%s4618 + $0x1a] sm:$0xff]
    %v5730 = vld [vmem:[%s4618 + $0x22] sm:$0xff]
    %v5731 = vld [vmem:[%s4618 + $0x32] sm:$0xff]
    %v5732 = vld [vmem:[%s4618 + $0x3a] sm:$0xff]
    %v5733 = vld [vmem:[%s4618 + $0x4a] sm:$0xff]
    %v5734 = vld [vmem:[%s4618 + $0x52] sm:$0xff]
    %v5735 = vld [vmem:[%s4618 + $0x62] sm:$0xff]
    %v5736 = vld [vmem:[%s4618 + $0x6a] sm:$0xff]
    %v5737 = vld [vmem:[%s4618 + $0x7a] sm:$0xff]
    %v5738 = vld [vmem:[%s4618 + $0x82] sm:$0xff]
    %v5739 = vld [vmem:[%s4618 + $0x92] sm:$0xff]
    %v5740 = vld [vmem:[%s4618 + $0x9a] sm:$0xff]
    %v5741 = vld [vmem:[%s4618 + $0xaa] sm:$0xff]
    %v5742 = vld [vmem:[%s4618 + $0xb2] sm:$0xff]
    %v5743 = vld [vmem:[%s4618 + $0xc2] sm:$0xff]
    %v5744 = vld [vmem:[%s4618 + $0xca] sm:$0xff]
    %v5745 = vld [vmem:[%s4618 + $0xda] sm:$0xff]
    %v5746 = vld [vmem:[%s4618 + $0xe2] sm:$0xff]
    %v5747 = vld [vmem:[%s4618 + $0xf2] sm:$0xff]
    %v5748 = vld [vmem:[%s4618 + $0xfa] sm:$0xff]
    %v5749 = vld [vmem:[%s4618 + $0x10a] sm:$0xff]
    %v5750 = vld [vmem:[%s4618 + $0x112] sm:$0xff]
    %v5751 = vld [vmem:[%s4618 + $0x122] sm:$0xff]
    %v5752 = vld [vmem:[%s4618 + $0x12a] sm:$0xff]
    %v5753 = vld [vmem:[%s4618 + $0x13a] sm:$0xff]
    %v5754 = vld [vmem:[%s4618 + $0x142] sm:$0xff]
    %v5755 = vld [vmem:[%s4618 + $0x152] sm:$0xff]
    %v5756 = vld [vmem:[%s4618 + $0x15a] sm:$0xff]
    %v5757 = vld [vmem:[%s4618 + $0x16a] sm:$0xff]
    %v5758 = vld [vmem:[%s4618 + $0x172] sm:$0xff]
    %v5759 = vld [vmem:[%s4618 + $0x1b2] sm:$0xff]
    %v5760 = vld [vmem:[%s4618 + $0x1ba] sm:$0xff]
    %v5761 = vld [vmem:[%s4618 + $0x1ca] sm:$0xff]
    %v5762 = vld [vmem:[%s4618 + $0x1d2] sm:$0xff]
    %v5763 = vld [vmem:[%s4618 + $0x1e2] sm:$0xff]
    %v5764 = vld [vmem:[%s4618 + $0x1ea] sm:$0xff]
    %v5765 = vld [vmem:[%s4618 + $0x1fa] sm:$0xff]
    %v5766 = vld [vmem:[%s4618 + $0x202] sm:$0xff]
    %v5767 = vld [vmem:[%s4618 + $0x212] sm:$0xff]
    %v5768 = vld [vmem:[%s4618 + $0x21a] sm:$0xff]
    %v5769 = vld [vmem:[%s4618 + $0x22a] sm:$0xff]
    %v5770 = vld [vmem:[%s4618 + $0x232] sm:$0xff]
    %v5771 = vld [vmem:[%s4618 + $0x242] sm:$0xff]
    %v5772 = vld [vmem:[%s4618 + $0x24a] sm:$0xff]
    %v5773 = vld [vmem:[%s4618 + $0x25a] sm:$0xff]
    %v5774 = vld [vmem:[%s4618 + $0x262] sm:$0xff]
    %v5775 = vld [vmem:[%s4618 + $0x272] sm:$0xff]
    %v5776 = vld [vmem:[%s4618 + $0x27a] sm:$0xff]
    %v5777 = vld [vmem:[%s4618 + $0x28a] sm:$0xff]
    %v5778 = vld [vmem:[%s4618 + $0x292] sm:$0xff]
    %v5779 = vld [vmem:[%s4618 + $0x2a2] sm:$0xff]
    %v5780 = vld [vmem:[%s4618 + $0x2aa] sm:$0xff]
    %v5781 = vld [vmem:[%s4618 + $0x2ba] sm:$0xff]
    %v5782 = vld [vmem:[%s4618 + $0x2c2] sm:$0xff]
    %v5783 = vld [vmem:[%s4618 + $0x2d2] sm:$0xff]
    %v5784 = vld [vmem:[%s4618 + $0x2da] sm:$0xff]
    %v5785 = vld [vmem:[%s4618 + $0x2ea] sm:$0xff]
    %v5786 = vld [vmem:[%s4618 + $0x2f2] sm:$0xff]
    %v5787 = vld [vmem:[%s4618 + $0x302] sm:$0xff]
    %v5788 = vld [vmem:[%s4618 + $0x30a] sm:$0xff]
    %v5789 = vld [vmem:[%s4618 + $0x31a] sm:$0xff]
    %v5790 = vld [vmem:[%s4618 + $0x322] sm:$0xff]
    %s5791 = scalar_lea.vmem [#allocation6], 64
    %v5792 = vld [vmem:[%s5791] sm:$0xf]
    %v5793 = vld [vmem:[%s5791 + $0x4] sm:$0xf]
    %v5794 = vpack.c.bf16 %v5728, %v5727
    %v5795 = vpack.c.bf16 %v5730, %v5729
    %v5796 = vpack.c.bf16 %v5732, %v5731
    %v5797 = vpack.c.bf16 %v5734, %v5733
    %v5798 = vpack.c.bf16 %v5736, %v5735
    %v5799 = vpack.c.bf16 %v5738, %v5737
    %v5800 = vpack.c.bf16 %v5740, %v5739
    %v5801 = vpack.c.bf16 %v5742, %v5741
    %v5802 = vpack.c.bf16 %v5744, %v5743
    %v5803 = vpack.c.bf16 %v5746, %v5745
    %v5804 = vpack.c.bf16 %v5748, %v5747
    %v5805 = vpack.c.bf16 %v5750, %v5749
    %v5806 = vpack.c.bf16 %v5752, %v5751
    %v5807 = vpack.c.bf16 %v5754, %v5753
    %v5808 = vpack.c.bf16 %v5756, %v5755
    %v5809 = vpack.c.bf16 %v5758, %v5757
    %v5810 = vpack.c.bf16 %v5760, %v5759
    %v5811 = vpack.c.bf16 %v5762, %v5761
    %v5812 = vpack.c.bf16 %v5764, %v5763
    %v5813 = vpack.c.bf16 %v5766, %v5765
    %v5814 = vpack.c.bf16 %v5768, %v5767
    %v5815 = vpack.c.bf16 %v5770, %v5769
    %v5816 = vpack.c.bf16 %v5772, %v5771
    %v5817 = vpack.c.bf16 %v5774, %v5773
    %v5818 = vpack.c.bf16 %v5776, %v5775
    %v5819 = vpack.c.bf16 %v5778, %v5777
    %v5820 = vpack.c.bf16 %v5780, %v5779
    %v5821 = vpack.c.bf16 %v5782, %v5781
    %v5822 = vpack.c.bf16 %v5784, %v5783
    %v5823 = vpack.c.bf16 %v5786, %v5785
    %v5824 = vpack.c.bf16 %v5788, %v5787
    %v5825 = vpack.c.bf16 %v5790, %v5789
    %v5828 = vunpack.c.l.b16 %v5792
    %v5829 = vunpack.c.l.b16 %v5793
    %v5830 = vpack.c.b16 %v5829, %v5828
    %v5833 = vsel %vm581, %v5794, 0
    %v5836 = vsel %vm581, %v5795, 0
    %v5839 = vsel %vm581, %v5796, 0
    %v5842 = vsel %vm581, %v5797, 0
    %v5845 = vsel %vm581, %v5798, 0
    %v5848 = vsel %vm581, %v5799, 0
    %v5851 = vsel %vm581, %v5800, 0
    %v5854 = vsel %vm581, %v5801, 0
    %v5857 = vsel %vm581, %v5802, 0
    %v5860 = vsel %vm581, %v5803, 0
    %v5863 = vsel %vm581, %v5804, 0
    %v5866 = vsel %vm581, %v5805, 0
    %v5869 = vsel %vm581, %v5806, 0
    %v5872 = vsel %vm581, %v5807, 0
    %v5875 = vsel %vm581, %v5808, 0
    %v5878 = vsel %vm581, %v5809, 0
    %v5881 = vsel %vm581, %v5810, 0
    %v5884 = vsel %vm581, %v5811, 0
    %v5887 = vsel %vm581, %v5812, 0
    %v5890 = vsel %vm581, %v5813, 0
    %v5893 = vsel %vm581, %v5814, 0
    %v5896 = vsel %vm581, %v5815, 0
    %v5899 = vsel %vm581, %v5816, 0
    %v5902 = vsel %vm581, %v5817, 0
    %v5905 = vsel %vm581, %v5818, 0
    %v5908 = vsel %vm581, %v5819, 0
    %v5911 = vsel %vm581, %v5820, 0
    %v5914 = vsel %vm581, %v5821, 0
    %v5917 = vsel %vm581, %v5822, 0
    %v5920 = vsel %vm581, %v5823, 0
    %v5923 = vsel %vm581, %v5824, 0
    %v5926 = vsel %vm581, %v5825, 0
    %5928 = vmatprep.subr.bf16.mxu0 0
    %5929 = vmatpush1.bf16.msra.mxu0 %v5830
    %5930 = vmatprep.subr.bf16.mxu0 0
    %5931 = vmatpush1.bf16.msra.mxu0 0
    %5932 = vmatprep.subr.bf16.mxu0 0
    %5933 = vmatpush1.bf16.msra.mxu0 0
    %5934 = vmatprep.subr.bf16.mxu0 0
    %5935 = vmatpush1.bf16.msra.mxu0 0
    %5936 = vmatprep.subr.bf16.mxu0 0
    %5937 = vmatpush1.bf16.msra.mxu0 0
    %5938 = vmatprep.subr.bf16.mxu0 0
    %5939 = vmatpush1.bf16.msra.mxu0 0
    %5940 = vmatprep.subr.bf16.mxu0 0
    %5941 = vmatpush1.bf16.msra.mxu0 0
    %5942 = vmatprep.subr.bf16.mxu0 0
    %5943 = vmatpush1.bf16.msra.mxu0 0
    %5944 = vmatprep.subr.bf16.mxu0 0
    %5945 = vmatpush1.bf16.msra.mxu0 0
    %5946 = vmatprep.subr.bf16.mxu0 0
    %5947 = vmatpush1.bf16.msra.mxu0 0
    %5948 = vmatprep.subr.bf16.mxu0 0
    %5949 = vmatpush1.bf16.msra.mxu0 0
    %5950 = vmatprep.subr.bf16.mxu0 0
    %5951 = vmatpush1.bf16.msra.mxu0 0
    %5952 = vmatprep.subr.bf16.mxu0 0
    %5953 = vmatpush1.bf16.msra.mxu0 0
    %5954 = vmatprep.subr.bf16.mxu0 0
    %5955 = vmatpush1.bf16.msra.mxu0 0
    %5956 = vmatprep.subr.bf16.mxu0 0
    %5957 = vmatpush1.bf16.msra.mxu0 0
    %5958 = vmatprep.subr.bf16.mxu0 0
    %5959 = vmatpush1.bf16.msra.mxu0 0
    %5960 = vmatprep.mubr.bf16.mxu0 0
    %5961 = vmatmul.mubr.bf16.gmra.mrb[0].mxu0 %v5833
    %v5962 = vpop.f32.mrb[0].mxu0
    %v5963 = vadd.f32 0.0, %v5962
    %v5964 = vpop.f32.mrb[0].mxu0
    %v5965 = vpop.f32.mrb[0].mxu0
    %v5966 = vadd.f32 0.0, %v5965
    %v5967 = vpop.f32.mrb[0].mxu0
    %5968 = vmatprep.mubr.bf16.mxu0 0
    %5969 = vmatmul.mubr.bf16.gmra.mrb[0].mxu0 %v5836
    %v5970 = vpop.f32.mrb[0].mxu0
    %v5971 = vadd.f32 0.0, %v5970
    %v5972 = vpop.f32.mrb[0].mxu0
    %v5973 = vpop.f32.mrb[0].mxu0
    %v5974 = vadd.f32 0.0, %v5973
    %v5975 = vpop.f32.mrb[0].mxu0
    %5976 = vmatprep.mubr.bf16.mxu0 0
    %5977 = vmatmul.mubr.bf16.gmra.mrb[0].mxu0 %v5839
    %v5978 = vpop.f32.mrb[0].mxu0
    %v5979 = vadd.f32 0.0, %v5978
    %v5980 = vpop.f32.mrb[0].mxu0
    %v5981 = vpop.f32.mrb[0].mxu0
    %v5982 = vadd.f32 0.0, %v5981
    %v5983 = vpop.f32.mrb[0].mxu0
    %5984 = vmatprep.mubr.bf16.mxu0 0
    %5985 = vmatmul.mubr.bf16.gmra.mrb[0].mxu0 %v5842
    %v5986 = vpop.f32.mrb[0].mxu0
    %v5987 = vadd.f32 0.0, %v5986
    %v5988 = vpop.f32.mrb[0].mxu0
    %v5989 = vpop.f32.mrb[0].mxu0
    %v5990 = vadd.f32 0.0, %v5989
    %v5991 = vpop.f32.mrb[0].mxu0
    %5992 = vmatprep.mubr.bf16.mxu0 0
    %5993 = vmatmul.mubr.bf16.gmra.mrb[0].mxu0 %v5845
    %v5994 = vpop.f32.mrb[0].mxu0
    %v5995 = vadd.f32 0.0, %v5994
    %v5996 = vpop.f32.mrb[0].mxu0
    %v5997 = vpop.f32.mrb[0].mxu0
    %v5998 = vadd.f32 0.0, %v5997
    %v5999 = vpop.f32.mrb[0].mxu0
    %6000 = vmatprep.mubr.bf16.mxu0 0
    %6001 = vmatmul.mubr.bf16.gmra.mrb[0].mxu0 %v5848
    %v6002 = vpop.f32.mrb[0].mxu0
    %v6003 = vadd.f32 0.0, %v6002
    %v6004 = vpop.f32.mrb[0].mxu0
    %v6005 = vpop.f32.mrb[0].mxu0
    %v6006 = vadd.f32 0.0, %v6005
    %v6007 = vpop.f32.mrb[0].mxu0
    %6008 = vmatprep.mubr.bf16.mxu0 0
    %6009 = vmatmul.mubr.bf16.gmra.mrb[0].mxu0 %v5851
    %v6010 = vpop.f32.mrb[0].mxu0
    %v6011 = vadd.f32 0.0, %v6010
    %v6012 = vpop.f32.mrb[0].mxu0
    %v6013 = vpop.f32.mrb[0].mxu0
    %v6014 = vadd.f32 0.0, %v6013
    %v6015 = vpop.f32.mrb[0].mxu0
    %6016 = vmatprep.mubr.bf16.mxu0 0
    %6017 = vmatmul.mubr.bf16.gmra.mrb[0].mxu0 %v5854
    %v6018 = vpop.f32.mrb[0].mxu0
    %v6019 = vadd.f32 0.0, %v6018
    %v6020 = vpop.f32.mrb[0].mxu0
    %v6021 = vpop.f32.mrb[0].mxu0
    %v6022 = vadd.f32 0.0, %v6021
    %v6023 = vpop.f32.mrb[0].mxu0
    %6024 = vmatprep.mubr.bf16.mxu0 0
    %6025 = vmatmul.mubr.bf16.gmra.mrb[0].mxu0 %v5857
    %v6026 = vpop.f32.mrb[0].mxu0
    %v6027 = vadd.f32 0.0, %v6026
    %v6028 = vpop.f32.mrb[0].mxu0
    %v6029 = vpop.f32.mrb[0].mxu0
    %v6030 = vadd.f32 0.0, %v6029
    %v6031 = vpop.f32.mrb[0].mxu0
    %6032 = vmatprep.mubr.bf16.mxu0 0
    %6033 = vmatmul.mubr.bf16.gmra.mrb[0].mxu0 %v5860
    %v6034 = vpop.f32.mrb[0].mxu0
    %v6035 = vadd.f32 0.0, %v6034
    %v6036 = vpop.f32.mrb[0].mxu0
    %v6037 = vpop.f32.mrb[0].mxu0
    %v6038 = vadd.f32 0.0, %v6037
    %v6039 = vpop.f32.mrb[0].mxu0
    %6040 = vmatprep.mubr.bf16.mxu0 0
    %6041 = vmatmul.mubr.bf16.gmra.mrb[0].mxu0 %v5863
    %v6042 = vpop.f32.mrb[0].mxu0
    %v6043 = vadd.f32 0.0, %v6042
    %v6044 = vpop.f32.mrb[0].mxu0
    %v6045 = vpop.f32.mrb[0].mxu0
    %v6046 = vadd.f32 0.0, %v6045
    %v6047 = vpop.f32.mrb[0].mxu0
    %6048 = vmatprep.mubr.bf16.mxu0 0
    %6049 = vmatmul.mubr.bf16.gmra.mrb[0].mxu0 %v5866
    %v6050 = vpop.f32.mrb[0].mxu0
    %v6051 = vadd.f32 0.0, %v6050
    %v6052 = vpop.f32.mrb[0].mxu0
    %v6053 = vpop.f32.mrb[0].mxu0
    %v6054 = vadd.f32 0.0, %v6053
    %v6055 = vpop.f32.mrb[0].mxu0
    %6056 = vmatprep.mubr.bf16.mxu0 0
    %6057 = vmatmul.mubr.bf16.gmra.mrb[0].mxu0 %v5869
    %v6058 = vpop.f32.mrb[0].mxu0
    %v6059 = vadd.f32 0.0, %v6058
    %v6060 = vpop.f32.mrb[0].mxu0
    %v6061 = vpop.f32.mrb[0].mxu0
    %v6062 = vadd.f32 0.0, %v6061
    %v6063 = vpop.f32.mrb[0].mxu0
    %6064 = vmatprep.mubr.bf16.mxu0 0
    %6065 = vmatmul.mubr.bf16.gmra.mrb[0].mxu0 %v5872
    %v6066 = vpop.f32.mrb[0].mxu0
    %v6067 = vadd.f32 0.0, %v6066
    %v6068 = vpop.f32.mrb[0].mxu0
    %v6069 = vpop.f32.mrb[0].mxu0
    %v6070 = vadd.f32 0.0, %v6069
    %v6071 = vpop.f32.mrb[0].mxu0
    %6072 = vmatprep.mubr.bf16.mxu0 0
    %6073 = vmatmul.mubr.bf16.gmra.mrb[0].mxu0 %v5875
    %v6074 = vpop.f32.mrb[0].mxu0
    %v6075 = vadd.f32 0.0, %v6074
    %v6076 = vpop.f32.mrb[0].mxu0
    %v6077 = vpop.f32.mrb[0].mxu0
    %v6078 = vadd.f32 0.0, %v6077
    %v6079 = vpop.f32.mrb[0].mxu0
    %6080 = vmatprep.mubr.bf16.mxu0 0
    %6081 = vmatmul.mubr.bf16.gmra.mrb[0].mxu0 %v5878
    %v6082 = vpop.f32.mrb[0].mxu0
    %v6083 = vadd.f32 0.0, %v6082
    %v6084 = vpop.f32.mrb[0].mxu0
    %v6085 = vpop.f32.mrb[0].mxu0
    %v6086 = vadd.f32 0.0, %v6085
    %v6087 = vpop.f32.mrb[0].mxu0
    %6088 = vmatprep.mubr.bf16.mxu0 0
    %6089 = vmatmul.mubr.bf16.gmra.mrb[0].mxu0 %v5881
    %v6090 = vpop.f32.mrb[0].mxu0
    %v6091 = vadd.f32 0.0, %v6090
    %v6092 = vpop.f32.mrb[0].mxu0
    %v6093 = vpop.f32.mrb[0].mxu0
    %v6094 = vadd.f32 0.0, %v6093
    %v6095 = vpop.f32.mrb[0].mxu0
    %6096 = vmatprep.mubr.bf16.mxu0 0
    %6097 = vmatmul.mubr.bf16.gmra.mrb[0].mxu0 %v5884
    %v6098 = vpop.f32.mrb[0].mxu0
    %v6099 = vadd.f32 0.0, %v6098
    %v6100 = vpop.f32.mrb[0].mxu0
    %v6101 = vpop.f32.mrb[0].mxu0
    %v6102 = vadd.f32 0.0, %v6101
    %v6103 = vpop.f32.mrb[0].mxu0
    %6104 = vmatprep.mubr.bf16.mxu0 0
    %6105 = vmatmul.mubr.bf16.gmra.mrb[0].mxu0 %v5887
    %v6106 = vpop.f32.mrb[0].mxu0
    %v6107 = vadd.f32 0.0, %v6106
    %v6108 = vpop.f32.mrb[0].mxu0
    %v6109 = vpop.f32.mrb[0].mxu0
    %v6110 = vadd.f32 0.0, %v6109
    %v6111 = vpop.f32.mrb[0].mxu0
    %6112 = vmatprep.mubr.bf16.mxu0 0
    %6113 = vmatmul.mubr.bf16.gmra.mrb[0].mxu0 %v5890
    %v6114 = vpop.f32.mrb[0].mxu0
    %v6115 = vadd.f32 0.0, %v6114
    %v6116 = vpop.f32.mrb[0].mxu0
    %v6117 = vpop.f32.mrb[0].mxu0
    %v6118 = vadd.f32 0.0, %v6117
    %v6119 = vpop.f32.mrb[0].mxu0
    %6120 = vmatprep.mubr.bf16.mxu0 0
    %6121 = vmatmul.mubr.bf16.gmra.mrb[0].mxu0 %v5893
    %v6122 = vpop.f32.mrb[0].mxu0
    %v6123 = vadd.f32 0.0, %v6122
    %v6124 = vpop.f32.mrb[0].mxu0
    %v6125 = vpop.f32.mrb[0].mxu0
    %v6126 = vadd.f32 0.0, %v6125
    %v6127 = vpop.f32.mrb[0].mxu0
    %6128 = vmatprep.mubr.bf16.mxu0 0
    %6129 = vmatmul.mubr.bf16.gmra.mrb[0].mxu0 %v5896
    %v6130 = vpop.f32.mrb[0].mxu0
    %v6131 = vadd.f32 0.0, %v6130
    %v6132 = vpop.f32.mrb[0].mxu0
    %v6133 = vpop.f32.mrb[0].mxu0
    %v6134 = vadd.f32 0.0, %v6133
    %v6135 = vpop.f32.mrb[0].mxu0
    %6136 = vmatprep.mubr.bf16.mxu0 0
    %6137 = vmatmul.mubr.bf16.gmra.mrb[0].mxu0 %v5899
    %v6138 = vpop.f32.mrb[0].mxu0
    %v6139 = vadd.f32 0.0, %v6138
    %v6140 = vpop.f32.mrb[0].mxu0
    %v6141 = vpop.f32.mrb[0].mxu0
    %v6142 = vadd.f32 0.0, %v6141
    %v6143 = vpop.f32.mrb[0].mxu0
    %6144 = vmatprep.mubr.bf16.mxu0 0
    %6145 = vmatmul.mubr.bf16.gmra.mrb[0].mxu0 %v5902
    %v6146 = vpop.f32.mrb[0].mxu0
    %v6147 = vadd.f32 0.0, %v6146
    %v6148 = vpop.f32.mrb[0].mxu0
    %v6149 = vpop.f32.mrb[0].mxu0
    %v6150 = vadd.f32 0.0, %v6149
    %v6151 = vpop.f32.mrb[0].mxu0
    %6152 = vmatprep.mubr.bf16.mxu0 0
    %6153 = vmatmul.mubr.bf16.gmra.mrb[0].mxu0 %v5905
    %v6154 = vpop.f32.mrb[0].mxu0
    %v6155 = vadd.f32 0.0, %v6154
    %v6156 = vpop.f32.mrb[0].mxu0
    %v6157 = vpop.f32.mrb[0].mxu0
    %v6158 = vadd.f32 0.0, %v6157
    %v6159 = vpop.f32.mrb[0].mxu0
    %6160 = vmatprep.mubr.bf16.mxu0 0
    %6161 = vmatmul.mubr.bf16.gmra.mrb[0].mxu0 %v5908
    %v6162 = vpop.f32.mrb[0].mxu0
    %v6163 = vadd.f32 0.0, %v6162
    %v6164 = vpop.f32.mrb[0].mxu0
    %v6165 = vpop.f32.mrb[0].mxu0
    %v6166 = vadd.f32 0.0, %v6165
    %v6167 = vpop.f32.mrb[0].mxu0
    %6168 = vmatprep.mubr.bf16.mxu0 0
    %6169 = vmatmul.mubr.bf16.gmra.mrb[0].mxu0 %v5911
    %v6170 = vpop.f32.mrb[0].mxu0
    %v6171 = vadd.f32 0.0, %v6170
    %v6172 = vpop.f32.mrb[0].mxu0
    %v6173 = vpop.f32.mrb[0].mxu0
    %v6174 = vadd.f32 0.0, %v6173
    %v6175 = vpop.f32.mrb[0].mxu0
    %6176 = vmatprep.mubr.bf16.mxu0 0
    %6177 = vmatmul.mubr.bf16.gmra.mrb[0].mxu0 %v5914
    %v6178 = vpop.f32.mrb[0].mxu0
    %v6179 = vadd.f32 0.0, %v6178
    %v6180 = vpop.f32.mrb[0].mxu0
    %v6181 = vpop.f32.mrb[0].mxu0
    %v6182 = vadd.f32 0.0, %v6181
    %v6183 = vpop.f32.mrb[0].mxu0
    %6184 = vmatprep.mubr.bf16.mxu0 0
    %6185 = vmatmul.mubr.bf16.gmra.mrb[0].mxu0 %v5917
    %v6186 = vpop.f32.mrb[0].mxu0
    %v6187 = vadd.f32 0.0, %v6186
    %v6188 = vpop.f32.mrb[0].mxu0
    %v6189 = vpop.f32.mrb[0].mxu0
    %v6190 = vadd.f32 0.0, %v6189
    %v6191 = vpop.f32.mrb[0].mxu0
    %6192 = vmatprep.mubr.bf16.mxu0 0
    %6193 = vmatmul.mubr.bf16.gmra.mrb[0].mxu0 %v5920
    %v6194 = vpop.f32.mrb[0].mxu0
    %v6195 = vadd.f32 0.0, %v6194
    %v6196 = vpop.f32.mrb[0].mxu0
    %v6197 = vpop.f32.mrb[0].mxu0
    %v6198 = vadd.f32 0.0, %v6197
    %v6199 = vpop.f32.mrb[0].mxu0
    %6200 = vmatprep.mubr.bf16.mxu0 0
    %6201 = vmatmul.mubr.bf16.gmra.mrb[0].mxu0 %v5923
    %v6202 = vpop.f32.mrb[0].mxu0
    %v6203 = vadd.f32 0.0, %v6202
    %v6204 = vpop.f32.mrb[0].mxu0
    %v6205 = vpop.f32.mrb[0].mxu0
    %v6206 = vadd.f32 0.0, %v6205
    %v6207 = vpop.f32.mrb[0].mxu0
    %6208 = vmatprep.mubr.bf16.mxu0 0
    %6209 = vmatmul.mubr.bf16.gmra.mrb[0].mxu0 %v5926
    %v6210 = vpop.f32.mrb[0].mxu0
    %v6211 = vadd.f32 0.0, %v6210
    %v6212 = vpop.f32.mrb[0].mxu0
    %v6213 = vpop.f32.mrb[0].mxu0
    %v6214 = vadd.f32 0.0, %v6213
    %v6215 = vpop.f32.mrb[0].mxu0
    %6216 = vdwg.mxu0
    %v6217 = vadd.f32 %v5663, %v5963
    %v6218 = vadd.f32 %v5664, %v5966
    %v6219 = vadd.f32 %v5665, %v5971
    %v6220 = vadd.f32 %v5666, %v5974
    %v6221 = vadd.f32 %v5667, %v5979
    %v6222 = vadd.f32 %v5668, %v5982
    %v6223 = vadd.f32 %v5669, %v5987
    %v6224 = vadd.f32 %v5670, %v5990
    %v6225 = vadd.f32 %v5671, %v5995
    %v6226 = vadd.f32 %v5672, %v5998
    %v6227 = vadd.f32 %v5673, %v6003
    %v6228 = vadd.f32 %v5674, %v6006
    %v6229 = vadd.f32 %v5675, %v6011
    %v6230 = vadd.f32 %v5676, %v6014
    %v6231 = vadd.f32 %v5677, %v6019
    %v6232 = vadd.f32 %v5678, %v6022
    %v6233 = vadd.f32 %v5679, %v6027
    %v6234 = vadd.f32 %v5680, %v6030
    %v6235 = vadd.f32 %v5681, %v6035
    %v6236 = vadd.f32 %v5682, %v6038
    %v6237 = vadd.f32 %v5683, %v6043
    %v6238 = vadd.f32 %v5684, %v6046
    %v6239 = vadd.f32 %v5685, %v6051
    %v6240 = vadd.f32 %v5686, %v6054
    %v6241 = vadd.f32 %v5687, %v6059
    %v6242 = vadd.f32 %v5688, %v6062
    %v6243 = vadd.f32 %v5689, %v6067
    %v6244 = vadd.f32 %v5690, %v6070
    %v6245 = vadd.f32 %v5691, %v6075
    %v6246 = vadd.f32 %v5692, %v6078
    %v6247 = vadd.f32 %v5693, %v6083
    %v6248 = vadd.f32 %v5694, %v6086
    %v6249 = vadd.f32 %v5695, %v6091
    %v6250 = vadd.f32 %v5696, %v6094
    %v6251 = vadd.f32 %v5697, %v6099
    %v6252 = vadd.f32 %v5698, %v6102
    %v6253 = vadd.f32 %v5699, %v6107
    %v6254 = vadd.f32 %v5700, %v6110
    %v6255 = vadd.f32 %v5701, %v6115
    %v6256 = vadd.f32 %v5702, %v6118
    %v6257 = vadd.f32 %v5703, %v6123
    %v6258 = vadd.f32 %v5704, %v6126
    %v6259 = vadd.f32 %v5705, %v6131
    %v6260 = vadd.f32 %v5706, %v6134
    %v6261 = vadd.f32 %v5707, %v6139
    %v6262 = vadd.f32 %v5708, %v6142
    %v6263 = vadd.f32 %v5709, %v6147
    %v6264 = vadd.f32 %v5710, %v6150
    %v6265 = vadd.f32 %v5711, %v6155
    %v6266 = vadd.f32 %v5712, %v6158
    %v6267 = vadd.f32 %v5713, %v6163
    %v6268 = vadd.f32 %v5714, %v6166
    %v6269 = vadd.f32 %v5715, %v6171
    %v6270 = vadd.f32 %v5716, %v6174
    %v6271 = vadd.f32 %v5717, %v6179
    %v6272 = vadd.f32 %v5718, %v6182
    %v6273 = vadd.f32 %v5719, %v6187
    %v6274 = vadd.f32 %v5720, %v6190
    %v6275 = vadd.f32 %v5721, %v6195
    %v6276 = vadd.f32 %v5722, %v6198
    %v6277 = vadd.f32 %v5723, %v6203
    %v6278 = vadd.f32 %v5724, %v6206
    %v6279 = vadd.f32 %v5725, %v6211
    %v6280 = vadd.f32 %v5726, %v6214
    %v6281 = vld [vmem:[%s5] sm:$0x1]
    %v6282 = vld [vmem:[%s6] sm:$0x1]
    %v6283 = vld [vmem:[%s7] sm:$0xf]
    %v6284 = vld [vmem:[%s7 + $0x4] sm:$0xf]
    %v6285 = vld [vmem:[%s8] sm:$0x1]
    %v6286 = vld [vmem:[%s9] sm:$0x1]
    %v6287 = vsel %vm581, %v6217, 0.0
    %v6288 = vsel %vm581, %v6218, 0.0
    %v6289 = vadd.f32 %v6287, %v6288
    %v6290 = vsel %vm581, %v6219, 0.0
    %v6291 = vadd.f32 %v6289, %v6290
    %v6292 = vsel %vm581, %v6220, 0.0
    %v6293 = vadd.f32 %v6291, %v6292
    %v6294 = vsel %vm581, %v6221, 0.0
    %v6295 = vadd.f32 %v6293, %v6294
    %v6296 = vsel %vm581, %v6222, 0.0
    %v6297 = vadd.f32 %v6295, %v6296
    %v6298 = vsel %vm581, %v6223, 0.0
    %v6299 = vadd.f32 %v6297, %v6298
    %v6300 = vsel %vm581, %v6224, 0.0
    %v6301 = vadd.f32 %v6299, %v6300
    %v6302 = vsel %vm581, %v6225, 0.0
    %v6303 = vadd.f32 %v6301, %v6302
    %v6304 = vsel %vm581, %v6226, 0.0
    %v6305 = vadd.f32 %v6303, %v6304
    %v6306 = vsel %vm581, %v6227, 0.0
    %v6307 = vadd.f32 %v6305, %v6306
    %v6308 = vsel %vm581, %v6228, 0.0
    %v6309 = vadd.f32 %v6307, %v6308
    %v6310 = vsel %vm581, %v6229, 0.0
    %v6311 = vadd.f32 %v6309, %v6310
    %v6312 = vsel %vm581, %v6230, 0.0
    %v6313 = vadd.f32 %v6311, %v6312
    %v6314 = vsel %vm581, %v6231, 0.0
    %v6315 = vadd.f32 %v6313, %v6314
    %v6316 = vsel %vm581, %v6232, 0.0
    %v6317 = vadd.f32 %v6315, %v6316
    %v6318 = vsel %vm581, %v6233, 0.0
    %v6319 = vadd.f32 %v6317, %v6318
    %v6320 = vsel %vm581, %v6234, 0.0
    %v6321 = vadd.f32 %v6319, %v6320
    %v6322 = vsel %vm581, %v6235, 0.0
    %v6323 = vadd.f32 %v6321, %v6322
    %v6324 = vsel %vm581, %v6236, 0.0
    %v6325 = vadd.f32 %v6323, %v6324
    %v6326 = vsel %vm581, %v6237, 0.0
    %v6327 = vadd.f32 %v6325, %v6326
    %v6328 = vsel %vm581, %v6238, 0.0
    %v6329 = vadd.f32 %v6327, %v6328
    %v6330 = vsel %vm581, %v6239, 0.0
    %v6331 = vadd.f32 %v6329, %v6330
    %v6332 = vsel %vm581, %v6240, 0.0
    %v6333 = vadd.f32 %v6331, %v6332
    %v6334 = vsel %vm581, %v6241, 0.0
    %v6335 = vadd.f32 %v6333, %v6334
    %v6336 = vsel %vm581, %v6242, 0.0
    %v6337 = vadd.f32 %v6335, %v6336
    %v6338 = vsel %vm581, %v6243, 0.0
    %v6339 = vadd.f32 %v6337, %v6338
    %v6340 = vsel %vm581, %v6244, 0.0
    %v6341 = vadd.f32 %v6339, %v6340
    %v6342 = vsel %vm581, %v6245, 0.0
    %v6343 = vadd.f32 %v6341, %v6342
    %v6344 = vsel %vm581, %v6246, 0.0
    %v6345 = vadd.f32 %v6343, %v6344
    %v6346 = vsel %vm581, %v6247, 0.0
    %v6347 = vadd.f32 %v6345, %v6346
    %v6348 = vsel %vm581, %v6248, 0.0
    %v6349 = vadd.f32 %v6347, %v6348
    %v6350 = vsel %vm581, %v6249, 0.0
    %v6351 = vadd.f32 %v6349, %v6350
    %v6352 = vsel %vm581, %v6250, 0.0
    %v6353 = vadd.f32 %v6351, %v6352
    %v6354 = vsel %vm581, %v6251, 0.0
    %v6355 = vadd.f32 %v6353, %v6354
    %v6356 = vsel %vm581, %v6252, 0.0
    %v6357 = vadd.f32 %v6355, %v6356
    %v6358 = vsel %vm581, %v6253, 0.0
    %v6359 = vadd.f32 %v6357, %v6358
    %v6360 = vsel %vm581, %v6254, 0.0
    %v6361 = vadd.f32 %v6359, %v6360
    %v6362 = vsel %vm581, %v6255, 0.0
    %v6363 = vadd.f32 %v6361, %v6362
    %v6364 = vsel %vm581, %v6256, 0.0
    %v6365 = vadd.f32 %v6363, %v6364
    %v6366 = vsel %vm581, %v6257, 0.0
    %v6367 = vadd.f32 %v6365, %v6366
    %v6368 = vsel %vm581, %v6258, 0.0
    %v6369 = vadd.f32 %v6367, %v6368
    %v6370 = vsel %vm581, %v6259, 0.0
    %v6371 = vadd.f32 %v6369, %v6370
    %v6372 = vsel %vm581, %v6260, 0.0
    %v6373 = vadd.f32 %v6371, %v6372
    %v6374 = vsel %vm581, %v6261, 0.0
    %v6375 = vadd.f32 %v6373, %v6374
    %v6376 = vsel %vm581, %v6262, 0.0
    %v6377 = vadd.f32 %v6375, %v6376
    %v6378 = vsel %vm581, %v6263, 0.0
    %v6379 = vadd.f32 %v6377, %v6378
    %v6380 = vsel %vm581, %v6264, 0.0
    %v6381 = vadd.f32 %v6379, %v6380
    %v6382 = vsel %vm581, %v6265, 0.0
    %v6383 = vadd.f32 %v6381, %v6382
    %v6384 = vsel %vm581, %v6266, 0.0
    %v6385 = vadd.f32 %v6383, %v6384
    %v6386 = vsel %vm581, %v6267, 0.0
    %v6387 = vadd.f32 %v6385, %v6386
    %v6388 = vsel %vm581, %v6268, 0.0
    %v6389 = vadd.f32 %v6387, %v6388
    %v6390 = vsel %vm581, %v6269, 0.0
    %v6391 = vadd.f32 %v6389, %v6390
    %v6392 = vsel %vm581, %v6270, 0.0
    %v6393 = vadd.f32 %v6391, %v6392
    %v6394 = vsel %vm581, %v6271, 0.0
    %v6395 = vadd.f32 %v6393, %v6394
    %v6396 = vsel %vm581, %v6272, 0.0
    %v6397 = vadd.f32 %v6395, %v6396
    %v6398 = vsel %vm581, %v6273, 0.0
    %v6399 = vadd.f32 %v6397, %v6398
    %v6400 = vsel %vm581, %v6274, 0.0
    %v6401 = vadd.f32 %v6399, %v6400
    %v6402 = vsel %vm581, %v6275, 0.0
    %v6403 = vadd.f32 %v6401, %v6402
    %v6404 = vsel %vm581, %v6276, 0.0
    %v6405 = vadd.f32 %v6403, %v6404
    %v6406 = vsel %vm581, %v6277, 0.0
    %v6407 = vadd.f32 %v6405, %v6406
    %v6408 = vsel %vm581, %v6278, 0.0
    %v6409 = vadd.f32 %v6407, %v6408
    %v6410 = vsel %vm581, %v6279, 0.0
    %v6411 = vadd.f32 %v6409, %v6410
    %v6412 = vsel %vm581, %v6280, 0.0
    %v6413 = vadd.f32 %v6411, %v6412
    %v6414 = vrot.slane %v6413, 4
    %v6415 = vadd.f32 %v6413, %v6414
    %v6416 = vrot.slane %v6415, 2
    %v6417 = vadd.f32 %v6415, %v6416
    %v6418 = vrot.slane %v6417, 1
    %v6419 = vadd.f32 %v6417, %v6418
    %v6420 = vmul.f32 %v6419, %v715
    %v6421 = vsub.f32 %v6217, %v6420
    %v6422 = vsub.f32 %v6218, %v6420
    %v6423 = vsub.f32 %v6219, %v6420
    %v6424 = vsub.f32 %v6220, %v6420
    %v6425 = vsub.f32 %v6221, %v6420
    %v6426 = vsub.f32 %v6222, %v6420
    %v6427 = vsub.f32 %v6223, %v6420
    %v6428 = vsub.f32 %v6224, %v6420
    %v6429 = vsub.f32 %v6225, %v6420
    %v6430 = vsub.f32 %v6226, %v6420
    %v6431 = vsub.f32 %v6227, %v6420
    %v6432 = vsub.f32 %v6228, %v6420
    %v6433 = vsub.f32 %v6229, %v6420
    %v6434 = vsub.f32 %v6230, %v6420
    %v6435 = vsub.f32 %v6231, %v6420
    %v6436 = vsub.f32 %v6232, %v6420
    %v6437 = vsub.f32 %v6233, %v6420
    %v6438 = vsub.f32 %v6234, %v6420
    %v6439 = vsub.f32 %v6235, %v6420
    %v6440 = vsub.f32 %v6236, %v6420
    %v6441 = vsub.f32 %v6237, %v6420
    %v6442 = vsub.f32 %v6238, %v6420
    %v6443 = vsub.f32 %v6239, %v6420
    %v6444 = vsub.f32 %v6240, %v6420
    %v6445 = vsub.f32 %v6241, %v6420
    %v6446 = vsub.f32 %v6242, %v6420
    %v6447 = vsub.f32 %v6243, %v6420
    %v6448 = vsub.f32 %v6244, %v6420
    %v6449 = vsub.f32 %v6245, %v6420
    %v6450 = vsub.f32 %v6246, %v6420
    %v6451 = vsub.f32 %v6247, %v6420
    %v6452 = vsub.f32 %v6248, %v6420
    %v6453 = vsub.f32 %v6249, %v6420
    %v6454 = vsub.f32 %v6250, %v6420
    %v6455 = vsub.f32 %v6251, %v6420
    %v6456 = vsub.f32 %v6252, %v6420
    %v6457 = vsub.f32 %v6253, %v6420
    %v6458 = vsub.f32 %v6254, %v6420
    %v6459 = vsub.f32 %v6255, %v6420
    %v6460 = vsub.f32 %v6256, %v6420
    %v6461 = vsub.f32 %v6257, %v6420
    %v6462 = vsub.f32 %v6258, %v6420
    %v6463 = vsub.f32 %v6259, %v6420
    %v6464 = vsub.f32 %v6260, %v6420
    %v6465 = vsub.f32 %v6261, %v6420
    %v6466 = vsub.f32 %v6262, %v6420
    %v6467 = vsub.f32 %v6263, %v6420
    %v6468 = vsub.f32 %v6264, %v6420
    %v6469 = vsub.f32 %v6265, %v6420
    %v6470 = vsub.f32 %v6266, %v6420
    %v6471 = vsub.f32 %v6267, %v6420
    %v6472 = vsub.f32 %v6268, %v6420
    %v6473 = vsub.f32 %v6269, %v6420
    %v6474 = vsub.f32 %v6270, %v6420
    %v6475 = vsub.f32 %v6271, %v6420
    %v6476 = vsub.f32 %v6272, %v6420
    %v6477 = vsub.f32 %v6273, %v6420
    %v6478 = vsub.f32 %v6274, %v6420
    %v6479 = vsub.f32 %v6275, %v6420
    %v6480 = vsub.f32 %v6276, %v6420
    %v6481 = vsub.f32 %v6277, %v6420
    %v6482 = vsub.f32 %v6278, %v6420
    %v6483 = vsub.f32 %v6279, %v6420
    %v6484 = vsub.f32 %v6280, %v6420
    %v6485 = vmul.f32 %v6421, %v6421
    %v6486 = vmul.f32 %v6422, %v6422
    %v6487 = vmul.f32 %v6423, %v6423
    %v6488 = vmul.f32 %v6424, %v6424
    %v6489 = vmul.f32 %v6425, %v6425
    %v6490 = vmul.f32 %v6426, %v6426
    %v6491 = vmul.f32 %v6427, %v6427
    %v6492 = vmul.f32 %v6428, %v6428
    %v6493 = vmul.f32 %v6429, %v6429
    %v6494 = vmul.f32 %v6430, %v6430
    %v6495 = vmul.f32 %v6431, %v6431
    %v6496 = vmul.f32 %v6432, %v6432
    %v6497 = vmul.f32 %v6433, %v6433
    %v6498 = vmul.f32 %v6434, %v6434
    %v6499 = vmul.f32 %v6435, %v6435
    %v6500 = vmul.f32 %v6436, %v6436
    %v6501 = vmul.f32 %v6437, %v6437
    %v6502 = vmul.f32 %v6438, %v6438
    %v6503 = vmul.f32 %v6439, %v6439
    %v6504 = vmul.f32 %v6440, %v6440
    %v6505 = vmul.f32 %v6441, %v6441
    %v6506 = vmul.f32 %v6442, %v6442
    %v6507 = vmul.f32 %v6443, %v6443
    %v6508 = vmul.f32 %v6444, %v6444
    %v6509 = vmul.f32 %v6445, %v6445
    %v6510 = vmul.f32 %v6446, %v6446
    %v6511 = vmul.f32 %v6447, %v6447
    %v6512 = vmul.f32 %v6448, %v6448
    %v6513 = vmul.f32 %v6449, %v6449
    %v6514 = vmul.f32 %v6450, %v6450
    %v6515 = vmul.f32 %v6451, %v6451
    %v6516 = vmul.f32 %v6452, %v6452
    %v6517 = vmul.f32 %v6453, %v6453
    %v6518 = vmul.f32 %v6454, %v6454
    %v6519 = vmul.f32 %v6455, %v6455
    %v6520 = vmul.f32 %v6456, %v6456
    %v6521 = vmul.f32 %v6457, %v6457
    %v6522 = vmul.f32 %v6458, %v6458
    %v6523 = vmul.f32 %v6459, %v6459
    %v6524 = vmul.f32 %v6460, %v6460
    %v6525 = vmul.f32 %v6461, %v6461
    %v6526 = vmul.f32 %v6462, %v6462
    %v6527 = vmul.f32 %v6463, %v6463
    %v6528 = vmul.f32 %v6464, %v6464
    %v6529 = vmul.f32 %v6465, %v6465
    %v6530 = vmul.f32 %v6466, %v6466
    %v6531 = vmul.f32 %v6467, %v6467
    %v6532 = vmul.f32 %v6468, %v6468
    %v6533 = vmul.f32 %v6469, %v6469
    %v6534 = vmul.f32 %v6470, %v6470
    %v6535 = vmul.f32 %v6471, %v6471
    %v6536 = vmul.f32 %v6472, %v6472
    %v6537 = vmul.f32 %v6473, %v6473
    %v6538 = vmul.f32 %v6474, %v6474
    %v6539 = vmul.f32 %v6475, %v6475
    %v6540 = vmul.f32 %v6476, %v6476
    %v6541 = vmul.f32 %v6477, %v6477
    %v6542 = vmul.f32 %v6478, %v6478
    %v6543 = vmul.f32 %v6479, %v6479
    %v6544 = vmul.f32 %v6480, %v6480
    %v6545 = vmul.f32 %v6481, %v6481
    %v6546 = vmul.f32 %v6482, %v6482
    %v6547 = vmul.f32 %v6483, %v6483
    %v6548 = vmul.f32 %v6484, %v6484
    %v6549 = vsel %vm581, %v6485, 0.0
    %v6550 = vsel %vm581, %v6486, 0.0
    %v6551 = vadd.f32 %v6549, %v6550
    %v6552 = vsel %vm581, %v6487, 0.0
    %v6553 = vadd.f32 %v6551, %v6552
    %v6554 = vsel %vm581, %v6488, 0.0
    %v6555 = vadd.f32 %v6553, %v6554
    %v6556 = vsel %vm581, %v6489, 0.0
    %v6557 = vadd.f32 %v6555, %v6556
    %v6558 = vsel %vm581, %v6490, 0.0
    %v6559 = vadd.f32 %v6557, %v6558
    %v6560 = vsel %vm581, %v6491, 0.0
    %v6561 = vadd.f32 %v6559, %v6560
    %v6562 = vsel %vm581, %v6492, 0.0
    %v6563 = vadd.f32 %v6561, %v6562
    %v6564 = vsel %vm581, %v6493, 0.0
    %v6565 = vadd.f32 %v6563, %v6564
    %v6566 = vsel %vm581, %v6494, 0.0
    %v6567 = vadd.f32 %v6565, %v6566
    %v6568 = vsel %vm581, %v6495, 0.0
    %v6569 = vadd.f32 %v6567, %v6568
    %v6570 = vsel %vm581, %v6496, 0.0
    %v6571 = vadd.f32 %v6569, %v6570
    %v6572 = vsel %vm581, %v6497, 0.0
    %v6573 = vadd.f32 %v6571, %v6572
    %v6574 = vsel %vm581, %v6498, 0.0
    %v6575 = vadd.f32 %v6573, %v6574
    %v6576 = vsel %vm581, %v6499, 0.0
    %v6577 = vadd.f32 %v6575, %v6576
    %v6578 = vsel %vm581, %v6500, 0.0
    %v6579 = vadd.f32 %v6577, %v6578
    %v6580 = vsel %vm581, %v6501, 0.0
    %v6581 = vadd.f32 %v6579, %v6580
    %v6582 = vsel %vm581, %v6502, 0.0
    %v6583 = vadd.f32 %v6581, %v6582
    %v6584 = vsel %vm581, %v6503, 0.0
    %v6585 = vadd.f32 %v6583, %v6584
    %v6586 = vsel %vm581, %v6504, 0.0
    %v6587 = vadd.f32 %v6585, %v6586
    %v6588 = vsel %vm581, %v6505, 0.0
    %v6589 = vadd.f32 %v6587, %v6588
    %v6590 = vsel %vm581, %v6506, 0.0
    %v6591 = vadd.f32 %v6589, %v6590
    %v6592 = vsel %vm581, %v6507, 0.0
    %v6593 = vadd.f32 %v6591, %v6592
    %v6594 = vsel %vm581, %v6508, 0.0
    %v6595 = vadd.f32 %v6593, %v6594
    %v6596 = vsel %vm581, %v6509, 0.0
    %v6597 = vadd.f32 %v6595, %v6596
    %v6598 = vsel %vm581, %v6510, 0.0
    %v6599 = vadd.f32 %v6597, %v6598
    %v6600 = vsel %vm581, %v6511, 0.0
    %v6601 = vadd.f32 %v6599, %v6600
    %v6602 = vsel %vm581, %v6512, 0.0
    %v6603 = vadd.f32 %v6601, %v6602
    %v6604 = vsel %vm581, %v6513, 0.0
    %v6605 = vadd.f32 %v6603, %v6604
    %v6606 = vsel %vm581, %v6514, 0.0
    %v6607 = vadd.f32 %v6605, %v6606
    %v6608 = vsel %vm581, %v6515, 0.0
    %v6609 = vadd.f32 %v6607, %v6608
    %v6610 = vsel %vm581, %v6516, 0.0
    %v6611 = vadd.f32 %v6609, %v6610
    %v6612 = vsel %vm581, %v6517, 0.0
    %v6613 = vadd.f32 %v6611, %v6612
    %v6614 = vsel %vm581, %v6518, 0.0
    %v6615 = vadd.f32 %v6613, %v6614
    %v6616 = vsel %vm581, %v6519, 0.0
    %v6617 = vadd.f32 %v6615, %v6616
    %v6618 = vsel %vm581, %v6520, 0.0
    %v6619 = vadd.f32 %v6617, %v6618
    %v6620 = vsel %vm581, %v6521, 0.0
    %v6621 = vadd.f32 %v6619, %v6620
    %v6622 = vsel %vm581, %v6522, 0.0
    %v6623 = vadd.f32 %v6621, %v6622
    %v6624 = vsel %vm581, %v6523, 0.0
    %v6625 = vadd.f32 %v6623, %v6624
    %v6626 = vsel %vm581, %v6524, 0.0
    %v6627 = vadd.f32 %v6625, %v6626
    %v6628 = vsel %vm581, %v6525, 0.0
    %v6629 = vadd.f32 %v6627, %v6628
    %v6630 = vsel %vm581, %v6526, 0.0
    %v6631 = vadd.f32 %v6629, %v6630
    %v6632 = vsel %vm581, %v6527, 0.0
    %v6633 = vadd.f32 %v6631, %v6632
    %v6634 = vsel %vm581, %v6528, 0.0
    %v6635 = vadd.f32 %v6633, %v6634
    %v6636 = vsel %vm581, %v6529, 0.0
    %v6637 = vadd.f32 %v6635, %v6636
    %v6638 = vsel %vm581, %v6530, 0.0
    %v6639 = vadd.f32 %v6637, %v6638
    %v6640 = vsel %vm581, %v6531, 0.0
    %v6641 = vadd.f32 %v6639, %v6640
    %v6642 = vsel %vm581, %v6532, 0.0
    %v6643 = vadd.f32 %v6641, %v6642
    %v6644 = vsel %vm581, %v6533, 0.0
    %v6645 = vadd.f32 %v6643, %v6644
    %v6646 = vsel %vm581, %v6534, 0.0
    %v6647 = vadd.f32 %v6645, %v6646
    %v6648 = vsel %vm581, %v6535, 0.0
    %v6649 = vadd.f32 %v6647, %v6648
    %v6650 = vsel %vm581, %v6536, 0.0
    %v6651 = vadd.f32 %v6649, %v6650
    %v6652 = vsel %vm581, %v6537, 0.0
    %v6653 = vadd.f32 %v6651, %v6652
    %v6654 = vsel %vm581, %v6538, 0.0
    %v6655 = vadd.f32 %v6653, %v6654
    %v6656 = vsel %vm581, %v6539, 0.0
    %v6657 = vadd.f32 %v6655, %v6656
    %v6658 = vsel %vm581, %v6540, 0.0
    %v6659 = vadd.f32 %v6657, %v6658
    %v6660 = vsel %vm581, %v6541, 0.0
    %v6661 = vadd.f32 %v6659, %v6660
    %v6662 = vsel %vm581, %v6542, 0.0
    %v6663 = vadd.f32 %v6661, %v6662
    %v6664 = vsel %vm581, %v6543, 0.0
    %v6665 = vadd.f32 %v6663, %v6664
    %v6666 = vsel %vm581, %v6544, 0.0
    %v6667 = vadd.f32 %v6665, %v6666
    %v6668 = vsel %vm581, %v6545, 0.0
    %v6669 = vadd.f32 %v6667, %v6668
    %v6670 = vsel %vm581, %v6546, 0.0
    %v6671 = vadd.f32 %v6669, %v6670
    %v6672 = vsel %vm581, %v6547, 0.0
    %v6673 = vadd.f32 %v6671, %v6672
    %v6674 = vsel %vm581, %v6548, 0.0
    %v6675 = vadd.f32 %v6673, %v6674
    %v6676 = vrot.slane %v6675, 4
    %v6677 = vadd.f32 %v6675, %v6676
    %v6678 = vrot.slane %v6677, 2
    %v6679 = vadd.f32 %v6677, %v6678
    %v6680 = vrot.slane %v6679, 1
    %v6681 = vadd.f32 %v6679, %v6680
    %v6682 = vmul.f32 %v6681, %v715
    %v6683 = vadd.f32 %v6682, 1e-05
    %v6684 = vrsqrt.pop %v6683
    %v6685 = vmul.f32 %v6421, %v6684
    %v6686 = vmul.f32 %v6422, %v6684
    %v6687 = vmul.f32 %v6423, %v6684
    %v6688 = vmul.f32 %v6424, %v6684
    %v6689 = vmul.f32 %v6425, %v6684
    %v6690 = vmul.f32 %v6426, %v6684
    %v6691 = vmul.f32 %v6427, %v6684
    %v6692 = vmul.f32 %v6428, %v6684
    %v6693 = vmul.f32 %v6429, %v6684
    %v6694 = vmul.f32 %v6430, %v6684
    %v6695 = vmul.f32 %v6431, %v6684
    %v6696 = vmul.f32 %v6432, %v6684
    %v6697 = vmul.f32 %v6433, %v6684
    %v6698 = vmul.f32 %v6434, %v6684
    %v6699 = vmul.f32 %v6435, %v6684
    %v6700 = vmul.f32 %v6436, %v6684
    %v6701 = vmul.f32 %v6437, %v6684
    %v6702 = vmul.f32 %v6438, %v6684
    %v6703 = vmul.f32 %v6439, %v6684
    %v6704 = vmul.f32 %v6440, %v6684
    %v6705 = vmul.f32 %v6441, %v6684
    %v6706 = vmul.f32 %v6442, %v6684
    %v6707 = vmul.f32 %v6443, %v6684
    %v6708 = vmul.f32 %v6444, %v6684
    %v6709 = vmul.f32 %v6445, %v6684
    %v6710 = vmul.f32 %v6446, %v6684
    %v6711 = vmul.f32 %v6447, %v6684
    %v6712 = vmul.f32 %v6448, %v6684
    %v6713 = vmul.f32 %v6449, %v6684
    %v6714 = vmul.f32 %v6450, %v6684
    %v6715 = vmul.f32 %v6451, %v6684
    %v6716 = vmul.f32 %v6452, %v6684
    %v6717 = vmul.f32 %v6453, %v6684
    %v6718 = vmul.f32 %v6454, %v6684
    %v6719 = vmul.f32 %v6455, %v6684
    %v6720 = vmul.f32 %v6456, %v6684
    %v6721 = vmul.f32 %v6457, %v6684
    %v6722 = vmul.f32 %v6458, %v6684
    %v6723 = vmul.f32 %v6459, %v6684
    %v6724 = vmul.f32 %v6460, %v6684
    %v6725 = vmul.f32 %v6461, %v6684
    %v6726 = vmul.f32 %v6462, %v6684
    %v6727 = vmul.f32 %v6463, %v6684
    %v6728 = vmul.f32 %v6464, %v6684
    %v6729 = vmul.f32 %v6465, %v6684
    %v6730 = vmul.f32 %v6466, %v6684
    %v6731 = vmul.f32 %v6467, %v6684
    %v6732 = vmul.f32 %v6468, %v6684
    %v6733 = vmul.f32 %v6469, %v6684
    %v6734 = vmul.f32 %v6470, %v6684
    %v6735 = vmul.f32 %v6471, %v6684
    %v6736 = vmul.f32 %v6472, %v6684
    %v6737 = vmul.f32 %v6473, %v6684
    %v6738 = vmul.f32 %v6474, %v6684
    %v6739 = vmul.f32 %v6475, %v6684
    %v6740 = vmul.f32 %v6476, %v6684
    %v6741 = vmul.f32 %v6477, %v6684
    %v6742 = vmul.f32 %v6478, %v6684
    %v6743 = vmul.f32 %v6479, %v6684
    %v6744 = vmul.f32 %v6480, %v6684
    %v6745 = vmul.f32 %v6481, %v6684
    %v6746 = vmul.f32 %v6482, %v6684
    %v6747 = vmul.f32 %v6483, %v6684
    %v6748 = vmul.f32 %v6484, %v6684
    %v6750 = vlaneseq
    %v6751 = vshrl.u32 %v6750, 7
    %v6752 = vsub.s32 0, %v6751
    %v6753 = vrot.slane %v6281, %v6752
    %v6755 = vmul.f32 %v6685, %v6753
    %v6756 = vmul.f32 %v6686, %v6753
    %v6757 = vmul.f32 %v6687, %v6753
    %v6758 = vmul.f32 %v6688, %v6753
    %v6759 = vmul.f32 %v6689, %v6753
    %v6760 = vmul.f32 %v6690, %v6753
    %v6761 = vmul.f32 %v6691, %v6753
    %v6762 = vmul.f32 %v6692, %v6753
    %v6763 = vmul.f32 %v6693, %v6753
    %v6764 = vmul.f32 %v6694, %v6753
    %v6765 = vmul.f32 %v6695, %v6753
    %v6766 = vmul.f32 %v6696, %v6753
    %v6767 = vmul.f32 %v6697, %v6753
    %v6768 = vmul.f32 %v6698, %v6753
    %v6769 = vmul.f32 %v6699, %v6753
    %v6770 = vmul.f32 %v6700, %v6753
    %v6771 = vmul.f32 %v6701, %v6753
    %v6772 = vmul.f32 %v6702, %v6753
    %v6773 = vmul.f32 %v6703, %v6753
    %v6774 = vmul.f32 %v6704, %v6753
    %v6775 = vmul.f32 %v6705, %v6753
    %v6776 = vmul.f32 %v6706, %v6753
    %v6777 = vmul.f32 %v6707, %v6753
    %v6778 = vmul.f32 %v6708, %v6753
    %v6779 = vmul.f32 %v6709, %v6753
    %v6780 = vmul.f32 %v6710, %v6753
    %v6781 = vmul.f32 %v6711, %v6753
    %v6782 = vmul.f32 %v6712, %v6753
    %v6783 = vmul.f32 %v6713, %v6753
    %v6784 = vmul.f32 %v6714, %v6753
    %v6785 = vmul.f32 %v6715, %v6753
    %v6786 = vmul.f32 %v6716, %v6753
    %v6787 = vmul.f32 %v6717, %v6753
    %v6788 = vmul.f32 %v6718, %v6753
    %v6789 = vmul.f32 %v6719, %v6753
    %v6790 = vmul.f32 %v6720, %v6753
    %v6791 = vmul.f32 %v6721, %v6753
    %v6792 = vmul.f32 %v6722, %v6753
    %v6793 = vmul.f32 %v6723, %v6753
    %v6794 = vmul.f32 %v6724, %v6753
    %v6795 = vmul.f32 %v6725, %v6753
    %v6796 = vmul.f32 %v6726, %v6753
    %v6797 = vmul.f32 %v6727, %v6753
    %v6798 = vmul.f32 %v6728, %v6753
    %v6799 = vmul.f32 %v6729, %v6753
    %v6800 = vmul.f32 %v6730, %v6753
    %v6801 = vmul.f32 %v6731, %v6753
    %v6802 = vmul.f32 %v6732, %v6753
    %v6803 = vmul.f32 %v6733, %v6753
    %v6804 = vmul.f32 %v6734, %v6753
    %v6805 = vmul.f32 %v6735, %v6753
    %v6806 = vmul.f32 %v6736, %v6753
    %v6807 = vmul.f32 %v6737, %v6753
    %v6808 = vmul.f32 %v6738, %v6753
    %v6809 = vmul.f32 %v6739, %v6753
    %v6810 = vmul.f32 %v6740, %v6753
    %v6811 = vmul.f32 %v6741, %v6753
    %v6812 = vmul.f32 %v6742, %v6753
    %v6813 = vmul.f32 %v6743, %v6753
    %v6814 = vmul.f32 %v6744, %v6753
    %v6815 = vmul.f32 %v6745, %v6753
    %v6816 = vmul.f32 %v6746, %v6753
    %v6817 = vmul.f32 %v6747, %v6753
    %v6818 = vmul.f32 %v6748, %v6753
    %v6820 = vlaneseq
    %v6821 = vshrl.u32 %v6820, 7
    %v6822 = vsub.s32 0, %v6821
    %v6823 = vrot.slane %v6282, %v6822
    %v6825 = vadd.f32 %v6755, %v6823
    %v6826 = vadd.f32 %v6756, %v6823
    %v6827 = vadd.f32 %v6757, %v6823
    %v6828 = vadd.f32 %v6758, %v6823
    %v6829 = vadd.f32 %v6759, %v6823
    %v6830 = vadd.f32 %v6760, %v6823
    %v6831 = vadd.f32 %v6761, %v6823
    %v6832 = vadd.f32 %v6762, %v6823
    %v6833 = vadd.f32 %v6763, %v6823
    %v6834 = vadd.f32 %v6764, %v6823
    %v6835 = vadd.f32 %v6765, %v6823
    %v6836 = vadd.f32 %v6766, %v6823
    %v6837 = vadd.f32 %v6767, %v6823
    %v6838 = vadd.f32 %v6768, %v6823
    %v6839 = vadd.f32 %v6769, %v6823
    %v6840 = vadd.f32 %v6770, %v6823
    %v6841 = vadd.f32 %v6771, %v6823
    %v6842 = vadd.f32 %v6772, %v6823
    %v6843 = vadd.f32 %v6773, %v6823
    %v6844 = vadd.f32 %v6774, %v6823
    %v6845 = vadd.f32 %v6775, %v6823
    %v6846 = vadd.f32 %v6776, %v6823
    %v6847 = vadd.f32 %v6777, %v6823
    %v6848 = vadd.f32 %v6778, %v6823
    %v6849 = vadd.f32 %v6779, %v6823
    %v6850 = vadd.f32 %v6780, %v6823
    %v6851 = vadd.f32 %v6781, %v6823
    %v6852 = vadd.f32 %v6782, %v6823
    %v6853 = vadd.f32 %v6783, %v6823
    %v6854 = vadd.f32 %v6784, %v6823
    %v6855 = vadd.f32 %v6785, %v6823
    %v6856 = vadd.f32 %v6786, %v6823
    %v6857 = vadd.f32 %v6787, %v6823
    %v6858 = vadd.f32 %v6788, %v6823
    %v6859 = vadd.f32 %v6789, %v6823
    %v6860 = vadd.f32 %v6790, %v6823
    %v6861 = vadd.f32 %v6791, %v6823
    %v6862 = vadd.f32 %v6792, %v6823
    %v6863 = vadd.f32 %v6793, %v6823
    %v6864 = vadd.f32 %v6794, %v6823
    %v6865 = vadd.f32 %v6795, %v6823
    %v6866 = vadd.f32 %v6796, %v6823
    %v6867 = vadd.f32 %v6797, %v6823
    %v6868 = vadd.f32 %v6798, %v6823
    %v6869 = vadd.f32 %v6799, %v6823
    %v6870 = vadd.f32 %v6800, %v6823
    %v6871 = vadd.f32 %v6801, %v6823
    %v6872 = vadd.f32 %v6802, %v6823
    %v6873 = vadd.f32 %v6803, %v6823
    %v6874 = vadd.f32 %v6804, %v6823
    %v6875 = vadd.f32 %v6805, %v6823
    %v6876 = vadd.f32 %v6806, %v6823
    %v6877 = vadd.f32 %v6807, %v6823
    %v6878 = vadd.f32 %v6808, %v6823
    %v6879 = vadd.f32 %v6809, %v6823
    %v6880 = vadd.f32 %v6810, %v6823
    %v6881 = vadd.f32 %v6811, %v6823
    %v6882 = vadd.f32 %v6812, %v6823
    %v6883 = vadd.f32 %v6813, %v6823
    %v6884 = vadd.f32 %v6814, %v6823
    %v6885 = vadd.f32 %v6815, %v6823
    %v6886 = vadd.f32 %v6816, %v6823
    %v6887 = vadd.f32 %v6817, %v6823
    %v6888 = vadd.f32 %v6818, %v6823
    %v6889 = vmax.f32 %v6825, 0.0
    %v6890 = vmax.f32 %v6826, 0.0
    %v6891 = vmax.f32 %v6827, 0.0
    %v6892 = vmax.f32 %v6828, 0.0
    %v6893 = vmax.f32 %v6829, 0.0
    %v6894 = vmax.f32 %v6830, 0.0
    %v6895 = vmax.f32 %v6831, 0.0
    %v6896 = vmax.f32 %v6832, 0.0
    %v6897 = vmax.f32 %v6833, 0.0
    %v6898 = vmax.f32 %v6834, 0.0
    %v6899 = vmax.f32 %v6835, 0.0
    %v6900 = vmax.f32 %v6836, 0.0
    %v6901 = vmax.f32 %v6837, 0.0
    %v6902 = vmax.f32 %v6838, 0.0
    %v6903 = vmax.f32 %v6839, 0.0
    %v6904 = vmax.f32 %v6840, 0.0
    %v6905 = vmax.f32 %v6841, 0.0
    %v6906 = vmax.f32 %v6842, 0.0
    %v6907 = vmax.f32 %v6843, 0.0
    %v6908 = vmax.f32 %v6844, 0.0
    %v6909 = vmax.f32 %v6845, 0.0
    %v6910 = vmax.f32 %v6846, 0.0
    %v6911 = vmax.f32 %v6847, 0.0
    %v6912 = vmax.f32 %v6848, 0.0
    %v6913 = vmax.f32 %v6849, 0.0
    %v6914 = vmax.f32 %v6850, 0.0
    %v6915 = vmax.f32 %v6851, 0.0
    %v6916 = vmax.f32 %v6852, 0.0
    %v6917 = vmax.f32 %v6853, 0.0
    %v6918 = vmax.f32 %v6854, 0.0
    %v6919 = vmax.f32 %v6855, 0.0
    %v6920 = vmax.f32 %v6856, 0.0
    %v6921 = vmax.f32 %v6857, 0.0
    %v6922 = vmax.f32 %v6858, 0.0
    %v6923 = vmax.f32 %v6859, 0.0
    %v6924 = vmax.f32 %v6860, 0.0
    %v6925 = vmax.f32 %v6861, 0.0
    %v6926 = vmax.f32 %v6862, 0.0
    %v6927 = vmax.f32 %v6863, 0.0
    %v6928 = vmax.f32 %v6864, 0.0
    %v6929 = vmax.f32 %v6865, 0.0
    %v6930 = vmax.f32 %v6866, 0.0
    %v6931 = vmax.f32 %v6867, 0.0
    %v6932 = vmax.f32 %v6868, 0.0
    %v6933 = vmax.f32 %v6869, 0.0
    %v6934 = vmax.f32 %v6870, 0.0
    %v6935 = vmax.f32 %v6871, 0.0
    %v6936 = vmax.f32 %v6872, 0.0
    %v6937 = vmax.f32 %v6873, 0.0
    %v6938 = vmax.f32 %v6874, 0.0
    %v6939 = vmax.f32 %v6875, 0.0
    %v6940 = vmax.f32 %v6876, 0.0
    %v6941 = vmax.f32 %v6877, 0.0
    %v6942 = vmax.f32 %v6878, 0.0
    %v6943 = vmax.f32 %v6879, 0.0
    %v6944 = vmax.f32 %v6880, 0.0
    %v6945 = vmax.f32 %v6881, 0.0
    %v6946 = vmax.f32 %v6882, 0.0
    %v6947 = vmax.f32 %v6883, 0.0
    %v6948 = vmax.f32 %v6884, 0.0
    %v6949 = vmax.f32 %v6885, 0.0
    %v6950 = vmax.f32 %v6886, 0.0
    %v6951 = vmax.f32 %v6887, 0.0
    %v6952 = vmax.f32 %v6888, 0.0
    %v6953 = vpack.c.bf16 %v6890, %v6889
    %v6954 = vpack.c.bf16 %v6892, %v6891
    %v6955 = vpack.c.bf16 %v6894, %v6893
    %v6956 = vpack.c.bf16 %v6896, %v6895
    %v6957 = vpack.c.bf16 %v6898, %v6897
    %v6958 = vpack.c.bf16 %v6900, %v6899
    %v6959 = vpack.c.bf16 %v6902, %v6901
    %v6960 = vpack.c.bf16 %v6904, %v6903
    %v6961 = vpack.c.bf16 %v6906, %v6905
    %v6962 = vpack.c.bf16 %v6908, %v6907
    %v6963 = vpack.c.bf16 %v6910, %v6909
    %v6964 = vpack.c.bf16 %v6912, %v6911
    %v6965 = vpack.c.bf16 %v6914, %v6913
    %v6966 = vpack.c.bf16 %v6916, %v6915
    %v6967 = vpack.c.bf16 %v6918, %v6917
    %v6968 = vpack.c.bf16 %v6920, %v6919
    %v6969 = vpack.c.bf16 %v6922, %v6921
    %v6970 = vpack.c.bf16 %v6924, %v6923
    %v6971 = vpack.c.bf16 %v6926, %v6925
    %v6972 = vpack.c.bf16 %v6928, %v6927
    %v6973 = vpack.c.bf16 %v6930, %v6929
    %v6974 = vpack.c.bf16 %v6932, %v6931
    %v6975 = vpack.c.bf16 %v6934, %v6933
    %v6976 = vpack.c.bf16 %v6936, %v6935
    %v6977 = vpack.c.bf16 %v6938, %v6937
    %v6978 = vpack.c.bf16 %v6940, %v6939
    %v6979 = vpack.c.bf16 %v6942, %v6941
    %v6980 = vpack.c.bf16 %v6944, %v6943
    %v6981 = vpack.c.bf16 %v6946, %v6945
    %v6982 = vpack.c.bf16 %v6948, %v6947
    %v6983 = vpack.c.bf16 %v6950, %v6949
    %v6984 = vpack.c.bf16 %v6952, %v6951
    %v6987 = vunpack.c.l.b16 %v6283
    %v6988 = vunpack.c.l.b16 %v6284
    %v6989 = vpack.c.b16 %v6988, %v6987
    %v6992 = vsel %vm581, %v6953, 0
    %v6995 = vsel %vm581, %v6954, 0
    %v6998 = vsel %vm581, %v6955, 0
    %v7001 = vsel %vm581, %v6956, 0
    %v7004 = vsel %vm581, %v6957, 0
    %v7007 = vsel %vm581, %v6958, 0
    %v7010 = vsel %vm581, %v6959, 0
    %v7013 = vsel %vm581, %v6960, 0
    %v7016 = vsel %vm581, %v6961, 0
    %v7019 = vsel %vm581, %v6962, 0
    %v7022 = vsel %vm581, %v6963, 0
    %v7025 = vsel %vm581, %v6964, 0
    %v7028 = vsel %vm581, %v6965, 0
    %v7031 = vsel %vm581, %v6966, 0
    %v7034 = vsel %vm581, %v6967, 0
    %v7037 = vsel %vm581, %v6968, 0
    %v7040 = vsel %vm581, %v6969, 0
    %v7043 = vsel %vm581, %v6970, 0
    %v7046 = vsel %vm581, %v6971, 0
    %v7049 = vsel %vm581, %v6972, 0
    %v7052 = vsel %vm581, %v6973, 0
    %v7055 = vsel %vm581, %v6974, 0
    %v7058 = vsel %vm581, %v6975, 0
    %v7061 = vsel %vm581, %v6976, 0
    %v7064 = vsel %vm581, %v6977, 0
    %v7067 = vsel %vm581, %v6978, 0
    %v7070 = vsel %vm581, %v6979, 0
    %v7073 = vsel %vm581, %v6980, 0
    %v7076 = vsel %vm581, %v6981, 0
    %v7079 = vsel %vm581, %v6982, 0
    %v7082 = vsel %vm581, %v6983, 0
    %v7085 = vsel %vm581, %v6984, 0
    %7087 = vmatprep.subr.bf16.mxu0 0
    %7088 = vmatpush1.bf16.msra.mxu0 %v6989
    %7089 = vmatprep.subr.bf16.mxu0 0
    %7090 = vmatpush1.bf16.msra.mxu0 0
    %7091 = vmatprep.subr.bf16.mxu0 0
    %7092 = vmatpush1.bf16.msra.mxu0 0
    %7093 = vmatprep.subr.bf16.mxu0 0
    %7094 = vmatpush1.bf16.msra.mxu0 0
    %7095 = vmatprep.subr.bf16.mxu0 0
    %7096 = vmatpush1.bf16.msra.mxu0 0
    %7097 = vmatprep.subr.bf16.mxu0 0
    %7098 = vmatpush1.bf16.msra.mxu0 0
    %7099 = vmatprep.subr.bf16.mxu0 0
    %7100 = vmatpush1.bf16.msra.mxu0 0
    %7101 = vmatprep.subr.bf16.mxu0 0
    %7102 = vmatpush1.bf16.msra.mxu0 0
    %7103 = vmatprep.subr.bf16.mxu0 0
    %7104 = vmatpush1.bf16.msra.mxu0 0
    %7105 = vmatprep.subr.bf16.mxu0 0
    %7106 = vmatpush1.bf16.msra.mxu0 0
    %7107 = vmatprep.subr.bf16.mxu0 0
    %7108 = vmatpush1.bf16.msra.mxu0 0
    %7109 = vmatprep.subr.bf16.mxu0 0
    %7110 = vmatpush1.bf16.msra.mxu0 0
    %7111 = vmatprep.subr.bf16.mxu0 0
    %7112 = vmatpush1.bf16.msra.mxu0 0
    %7113 = vmatprep.subr.bf16.mxu0 0
    %7114 = vmatpush1.bf16.msra.mxu0 0
    %7115 = vmatprep.subr.bf16.mxu0 0
    %7116 = vmatpush1.bf16.msra.mxu0 0
    %7117 = vmatprep.subr.bf16.mxu0 0
    %7118 = vmatpush1.bf16.msra.mxu0 0
    %7119 = vmatprep.mubr.bf16.mxu0 0
    %7120 = vmatmul.mubr.bf16.gmra.mrb[0].mxu0 %v6992
    %v7121 = vpop.f32.mrb[0].mxu0
    %v7122 = vadd.f32 0.0, %v7121
    %v7123 = vpop.f32.mrb[0].mxu0
    %v7124 = vpop.f32.mrb[0].mxu0
    %v7125 = vadd.f32 0.0, %v7124
    %v7126 = vpop.f32.mrb[0].mxu0
    %7127 = vmatprep.mubr.bf16.mxu0 0
    %7128 = vmatmul.mubr.bf16.gmra.mrb[0].mxu0 %v6995
    %v7129 = vpop.f32.mrb[0].mxu0
    %v7130 = vadd.f32 0.0, %v7129
    %v7131 = vpop.f32.mrb[0].mxu0
    %v7132 = vpop.f32.mrb[0].mxu0
    %v7133 = vadd.f32 0.0, %v7132
    %v7134 = vpop.f32.mrb[0].mxu0
    %7135 = vmatprep.mubr.bf16.mxu0 0
    %7136 = vmatmul.mubr.bf16.gmra.mrb[0].mxu0 %v6998
    %v7137 = vpop.f32.mrb[0].mxu0
    %v7138 = vadd.f32 0.0, %v7137
    %v7139 = vpop.f32.mrb[0].mxu0
    %v7140 = vpop.f32.mrb[0].mxu0
    %v7141 = vadd.f32 0.0, %v7140
    %v7142 = vpop.f32.mrb[0].mxu0
    %7143 = vmatprep.mubr.bf16.mxu0 0
    %7144 = vmatmul.mubr.bf16.gmra.mrb[0].mxu0 %v7001
    %v7145 = vpop.f32.mrb[0].mxu0
    %v7146 = vadd.f32 0.0, %v7145
    %v7147 = vpop.f32.mrb[0].mxu0
    %v7148 = vpop.f32.mrb[0].mxu0
    %v7149 = vadd.f32 0.0, %v7148
    %v7150 = vpop.f32.mrb[0].mxu0
    %7151 = vmatprep.mubr.bf16.mxu0 0
    %7152 = vmatmul.mubr.bf16.gmra.mrb[0].mxu0 %v7004
    %v7153 = vpop.f32.mrb[0].mxu0
    %v7154 = vadd.f32 0.0, %v7153
    %v7155 = vpop.f32.mrb[0].mxu0
    %v7156 = vpop.f32.mrb[0].mxu0
    %v7157 = vadd.f32 0.0, %v7156
    %v7158 = vpop.f32.mrb[0].mxu0
    %7159 = vmatprep.mubr.bf16.mxu0 0
    %7160 = vmatmul.mubr.bf16.gmra.mrb[0].mxu0 %v7007
    %v7161 = vpop.f32.mrb[0].mxu0
    %v7162 = vadd.f32 0.0, %v7161
    %v7163 = vpop.f32.mrb[0].mxu0
    %v7164 = vpop.f32.mrb[0].mxu0
    %v7165 = vadd.f32 0.0, %v7164
    %v7166 = vpop.f32.mrb[0].mxu0
    %7167 = vmatprep.mubr.bf16.mxu0 0
    %7168 = vmatmul.mubr.bf16.gmra.mrb[0].mxu0 %v7010
    %v7169 = vpop.f32.mrb[0].mxu0
    %v7170 = vadd.f32 0.0, %v7169
    %v7171 = vpop.f32.mrb[0].mxu0
    %v7172 = vpop.f32.mrb[0].mxu0
    %v7173 = vadd.f32 0.0, %v7172
    %v7174 = vpop.f32.mrb[0].mxu0
    %7175 = vmatprep.mubr.bf16.mxu0 0
    %7176 = vmatmul.mubr.bf16.gmra.mrb[0].mxu0 %v7013
    %v7177 = vpop.f32.mrb[0].mxu0
    %v7178 = vadd.f32 0.0, %v7177
    %v7179 = vpop.f32.mrb[0].mxu0
    %v7180 = vpop.f32.mrb[0].mxu0
    %v7181 = vadd.f32 0.0, %v7180
    %v7182 = vpop.f32.mrb[0].mxu0
    %7183 = vmatprep.mubr.bf16.mxu0 0
    %7184 = vmatmul.mubr.bf16.gmra.mrb[0].mxu0 %v7016
    %v7185 = vpop.f32.mrb[0].mxu0
    %v7186 = vadd.f32 0.0, %v7185
    %v7187 = vpop.f32.mrb[0].mxu0
    %v7188 = vpop.f32.mrb[0].mxu0
    %v7189 = vadd.f32 0.0, %v7188
    %v7190 = vpop.f32.mrb[0].mxu0
    %7191 = vmatprep.mubr.bf16.mxu0 0
    %7192 = vmatmul.mubr.bf16.gmra.mrb[0].mxu0 %v7019
    %v7193 = vpop.f32.mrb[0].mxu0
    %v7194 = vadd.f32 0.0, %v7193
    %v7195 = vpop.f32.mrb[0].mxu0
    %v7196 = vpop.f32.mrb[0].mxu0
    %v7197 = vadd.f32 0.0, %v7196
    %v7198 = vpop.f32.mrb[0].mxu0
    %7199 = vmatprep.mubr.bf16.mxu0 0
    %7200 = vmatmul.mubr.bf16.gmra.mrb[0].mxu0 %v7022
    %v7201 = vpop.f32.mrb[0].mxu0
    %v7202 = vadd.f32 0.0, %v7201
    %v7203 = vpop.f32.mrb[0].mxu0
    %v7204 = vpop.f32.mrb[0].mxu0
    %v7205 = vadd.f32 0.0, %v7204
    %v7206 = vpop.f32.mrb[0].mxu0
    %7207 = vmatprep.mubr.bf16.mxu0 0
    %7208 = vmatmul.mubr.bf16.gmra.mrb[0].mxu0 %v7025
    %v7209 = vpop.f32.mrb[0].mxu0
    %v7210 = vadd.f32 0.0, %v7209
    %v7211 = vpop.f32.mrb[0].mxu0
    %v7212 = vpop.f32.mrb[0].mxu0
    %v7213 = vadd.f32 0.0, %v7212
    %v7214 = vpop.f32.mrb[0].mxu0
    %7215 = vmatprep.mubr.bf16.mxu0 0
    %7216 = vmatmul.mubr.bf16.gmra.mrb[0].mxu0 %v7028
    %v7217 = vpop.f32.mrb[0].mxu0
    %v7218 = vadd.f32 0.0, %v7217
    %v7219 = vpop.f32.mrb[0].mxu0
    %v7220 = vpop.f32.mrb[0].mxu0
    %v7221 = vadd.f32 0.0, %v7220
    %v7222 = vpop.f32.mrb[0].mxu0
    %7223 = vmatprep.mubr.bf16.mxu0 0
    %7224 = vmatmul.mubr.bf16.gmra.mrb[0].mxu0 %v7031
    %v7225 = vpop.f32.mrb[0].mxu0
    %v7226 = vadd.f32 0.0, %v7225
    %v7227 = vpop.f32.mrb[0].mxu0
    %v7228 = vpop.f32.mrb[0].mxu0
    %v7229 = vadd.f32 0.0, %v7228
    %v7230 = vpop.f32.mrb[0].mxu0
    %7231 = vmatprep.mubr.bf16.mxu0 0
    %7232 = vmatmul.mubr.bf16.gmra.mrb[0].mxu0 %v7034
    %v7233 = vpop.f32.mrb[0].mxu0
    %v7234 = vadd.f32 0.0, %v7233
    %v7235 = vpop.f32.mrb[0].mxu0
    %v7236 = vpop.f32.mrb[0].mxu0
    %v7237 = vadd.f32 0.0, %v7236
    %v7238 = vpop.f32.mrb[0].mxu0
    %7239 = vmatprep.mubr.bf16.mxu0 0
    %7240 = vmatmul.mubr.bf16.gmra.mrb[0].mxu0 %v7037
    %v7241 = vpop.f32.mrb[0].mxu0
    %v7242 = vadd.f32 0.0, %v7241
    %v7243 = vpop.f32.mrb[0].mxu0
    %v7244 = vpop.f32.mrb[0].mxu0
    %v7245 = vadd.f32 0.0, %v7244
    %v7246 = vpop.f32.mrb[0].mxu0
    %7247 = vmatprep.mubr.bf16.mxu0 0
    %7248 = vmatmul.mubr.bf16.gmra.mrb[0].mxu0 %v7040
    %v7249 = vpop.f32.mrb[0].mxu0
    %v7250 = vadd.f32 0.0, %v7249
    %v7251 = vpop.f32.mrb[0].mxu0
    %v7252 = vpop.f32.mrb[0].mxu0
    %v7253 = vadd.f32 0.0, %v7252
    %v7254 = vpop.f32.mrb[0].mxu0
    %7255 = vmatprep.mubr.bf16.mxu0 0
    %7256 = vmatmul.mubr.bf16.gmra.mrb[0].mxu0 %v7043
    %v7257 = vpop.f32.mrb[0].mxu0
    %v7258 = vadd.f32 0.0, %v7257
    %v7259 = vpop.f32.mrb[0].mxu0
    %v7260 = vpop.f32.mrb[0].mxu0
    %v7261 = vadd.f32 0.0, %v7260
    %v7262 = vpop.f32.mrb[0].mxu0
    %7263 = vmatprep.mubr.bf16.mxu0 0
    %7264 = vmatmul.mubr.bf16.gmra.mrb[0].mxu0 %v7046
    %v7265 = vpop.f32.mrb[0].mxu0
    %v7266 = vadd.f32 0.0, %v7265
    %v7267 = vpop.f32.mrb[0].mxu0
    %v7268 = vpop.f32.mrb[0].mxu0
    %v7269 = vadd.f32 0.0, %v7268
    %v7270 = vpop.f32.mrb[0].mxu0
    %7271 = vmatprep.mubr.bf16.mxu0 0
    %7272 = vmatmul.mubr.bf16.gmra.mrb[0].mxu0 %v7049
    %v7273 = vpop.f32.mrb[0].mxu0
    %v7274 = vadd.f32 0.0, %v7273
    %v7275 = vpop.f32.mrb[0].mxu0
    %v7276 = vpop.f32.mrb[0].mxu0
    %v7277 = vadd.f32 0.0, %v7276
    %v7278 = vpop.f32.mrb[0].mxu0
    %7279 = vmatprep.mubr.bf16.mxu0 0
    %7280 = vmatmul.mubr.bf16.gmra.mrb[0].mxu0 %v7052
    %v7281 = vpop.f32.mrb[0].mxu0
    %v7282 = vadd.f32 0.0, %v7281
    %v7283 = vpop.f32.mrb[0].mxu0
    %v7284 = vpop.f32.mrb[0].mxu0
    %v7285 = vadd.f32 0.0, %v7284
    %v7286 = vpop.f32.mrb[0].mxu0
    %7287 = vmatprep.mubr.bf16.mxu0 0
    %7288 = vmatmul.mubr.bf16.gmra.mrb[0].mxu0 %v7055
    %v7289 = vpop.f32.mrb[0].mxu0
    %v7290 = vadd.f32 0.0, %v7289
    %v7291 = vpop.f32.mrb[0].mxu0
    %v7292 = vpop.f32.mrb[0].mxu0
    %v7293 = vadd.f32 0.0, %v7292
    %v7294 = vpop.f32.mrb[0].mxu0
    %7295 = vmatprep.mubr.bf16.mxu0 0
    %7296 = vmatmul.mubr.bf16.gmra.mrb[0].mxu0 %v7058
    %v7297 = vpop.f32.mrb[0].mxu0
    %v7298 = vadd.f32 0.0, %v7297
    %v7299 = vpop.f32.mrb[0].mxu0
    %v7300 = vpop.f32.mrb[0].mxu0
    %v7301 = vadd.f32 0.0, %v7300
    %v7302 = vpop.f32.mrb[0].mxu0
    %7303 = vmatprep.mubr.bf16.mxu0 0
    %7304 = vmatmul.mubr.bf16.gmra.mrb[0].mxu0 %v7061
    %v7305 = vpop.f32.mrb[0].mxu0
    %v7306 = vadd.f32 0.0, %v7305
    %v7307 = vpop.f32.mrb[0].mxu0
    %v7308 = vpop.f32.mrb[0].mxu0
    %v7309 = vadd.f32 0.0, %v7308
    %v7310 = vpop.f32.mrb[0].mxu0
    %7311 = vmatprep.mubr.bf16.mxu0 0
    %7312 = vmatmul.mubr.bf16.gmra.mrb[0].mxu0 %v7064
    %v7313 = vpop.f32.mrb[0].mxu0
    %v7314 = vadd.f32 0.0, %v7313
    %v7315 = vpop.f32.mrb[0].mxu0
    %v7316 = vpop.f32.mrb[0].mxu0
    %v7317 = vadd.f32 0.0, %v7316
    %v7318 = vpop.f32.mrb[0].mxu0
    %7319 = vmatprep.mubr.bf16.mxu0 0
    %7320 = vmatmul.mubr.bf16.gmra.mrb[0].mxu0 %v7067
    %v7321 = vpop.f32.mrb[0].mxu0
    %v7322 = vadd.f32 0.0, %v7321
    %v7323 = vpop.f32.mrb[0].mxu0
    %v7324 = vpop.f32.mrb[0].mxu0
    %v7325 = vadd.f32 0.0, %v7324
    %v7326 = vpop.f32.mrb[0].mxu0
    %7327 = vmatprep.mubr.bf16.mxu0 0
    %7328 = vmatmul.mubr.bf16.gmra.mrb[0].mxu0 %v7070
    %v7329 = vpop.f32.mrb[0].mxu0
    %v7330 = vadd.f32 0.0, %v7329
    %v7331 = vpop.f32.mrb[0].mxu0
    %v7332 = vpop.f32.mrb[0].mxu0
    %v7333 = vadd.f32 0.0, %v7332
    %v7334 = vpop.f32.mrb[0].mxu0
    %7335 = vmatprep.mubr.bf16.mxu0 0
    %7336 = vmatmul.mubr.bf16.gmra.mrb[0].mxu0 %v7073
    %v7337 = vpop.f32.mrb[0].mxu0
    %v7338 = vadd.f32 0.0, %v7337
    %v7339 = vpop.f32.mrb[0].mxu0
    %v7340 = vpop.f32.mrb[0].mxu0
    %v7341 = vadd.f32 0.0, %v7340
    %v7342 = vpop.f32.mrb[0].mxu0
    %7343 = vmatprep.mubr.bf16.mxu0 0
    %7344 = vmatmul.mubr.bf16.gmra.mrb[0].mxu0 %v7076
    %v7345 = vpop.f32.mrb[0].mxu0
    %v7346 = vadd.f32 0.0, %v7345
    %v7347 = vpop.f32.mrb[0].mxu0
    %v7348 = vpop.f32.mrb[0].mxu0
    %v7349 = vadd.f32 0.0, %v7348
    %v7350 = vpop.f32.mrb[0].mxu0
    %7351 = vmatprep.mubr.bf16.mxu0 0
    %7352 = vmatmul.mubr.bf16.gmra.mrb[0].mxu0 %v7079
    %v7353 = vpop.f32.mrb[0].mxu0
    %v7354 = vadd.f32 0.0, %v7353
    %v7355 = vpop.f32.mrb[0].mxu0
    %v7356 = vpop.f32.mrb[0].mxu0
    %v7357 = vadd.f32 0.0, %v7356
    %v7358 = vpop.f32.mrb[0].mxu0
    %7359 = vmatprep.mubr.bf16.mxu0 0
    %7360 = vmatmul.mubr.bf16.gmra.mrb[0].mxu0 %v7082
    %v7361 = vpop.f32.mrb[0].mxu0
    %v7362 = vadd.f32 0.0, %v7361
    %v7363 = vpop.f32.mrb[0].mxu0
    %v7364 = vpop.f32.mrb[0].mxu0
    %v7365 = vadd.f32 0.0, %v7364
    %v7366 = vpop.f32.mrb[0].mxu0
    %7367 = vmatprep.mubr.bf16.mxu0 0
    %7368 = vmatmul.mubr.bf16.gmra.mrb[0].mxu0 %v7085
    %v7369 = vpop.f32.mrb[0].mxu0
    %v7370 = vadd.f32 0.0, %v7369
    %v7371 = vpop.f32.mrb[0].mxu0
    %v7372 = vpop.f32.mrb[0].mxu0
    %v7373 = vadd.f32 0.0, %v7372
    %v7374 = vpop.f32.mrb[0].mxu0
    %7375 = vdwg.mxu0
    %v7376 = vsel %vm195, %v7122, 0.0
    %v7377 = vsel %vm195, %v7125, 0.0
    %v7378 = vadd.f32 %v7376, %v7377
    %v7379 = vsel %vm195, %v7130, 0.0
    %v7380 = vadd.f32 %v7378, %v7379
    %v7381 = vsel %vm195, %v7133, 0.0
    %v7382 = vadd.f32 %v7380, %v7381
    %v7383 = vsel %vm195, %v7138, 0.0
    %v7384 = vadd.f32 %v7382, %v7383
    %v7385 = vsel %vm195, %v7141, 0.0
    %v7386 = vadd.f32 %v7384, %v7385
    %v7387 = vsel %vm195, %v7146, 0.0
    %v7388 = vadd.f32 %v7386, %v7387
    %v7389 = vsel %vm195, %v7149, 0.0
    %v7390 = vadd.f32 %v7388, %v7389
    %v7391 = vsel %vm195, %v7154, 0.0
    %v7392 = vadd.f32 %v7390, %v7391
    %v7393 = vsel %vm195, %v7157, 0.0
    %v7394 = vadd.f32 %v7392, %v7393
    %v7395 = vsel %vm195, %v7162, 0.0
    %v7396 = vadd.f32 %v7394, %v7395
    %v7397 = vsel %vm195, %v7165, 0.0
    %v7398 = vadd.f32 %v7396, %v7397
    %v7399 = vsel %vm195, %v7170, 0.0
    %v7400 = vadd.f32 %v7398, %v7399
    %v7401 = vsel %vm195, %v7173, 0.0
    %v7402 = vadd.f32 %v7400, %v7401
    %v7403 = vsel %vm195, %v7178, 0.0
    %v7404 = vadd.f32 %v7402, %v7403
    %v7405 = vsel %vm195, %v7181, 0.0
    %v7406 = vadd.f32 %v7404, %v7405
    %v7407 = vsel %vm195, %v7186, 0.0
    %v7408 = vadd.f32 %v7406, %v7407
    %v7409 = vsel %vm195, %v7189, 0.0
    %v7410 = vadd.f32 %v7408, %v7409
    %v7411 = vsel %vm195, %v7194, 0.0
    %v7412 = vadd.f32 %v7410, %v7411
    %v7413 = vsel %vm195, %v7197, 0.0
    %v7414 = vadd.f32 %v7412, %v7413
    %v7415 = vsel %vm195, %v7202, 0.0
    %v7416 = vadd.f32 %v7414, %v7415
    %v7417 = vsel %vm195, %v7205, 0.0
    %v7418 = vadd.f32 %v7416, %v7417
    %v7419 = vsel %vm195, %v7210, 0.0
    %v7420 = vadd.f32 %v7418, %v7419
    %v7421 = vsel %vm195, %v7213, 0.0
    %v7422 = vadd.f32 %v7420, %v7421
    %v7423 = vsel %vm195, %v7218, 0.0
    %v7424 = vadd.f32 %v7422, %v7423
    %v7425 = vsel %vm195, %v7221, 0.0
    %v7426 = vadd.f32 %v7424, %v7425
    %v7427 = vsel %vm195, %v7226, 0.0
    %v7428 = vadd.f32 %v7426, %v7427
    %v7429 = vsel %vm195, %v7229, 0.0
    %v7430 = vadd.f32 %v7428, %v7429
    %v7431 = vsel %vm195, %v7234, 0.0
    %v7432 = vadd.f32 %v7430, %v7431
    %v7433 = vsel %vm195, %v7237, 0.0
    %v7434 = vadd.f32 %v7432, %v7433
    %v7435 = vsel %vm195, %v7242, 0.0
    %v7436 = vadd.f32 %v7434, %v7435
    %v7437 = vsel %vm195, %v7245, 0.0
    %v7438 = vadd.f32 %v7436, %v7437
    %v7439 = vsel %vm195, %v7250, 0.0
    %v7440 = vadd.f32 %v7438, %v7439
    %v7441 = vsel %vm195, %v7253, 0.0
    %v7442 = vadd.f32 %v7440, %v7441
    %v7443 = vsel %vm195, %v7258, 0.0
    %v7444 = vadd.f32 %v7442, %v7443
    %v7445 = vsel %vm195, %v7261, 0.0
    %v7446 = vadd.f32 %v7444, %v7445
    %v7447 = vsel %vm195, %v7266, 0.0
    %v7448 = vadd.f32 %v7446, %v7447
    %v7449 = vsel %vm195, %v7269, 0.0
    %v7450 = vadd.f32 %v7448, %v7449
    %v7451 = vsel %vm195, %v7274, 0.0
    %v7452 = vadd.f32 %v7450, %v7451
    %v7453 = vsel %vm195, %v7277, 0.0
    %v7454 = vadd.f32 %v7452, %v7453
    %v7455 = vsel %vm195, %v7282, 0.0
    %v7456 = vadd.f32 %v7454, %v7455
    %v7457 = vsel %vm195, %v7285, 0.0
    %v7458 = vadd.f32 %v7456, %v7457
    %v7459 = vsel %vm195, %v7290, 0.0
    %v7460 = vadd.f32 %v7458, %v7459
    %v7461 = vsel %vm195, %v7293, 0.0
    %v7462 = vadd.f32 %v7460, %v7461
    %v7463 = vsel %vm195, %v7298, 0.0
    %v7464 = vadd.f32 %v7462, %v7463
    %v7465 = vsel %vm195, %v7301, 0.0
    %v7466 = vadd.f32 %v7464, %v7465
    %v7467 = vsel %vm195, %v7306, 0.0
    %v7468 = vadd.f32 %v7466, %v7467
    %v7469 = vsel %vm195, %v7309, 0.0
    %v7470 = vadd.f32 %v7468, %v7469
    %v7471 = vsel %vm195, %v7314, 0.0
    %v7472 = vadd.f32 %v7470, %v7471
    %v7473 = vsel %vm195, %v7317, 0.0
    %v7474 = vadd.f32 %v7472, %v7473
    %v7475 = vsel %vm195, %v7322, 0.0
    %v7476 = vadd.f32 %v7474, %v7475
    %v7477 = vsel %vm195, %v7325, 0.0
    %v7478 = vadd.f32 %v7476, %v7477
    %v7479 = vsel %vm195, %v7330, 0.0
    %v7480 = vadd.f32 %v7478, %v7479
    %v7481 = vsel %vm195, %v7333, 0.0
    %v7482 = vadd.f32 %v7480, %v7481
    %v7483 = vsel %vm195, %v7338, 0.0
    %v7484 = vadd.f32 %v7482, %v7483
    %v7485 = vsel %vm195, %v7341, 0.0
    %v7486 = vadd.f32 %v7484, %v7485
    %v7487 = vsel %vm195, %v7346, 0.0
    %v7488 = vadd.f32 %v7486, %v7487
    %v7489 = vsel %vm195, %v7349, 0.0
    %v7490 = vadd.f32 %v7488, %v7489
    %v7491 = vsel %vm195, %v7354, 0.0
    %v7492 = vadd.f32 %v7490, %v7491
    %v7493 = vsel %vm195, %v7357, 0.0
    %v7494 = vadd.f32 %v7492, %v7493
    %v7495 = vsel %vm195, %v7362, 0.0
    %v7496 = vadd.f32 %v7494, %v7495
    %v7497 = vsel %vm195, %v7365, 0.0
    %v7498 = vadd.f32 %v7496, %v7497
    %v7499 = vsel %vm195, %v7370, 0.0
    %v7500 = vadd.f32 %v7498, %v7499
    %v7501 = vsel %vm195, %v7373, 0.0
    %v7502 = vadd.f32 %v7500, %v7501
    %v7503 = vrot.slane %v7502, 4
    %v7504 = vadd.f32 %v7502, %v7503
    %v7505 = vrot.slane %v7504, 2
    %v7506 = vadd.f32 %v7504, %v7505
    %v7507 = vrot.slane %v7506, 1
    %v7508 = vadd.f32 %v7506, %v7507
    %v7509 = vmul.f32 %v7508, %v715
    %v7510 = vsub.f32 %v7122, %v7509
    %v7511 = vsub.f32 %v7125, %v7509
    %v7512 = vsub.f32 %v7130, %v7509
    %v7513 = vsub.f32 %v7133, %v7509
    %v7514 = vsub.f32 %v7138, %v7509
    %v7515 = vsub.f32 %v7141, %v7509
    %v7516 = vsub.f32 %v7146, %v7509
    %v7517 = vsub.f32 %v7149, %v7509
    %v7518 = vsub.f32 %v7154, %v7509
    %v7519 = vsub.f32 %v7157, %v7509
    %v7520 = vsub.f32 %v7162, %v7509
    %v7521 = vsub.f32 %v7165, %v7509
    %v7522 = vsub.f32 %v7170, %v7509
    %v7523 = vsub.f32 %v7173, %v7509
    %v7524 = vsub.f32 %v7178, %v7509
    %v7525 = vsub.f32 %v7181, %v7509
    %v7526 = vsub.f32 %v7186, %v7509
    %v7527 = vsub.f32 %v7189, %v7509
    %v7528 = vsub.f32 %v7194, %v7509
    %v7529 = vsub.f32 %v7197, %v7509
    %v7530 = vsub.f32 %v7202, %v7509
    %v7531 = vsub.f32 %v7205, %v7509
    %v7532 = vsub.f32 %v7210, %v7509
    %v7533 = vsub.f32 %v7213, %v7509
    %v7534 = vsub.f32 %v7218, %v7509
    %v7535 = vsub.f32 %v7221, %v7509
    %v7536 = vsub.f32 %v7226, %v7509
    %v7537 = vsub.f32 %v7229, %v7509
    %v7538 = vsub.f32 %v7234, %v7509
    %v7539 = vsub.f32 %v7237, %v7509
    %v7540 = vsub.f32 %v7242, %v7509
    %v7541 = vsub.f32 %v7245, %v7509
    %v7542 = vsub.f32 %v7250, %v7509
    %v7543 = vsub.f32 %v7253, %v7509
    %v7544 = vsub.f32 %v7258, %v7509
    %v7545 = vsub.f32 %v7261, %v7509
    %v7546 = vsub.f32 %v7266, %v7509
    %v7547 = vsub.f32 %v7269, %v7509
    %v7548 = vsub.f32 %v7274, %v7509
    %v7549 = vsub.f32 %v7277, %v7509
    %v7550 = vsub.f32 %v7282, %v7509
    %v7551 = vsub.f32 %v7285, %v7509
    %v7552 = vsub.f32 %v7290, %v7509
    %v7553 = vsub.f32 %v7293, %v7509
    %v7554 = vsub.f32 %v7298, %v7509
    %v7555 = vsub.f32 %v7301, %v7509
    %v7556 = vsub.f32 %v7306, %v7509
    %v7557 = vsub.f32 %v7309, %v7509
    %v7558 = vsub.f32 %v7314, %v7509
    %v7559 = vsub.f32 %v7317, %v7509
    %v7560 = vsub.f32 %v7322, %v7509
    %v7561 = vsub.f32 %v7325, %v7509
    %v7562 = vsub.f32 %v7330, %v7509
    %v7563 = vsub.f32 %v7333, %v7509
    %v7564 = vsub.f32 %v7338, %v7509
    %v7565 = vsub.f32 %v7341, %v7509
    %v7566 = vsub.f32 %v7346, %v7509
    %v7567 = vsub.f32 %v7349, %v7509
    %v7568 = vsub.f32 %v7354, %v7509
    %v7569 = vsub.f32 %v7357, %v7509
    %v7570 = vsub.f32 %v7362, %v7509
    %v7571 = vsub.f32 %v7365, %v7509
    %v7572 = vsub.f32 %v7370, %v7509
    %v7573 = vsub.f32 %v7373, %v7509
    %v7574 = vmul.f32 %v7510, %v7510
    %v7575 = vmul.f32 %v7511, %v7511
    %v7576 = vmul.f32 %v7512, %v7512
    %v7577 = vmul.f32 %v7513, %v7513
    %v7578 = vmul.f32 %v7514, %v7514
    %v7579 = vmul.f32 %v7515, %v7515
    %v7580 = vmul.f32 %v7516, %v7516
    %v7581 = vmul.f32 %v7517, %v7517
    %v7582 = vmul.f32 %v7518, %v7518
    %v7583 = vmul.f32 %v7519, %v7519
    %v7584 = vmul.f32 %v7520, %v7520
    %v7585 = vmul.f32 %v7521, %v7521
    %v7586 = vmul.f32 %v7522, %v7522
    %v7587 = vmul.f32 %v7523, %v7523
    %v7588 = vmul.f32 %v7524, %v7524
    %v7589 = vmul.f32 %v7525, %v7525
    %v7590 = vmul.f32 %v7526, %v7526
    %v7591 = vmul.f32 %v7527, %v7527
    %v7592 = vmul.f32 %v7528, %v7528
    %v7593 = vmul.f32 %v7529, %v7529
    %v7594 = vmul.f32 %v7530, %v7530
    %v7595 = vmul.f32 %v7531, %v7531
    %v7596 = vmul.f32 %v7532, %v7532
    %v7597 = vmul.f32 %v7533, %v7533
    %v7598 = vmul.f32 %v7534, %v7534
    %v7599 = vmul.f32 %v7535, %v7535
    %v7600 = vmul.f32 %v7536, %v7536
    %v7601 = vmul.f32 %v7537, %v7537
    %v7602 = vmul.f32 %v7538, %v7538
    %v7603 = vmul.f32 %v7539, %v7539
    %v7604 = vmul.f32 %v7540, %v7540
    %v7605 = vmul.f32 %v7541, %v7541
    %v7606 = vmul.f32 %v7542, %v7542
    %v7607 = vmul.f32 %v7543, %v7543
    %v7608 = vmul.f32 %v7544, %v7544
    %v7609 = vmul.f32 %v7545, %v7545
    %v7610 = vmul.f32 %v7546, %v7546
    %v7611 = vmul.f32 %v7547, %v7547
    %v7612 = vmul.f32 %v7548, %v7548
    %v7613 = vmul.f32 %v7549, %v7549
    %v7614 = vmul.f32 %v7550, %v7550
    %v7615 = vmul.f32 %v7551, %v7551
    %v7616 = vmul.f32 %v7552, %v7552
    %v7617 = vmul.f32 %v7553, %v7553
    %v7618 = vmul.f32 %v7554, %v7554
    %v7619 = vmul.f32 %v7555, %v7555
    %v7620 = vmul.f32 %v7556, %v7556
    %v7621 = vmul.f32 %v7557, %v7557
    %v7622 = vmul.f32 %v7558, %v7558
    %v7623 = vmul.f32 %v7559, %v7559
    %v7624 = vmul.f32 %v7560, %v7560
    %v7625 = vmul.f32 %v7561, %v7561
    %v7626 = vmul.f32 %v7562, %v7562
    %v7627 = vmul.f32 %v7563, %v7563
    %v7628 = vmul.f32 %v7564, %v7564
    %v7629 = vmul.f32 %v7565, %v7565
    %v7630 = vmul.f32 %v7566, %v7566
    %v7631 = vmul.f32 %v7567, %v7567
    %v7632 = vmul.f32 %v7568, %v7568
    %v7633 = vmul.f32 %v7569, %v7569
    %v7634 = vmul.f32 %v7570, %v7570
    %v7635 = vmul.f32 %v7571, %v7571
    %v7636 = vmul.f32 %v7572, %v7572
    %v7637 = vmul.f32 %v7573, %v7573
    %v7638 = vsel %vm195, %v7574, 0.0
    %v7639 = vsel %vm195, %v7575, 0.0
    %v7640 = vadd.f32 %v7638, %v7639
    %v7641 = vsel %vm195, %v7576, 0.0
    %v7642 = vadd.f32 %v7640, %v7641
    %v7643 = vsel %vm195, %v7577, 0.0
    %v7644 = vadd.f32 %v7642, %v7643
    %v7645 = vsel %vm195, %v7578, 0.0
    %v7646 = vadd.f32 %v7644, %v7645
    %v7647 = vsel %vm195, %v7579, 0.0
    %v7648 = vadd.f32 %v7646, %v7647
    %v7649 = vsel %vm195, %v7580, 0.0
    %v7650 = vadd.f32 %v7648, %v7649
    %v7651 = vsel %vm195, %v7581, 0.0
    %v7652 = vadd.f32 %v7650, %v7651
    %v7653 = vsel %vm195, %v7582, 0.0
    %v7654 = vadd.f32 %v7652, %v7653
    %v7655 = vsel %vm195, %v7583, 0.0
    %v7656 = vadd.f32 %v7654, %v7655
    %v7657 = vsel %vm195, %v7584, 0.0
    %v7658 = vadd.f32 %v7656, %v7657
    %v7659 = vsel %vm195, %v7585, 0.0
    %v7660 = vadd.f32 %v7658, %v7659
    %v7661 = vsel %vm195, %v7586, 0.0
    %v7662 = vadd.f32 %v7660, %v7661
    %v7663 = vsel %vm195, %v7587, 0.0
    %v7664 = vadd.f32 %v7662, %v7663
    %v7665 = vsel %vm195, %v7588, 0.0
    %v7666 = vadd.f32 %v7664, %v7665
    %v7667 = vsel %vm195, %v7589, 0.0
    %v7668 = vadd.f32 %v7666, %v7667
    %v7669 = vsel %vm195, %v7590, 0.0
    %v7670 = vadd.f32 %v7668, %v7669
    %v7671 = vsel %vm195, %v7591, 0.0
    %v7672 = vadd.f32 %v7670, %v7671
    %v7673 = vsel %vm195, %v7592, 0.0
    %v7674 = vadd.f32 %v7672, %v7673
    %v7675 = vsel %vm195, %v7593, 0.0
    %v7676 = vadd.f32 %v7674, %v7675
    %v7677 = vsel %vm195, %v7594, 0.0
    %v7678 = vadd.f32 %v7676, %v7677
    %v7679 = vsel %vm195, %v7595, 0.0
    %v7680 = vadd.f32 %v7678, %v7679
    %v7681 = vsel %vm195, %v7596, 0.0
    %v7682 = vadd.f32 %v7680, %v7681
    %v7683 = vsel %vm195, %v7597, 0.0
    %v7684 = vadd.f32 %v7682, %v7683
    %v7685 = vsel %vm195, %v7598, 0.0
    %v7686 = vadd.f32 %v7684, %v7685
    %v7687 = vsel %vm195, %v7599, 0.0
    %v7688 = vadd.f32 %v7686, %v7687
    %v7689 = vsel %vm195, %v7600, 0.0
    %v7690 = vadd.f32 %v7688, %v7689
    %v7691 = vsel %vm195, %v7601, 0.0
    %v7692 = vadd.f32 %v7690, %v7691
    %v7693 = vsel %vm195, %v7602, 0.0
    %v7694 = vadd.f32 %v7692, %v7693
    %v7695 = vsel %vm195, %v7603, 0.0
    %v7696 = vadd.f32 %v7694, %v7695
    %v7697 = vsel %vm195, %v7604, 0.0
    %v7698 = vadd.f32 %v7696, %v7697
    %v7699 = vsel %vm195, %v7605, 0.0
    %v7700 = vadd.f32 %v7698, %v7699
    %v7701 = vsel %vm195, %v7606, 0.0
    %v7702 = vadd.f32 %v7700, %v7701
    %v7703 = vsel %vm195, %v7607, 0.0
    %v7704 = vadd.f32 %v7702, %v7703
    %v7705 = vsel %vm195, %v7608, 0.0
    %v7706 = vadd.f32 %v7704, %v7705
    %v7707 = vsel %vm195, %v7609, 0.0
    %v7708 = vadd.f32 %v7706, %v7707
    %v7709 = vsel %vm195, %v7610, 0.0
    %v7710 = vadd.f32 %v7708, %v7709
    %v7711 = vsel %vm195, %v7611, 0.0
    %v7712 = vadd.f32 %v7710, %v7711
    %v7713 = vsel %vm195, %v7612, 0.0
    %v7714 = vadd.f32 %v7712, %v7713
    %v7715 = vsel %vm195, %v7613, 0.0
    %v7716 = vadd.f32 %v7714, %v7715
    %v7717 = vsel %vm195, %v7614, 0.0
    %v7718 = vadd.f32 %v7716, %v7717
    %v7719 = vsel %vm195, %v7615, 0.0
    %v7720 = vadd.f32 %v7718, %v7719
    %v7721 = vsel %vm195, %v7616, 0.0
    %v7722 = vadd.f32 %v7720, %v7721
    %v7723 = vsel %vm195, %v7617, 0.0
    %v7724 = vadd.f32 %v7722, %v7723
    %v7725 = vsel %vm195, %v7618, 0.0
    %v7726 = vadd.f32 %v7724, %v7725
    %v7727 = vsel %vm195, %v7619, 0.0
    %v7728 = vadd.f32 %v7726, %v7727
    %v7729 = vsel %vm195, %v7620, 0.0
    %v7730 = vadd.f32 %v7728, %v7729
    %v7731 = vsel %vm195, %v7621, 0.0
    %v7732 = vadd.f32 %v7730, %v7731
    %v7733 = vsel %vm195, %v7622, 0.0
    %v7734 = vadd.f32 %v7732, %v7733
    %v7735 = vsel %vm195, %v7623, 0.0
    %v7736 = vadd.f32 %v7734, %v7735
    %v7737 = vsel %vm195, %v7624, 0.0
    %v7738 = vadd.f32 %v7736, %v7737
    %v7739 = vsel %vm195, %v7625, 0.0
    %v7740 = vadd.f32 %v7738, %v7739
    %v7741 = vsel %vm195, %v7626, 0.0
    %v7742 = vadd.f32 %v7740, %v7741
    %v7743 = vsel %vm195, %v7627, 0.0
    %v7744 = vadd.f32 %v7742, %v7743
    %v7745 = vsel %vm195, %v7628, 0.0
    %v7746 = vadd.f32 %v7744, %v7745
    %v7747 = vsel %vm195, %v7629, 0.0
    %v7748 = vadd.f32 %v7746, %v7747
    %v7749 = vsel %vm195, %v7630, 0.0
    %v7750 = vadd.f32 %v7748, %v7749
    %v7751 = vsel %vm195, %v7631, 0.0
    %v7752 = vadd.f32 %v7750, %v7751
    %v7753 = vsel %vm195, %v7632, 0.0
    %v7754 = vadd.f32 %v7752, %v7753
    %v7755 = vsel %vm195, %v7633, 0.0
    %v7756 = vadd.f32 %v7754, %v7755
    %v7757 = vsel %vm195, %v7634, 0.0
    %v7758 = vadd.f32 %v7756, %v7757
    %v7759 = vsel %vm195, %v7635, 0.0
    %v7760 = vadd.f32 %v7758, %v7759
    %v7761 = vsel %vm195, %v7636, 0.0
    %v7762 = vadd.f32 %v7760, %v7761
    %v7763 = vsel %vm195, %v7637, 0.0
    %v7764 = vadd.f32 %v7762, %v7763
    %v7765 = vrot.slane %v7764, 4
    %v7766 = vadd.f32 %v7764, %v7765
    %v7767 = vrot.slane %v7766, 2
    %v7768 = vadd.f32 %v7766, %v7767
    %v7769 = vrot.slane %v7768, 1
    %v7770 = vadd.f32 %v7768, %v7769
    %v7771 = vmul.f32 %v7770, %v715
    %v7772 = vadd.f32 %v7771, 1e-05
    %v7773 = vrsqrt.pop %v7772
    %v7774 = vmul.f32 %v7510, %v7773
    %v7775 = vmul.f32 %v7511, %v7773
    %v7776 = vmul.f32 %v7512, %v7773
    %v7777 = vmul.f32 %v7513, %v7773
    %v7778 = vmul.f32 %v7514, %v7773
    %v7779 = vmul.f32 %v7515, %v7773
    %v7780 = vmul.f32 %v7516, %v7773
    %v7781 = vmul.f32 %v7517, %v7773
    %v7782 = vmul.f32 %v7518, %v7773
    %v7783 = vmul.f32 %v7519, %v7773
    %v7784 = vmul.f32 %v7520, %v7773
    %v7785 = vmul.f32 %v7521, %v7773
    %v7786 = vmul.f32 %v7522, %v7773
    %v7787 = vmul.f32 %v7523, %v7773
    %v7788 = vmul.f32 %v7524, %v7773
    %v7789 = vmul.f32 %v7525, %v7773
    %v7790 = vmul.f32 %v7526, %v7773
    %v7791 = vmul.f32 %v7527, %v7773
    %v7792 = vmul.f32 %v7528, %v7773
    %v7793 = vmul.f32 %v7529, %v7773
    %v7794 = vmul.f32 %v7530, %v7773
    %v7795 = vmul.f32 %v7531, %v7773
    %v7796 = vmul.f32 %v7532, %v7773
    %v7797 = vmul.f32 %v7533, %v7773
    %v7798 = vmul.f32 %v7534, %v7773
    %v7799 = vmul.f32 %v7535, %v7773
    %v7800 = vmul.f32 %v7536, %v7773
    %v7801 = vmul.f32 %v7537, %v7773
    %v7802 = vmul.f32 %v7538, %v7773
    %v7803 = vmul.f32 %v7539, %v7773
    %v7804 = vmul.f32 %v7540, %v7773
    %v7805 = vmul.f32 %v7541, %v7773
    %v7806 = vmul.f32 %v7542, %v7773
    %v7807 = vmul.f32 %v7543, %v7773
    %v7808 = vmul.f32 %v7544, %v7773
    %v7809 = vmul.f32 %v7545, %v7773
    %v7810 = vmul.f32 %v7546, %v7773
    %v7811 = vmul.f32 %v7547, %v7773
    %v7812 = vmul.f32 %v7548, %v7773
    %v7813 = vmul.f32 %v7549, %v7773
    %v7814 = vmul.f32 %v7550, %v7773
    %v7815 = vmul.f32 %v7551, %v7773
    %v7816 = vmul.f32 %v7552, %v7773
    %v7817 = vmul.f32 %v7553, %v7773
    %v7818 = vmul.f32 %v7554, %v7773
    %v7819 = vmul.f32 %v7555, %v7773
    %v7820 = vmul.f32 %v7556, %v7773
    %v7821 = vmul.f32 %v7557, %v7773
    %v7822 = vmul.f32 %v7558, %v7773
    %v7823 = vmul.f32 %v7559, %v7773
    %v7824 = vmul.f32 %v7560, %v7773
    %v7825 = vmul.f32 %v7561, %v7773
    %v7826 = vmul.f32 %v7562, %v7773
    %v7827 = vmul.f32 %v7563, %v7773
    %v7828 = vmul.f32 %v7564, %v7773
    %v7829 = vmul.f32 %v7565, %v7773
    %v7830 = vmul.f32 %v7566, %v7773
    %v7831 = vmul.f32 %v7567, %v7773
    %v7832 = vmul.f32 %v7568, %v7773
    %v7833 = vmul.f32 %v7569, %v7773
    %v7834 = vmul.f32 %v7570, %v7773
    %v7835 = vmul.f32 %v7571, %v7773
    %v7836 = vmul.f32 %v7572, %v7773
    %v7837 = vmul.f32 %v7573, %v7773
    %v7839 = vlaneseq
    %v7840 = vshrl.u32 %v7839, 7
    %v7841 = vsub.s32 0, %v7840
    %v7842 = vrot.slane %v6285, %v7841
    %v7844 = vmul.f32 %v7774, %v7842
    %v7845 = vmul.f32 %v7775, %v7842
    %v7846 = vmul.f32 %v7776, %v7842
    %v7847 = vmul.f32 %v7777, %v7842
    %v7848 = vmul.f32 %v7778, %v7842
    %v7849 = vmul.f32 %v7779, %v7842
    %v7850 = vmul.f32 %v7780, %v7842
    %v7851 = vmul.f32 %v7781, %v7842
    %v7852 = vmul.f32 %v7782, %v7842
    %v7853 = vmul.f32 %v7783, %v7842
    %v7854 = vmul.f32 %v7784, %v7842
    %v7855 = vmul.f32 %v7785, %v7842
    %v7856 = vmul.f32 %v7786, %v7842
    %v7857 = vmul.f32 %v7787, %v7842
    %v7858 = vmul.f32 %v7788, %v7842
    %v7859 = vmul.f32 %v7789, %v7842
    %v7860 = vmul.f32 %v7790, %v7842
    %v7861 = vmul.f32 %v7791, %v7842
    %v7862 = vmul.f32 %v7792, %v7842
    %v7863 = vmul.f32 %v7793, %v7842
    %v7864 = vmul.f32 %v7794, %v7842
    %v7865 = vmul.f32 %v7795, %v7842
    %v7866 = vmul.f32 %v7796, %v7842
    %v7867 = vmul.f32 %v7797, %v7842
    %v7868 = vmul.f32 %v7798, %v7842
    %v7869 = vmul.f32 %v7799, %v7842
    %v7870 = vmul.f32 %v7800, %v7842
    %v7871 = vmul.f32 %v7801, %v7842
    %v7872 = vmul.f32 %v7802, %v7842
    %v7873 = vmul.f32 %v7803, %v7842
    %v7874 = vmul.f32 %v7804, %v7842
    %v7875 = vmul.f32 %v7805, %v7842
    %v7876 = vmul.f32 %v7806, %v7842
    %v7877 = vmul.f32 %v7807, %v7842
    %v7878 = vmul.f32 %v7808, %v7842
    %v7879 = vmul.f32 %v7809, %v7842
    %v7880 = vmul.f32 %v7810, %v7842
    %v7881 = vmul.f32 %v7811, %v7842
    %v7882 = vmul.f32 %v7812, %v7842
    %v7883 = vmul.f32 %v7813, %v7842
    %v7884 = vmul.f32 %v7814, %v7842
    %v7885 = vmul.f32 %v7815, %v7842
    %v7886 = vmul.f32 %v7816, %v7842
    %v7887 = vmul.f32 %v7817, %v7842
    %v7888 = vmul.f32 %v7818, %v7842
    %v7889 = vmul.f32 %v7819, %v7842
    %v7890 = vmul.f32 %v7820, %v7842
    %v7891 = vmul.f32 %v7821, %v7842
    %v7892 = vmul.f32 %v7822, %v7842
    %v7893 = vmul.f32 %v7823, %v7842
    %v7894 = vmul.f32 %v7824, %v7842
    %v7895 = vmul.f32 %v7825, %v7842
    %v7896 = vmul.f32 %v7826, %v7842
    %v7897 = vmul.f32 %v7827, %v7842
    %v7898 = vmul.f32 %v7828, %v7842
    %v7899 = vmul.f32 %v7829, %v7842
    %v7900 = vmul.f32 %v7830, %v7842
    %v7901 = vmul.f32 %v7831, %v7842
    %v7902 = vmul.f32 %v7832, %v7842
    %v7903 = vmul.f32 %v7833, %v7842
    %v7904 = vmul.f32 %v7834, %v7842
    %v7905 = vmul.f32 %v7835, %v7842
    %v7906 = vmul.f32 %v7836, %v7842
    %v7907 = vmul.f32 %v7837, %v7842
    %v7909 = vlaneseq
    %v7910 = vshrl.u32 %v7909, 7
    %v7911 = vsub.s32 0, %v7910
    %v7912 = vrot.slane %v6286, %v7911
    %v7914 = vadd.f32 %v7844, %v7912
    %v7915 = vadd.f32 %v7845, %v7912
    %v7916 = vadd.f32 %v7846, %v7912
    %v7917 = vadd.f32 %v7847, %v7912
    %v7918 = vadd.f32 %v7848, %v7912
    %v7919 = vadd.f32 %v7849, %v7912
    %v7920 = vadd.f32 %v7850, %v7912
    %v7921 = vadd.f32 %v7851, %v7912
    %v7922 = vadd.f32 %v7852, %v7912
    %v7923 = vadd.f32 %v7853, %v7912
    %v7924 = vadd.f32 %v7854, %v7912
    %v7925 = vadd.f32 %v7855, %v7912
    %v7926 = vadd.f32 %v7856, %v7912
    %v7927 = vadd.f32 %v7857, %v7912
    %v7928 = vadd.f32 %v7858, %v7912
    %v7929 = vadd.f32 %v7859, %v7912
    %v7930 = vadd.f32 %v7860, %v7912
    %v7931 = vadd.f32 %v7861, %v7912
    %v7932 = vadd.f32 %v7862, %v7912
    %v7933 = vadd.f32 %v7863, %v7912
    %v7934 = vadd.f32 %v7864, %v7912
    %v7935 = vadd.f32 %v7865, %v7912
    %v7936 = vadd.f32 %v7866, %v7912
    %v7937 = vadd.f32 %v7867, %v7912
    %v7938 = vadd.f32 %v7868, %v7912
    %v7939 = vadd.f32 %v7869, %v7912
    %v7940 = vadd.f32 %v7870, %v7912
    %v7941 = vadd.f32 %v7871, %v7912
    %v7942 = vadd.f32 %v7872, %v7912
    %v7943 = vadd.f32 %v7873, %v7912
    %v7944 = vadd.f32 %v7874, %v7912
    %v7945 = vadd.f32 %v7875, %v7912
    %v7946 = vadd.f32 %v7876, %v7912
    %v7947 = vadd.f32 %v7877, %v7912
    %v7948 = vadd.f32 %v7878, %v7912
    %v7949 = vadd.f32 %v7879, %v7912
    %v7950 = vadd.f32 %v7880, %v7912
    %v7951 = vadd.f32 %v7881, %v7912
    %v7952 = vadd.f32 %v7882, %v7912
    %v7953 = vadd.f32 %v7883, %v7912
    %v7954 = vadd.f32 %v7884, %v7912
    %v7955 = vadd.f32 %v7885, %v7912
    %v7956 = vadd.f32 %v7886, %v7912
    %v7957 = vadd.f32 %v7887, %v7912
    %v7958 = vadd.f32 %v7888, %v7912
    %v7959 = vadd.f32 %v7889, %v7912
    %v7960 = vadd.f32 %v7890, %v7912
    %v7961 = vadd.f32 %v7891, %v7912
    %v7962 = vadd.f32 %v7892, %v7912
    %v7963 = vadd.f32 %v7893, %v7912
    %v7964 = vadd.f32 %v7894, %v7912
    %v7965 = vadd.f32 %v7895, %v7912
    %v7966 = vadd.f32 %v7896, %v7912
    %v7967 = vadd.f32 %v7897, %v7912
    %v7968 = vadd.f32 %v7898, %v7912
    %v7969 = vadd.f32 %v7899, %v7912
    %v7970 = vadd.f32 %v7900, %v7912
    %v7971 = vadd.f32 %v7901, %v7912
    %v7972 = vadd.f32 %v7902, %v7912
    %v7973 = vadd.f32 %v7903, %v7912
    %v7974 = vadd.f32 %v7904, %v7912
    %v7975 = vadd.f32 %v7905, %v7912
    %v7976 = vadd.f32 %v7906, %v7912
    %v7977 = vadd.f32 %v7907, %v7912
    %v7978 = vadd.f32 %v7914, %v65
    %v7979 = vadd.f32 %v7915, %v66
    %v7980 = vadd.f32 %v7916, %v67
    %v7981 = vadd.f32 %v7917, %v68
    %v7982 = vadd.f32 %v7918, %v69
    %v7983 = vadd.f32 %v7919, %v70
    %v7984 = vadd.f32 %v7920, %v71
    %v7985 = vadd.f32 %v7921, %v72
    %v7986 = vadd.f32 %v7922, %v73
    %v7987 = vadd.f32 %v7923, %v74
    %v7988 = vadd.f32 %v7924, %v75
    %v7989 = vadd.f32 %v7925, %v76
    %v7990 = vadd.f32 %v7926, %v77
    %v7991 = vadd.f32 %v7927, %v78
    %v7992 = vadd.f32 %v7928, %v79
    %v7993 = vadd.f32 %v7929, %v80
    %v7994 = vadd.f32 %v7930, %v81
    %v7995 = vadd.f32 %v7931, %v82
    %v7996 = vadd.f32 %v7932, %v83
    %v7997 = vadd.f32 %v7933, %v84
    %v7998 = vadd.f32 %v7934, %v85
    %v7999 = vadd.f32 %v7935, %v86
    %v8000 = vadd.f32 %v7936, %v87
    %v8001 = vadd.f32 %v7937, %v88
    %v8002 = vadd.f32 %v7938, %v89
    %v8003 = vadd.f32 %v7939, %v90
    %v8004 = vadd.f32 %v7940, %v91
    %v8005 = vadd.f32 %v7941, %v92
    %v8006 = vadd.f32 %v7942, %v93
    %v8007 = vadd.f32 %v7943, %v94
    %v8008 = vadd.f32 %v7944, %v95
    %v8009 = vadd.f32 %v7945, %v96
    %v8010 = vadd.f32 %v7946, %v97
    %v8011 = vadd.f32 %v7947, %v98
    %v8012 = vadd.f32 %v7948, %v99
    %v8013 = vadd.f32 %v7949, %v100
    %v8014 = vadd.f32 %v7950, %v101
    %v8015 = vadd.f32 %v7951, %v102
    %v8016 = vadd.f32 %v7952, %v103
    %v8017 = vadd.f32 %v7953, %v104
    %v8018 = vadd.f32 %v7954, %v105
    %v8019 = vadd.f32 %v7955, %v106
    %v8020 = vadd.f32 %v7956, %v107
    %v8021 = vadd.f32 %v7957, %v108
    %v8022 = vadd.f32 %v7958, %v109
    %v8023 = vadd.f32 %v7959, %v110
    %v8024 = vadd.f32 %v7960, %v111
    %v8025 = vadd.f32 %v7961, %v112
    %v8026 = vadd.f32 %v7962, %v113
    %v8027 = vadd.f32 %v7963, %v114
    %v8028 = vadd.f32 %v7964, %v115
    %v8029 = vadd.f32 %v7965, %v116
    %v8030 = vadd.f32 %v7966, %v117
    %v8031 = vadd.f32 %v7967, %v118
    %v8032 = vadd.f32 %v7968, %v119
    %v8033 = vadd.f32 %v7969, %v120
    %v8034 = vadd.f32 %v7970, %v121
    %v8035 = vadd.f32 %v7971, %v122
    %v8036 = vadd.f32 %v7972, %v123
    %v8037 = vadd.f32 %v7973, %v124
    %v8038 = vadd.f32 %v7974, %v125
    %v8039 = vadd.f32 %v7975, %v126
    %v8040 = vadd.f32 %v7976, %v127
    %v8041 = vadd.f32 %v7977, %v128
    %v8042 = vmax.f32 %v7978, 0.0
    %v8043 = vmax.f32 %v7979, 0.0
    %v8044 = vmax.f32 %v7980, 0.0
    %v8045 = vmax.f32 %v7981, 0.0
    %v8046 = vmax.f32 %v7982, 0.0
    %v8047 = vmax.f32 %v7983, 0.0
    %v8048 = vmax.f32 %v7984, 0.0
    %v8049 = vmax.f32 %v7985, 0.0
    %v8050 = vmax.f32 %v7986, 0.0
    %v8051 = vmax.f32 %v7987, 0.0
    %v8052 = vmax.f32 %v7988, 0.0
    %v8053 = vmax.f32 %v7989, 0.0
    %v8054 = vmax.f32 %v7990, 0.0
    %v8055 = vmax.f32 %v7991, 0.0
    %v8056 = vmax.f32 %v7992, 0.0
    %v8057 = vmax.f32 %v7993, 0.0
    %v8058 = vmax.f32 %v7994, 0.0
    %v8059 = vmax.f32 %v7995, 0.0
    %v8060 = vmax.f32 %v7996, 0.0
    %v8061 = vmax.f32 %v7997, 0.0
    %v8062 = vmax.f32 %v7998, 0.0
    %v8063 = vmax.f32 %v7999, 0.0
    %v8064 = vmax.f32 %v8000, 0.0
    %v8065 = vmax.f32 %v8001, 0.0
    %v8066 = vmax.f32 %v8002, 0.0
    %v8067 = vmax.f32 %v8003, 0.0
    %v8068 = vmax.f32 %v8004, 0.0
    %v8069 = vmax.f32 %v8005, 0.0
    %v8070 = vmax.f32 %v8006, 0.0
    %v8071 = vmax.f32 %v8007, 0.0
    %v8072 = vmax.f32 %v8008, 0.0
    %v8073 = vmax.f32 %v8009, 0.0
    %v8074 = vmax.f32 %v8010, 0.0
    %v8075 = vmax.f32 %v8011, 0.0
    %v8076 = vmax.f32 %v8012, 0.0
    %v8077 = vmax.f32 %v8013, 0.0
    %v8078 = vmax.f32 %v8014, 0.0
    %v8079 = vmax.f32 %v8015, 0.0
    %v8080 = vmax.f32 %v8016, 0.0
    %v8081 = vmax.f32 %v8017, 0.0
    %v8082 = vmax.f32 %v8018, 0.0
    %v8083 = vmax.f32 %v8019, 0.0
    %v8084 = vmax.f32 %v8020, 0.0
    %v8085 = vmax.f32 %v8021, 0.0
    %v8086 = vmax.f32 %v8022, 0.0
    %v8087 = vmax.f32 %v8023, 0.0
    %v8088 = vmax.f32 %v8024, 0.0
    %v8089 = vmax.f32 %v8025, 0.0
    %v8090 = vmax.f32 %v8026, 0.0
    %v8091 = vmax.f32 %v8027, 0.0
    %v8092 = vmax.f32 %v8028, 0.0
    %v8093 = vmax.f32 %v8029, 0.0
    %v8094 = vmax.f32 %v8030, 0.0
    %v8095 = vmax.f32 %v8031, 0.0
    %v8096 = vmax.f32 %v8032, 0.0
    %v8097 = vmax.f32 %v8033, 0.0
    %v8098 = vmax.f32 %v8034, 0.0
    %v8099 = vmax.f32 %v8035, 0.0
    %v8100 = vmax.f32 %v8036, 0.0
    %v8101 = vmax.f32 %v8037, 0.0
    %v8102 = vmax.f32 %v8038, 0.0
    %v8103 = vmax.f32 %v8039, 0.0
    %v8104 = vmax.f32 %v8040, 0.0
    %v8105 = vmax.f32 %v8041, 0.0
    %8106 = vst.msk [vmem:[#allocation8] sm:$0xff] %vm195, %v8042
    %8107 = vst.msk [vmem:[#allocation8 + $0x8] sm:$0xff] %vm195, %v8043
    %8108 = vst.msk [vmem:[#allocation8 + $0x10] sm:$0xff] %vm195, %v8044
    %8109 = vst.msk [vmem:[#allocation8 + $0x18] sm:$0xff] %vm195, %v8045
    %8110 = vst.msk [vmem:[#allocation8 + $0x20] sm:$0xff] %vm195, %v8046
    %8111 = vst.msk [vmem:[#allocation8 + $0x28] sm:$0xff] %vm195, %v8047
    %8112 = vst.msk [vmem:[#allocation8 + $0x30] sm:$0xff] %vm195, %v8048
    %8113 = vst.msk [vmem:[#allocation8 + $0x38] sm:$0xff] %vm195, %v8049
    %8114 = vst.msk [vmem:[#allocation8 + $0x40] sm:$0xff] %vm195, %v8050
    %8115 = vst.msk [vmem:[#allocation8 + $0x48] sm:$0xff] %vm195, %v8051
    %8116 = vst.msk [vmem:[#allocation8 + $0x50] sm:$0xff] %vm195, %v8052
    %8117 = vst.msk [vmem:[#allocation8 + $0x58] sm:$0xff] %vm195, %v8053
    %8118 = vst.msk [vmem:[#allocation8 + $0x60] sm:$0xff] %vm195, %v8054
    %8119 = vst.msk [vmem:[#allocation8 + $0x68] sm:$0xff] %vm195, %v8055
    %8120 = vst.msk [vmem:[#allocation8 + $0x70] sm:$0xff] %vm195, %v8056
    %8121 = vst.msk [vmem:[#allocation8 + $0x78] sm:$0xff] %vm195, %v8057
    %8122 = vst.msk [vmem:[#allocation8 + $0x80] sm:$0xff] %vm195, %v8058
    %8123 = vst.msk [vmem:[#allocation8 + $0x88] sm:$0xff] %vm195, %v8059
    %8124 = vst.msk [vmem:[#allocation8 + $0x90] sm:$0xff] %vm195, %v8060
    %8125 = vst.msk [vmem:[#allocation8 + $0x98] sm:$0xff] %vm195, %v8061
    %8126 = vst.msk [vmem:[#allocation8 + $0xa0] sm:$0xff] %vm195, %v8062
    %8127 = vst.msk [vmem:[#allocation8 + $0xa8] sm:$0xff] %vm195, %v8063
    %8128 = vst.msk [vmem:[#allocation8 + $0xb0] sm:$0xff] %vm195, %v8064
    %8129 = vst.msk [vmem:[#allocation8 + $0xb8] sm:$0xff] %vm195, %v8065
    %8130 = vst.msk [vmem:[#allocation8 + $0xc0] sm:$0xff] %vm195, %v8066
    %8131 = vst.msk [vmem:[#allocation8 + $0xc8] sm:$0xff] %vm195, %v8067
    %8132 = vst.msk [vmem:[#allocation8 + $0xd0] sm:$0xff] %vm195, %v8068
    %8133 = vst.msk [vmem:[#allocation8 + $0xd8] sm:$0xff] %vm195, %v8069
    %8134 = vst.msk [vmem:[#allocation8 + $0xe0] sm:$0xff] %vm195, %v8070
    %8135 = vst.msk [vmem:[#allocation8 + $0xe8] sm:$0xff] %vm195, %v8071
    %8136 = vst.msk [vmem:[#allocation8 + $0xf0] sm:$0xff] %vm195, %v8072
    %8137 = vst.msk [vmem:[#allocation8 + $0xf8] sm:$0xff] %vm195, %v8073
    %8138 = vst.msk [vmem:[#allocation8 + $0x100] sm:$0xff] %vm195, %v8074
    %8139 = vst.msk [vmem:[#allocation8 + $0x108] sm:$0xff] %vm195, %v8075
    %8140 = vst.msk [vmem:[#allocation8 + $0x110] sm:$0xff] %vm195, %v8076
    %8141 = vst.msk [vmem:[#allocation8 + $0x118] sm:$0xff] %vm195, %v8077
    %8142 = vst.msk [vmem:[#allocation8 + $0x120] sm:$0xff] %vm195, %v8078
    %8143 = vst.msk [vmem:[#allocation8 + $0x128] sm:$0xff] %vm195, %v8079
    %8144 = vst.msk [vmem:[#allocation8 + $0x130] sm:$0xff] %vm195, %v8080
    %8145 = vst.msk [vmem:[#allocation8 + $0x138] sm:$0xff] %vm195, %v8081
    %8146 = vst.msk [vmem:[#allocation8 + $0x140] sm:$0xff] %vm195, %v8082
    %8147 = vst.msk [vmem:[#allocation8 + $0x148] sm:$0xff] %vm195, %v8083
    %8148 = vst.msk [vmem:[#allocation8 + $0x150] sm:$0xff] %vm195, %v8084
    %8149 = vst.msk [vmem:[#allocation8 + $0x158] sm:$0xff] %vm195, %v8085
    %8150 = vst.msk [vmem:[#allocation8 + $0x160] sm:$0xff] %vm195, %v8086
    %8151 = vst.msk [vmem:[#allocation8 + $0x168] sm:$0xff] %vm195, %v8087
    %8152 = vst.msk [vmem:[#allocation8 + $0x170] sm:$0xff] %vm195, %v8088
    %8153 = vst.msk [vmem:[#allocation8 + $0x178] sm:$0xff] %vm195, %v8089
    %8154 = vst.msk [vmem:[#allocation8 + $0x180] sm:$0xff] %vm195, %v8090
    %8155 = vst.msk [vmem:[#allocation8 + $0x188] sm:$0xff] %vm195, %v8091
    %8156 = vst.msk [vmem:[#allocation8 + $0x190] sm:$0xff] %vm195, %v8092
    %8157 = vst.msk [vmem:[#allocation8 + $0x198] sm:$0xff] %vm195, %v8093
    %8158 = vst.msk [vmem:[#allocation8 + $0x1a0] sm:$0xff] %vm195, %v8094
    %8159 = vst.msk [vmem:[#allocation8 + $0x1a8] sm:$0xff] %vm195, %v8095
    %8160 = vst.msk [vmem:[#allocation8 + $0x1b0] sm:$0xff] %vm195, %v8096
    %8161 = vst.msk [vmem:[#allocation8 + $0x1b8] sm:$0xff] %vm195, %v8097
    %8162 = vst.msk [vmem:[#allocation8 + $0x1c0] sm:$0xff] %vm195, %v8098
    %8163 = vst.msk [vmem:[#allocation8 + $0x1c8] sm:$0xff] %vm195, %v8099
    %8164 = vst.msk [vmem:[#allocation8 + $0x1d0] sm:$0xff] %vm195, %v8100
    %8165 = vst.msk [vmem:[#allocation8 + $0x1d8] sm:$0xff] %vm195, %v8101
    %8166 = vst.msk [vmem:[#allocation8 + $0x1e0] sm:$0xff] %vm195, %v8102
    %8167 = vst.msk [vmem:[#allocation8 + $0x1e8] sm:$0xff] %vm195, %v8103
    %8168 = vst.msk [vmem:[#allocation8 + $0x1f0] sm:$0xff] %vm195, %v8104
    %8169 = vst.msk [vmem:[#allocation8 + $0x1f8] sm:$0xff] %vm195, %v8105
    // Predicated region
    $region50: #{_lambda_.1} parent=1 // pred_check
      _
    $region51: #{_lambda_.1} parent=1 // pred_check_branch
      %8171 = sbr.rel (0) target = $region53
    $region52: #{_lambda_.1} parent=1 // pred_region
      %s8173 = ssub.s32 8192, 8192
      %8174 = vsyncadd [#allocation5], %s8173
      %s8175 = sshll.u32 [#allocation8], 4
      %s8176 = int_to_ptr.vmem [resolvable:$true] %s8175
      %8181 = dma.vmem_to_hbm [thread:$0]  %s8176, 8192, %s10, [#allocation5], 128, 128, 8
    $region53: #{_lambda_.1} parent=1 // pred_fallthru
      _
    // Predicated region
    $region54: #{_lambda_.1} parent=1 // pred_check
      _
    $region55: #{_lambda_.1} parent=1 // pred_check_branch
      %8183 = sbr.rel (0) target = $region57
    $region56: #{_lambda_.1} parent=1 // pred_region
      %8184 = dma.done [#allocation5], 8192
    $region57: #{_lambda_.1} parent=1 // pred_fallthru
      _
    %8185 = vsyncpa [#allocation4], 1
    %8186 = vsyncpa [#allocation7], 1
    %8187 = vsyncpa [#allocation5], 1

</llo_original>
